<compile_context>
chip_gen: v7x
topology: tpu7x:2x2x1
jax: 0.10.0
libtpu: 0.0.40
codegen_flags: <defaults>
</compile_context>

<pallas_src>
import functools

import jax
import jax.numpy as jnp
from jax.experimental import pallas as pl
from jax.experimental.pallas import tpu as pltpu


def _self_attention_kernel(x_ref, w_q_ref, w_k_ref, w_v_ref, w_p_ref, b_p_ref,
                           o_ref, k_scr, v_scr, *, scale, num_heads, q_tile,
                           kv_tile):
    # Per grid step (b, qi):
    #   x_ref  : (1, N, C) bf16   full sequence of batch element b
    #   w_q/k/v: (C, C)    bf16   projection weights (qkv.weight^T slices)
    #   w_p    : (C, C)    bf16   output projection (proj.weight^T)
    #   b_p    : (1, C)    f32    output projection bias
    #   o_ref  : (1, TQ, C)       output tile
    #   k_scr/v_scr: (H, N, D) bf16  full-sequence K/V for batch element b
    H = num_heads
    N, C = x_ref.shape[1], x_ref.shape[2]
    D = C // H
    TQ, TK = q_tile, kv_tile
    NK = N // TK
    qi = pl.program_id(1)

    # ---- K/V projection: once per batch element, reused by every query tile.
    #      (Relies on qi iterating sequentially -> qi axis must stay "arbitrary".)
    @pl.when(qi == 0)
    def _():
        x_full = x_ref[0]                                              # (N, C)
        k_flat = jnp.dot(x_full, w_k_ref[...],
                         preferred_element_type=jnp.float32)           # (N, C)
        v_flat = jnp.dot(x_full, w_v_ref[...],
                         preferred_element_type=jnp.float32)           # (N, C)
        k_flat = k_flat.astype(k_scr.dtype)
        v_flat = v_flat.astype(v_scr.dtype)
        # Head split via static lane slices (pure re-tiling when D % 128 == 0).
        k_scr[...] = jnp.stack(
            [k_flat[:, h * D:(h + 1) * D] for h in range(H)], axis=0)  # (H,N,D)
        v_scr[...] = jnp.stack(
            [v_flat[:, h * D:(h + 1) * D] for h in range(H)], axis=0)  # (H,N,D)

    # ---- Q projection for this query tile: one full-width (TQ,C)x(C,C) GEMM.
    xq = x_ref[0, pl.ds(pl.multiple_of(qi * TQ, TQ), TQ), :]           # (TQ, C)
    q_flat = jnp.dot(xq, w_q_ref[...],
                     preferred_element_type=jnp.float32)               # (TQ, C)
    # Fold the softmax scale into q: O(TQ*C) VPU work instead of O(H*TQ*N).
    q_flat = (q_flat * scale).astype(jnp.bfloat16)
    q = jnp.stack([q_flat[:, h * D:(h + 1) * D] for h in range(H)], axis=0)
    # q: (H, TQ, D) bf16

    # ---- Online (flash-style) softmax over KV tiles: live score block is
    #      (H, TQ, TK), never (H, TQ, N).
    def kv_step(t, carry):
        m, l, acc = carry
        off = pl.multiple_of(t * TK, TK)
        kb = k_scr[:, pl.ds(off, TK), :]                               # (H,TK,D)
        vb = v_scr[:, pl.ds(off, TK), :]                               # (H,TK,D)
        s = jax.lax.dot_general(q, kb, (((2,), (2,)), ((0,), (0,))),
                                preferred_element_type=jnp.float32)    # (H,TQ,TK)
        m_new = jnp.maximum(m, jnp.max(s, axis=-1, keepdims=True))
        alpha = jnp.exp(m - m_new)
        p = jnp.exp(s - m_new)
        l_new = alpha * l + jnp.sum(p, axis=-1, keepdims=True)
        acc_new = alpha * acc + jax.lax.dot_general(
            p.astype(jnp.bfloat16), vb, (((2,), (1,)), ((0,), (0,))),
            preferred_element_type=jnp.float32)                        # (H,TQ,D)
        return m_new, l_new, acc_new

    m0 = jnp.full((H, TQ, 1), -jnp.inf, dtype=jnp.float32)
    l0 = jnp.zeros((H, TQ, 1), dtype=jnp.float32)
    acc0 = jnp.zeros((H, TQ, D), dtype=jnp.float32)
    _, l, acc = jax.lax.fori_loop(0, NK, kv_step, (m0, l0, acc0))

    # attn_drop / proj_drop (dropout_rate = 0.0) -> identity.
    # approx=True reciprocal (EUP slot) adds ~1e-3 relative error.
    ctx = (acc * pl.reciprocal(l, approx=True)).astype(jnp.bfloat16)   # (H,TQ,D)

    # ---- Fused head-concat + output projection: one full-width (C x C) GEMM,
    #      no (H, TQ, C) intermediate, no cross-head sum.
    ctx_flat = jnp.concatenate([ctx[h] for h in range(H)], axis=-1)    # (TQ, C)
    out = jnp.dot(ctx_flat, w_p_ref[...],
                  preferred_element_type=jnp.float32) + b_p_ref[...]   # (TQ, C)
    o_ref[0] = out.astype(o_ref.dtype)   # lane-dense store (C multiple of 128)


def _pick_tile(n, cap):
    """Largest divisor of n that is <= cap and a multiple of 8 (or n itself)."""
    cap = max(1, min(cap, n))
    for t in range(cap, 0, -1):
        if n % t == 0 and (t % 8 == 0 or t == n):
            return t
    return n


def self_attention(x, w_qkv, w_proj, b_proj, *, num_heads, q_tile=128,
                   kv_tile=512, vmem_limit_bytes=56 * 1024 * 1024):
    """x: (B, N, C); w_qkv: (C, 3C) (= qkv.weight^T, no qkv bias);
    w_proj: (C, C) (= proj.weight^T); b_proj: (C,)."""
    B, N, C = x.shape
    H = num_heads
    assert C % H == 0, "dim must be divisible by heads"
    D = C // H
    scale = D ** (-0.5)

    TQ = _pick_tile(N, q_tile)
    TK = _pick_tile(N, kv_tile)
    NQ = N // TQ

    cdt = jnp.bfloat16            # MXU input dtype; accumulation stays f32
    xc = x.astype(cdt)
    # One-time weight slicing (plain XLA, outside the kernel); weights stay in
    # their natural (C, C) orientation.
    w_q = w_qkv[:, 0 * C:1 * C].astype(cdt)
    w_k = w_qkv[:, 1 * C:2 * C].astype(cdt)
    w_v = w_qkv[:, 2 * C:3 * C].astype(cdt)
    w_p = w_proj.astype(cdt)
    b_p = b_proj.reshape(1, C).astype(jnp.float32)

    kernel = functools.partial(_self_attention_kernel, scale=scale,
                               num_heads=H, q_tile=TQ, kv_tile=TK)

    def build(single_buffer_weights):
        # Constant-index weight/bias blocks: single-buffer them (double
        # buffering constants only wastes VMEM, critical on v7x's 64 MiB).
        kw = dict(pipeline_mode=pl.Buffered(1)) if single_buffer_weights else {}
        w_spec = pl.BlockSpec((C, C), lambda b, qi: (0, 0), **kw)
        b_spec = pl.BlockSpec((1, C), lambda b, qi: (0, 0), **kw)
        return pl.pallas_call(
            kernel,
            out_shape=jax.ShapeDtypeStruct((B, N, C), x.dtype),
            grid_spec=pltpu.PrefetchScalarGridSpec(
                num_scalar_prefetch=0,
                grid=(B, NQ),
                in_specs=[
                    # Single x input: full sequence per batch element; the
                    # query tile is sliced out of it inside the kernel.
                    pl.BlockSpec((1, N, C), lambda b, qi: (b, 0, 0)),
                    w_spec, w_spec, w_spec, w_spec, b_spec,
                ],
                out_specs=pl.BlockSpec((1, TQ, C), lambda b, qi: (b, qi, 0)),
                scratch_shapes=[
                    pltpu.VMEM((H, N, D), cdt),   # K (full seq, current batch)
                    pltpu.VMEM((H, N, D), cdt),   # V
                ],
            ),
            compiler_params=pltpu.CompilerParams(
                # b: parallel (megacore; note B < 2 leaves a v7x core idle),
                # qi: MUST stay "arbitrary" for the K/V-scratch reuse.
                dimension_semantics=("parallel", "arbitrary"),
                vmem_limit_bytes=vmem_limit_bytes,
            ),
        )

    try:
        return build(True)(xc, w_q, w_k, w_v, w_p, b_p)
    except Exception:
        # pl.Buffered(1) not supported by this jax version -> fall back to the
        # default (double-buffered) pipelining; everything else is identical.
        return build(False)(xc, w_q, w_k, w_v, w_p, b_p)


def self_attention_ref(x, w_qkv, w_proj, b_proj, *, num_heads):
    """Pure-JAX f32 reference mirroring the PyTorch forward."""
    B, N, C = x.shape
    D = C // num_heads
    scale = D ** (-0.5)
    qkv = x @ w_qkv                                          # (B, N, 3C)
    qkv = qkv.reshape(B, N, 3, num_heads, D).transpose(2, 0, 3, 1, 4)
    q, k, v = qkv[0], qkv[1], qkv[2]                         # (B, H, N, D)
    attn = jnp.einsum("bhnd,bhmd->bhnm", q, k) * scale
    attn = jax.nn.softmax(attn, axis=-1)
    out = jnp.einsum("bhnm,bhmd->bhnd", attn, v)             # (B, H, N, D)
    out = out.transpose(0, 2, 1, 3).reshape(B, N, C)
    return out @ w_proj + b_proj


if __name__ == "__main__":
    # TPU-friendly small shapes (review item: C and D multiples of 128 so all
    # stores are lane-dense and all slices land on full lane tiles).
    B, N, C, H = 2, 256, 256, 2          # head_dim D = 128

    key = jax.random.PRNGKey(0)
    kx, kqkv, kproj, kb = jax.random.split(key, 4)

    x = jax.random.normal(kx, (B, N, C), dtype=jnp.float32)
    # Deterministic synthetic parameters (qkv_bias=False -> no qkv bias).
    w_qkv = 0.05 * jax.random.normal(kqkv, (C, 3 * C), dtype=jnp.float32)
    w_proj = 0.05 * jax.random.normal(kproj, (C, C), dtype=jnp.float32)
    b_proj = 0.05 * jax.random.normal(kb, (C,), dtype=jnp.float32)

    # q_tile=128 -> grid (B, 2): exercises K/V-scratch reuse across q tiles.
    # kv_tile=128 -> 2-step online-softmax loop: exercises the KV tiling path.
    out = self_attention(x, w_qkv, w_proj, b_proj, num_heads=H,
                         q_tile=128, kv_tile=128)
    out = jax.block_until_ready(out)

    ref = self_attention_ref(x, w_qkv, w_proj, b_proj, num_heads=H)
    assert out.shape == (B, N, C)
    # bf16 MXU inputs (f32 accumulation) + approx reciprocal -> loosen
    # tolerance vs. the f32 reference.
    assert jnp.allclose(out, ref, atol=2e-2, rtol=2e-2), "mismatch vs reference"

    print("KERNEL_OK")
</pallas_src>

<mosaic_0001>
module attributes {stable_mosaic.version = 11 : i64} {
  func.func @_self_attention_kernel(%arg0: i32, %arg1: i32, %arg2: memref<1x256x256xbf16, #tpu.memory_space<vmem>>, %arg3: memref<256x256xbf16, #tpu.memory_space<vmem>>, %arg4: memref<256x256xbf16, #tpu.memory_space<vmem>>, %arg5: memref<256x256xbf16, #tpu.memory_space<vmem>>, %arg6: memref<256x256xbf16, #tpu.memory_space<vmem>>, %arg7: memref<1x256xf32, #tpu.memory_space<vmem>>, %arg8: memref<1x128x256xf32, #tpu.memory_space<vmem>>, %arg9: memref<2x256x128xbf16, #tpu.memory_space<vmem>>, %arg10: memref<2x256x128xbf16, #tpu.memory_space<vmem>>) attributes {dimension_semantics = [#tpu.dimension_semantics<parallel>, #tpu.dimension_semantics<arbitrary>], iteration_bounds = array<i64: 2, 2>, scalar_prefetch = 0 : i64, scratch_operands = 2 : i64, tpu.core_type = #tpu.core_type<tc>, window_params = [{transform_indices = @transform_0, window_bounds = array<i64: 1, 256, 256>}, {pipeline_mode = #tpu.pipeline_mode<synchronous>, transform_indices = @transform_1, window_bounds = array<i64: 256, 256>}, {pipeline_mode = #tpu.pipeline_mode<synchronous>, transform_indices = @transform_2, window_bounds = array<i64: 256, 256>}, {pipeline_mode = #tpu.pipeline_mode<synchronous>, transform_indices = @transform_3, window_bounds = array<i64: 256, 256>}, {pipeline_mode = #tpu.pipeline_mode<synchronous>, transform_indices = @transform_4, window_bounds = array<i64: 256, 256>}, {pipeline_mode = #tpu.pipeline_mode<synchronous>, transform_indices = @transform_5, window_bounds = array<i64: 1, 256>}, {transform_indices = @transform_6, window_bounds = array<i64: 1, 128, 256>}]} {
    %c0_i32 = arith.constant 0 : i32
    %0 = arith.cmpi eq, %arg1, %c0_i32 : i32
    %1 = arith.extui %0 : i1 to i32
    %c0_i32_0 = arith.constant 0 : i32
    %2 = arith.cmpi ne, %1, %c0_i32_0 : i32
    scf.if %2 {
      %c0_18 = arith.constant 0 : index
      %c0_19 = arith.constant 0 : index
      %c0_20 = arith.constant 0 : index
      %40 = vector.load %arg2[%c0_18, %c0_19, %c0_20] : memref<1x256x256xbf16, #tpu.memory_space<vmem>>, vector<1x256x256xbf16>
      %41 = vector.shape_cast %40 : vector<1x256x256xbf16> to vector<256x256xbf16>
      %c0_21 = arith.constant 0 : index
      %c0_22 = arith.constant 0 : index
      %42 = vector.load %arg4[%c0_21, %c0_22] : memref<256x256xbf16, #tpu.memory_space<vmem>>, vector<256x256xbf16>
      %cst_23 = arith.constant dense<0.000000e+00> : vector<256x256xf32>
      %43 = tpu.matmul %41, %42, %cst_23 {dimension_numbers = #tpu.dot_dimension_numbers<[1], [0], [0], [1], [0, 0, 1, 1], [], []>} : vector<256x256xbf16>, vector<256x256xbf16>, vector<256x256xf32> -> vector<256x256xf32>
      %c0_24 = arith.constant 0 : index
      %c0_25 = arith.constant 0 : index
      %44 = vector.load %arg5[%c0_24, %c0_25] : memref<256x256xbf16, #tpu.memory_space<vmem>>, vector<256x256xbf16>
      %cst_26 = arith.constant dense<0.000000e+00> : vector<256x256xf32>
      %45 = tpu.matmul %41, %44, %cst_26 {dimension_numbers = #tpu.dot_dimension_numbers<[1], [0], [0], [1], [0, 0, 1, 1], [], []>} : vector<256x256xbf16>, vector<256x256xbf16>, vector<256x256xf32> -> vector<256x256xf32>
      %46 = arith.truncf %43 : vector<256x256xf32> to vector<256x256xbf16>
      %47 = arith.truncf %45 : vector<256x256xf32> to vector<256x256xbf16>
      %48 = vector.extract_strided_slice %46 {offsets = [0, 0], sizes = [256, 128], strides = [1, 1]} : vector<256x256xbf16> to vector<256x128xbf16>
      %49 = vector.extract_strided_slice %46 {offsets = [0, 128], sizes = [256, 128], strides = [1, 1]} : vector<256x256xbf16> to vector<256x128xbf16>
      %50 = vector.shape_cast %48 : vector<256x128xbf16> to vector<1x256x128xbf16>
      %51 = vector.shape_cast %49 : vector<256x128xbf16> to vector<1x256x128xbf16>
      %52 = tpu.concatenate %50, %51 in 0 : vector<1x256x128xbf16>, vector<1x256x128xbf16> -> vector<2x256x128xbf16>
      %c0_27 = arith.constant 0 : index
      %c0_28 = arith.constant 0 : index
      %c0_29 = arith.constant 0 : index
      %53 = vector.load %arg9[%c0_27, %c0_28, %c0_29] : memref<2x256x128xbf16, #tpu.memory_space<vmem>>, vector<2x256x128xbf16>
      tpu.vector_store %arg9[%c0_27, %c0_28, %c0_29], %52 {strides = array<i32>} : memref<2x256x128xbf16, #tpu.memory_space<vmem>>, vector<2x256x128xbf16>,
      %54 = vector.extract_strided_slice %47 {offsets = [0, 0], sizes = [256, 128], strides = [1, 1]} : vector<256x256xbf16> to vector<256x128xbf16>
      %55 = vector.extract_strided_slice %47 {offsets = [0, 128], sizes = [256, 128], strides = [1, 1]} : vector<256x256xbf16> to vector<256x128xbf16>
      %56 = vector.shape_cast %54 : vector<256x128xbf16> to vector<1x256x128xbf16>
      %57 = vector.shape_cast %55 : vector<256x128xbf16> to vector<1x256x128xbf16>
      %58 = tpu.concatenate %56, %57 in 0 : vector<1x256x128xbf16>, vector<1x256x128xbf16> -> vector<2x256x128xbf16>
      %c0_30 = arith.constant 0 : index
      %c0_31 = arith.constant 0 : index
      %c0_32 = arith.constant 0 : index
      %59 = vector.load %arg10[%c0_30, %c0_31, %c0_32] : memref<2x256x128xbf16, #tpu.memory_space<vmem>>, vector<2x256x128xbf16>
      tpu.vector_store %arg10[%c0_30, %c0_31, %c0_32], %58 {strides = array<i32>} : memref<2x256x128xbf16, #tpu.memory_space<vmem>>, vector<2x256x128xbf16>,
    } else {
    }
    %c128_i32 = arith.constant 128 : i32
    %3 = arith.muli %arg1, %c128_i32 : i32
    %4 = tpu.assume_multiple %3, 128 : i32
    %c0 = arith.constant 0 : index
    %5 = arith.index_cast %4 : i32 to index
    %c0_1 = arith.constant 0 : index
    %6 = vector.load %arg2[%c0, %5, %c0_1] : memref<1x256x256xbf16, #tpu.memory_space<vmem>>, vector<1x128x256xbf16>
    %7 = vector.shape_cast %6 : vector<1x128x256xbf16> to vector<128x256xbf16>
    %c0_2 = arith.constant 0 : index
    %c0_3 = arith.constant 0 : index
    %8 = vector.load %arg3[%c0_2, %c0_3] : memref<256x256xbf16, #tpu.memory_space<vmem>>, vector<256x256xbf16>
    %cst = arith.constant dense<0.000000e+00> : vector<128x256xf32>
    %9 = tpu.matmul %7, %8, %cst {dimension_numbers = #tpu.dot_dimension_numbers<[1], [0], [0], [1], [0, 0, 1, 1], [], []>} : vector<128x256xbf16>, vector<256x256xbf16>, vector<128x256xf32> -> vector<128x256xf32>
    %cst_4 = arith.constant 0.0883883461 : f32
    %10 = vector.broadcast %cst_4 : f32 to vector<128x256xf32>
    %11 = arith.mulf %9, %10 : vector<128x256xf32>
    %12 = arith.truncf %11 : vector<128x256xf32> to vector<128x256xbf16>
    %13 = vector.extract_strided_slice %12 {offsets = [0, 0], sizes = [128, 128], strides = [1, 1]} : vector<128x256xbf16> to vector<128x128xbf16>
    %14 = vector.extract_strided_slice %12 {offsets = [0, 128], sizes = [128, 128], strides = [1, 1]} : vector<128x256xbf16> to vector<128x128xbf16>
    %15 = vector.shape_cast %13 : vector<128x128xbf16> to vector<1x128x128xbf16>
    %16 = vector.shape_cast %14 : vector<128x128xbf16> to vector<1x128x128xbf16>
    %17 = tpu.concatenate %15, %16 in 0 : vector<1x128x128xbf16>, vector<1x128x128xbf16> -> vector<2x128x128xbf16>
    %cst_5 = arith.constant 0xFF800000 : f32
    %18 = vector.broadcast %cst_5 : f32 to vector<2x128x1xf32>
    %cst_6 = arith.constant 0.000000e+00 : f32
    %19 = vector.broadcast %cst_6 : f32 to vector<2x128x1xf32>
    %cst_7 = arith.constant 0.000000e+00 : f32
    %20 = vector.broadcast %cst_7 : f32 to vector<2x128x128xf32>
    %c0_i32_8 = arith.constant 0 : i32
    %c2_i32 = arith.constant 2 : i32
    %21 = arith.addi %c0_i32_8, %c2_i32 : i32
    %c1_i32 = arith.constant 1 : i32
    %22:3 = scf.for %arg11 = %c0_i32_8 to %21 step %c1_i32 iter_args(%arg12 = %18, %arg13 = %19, %arg14 = %20) -> (vector<2x128x1xf32>, vector<2x128x1xf32>, vector<2x128x128xf32>)  : i32 {
      %c128_i32_18 = arith.constant 128 : i32
      %40 = arith.muli %arg11, %c128_i32_18 : i32
      %41 = tpu.assume_multiple %40, 128 : i32
      %c0_19 = arith.constant 0 : index
      %42 = arith.index_cast %41 : i32 to index
      %c0_20 = arith.constant 0 : index
      %43 = vector.load %arg9[%c0_19, %42, %c0_20] : memref<2x256x128xbf16, #tpu.memory_space<vmem>>, vector<2x128x128xbf16>
      %c0_21 = arith.constant 0 : index
      %44 = arith.index_cast %41 : i32 to index
      %c0_22 = arith.constant 0 : index
      %45 = vector.load %arg10[%c0_21, %44, %c0_22] : memref<2x256x128xbf16, #tpu.memory_space<vmem>>, vector<2x128x128xbf16>
      %cst_23 = arith.constant dense<0.000000e+00> : vector<2x128x128xf32>
      %46 = tpu.matmul %17, %43, %cst_23 {dimension_numbers = #tpu.dot_dimension_numbers<[2], [2], [1], [1], [0, 0, 0, 1, 1, 1], [0], [0]>} : vector<2x128x128xbf16>, vector<2x128x128xbf16>, vector<2x128x128xf32> -> vector<2x128x128xf32>
      %cst_24 = arith.constant dense<0xFF800000> : vector<2x128xf32>
      %47 = vector.multi_reduction <maximumf>, %46, %cst_24 [2] : vector<2x128x128xf32> to vector<2x128xf32>
      %48 = vector.shape_cast %47 : vector<2x128xf32> to vector<2x128x1xf32>
      %49 = arith.maximumf %arg12, %48 : vector<2x128x1xf32>
      %50 = arith.subf %arg12, %49 : vector<2x128x1xf32>
      %51 = math.exp %50 : vector<2x128x1xf32>
      %52 = vector.broadcast %49 : vector<2x128x1xf32> to vector<2x128x128xf32>
      %53 = arith.subf %46, %52 : vector<2x128x128xf32>
      %54 = math.exp %53 : vector<2x128x128xf32>
      %55 = arith.mulf %51, %arg13 : vector<2x128x1xf32>
      %cst_25 = arith.constant dense<0.000000e+00> : vector<2x128xf32>
      %56 = vector.multi_reduction <add>, %54, %cst_25 [2] : vector<2x128x128xf32> to vector<2x128xf32>
      %57 = vector.shape_cast %56 : vector<2x128xf32> to vector<2x128x1xf32>
      %58 = arith.addf %55, %57 : vector<2x128x1xf32>
      %59 = vector.broadcast %51 : vector<2x128x1xf32> to vector<2x128x128xf32>
      %60 = arith.mulf %59, %arg14 : vector<2x128x128xf32>
      %61 = arith.truncf %54 : vector<2x128x128xf32> to vector<2x128x128xbf16>
      %cst_26 = arith.constant dense<0.000000e+00> : vector<2x128x128xf32>
      %62 = tpu.matmul %61, %45, %cst_26 {dimension_numbers = #tpu.dot_dimension_numbers<[2], [1], [1], [2], [0, 0, 0, 1, 1, 2], [0], [0]>} : vector<2x128x128xbf16>, vector<2x128x128xbf16>, vector<2x128x128xf32> -> vector<2x128x128xf32>
      %63 = arith.addf %60, %62 : vector<2x128x128xf32>
      scf.yield %49, %58, %63 : vector<2x128x1xf32>, vector<2x128x1xf32>, vector<2x128x128xf32>
    }
    %c2_i32_9 = arith.constant 2 : i32
    %23 = tpu.reciprocal %22#1 {approx = true} : vector<2x128x1xf32> -> vector<2x128x1xf32>
    %24 = vector.broadcast %23 : vector<2x128x1xf32> to vector<2x128x128xf32>
    %25 = arith.mulf %22#2, %24 : vector<2x128x128xf32>
    %26 = arith.truncf %25 : vector<2x128x128xf32> to vector<2x128x128xbf16>
    %27 = vector.extract_strided_slice %26 {offsets = [0, 0, 0], sizes = [1, 128, 128], strides = [1, 1, 1]} : vector<2x128x128xbf16> to vector<1x128x128xbf16>
    %28 = vector.shape_cast %27 : vector<1x128x128xbf16> to vector<128x128xbf16>
    %29 = vector.extract_strided_slice %26 {offsets = [1, 0, 0], sizes = [1, 128, 128], strides = [1, 1, 1]} : vector<2x128x128xbf16> to vector<1x128x128xbf16>
    %30 = vector.shape_cast %29 : vector<1x128x128xbf16> to vector<128x128xbf16>
    %31 = tpu.concatenate %28, %30 in 1 : vector<128x128xbf16>, vector<128x128xbf16> -> vector<128x256xbf16>
    %c0_10 = arith.constant 0 : index
    %c0_11 = arith.constant 0 : index
    %32 = vector.load %arg6[%c0_10, %c0_11] : memref<256x256xbf16, #tpu.memory_space<vmem>>, vector<256x256xbf16>
    %cst_12 = arith.constant dense<0.000000e+00> : vector<128x256xf32>
    %33 = tpu.matmul %31, %32, %cst_12 {dimension_numbers = #tpu.dot_dimension_numbers<[1], [0], [0], [1], [0, 0, 1, 1], [], []>} : vector<128x256xbf16>, vector<256x256xbf16>, vector<128x256xf32> -> vector<128x256xf32>
    %c0_13 = arith.constant 0 : index
    %c0_14 = arith.constant 0 : index
    %34 = vector.load %arg7[%c0_13, %c0_14] : memref<1x256xf32, #tpu.memory_space<vmem>>, vector<1x256xf32>
    %35 = vector.broadcast %34 : vector<1x256xf32> to vector<128x256xf32>
    %36 = arith.addf %33, %35 : vector<128x256xf32>
    %c0_15 = arith.constant 0 : index
    %c0_16 = arith.constant 0 : index
    %c0_17 = arith.constant 0 : index
    %37 = vector.load %arg8[%c0_15, %c0_16, %c0_17] : memref<1x128x256xf32, #tpu.memory_space<vmem>>, vector<1x128x256xf32>
    %38 = vector.shape_cast %37 : vector<1x128x256xf32> to vector<128x256xf32>
    %39 = vector.shape_cast %36 : vector<128x256xf32> to vector<1x128x256xf32>
    tpu.vector_store %arg8[%c0_15, %c0_16, %c0_17], %39 {strides = array<i32>} : memref<1x128x256xf32, #tpu.memory_space<vmem>>, vector<1x128x256xf32>,
    return
  }
  func.func @transform_0(%arg0: i32, %arg1: i32) -> (i32, i32, i32) {
    %c0_i32 = arith.constant 0 : i32
    %c0_i32_0 = arith.constant 0 : i32
    %c0_i32_1 = arith.constant 0 : i32
    return %arg0, %c0_i32, %c0_i32_0 : i32, i32, i32
  }
  func.func @transform_1(%arg0: i32, %arg1: i32) -> (i32, i32) {
    %c0_i32 = arith.constant 0 : i32
    %c0_i32_0 = arith.constant 0 : i32
    %c0_i32_1 = arith.constant 0 : i32
    return %c0_i32, %c0_i32_0 : i32, i32
  }
  func.func @transform_2(%arg0: i32, %arg1: i32) -> (i32, i32) {
    %c0_i32 = arith.constant 0 : i32
    %c0_i32_0 = arith.constant 0 : i32
    %c0_i32_1 = arith.constant 0 : i32
    return %c0_i32, %c0_i32_0 : i32, i32
  }
  func.func @transform_3(%arg0: i32, %arg1: i32) -> (i32, i32) {
    %c0_i32 = arith.constant 0 : i32
    %c0_i32_0 = arith.constant 0 : i32
    %c0_i32_1 = arith.constant 0 : i32
    return %c0_i32, %c0_i32_0 : i32, i32
  }
  func.func @transform_4(%arg0: i32, %arg1: i32) -> (i32, i32) {
    %c0_i32 = arith.constant 0 : i32
    %c0_i32_0 = arith.constant 0 : i32
    %c0_i32_1 = arith.constant 0 : i32
    return %c0_i32, %c0_i32_0 : i32, i32
  }
  func.func @transform_5(%arg0: i32, %arg1: i32) -> (i32, i32) {
    %c0_i32 = arith.constant 0 : i32
    %c0_i32_0 = arith.constant 0 : i32
    %c0_i32_1 = arith.constant 0 : i32
    return %c0_i32, %c0_i32_0 : i32, i32
  }
  func.func @transform_6(%arg0: i32, %arg1: i32) -> (i32, i32, i32) {
    %c0_i32 = arith.constant 0 : i32
    %c0_i32_0 = arith.constant 0 : i32
    return %arg0, %arg1, %c0_i32 : i32, i32, i32
  }
}

module attributes {stable_mosaic.version = 11 : i64} {
  func.func @_self_attention_kernel(%arg0: i32, %arg1: i32, %arg2: memref<1x256x256xbf16, #tpu.memory_space<vmem>>, %arg3: memref<256x256xbf16, #tpu.memory_space<vmem>>, %arg4: memref<256x256xbf16, #tpu.memory_space<vmem>>, %arg5: memref<256x256xbf16, #tpu.memory_space<vmem>>, %arg6: memref<256x256xbf16, #tpu.memory_space<vmem>>, %arg7: memref<1x256xf32, #tpu.memory_space<vmem>>, %arg8: memref<1x128x256xf32, #tpu.memory_space<vmem>>, %arg9: memref<2x256x128xbf16, #tpu.memory_space<vmem>>, %arg10: memref<2x256x128xbf16, #tpu.memory_space<vmem>>) attributes {dimension_semantics = [#tpu.dimension_semantics<parallel>, #tpu.dimension_semantics<arbitrary>], iteration_bounds = array<i64: 2, 2>, scalar_prefetch = 0 : i64, scratch_operands = 2 : i64, tpu.core_type = #tpu.core_type<tc>, window_params = [{transform_indices = @transform_0, window_bounds = array<i64: 1, 256, 256>}, {pipeline_mode = #tpu.pipeline_mode<synchronous>, transform_indices = @transform_1, window_bounds = array<i64: 256, 256>}, {pipeline_mode = #tpu.pipeline_mode<synchronous>, transform_indices = @transform_2, window_bounds = array<i64: 256, 256>}, {pipeline_mode = #tpu.pipeline_mode<synchronous>, transform_indices = @transform_3, window_bounds = array<i64: 256, 256>}, {pipeline_mode = #tpu.pipeline_mode<synchronous>, transform_indices = @transform_4, window_bounds = array<i64: 256, 256>}, {pipeline_mode = #tpu.pipeline_mode<synchronous>, transform_indices = @transform_5, window_bounds = array<i64: 1, 256>}, {transform_indices = @transform_6, window_bounds = array<i64: 1, 128, 256>}]} {
    %c0_i32 = arith.constant 0 : i32
    %0 = arith.cmpi eq, %arg1, %c0_i32 : i32
    %1 = arith.extui %0 : i1 to i32
    %c0_i32_0 = arith.constant 0 : i32
    %2 = arith.cmpi ne, %1, %c0_i32_0 : i32
    scf.if %2 {
      %c0_18 = arith.constant 0 : index
      %c0_19 = arith.constant 0 : index
      %c0_20 = arith.constant 0 : index
      %40 = vector.load %arg2[%c0_18, %c0_19, %c0_20] : memref<1x256x256xbf16, #tpu.memory_space<vmem>>, vector<1x256x256xbf16>
      %41 = vector.shape_cast %40 : vector<1x256x256xbf16> to vector<256x256xbf16>
      %c0_21 = arith.constant 0 : index
      %c0_22 = arith.constant 0 : index
      %42 = vector.load %arg4[%c0_21, %c0_22] : memref<256x256xbf16, #tpu.memory_space<vmem>>, vector<256x256xbf16>
      %cst_23 = arith.constant dense<0.000000e+00> : vector<256x256xf32>
      %43 = tpu.matmul %41, %42, %cst_23 {dimension_numbers = #tpu.dot_dimension_numbers<[1], [0], [0], [1], [0, 0, 1, 1], [], []>} : vector<256x256xbf16>, vector<256x256xbf16>, vector<256x256xf32> -> vector<256x256xf32>
      %c0_24 = arith.constant 0 : index
      %c0_25 = arith.constant 0 : index
      %44 = vector.load %arg5[%c0_24, %c0_25] : memref<256x256xbf16, #tpu.memory_space<vmem>>, vector<256x256xbf16>
      %cst_26 = arith.constant dense<0.000000e+00> : vector<256x256xf32>
      %45 = tpu.matmul %41, %44, %cst_26 {dimension_numbers = #tpu.dot_dimension_numbers<[1], [0], [0], [1], [0, 0, 1, 1], [], []>} : vector<256x256xbf16>, vector<256x256xbf16>, vector<256x256xf32> -> vector<256x256xf32>
      %46 = arith.truncf %43 : vector<256x256xf32> to vector<256x256xbf16>
      %47 = arith.truncf %45 : vector<256x256xf32> to vector<256x256xbf16>
      %48 = vector.extract_strided_slice %46 {offsets = [0, 0], sizes = [256, 128], strides = [1, 1]} : vector<256x256xbf16> to vector<256x128xbf16>
      %49 = vector.extract_strided_slice %46 {offsets = [0, 128], sizes = [256, 128], strides = [1, 1]} : vector<256x256xbf16> to vector<256x128xbf16>
      %50 = vector.shape_cast %48 : vector<256x128xbf16> to vector<1x256x128xbf16>
      %51 = vector.shape_cast %49 : vector<256x128xbf16> to vector<1x256x128xbf16>
      %52 = tpu.concatenate %50, %51 in 0 : vector<1x256x128xbf16>, vector<1x256x128xbf16> -> vector<2x256x128xbf16>
      %c0_27 = arith.constant 0 : index
      %c0_28 = arith.constant 0 : index
      %c0_29 = arith.constant 0 : index
      %53 = vector.load %arg9[%c0_27, %c0_28, %c0_29] : memref<2x256x128xbf16, #tpu.memory_space<vmem>>, vector<2x256x128xbf16>
      tpu.vector_store %arg9[%c0_27, %c0_28, %c0_29], %52 {strides = array<i32>} : memref<2x256x128xbf16, #tpu.memory_space<vmem>>, vector<2x256x128xbf16>,
      %54 = vector.extract_strided_slice %47 {offsets = [0, 0], sizes = [256, 128], strides = [1, 1]} : vector<256x256xbf16> to vector<256x128xbf16>
      %55 = vector.extract_strided_slice %47 {offsets = [0, 128], sizes = [256, 128], strides = [1, 1]} : vector<256x256xbf16> to vector<256x128xbf16>
      %56 = vector.shape_cast %54 : vector<256x128xbf16> to vector<1x256x128xbf16>
      %57 = vector.shape_cast %55 : vector<256x128xbf16> to vector<1x256x128xbf16>
      %58 = tpu.concatenate %56, %57 in 0 : vector<1x256x128xbf16>, vector<1x256x128xbf16> -> vector<2x256x128xbf16>
      %c0_30 = arith.constant 0 : index
      %c0_31 = arith.constant 0 : index
      %c0_32 = arith.constant 0 : index
      %59 = vector.load %arg10[%c0_30, %c0_31, %c0_32] : memref<2x256x128xbf16, #tpu.memory_space<vmem>>, vector<2x256x128xbf16>
      tpu.vector_store %arg10[%c0_30, %c0_31, %c0_32], %58 {strides = array<i32>} : memref<2x256x128xbf16, #tpu.memory_space<vmem>>, vector<2x256x128xbf16>,
    } else {
    }
    %c128_i32 = arith.constant 128 : i32
    %3 = arith.muli %arg1, %c128_i32 : i32
    %4 = tpu.assume_multiple %3, 128 : i32
    %c0 = arith.constant 0 : index
    %5 = arith.index_cast %4 : i32 to index
    %c0_1 = arith.constant 0 : index
    %6 = vector.load %arg2[%c0, %5, %c0_1] : memref<1x256x256xbf16, #tpu.memory_space<vmem>>, vector<1x128x256xbf16>
    %7 = vector.shape_cast %6 : vector<1x128x256xbf16> to vector<128x256xbf16>
    %c0_2 = arith.constant 0 : index
    %c0_3 = arith.constant 0 : index
    %8 = vector.load %arg3[%c0_2, %c0_3] : memref<256x256xbf16, #tpu.memory_space<vmem>>, vector<256x256xbf16>
    %cst = arith.constant dense<0.000000e+00> : vector<128x256xf32>
    %9 = tpu.matmul %7, %8, %cst {dimension_numbers = #tpu.dot_dimension_numbers<[1], [0], [0], [1], [0, 0, 1, 1], [], []>} : vector<128x256xbf16>, vector<256x256xbf16>, vector<128x256xf32> -> vector<128x256xf32>
    %cst_4 = arith.constant 0.0883883461 : f32
    %10 = vector.broadcast %cst_4 : f32 to vector<128x256xf32>
    %11 = arith.mulf %9, %10 : vector<128x256xf32>
    %12 = arith.truncf %11 : vector<128x256xf32> to vector<128x256xbf16>
    %13 = vector.extract_strided_slice %12 {offsets = [0, 0], sizes = [128, 128], strides = [1, 1]} : vector<128x256xbf16> to vector<128x128xbf16>
    %14 = vector.extract_strided_slice %12 {offsets = [0, 128], sizes = [128, 128], strides = [1, 1]} : vector<128x256xbf16> to vector<128x128xbf16>
    %15 = vector.shape_cast %13 : vector<128x128xbf16> to vector<1x128x128xbf16>
    %16 = vector.shape_cast %14 : vector<128x128xbf16> to vector<1x128x128xbf16>
    %17 = tpu.concatenate %15, %16 in 0 : vector<1x128x128xbf16>, vector<1x128x128xbf16> -> vector<2x128x128xbf16>
    %cst_5 = arith.constant 0xFF800000 : f32
    %18 = vector.broadcast %cst_5 : f32 to vector<2x128x1xf32>
    %cst_6 = arith.constant 0.000000e+00 : f32
    %19 = vector.broadcast %cst_6 : f32 to vector<2x128x1xf32>
    %cst_7 = arith.constant 0.000000e+00 : f32
    %20 = vector.broadcast %cst_7 : f32 to vector<2x128x128xf32>
    %c0_i32_8 = arith.constant 0 : i32
    %c2_i32 = arith.constant 2 : i32
    %21 = arith.addi %c0_i32_8, %c2_i32 : i32
    %c1_i32 = arith.constant 1 : i32
    %22:3 = scf.for %arg11 = %c0_i32_8 to %21 step %c1_i32 iter_args(%arg12 = %18, %arg13 = %19, %arg14 = %20) -> (vector<2x128x1xf32>, vector<2x128x1xf32>, vector<2x128x128xf32>)  : i32 {
      %c128_i32_18 = arith.constant 128 : i32
      %40 = arith.muli %arg11, %c128_i32_18 : i32
      %41 = tpu.assume_multiple %40, 128 : i32
      %c0_19 = arith.constant 0 : index
      %42 = arith.index_cast %41 : i32 to index
      %c0_20 = arith.constant 0 : index
      %43 = vector.load %arg9[%c0_19, %42, %c0_20] : memref<2x256x128xbf16, #tpu.memory_space<vmem>>, vector<2x128x128xbf16>
      %c0_21 = arith.constant 0 : index
      %44 = arith.index_cast %41 : i32 to index
      %c0_22 = arith.constant 0 : index
      %45 = vector.load %arg10[%c0_21, %44, %c0_22] : memref<2x256x128xbf16, #tpu.memory_space<vmem>>, vector<2x128x128xbf16>
      %cst_23 = arith.constant dense<0.000000e+00> : vector<2x128x128xf32>
      %46 = tpu.matmul %17, %43, %cst_23 {dimension_numbers = #tpu.dot_dimension_numbers<[2], [2], [1], [1], [0, 0, 0, 1, 1, 1], [0], [0]>} : vector<2x128x128xbf16>, vector<2x128x128xbf16>, vector<2x128x128xf32> -> vector<2x128x128xf32>
      %cst_24 = arith.constant dense<0xFF800000> : vector<2x128xf32>
      %47 = vector.multi_reduction <maximumf>, %46, %cst_24 [2] : vector<2x128x128xf32> to vector<2x128xf32>
      %48 = vector.shape_cast %47 : vector<2x128xf32> to vector<2x128x1xf32>
      %49 = arith.maximumf %arg12, %48 : vector<2x128x1xf32>
      %50 = arith.subf %arg12, %49 : vector<2x128x1xf32>
      %51 = math.exp %50 : vector<2x128x1xf32>
      %52 = vector.broadcast %49 : vector<2x128x1xf32> to vector<2x128x128xf32>
      %53 = arith.subf %46, %52 : vector<2x128x128xf32>
      %54 = math.exp %53 : vector<2x128x128xf32>
      %55 = arith.mulf %51, %arg13 : vector<2x128x1xf32>
      %cst_25 = arith.constant dense<0.000000e+00> : vector<2x128xf32>
      %56 = vector.multi_reduction <add>, %54, %cst_25 [2] : vector<2x128x128xf32> to vector<2x128xf32>
      %57 = vector.shape_cast %56 : vector<2x128xf32> to vector<2x128x1xf32>
      %58 = arith.addf %55, %57 : vector<2x128x1xf32>
      %59 = vector.broadcast %51 : vector<2x128x1xf32> to vector<2x128x128xf32>
      %60 = arith.mulf %59, %arg14 : vector<2x128x128xf32>
      %61 = arith.truncf %54 : vector<2x128x128xf32> to vector<2x128x128xbf16>
      %cst_26 = arith.constant dense<0.000000e+00> : vector<2x128x128xf32>
      %62 = tpu.matmul %61, %45, %cst_26 {dimension_numbers = #tpu.dot_dimension_numbers<[2], [1], [1], [2], [0, 0, 0, 1, 1, 2], [0], [0]>} : vector<2x128x128xbf16>, vector<2x128x128xbf16>, vector<2x128x128xf32> -> vector<2x128x128xf32>
      %63 = arith.addf %60, %62 : vector<2x128x128xf32>
      scf.yield %49, %58, %63 : vector<2x128x1xf32>, vector<2x128x1xf32>, vector<2x128x128xf32>
    }
    %c2_i32_9 = arith.constant 2 : i32
    %23 = tpu.reciprocal %22#1 {approx = true} : vector<2x128x1xf32> -> vector<2x128x1xf32>
    %24 = vector.broadcast %23 : vector<2x128x1xf32> to vector<2x128x128xf32>
    %25 = arith.mulf %22#2, %24 : vector<2x128x128xf32>
    %26 = arith.truncf %25 : vector<2x128x128xf32> to vector<2x128x128xbf16>
    %27 = vector.extract_strided_slice %26 {offsets = [0, 0, 0], sizes = [1, 128, 128], strides = [1, 1, 1]} : vector<2x128x128xbf16> to vector<1x128x128xbf16>
    %28 = vector.shape_cast %27 : vector<1x128x128xbf16> to vector<128x128xbf16>
    %29 = vector.extract_strided_slice %26 {offsets = [1, 0, 0], sizes = [1, 128, 128], strides = [1, 1, 1]} : vector<2x128x128xbf16> to vector<1x128x128xbf16>
    %30 = vector.shape_cast %29 : vector<1x128x128xbf16> to vector<128x128xbf16>
    %31 = tpu.concatenate %28, %30 in 1 : vector<128x128xbf16>, vector<128x128xbf16> -> vector<128x256xbf16>
    %c0_10 = arith.constant 0 : index
    %c0_11 = arith.constant 0 : index
    %32 = vector.load %arg6[%c0_10, %c0_11] : memref<256x256xbf16, #tpu.memory_space<vmem>>, vector<256x256xbf16>
    %cst_12 = arith.constant dense<0.000000e+00> : vector<128x256xf32>
    %33 = tpu.matmul %31, %32, %cst_12 {dimension_numbers = #tpu.dot_dimension_numbers<[1], [0], [0], [1], [0, 0, 1, 1], [], []>} : vector<128x256xbf16>, vector<256x256xbf16>, vector<128x256xf32> -> vector<128x256xf32>
    %c0_13 = arith.constant 0 : index
    %c0_14 = arith.constant 0 : index
    %34 = vector.load %arg7[%c0_13, %c0_14] : memref<1x256xf32, #tpu.memory_space<vmem>>, vector<1x256xf32>
    %35 = vector.broadcast %34 : vector<1x256xf32> to vector<128x256xf32>
    %36 = arith.addf %33, %35 : vector<128x256xf32>
    %c0_15 = arith.constant 0 : index
    %c0_16 = arith.constant 0 : index
    %c0_17 = arith.constant 0 : index
    %37 = vector.load %arg8[%c0_15, %c0_16, %c0_17] : memref<1x128x256xf32, #tpu.memory_space<vmem>>, vector<1x128x256xf32>
    %38 = vector.shape_cast %37 : vector<1x128x256xf32> to vector<128x256xf32>
    %39 = vector.shape_cast %36 : vector<128x256xf32> to vector<1x128x256xf32>
    tpu.vector_store %arg8[%c0_15, %c0_16, %c0_17], %39 {strides = array<i32>} : memref<1x128x256xf32, #tpu.memory_space<vmem>>, vector<1x128x256xf32>,
    return
  }
  func.func @transform_0(%arg0: i32, %arg1: i32) -> (i32, i32, i32) {
    %c0_i32 = arith.constant 0 : i32
    %c0_i32_0 = arith.constant 0 : i32
    %c0_i32_1 = arith.constant 0 : i32
    return %arg0, %c0_i32, %c0_i32_0 : i32, i32, i32
  }
  func.func @transform_1(%arg0: i32, %arg1: i32) -> (i32, i32) {
    %c0_i32 = arith.constant 0 : i32
    %c0_i32_0 = arith.constant 0 : i32
    %c0_i32_1 = arith.constant 0 : i32
    return %c0_i32, %c0_i32_0 : i32, i32
  }
  func.func @transform_2(%arg0: i32, %arg1: i32) -> (i32, i32) {
    %c0_i32 = arith.constant 0 : i32
    %c0_i32_0 = arith.constant 0 : i32
    %c0_i32_1 = arith.constant 0 : i32
    return %c0_i32, %c0_i32_0 : i32, i32
  }
  func.func @transform_3(%arg0: i32, %arg1: i32) -> (i32, i32) {
    %c0_i32 = arith.constant 0 : i32
    %c0_i32_0 = arith.constant 0 : i32
    %c0_i32_1 = arith.constant 0 : i32
    return %c0_i32, %c0_i32_0 : i32, i32
  }
  func.func @transform_4(%arg0: i32, %arg1: i32) -> (i32, i32) {
    %c0_i32 = arith.constant 0 : i32
    %c0_i32_0 = arith.constant 0 : i32
    %c0_i32_1 = arith.constant 0 : i32
    return %c0_i32, %c0_i32_0 : i32, i32
  }
  func.func @transform_5(%arg0: i32, %arg1: i32) -> (i32, i32) {
    %c0_i32 = arith.constant 0 : i32
    %c0_i32_0 = arith.constant 0 : i32
    %c0_i32_1 = arith.constant 0 : i32
    return %c0_i32, %c0_i32_0 : i32, i32
  }
  func.func @transform_6(%arg0: i32, %arg1: i32) -> (i32, i32, i32) {
    %c0_i32 = arith.constant 0 : i32
    %c0_i32_0 = arith.constant 0 : i32
    return %arg0, %arg1, %c0_i32 : i32, i32, i32
  }
}

</mosaic_0001>

<llo_original>
// kernel: tpu_custom_call.1
$region0: #{tpu_custom_call.1}
  #allocation0 [shape = 'u32[]', space=smem, size = 0x4, offset = 0x4, fixed_abs, tag = 'smem constant byte address 0x4 - core index']
  #allocation1 [shape = 'u32[144,128]{1,0:T(1,128)}', space=vmem, size = 0x12000, scoped, tag = 'internal scratch']
  #allocation2 [shape = 'bf16[2,256,128]{2,1,0:T(16,128)(2,1)}', space=vmem, size = 0x20000, scoped, tag = 'scratch operand']
  #allocation3 [shape = 'bf16[2,256,128]{2,1,0:T(16,128)(2,1)}', space=vmem, size = 0x20000, scoped, tag = 'scratch operand']
  %s0 = inlined_call_operand.hbm [shape: bf16[2,256,256], index: 0, kind: input, shape index: {}]
  %s1 = inlined_call_operand.hbm [shape: bf16[256,256], index: 1, kind: input, shape index: {}]
  %s2 = inlined_call_operand.hbm [shape: bf16[256,256], index: 2, kind: input, shape index: {}]
  %s3 = inlined_call_operand.hbm [shape: bf16[256,256], index: 3, kind: input, shape index: {}]
  %s4 = inlined_call_operand.hbm [shape: bf16[256,256], index: 4, kind: input, shape index: {}]
  %s5 = inlined_call_operand.vmem [shape: f32[1,256], index: 5, kind: input, shape index: {}]
  %s6 = inlined_call_operand.hbm [shape: f32[2,256,256], index: 6, kind: output, shape index: {}]
  %s7 = sld [smem:[#allocation0]]
  $region88: #{tpu_custom_call.1} parent=0
    _
  %s9 = ssub.s32 1, %s7
  %s10 = scalar_select 0, %s9, %s7
  $region1: #{tpu_custom_call.1} parent=0
    #allocation4 [shape = 'u8[262144]{0}', space=vmem, size = 0x40000, scoped, tag = 'input window, operand 0']
    #allocation5 [shape = 's32[2]{0}', space=sflag, size = 0x8, scoped, tag = 'scoped memory for tpu_custom_call.1']
    #allocation6 [shape = 's32[2]{0}', space=sflag, size = 0x8, scoped, tag = 'scoped memory for tpu_custom_call.1']
    #allocation7 [shape = 'u8[131072]{0}', space=vmem, size = 0x20000, scoped, tag = 'input window, operand 1, single buffered']
    #allocation8 [shape = 's32[1]{0}', space=sflag, size = 0x4, scoped, tag = 'scoped memory for tpu_custom_call.1']
    #allocation9 [shape = 'u8[131072]{0}', space=vmem, size = 0x20000, scoped, tag = 'input window, operand 2, single buffered']
    #allocation10 [shape = 'u8[131072]{0}', space=vmem, size = 0x20000, scoped, tag = 'input window, operand 3, single buffered']
    #allocation11 [shape = 's32[1]{0}', space=sflag, size = 0x4, scoped, tag = 'scoped memory for tpu_custom_call.1']
    #allocation12 [shape = 'u8[131072]{0}', space=vmem, size = 0x20000, scoped, tag = 'input window, operand 4, single buffered']
    #allocation13 [shape = 'u8[262144]{0}', space=vmem, size = 0x40000, scoped, tag = 'output window, operand 0']
    %11 = vsyncpa [#allocation5], 0
    %s12 = scalar_lea.sflag [#allocation5], 1
    %13 = vsyncpa %s12, 0
    %14 = vsyncpa [#allocation8], 0
    %15 = vsyncpa [#allocation11], 0
    %16 = vsyncpa [#allocation6], 0
    %s17 = scalar_lea.sflag [#allocation6], 1
    %18 = vsyncpa %s17, 0
    loop: start=0, step=1, limit=6
    $region2: #{tpu_custom_call.1} parent=1 // loop_pre_header
      _
    $region3: #{tpu_custom_call.1} parent=1 // loop_header
      %s20 = sphi 0, %s24
      %p21 = scmp.ge.s32.totalorder %s20, 6
      %s27 = sphi 0, %s39
      %s28 = sphi 0, %s35
      %s29 = sphi 0, %s27
      %s30 = sphi 0, %s28
      %s31 = sphi 0, %s29
      %s32 = sphi 0, %s30
      %s42 = sphi 0, %s44
      %s45 = sphi 0, %s42
      %s46 = sphi 0, %s45
      %s62 = sphi 0, %s46
      %s66 = sphi 0, %s66
      %s68 = sphi 0, %s66
      %s69 = sphi 0, %s68
      %s83 = sphi 0, %s69
      %s87 = sphi 0, %s87
      %s89 = sphi 0, %s87
      %s90 = sphi 0, %s89
      %s104 = sphi 0, %s90
      %s108 = sphi 0, %s108
      %s110 = sphi 0, %s108
      %s111 = sphi 0, %s110
      %s125 = sphi 0, %s111
      %s129 = sphi 0, %s129
      %s131 = sphi 0, %s129
      %s132 = sphi 0, %s131
      %s146 = sphi 0, %s132
      %s150 = sphi 0, %s150
      %s152 = sphi 0, %s150
      %s153 = sphi 0, %s152
      %s167 = sphi 0, %s153
      %s175 = sphi 0, %s177
      %s178 = sphi 0, %s175
      %s179 = sphi 0, %s178
      %s195 = sphi 0, %s179
    $region4: #{tpu_custom_call.1} parent=1 // loop_header_branch
      %23 = sbr.rel (%p21) target = $region8
    $region5: #{tpu_custom_call.1} parent=1 // loop_body
      %s25 = ssub.s32 %s20, 1
      %s26 = ssub.s32 %s20, 2
      %s33 = sadd.s32 1, %s28
      %p34 = scmp.ge.s32.totalorder %s33, 2
      %s35 = scalar_select %p34, 0, %s33
      %s36 = sadd.s32 1, %s27
      %s37 = scalar_select %p34, %s36, %s27
      %p38 = scmp.ge.s32.totalorder %s37, 2
      %s39 = scalar_select %p38, 0, %s37
      %s40 = ssub.s32 %s27, %s39
      %p41 = scmp.eq.s32.totalorder %s40, 0
      %s43 = sadd.s32 %s42, 1
      %s44 = scalar_select %p41, %s42, %s43
      %p47 = pneg %p41
      %p48 = scmp.eq.s32.totalorder %s20, 3
      %p49 = por %p47, %p48
      %p50 = scmp.ne.s32.totalorder %s42, %s45
      %p51 = scmp.eq.s32.totalorder %s20, 0
      %p52 = por %p50, %p51
      %p53 = scmp.ne.s32.totalorder %s42, %s45
      %p54 = scmp.eq.s32.totalorder %s25, 3
      %p55 = por %p53, %p54
      %p56 = scmp.ne.s32.totalorder %s45, %s46
      %p57 = scmp.eq.s32.totalorder %s25, 0
      %p58 = por %p56, %p57
      %p59 = scmp.ne.s32.totalorder %s45, %s46
      %p60 = scmp.eq.s32.totalorder %s26, 3
      %p61 = por %p59, %p60
      %p63 = scmp.ne.s32.totalorder %s46, %s62
      %p64 = scmp.eq.s32.totalorder %s26, 0
      %p65 = por %p63, %p64
      %s67 = sadd.s32 %s66, 1
      %p70 = scmp.eq.s32.totalorder %s20, 3
      %p71 = scmp.ne.s32.totalorder %s66, %s68
      %p72 = scmp.eq.s32.totalorder %s20, 0
      %p73 = por %p71, %p72
      %p74 = scmp.ne.s32.totalorder %s66, %s68
      %p75 = scmp.eq.s32.totalorder %s25, 3
      %p76 = por %p74, %p75
      %p77 = scmp.ne.s32.totalorder %s68, %s69
      %p78 = scmp.eq.s32.totalorder %s25, 0
      %p79 = por %p77, %p78
      %p80 = scmp.ne.s32.totalorder %s68, %s69
      %p81 = scmp.eq.s32.totalorder %s26, 3
      %p82 = por %p80, %p81
      %p84 = scmp.ne.s32.totalorder %s69, %s83
      %p85 = scmp.eq.s32.totalorder %s26, 0
      %p86 = por %p84, %p85
      %s88 = sadd.s32 %s87, 1
      %p91 = scmp.eq.s32.totalorder %s20, 3
      %p92 = scmp.ne.s32.totalorder %s87, %s89
      %p93 = scmp.eq.s32.totalorder %s20, 0
      %p94 = por %p92, %p93
      %p95 = scmp.ne.s32.totalorder %s87, %s89
      %p96 = scmp.eq.s32.totalorder %s25, 3
      %p97 = por %p95, %p96
      %p98 = scmp.ne.s32.totalorder %s89, %s90
      %p99 = scmp.eq.s32.totalorder %s25, 0
      %p100 = por %p98, %p99
      %p101 = scmp.ne.s32.totalorder %s89, %s90
      %p102 = scmp.eq.s32.totalorder %s26, 3
      %p103 = por %p101, %p102
      %p105 = scmp.ne.s32.totalorder %s90, %s104
      %p106 = scmp.eq.s32.totalorder %s26, 0
      %p107 = por %p105, %p106
      %s109 = sadd.s32 %s108, 1
      %p112 = scmp.eq.s32.totalorder %s20, 3
      %p113 = scmp.ne.s32.totalorder %s108, %s110
      %p114 = scmp.eq.s32.totalorder %s20, 0
      %p115 = por %p113, %p114
      %p116 = scmp.ne.s32.totalorder %s108, %s110
      %p117 = scmp.eq.s32.totalorder %s25, 3
      %p118 = por %p116, %p117
      %p119 = scmp.ne.s32.totalorder %s110, %s111
      %p120 = scmp.eq.s32.totalorder %s25, 0
      %p121 = por %p119, %p120
      %p122 = scmp.ne.s32.totalorder %s110, %s111
      %p123 = scmp.eq.s32.totalorder %s26, 3
      %p124 = por %p122, %p123
      %p126 = scmp.ne.s32.totalorder %s111, %s125
      %p127 = scmp.eq.s32.totalorder %s26, 0
      %p128 = por %p126, %p127
      %s130 = sadd.s32 %s129, 1
      %p133 = scmp.eq.s32.totalorder %s20, 3
      %p134 = scmp.ne.s32.totalorder %s129, %s131
      %p135 = scmp.eq.s32.totalorder %s20, 0
      %p136 = por %p134, %p135
      %p137 = scmp.ne.s32.totalorder %s129, %s131
      %p138 = scmp.eq.s32.totalorder %s25, 3
      %p139 = por %p137, %p138
      %p140 = scmp.ne.s32.totalorder %s131, %s132
      %p141 = scmp.eq.s32.totalorder %s25, 0
      %p142 = por %p140, %p141
      %p143 = scmp.ne.s32.totalorder %s131, %s132
      %p144 = scmp.eq.s32.totalorder %s26, 3
      %p145 = por %p143, %p144
      %p147 = scmp.ne.s32.totalorder %s132, %s146
      %p148 = scmp.eq.s32.totalorder %s26, 0
      %p149 = por %p147, %p148
      %s151 = sadd.s32 %s150, 1
      %p154 = scmp.eq.s32.totalorder %s20, 3
      %p155 = scmp.ne.s32.totalorder %s150, %s152
      %p156 = scmp.eq.s32.totalorder %s20, 0
      %p157 = por %p155, %p156
      %p158 = scmp.ne.s32.totalorder %s150, %s152
      %p159 = scmp.eq.s32.totalorder %s25, 3
      %p160 = por %p158, %p159
      %p161 = scmp.ne.s32.totalorder %s152, %s153
      %p162 = scmp.eq.s32.totalorder %s25, 0
      %p163 = por %p161, %p162
      %p164 = scmp.ne.s32.totalorder %s152, %s153
      %p165 = scmp.eq.s32.totalorder %s26, 3
      %p166 = por %p164, %p165
      %p168 = scmp.ne.s32.totalorder %s153, %s167
      %p169 = scmp.eq.s32.totalorder %s26, 0
      %p170 = por %p168, %p169
      %s171 = ssub.s32 %s27, %s39
      %s172 = ssub.s32 %s28, %s35
      %s173 = sor.u32 %s171, %s172
      %p174 = scmp.eq.s32.totalorder %s173, 0
      %s176 = sadd.s32 %s175, 1
      %s177 = scalar_select %p174, %s175, %s176
      %p180 = pneg %p174
      %p181 = scmp.eq.s32.totalorder %s20, 3
      %p182 = por %p180, %p181
      %p183 = scmp.ne.s32.totalorder %s175, %s178
      %p184 = scmp.eq.s32.totalorder %s20, 0
      %p185 = por %p183, %p184
      %p186 = scmp.ne.s32.totalorder %s175, %s178
      %p187 = scmp.eq.s32.totalorder %s25, 3
      %p188 = por %p186, %p187
      %p189 = scmp.ne.s32.totalorder %s178, %s179
      %p190 = scmp.eq.s32.totalorder %s25, 0
      %p191 = por %p189, %p190
      %p192 = scmp.ne.s32.totalorder %s178, %s179
      %p193 = scmp.eq.s32.totalorder %s26, 3
      %p194 = por %p192, %p193
      %p196 = scmp.ne.s32.totalorder %s179, %s195
      %p197 = scmp.eq.s32.totalorder %s26, 0
      %p198 = por %p196, %p197
      %p199 = scmp.le.s32.totalorder 1, %s20
      %p200 = scmp.lt.s32.totalorder %s20, 5
      %p201 = pnand %p199, %p200
      %p202 = pneg %p201
      // Predicated region
      $region9: #{tpu_custom_call.1} parent=5 // pred_check
        _
      $region10: #{tpu_custom_call.1} parent=5 // pred_check_branch
        %204 = sbr.rel (%p201) target = $region12
      $region11: #{tpu_custom_call.1} parent=5 // pred_region
        %s205 = ssub.s32 %s20, 1
        // Predicated region
        $region13: #{tpu_custom_call.1} parent=11 // pred_check
          %p206 = pneg %p79
        $region14: #{tpu_custom_call.1} parent=11 // pred_check_branch
          %208 = sbr.rel (%p206) target = $region16
        $region15: #{tpu_custom_call.1} parent=11 // pred_region
          %s210 = ssub.s32 4096, 4096
          %211 = vsyncadd [#allocation8], %s210
          %s212 = sshll.u32 [#allocation7], 4
          %s213 = int_to_ptr.vmem [resolvable:$true] %s212
          %218 = dma.hbm_to_vmem [thread:$0]  %s1, 4096, %s213, [#allocation8], 128, 128, 8
        $region16: #{tpu_custom_call.1} parent=11 // pred_fallthru
          _
        // Predicated region
        $region17: #{tpu_custom_call.1} parent=11 // pred_check
          %p219 = pneg %p100
        $region18: #{tpu_custom_call.1} parent=11 // pred_check_branch
          %221 = sbr.rel (%p219) target = $region20
        $region19: #{tpu_custom_call.1} parent=11 // pred_region
          %s223 = ssub.s32 4096, 4096
          %224 = vsyncadd [#allocation8], %s223
          %s225 = sshll.u32 [#allocation9], 4
          %s226 = int_to_ptr.vmem [resolvable:$true] %s225
          %231 = dma.hbm_to_vmem [thread:$0]  %s2, 4096, %s226, [#allocation8], 128, 128, 8
        $region20: #{tpu_custom_call.1} parent=11 // pred_fallthru
          _
        // Predicated region
        $region21: #{tpu_custom_call.1} parent=11 // pred_check
          %p232 = pneg %p121
        $region22: #{tpu_custom_call.1} parent=11 // pred_check_branch
          %234 = sbr.rel (%p232) target = $region24
        $region23: #{tpu_custom_call.1} parent=11 // pred_region
          %s236 = ssub.s32 4096, 4096
          %237 = vsyncadd [#allocation11], %s236
          %s238 = sshll.u32 [#allocation10], 4
          %s239 = int_to_ptr.vmem [resolvable:$true] %s238
          %244 = dma.hbm_to_vmem [thread:$0]  %s3, 4096, %s239, [#allocation11], 128, 128, 8
        $region24: #{tpu_custom_call.1} parent=11 // pred_fallthru
          _
        // Predicated region
        $region25: #{tpu_custom_call.1} parent=11 // pred_check
          %p245 = pneg %p142
        $region26: #{tpu_custom_call.1} parent=11 // pred_check_branch
          %247 = sbr.rel (%p245) target = $region28
        $region27: #{tpu_custom_call.1} parent=11 // pred_region
          %s249 = ssub.s32 4096, 4096
          %250 = vsyncadd [#allocation11], %s249
          %s251 = sshll.u32 [#allocation12], 4
          %s252 = int_to_ptr.vmem [resolvable:$true] %s251
          %257 = dma.hbm_to_vmem [thread:$0]  %s4, 4096, %s252, [#allocation11], 128, 128, 8
        $region28: #{tpu_custom_call.1} parent=11 // pred_fallthru
          _
        // Predicated region
        $region29: #{tpu_custom_call.1} parent=11 // pred_check
          %p258 = pneg %p163
        $region30: #{tpu_custom_call.1} parent=11 // pred_check_branch
          %260 = sbr.rel (%p258) target = $region32
        $region31: #{tpu_custom_call.1} parent=11 // pred_region
          _
        $region32: #{tpu_custom_call.1} parent=11 // pred_fallthru
          _
      $region12: #{tpu_custom_call.1} parent=5 // pred_fallthru
        _
      %p261 = scmp.lt.s32.totalorder %s20, 4
      // Predicated region
      $region33: #{tpu_custom_call.1} parent=5 // pred_check
        %p262 = pneg %p261
      $region34: #{tpu_custom_call.1} parent=5 // pred_check_branch
        %264 = sbr.rel (%p262) target = $region36
      $region35: #{tpu_custom_call.1} parent=5 // pred_region
        // Predicated region
        $region37: #{tpu_custom_call.1} parent=35 // pred_check
          %p265 = pneg %p52
        $region38: #{tpu_custom_call.1} parent=35 // pred_check_branch
          %267 = sbr.rel (%p265) target = $region40
        $region39: #{tpu_custom_call.1} parent=35 // pred_region
          %s268 = sand.u32 %s42, 1
          %s269 = scalar_lea.sflag [#allocation5], %s268
          %s270 = sand.u32 %s42, 1
          %s271 = smul.addr %s270, 256
          %s272 = scalar_lea.vmem [#allocation4], %s271
          %s274 = ssub.s32 4096, 4096
          %275 = vsyncadd %s269, %s274
          %s276 = smul.addr %s27, 64
          %s277 = smul.addr %s276, 64
          %s278 = scalar_lea.hbm %s0, %s277
          %s279 = sshll.u32 %s272, 4
          %s280 = int_to_ptr.vmem [resolvable:$true] %s279
          %285 = dma.hbm_to_vmem [thread:$0]  %s278, 4096, %s280, %s269, 128, 128, 8
        $region40: #{tpu_custom_call.1} parent=35 // pred_fallthru
          _
      $region36: #{tpu_custom_call.1} parent=5 // pred_fallthru
        _
      %p286 = scmp.le.s32.totalorder 1, %s20
      %p287 = scmp.lt.s32.totalorder %s20, 5
      %p288 = pnand %p286, %p287
      %p289 = pneg %p288
      // Predicated region
      $region41: #{tpu_custom_call.1} parent=5 // pred_check
        _
      $region42: #{tpu_custom_call.1} parent=5 // pred_check_branch
        %291 = sbr.rel (%p288) target = $region44
      $region43: #{tpu_custom_call.1} parent=5 // pred_region
        %s292 = ssub.s32 %s20, 1
        %s293 = sand.u32 %s45, 1
        %s294 = scalar_lea.sflag [#allocation5], %s293
        %s295 = sand.u32 %s45, 1
        %s296 = smul.addr %s295, 256
        %s297 = scalar_lea.vmem [#allocation4], %s296
        // Predicated region
        $region45: #{tpu_custom_call.1} parent=43 // pred_check
          %p298 = pneg %p58
        $region46: #{tpu_custom_call.1} parent=43 // pred_check_branch
          %300 = sbr.rel (%p298) target = $region48
        $region47: #{tpu_custom_call.1} parent=43 // pred_region
          %301 = dma.done %s294, 4096
        $region48: #{tpu_custom_call.1} parent=43 // pred_fallthru
          _
        // Predicated region
        $region49: #{tpu_custom_call.1} parent=43 // pred_check
          %p302 = pneg %p79
        $region50: #{tpu_custom_call.1} parent=43 // pred_check_branch
          %304 = sbr.rel (%p302) target = $region52
        $region51: #{tpu_custom_call.1} parent=43 // pred_region
          %305 = dma.done [#allocation8], 4096
        $region52: #{tpu_custom_call.1} parent=43 // pred_fallthru
          _
        // Predicated region
        $region53: #{tpu_custom_call.1} parent=43 // pred_check
          %p306 = pneg %p100
        $region54: #{tpu_custom_call.1} parent=43 // pred_check_branch
          %308 = sbr.rel (%p306) target = $region56
        $region55: #{tpu_custom_call.1} parent=43 // pred_region
          %309 = dma.done [#allocation8], 4096
        $region56: #{tpu_custom_call.1} parent=43 // pred_fallthru
          _
        // Predicated region
        $region57: #{tpu_custom_call.1} parent=43 // pred_check
          %p310 = pneg %p121
        $region58: #{tpu_custom_call.1} parent=43 // pred_check_branch
          %312 = sbr.rel (%p310) target = $region60
        $region59: #{tpu_custom_call.1} parent=43 // pred_region
          %313 = dma.done [#allocation11], 4096
        $region60: #{tpu_custom_call.1} parent=43 // pred_fallthru
          _
        // Predicated region
        $region61: #{tpu_custom_call.1} parent=43 // pred_check
          %p314 = pneg %p142
        $region62: #{tpu_custom_call.1} parent=43 // pred_check_branch
          %316 = sbr.rel (%p314) target = $region64
        $region63: #{tpu_custom_call.1} parent=43 // pred_region
          %317 = dma.done [#allocation11], 4096
        $region64: #{tpu_custom_call.1} parent=43 // pred_fallthru
          _
        %s318 = sand.u32 %s45, 1
        %s319 = scalar_lea.sflag [#allocation5], %s318
        %s320 = sand.u32 %s45, 1
        %s321 = smul.addr %s320, 256
        %s322 = scalar_lea.vmem [#allocation4], %s321
        %p323 = pneg %p58
        %p324 = pneg %p55
        %p325 = pneg %p79
        %p326 = pneg %p76
        %p327 = pneg %p100
        %p328 = pneg %p97
        %p329 = pneg %p121
        %p330 = pneg %p118
        %p331 = pneg %p142
        %p332 = pneg %p139
        %p333 = pneg %p163
        %p334 = pneg %p160
        %p335 = pneg %p191
        %p336 = pneg %p188
        %s337 = sand.u32 %s178, 1
        %s338 = scalar_lea.sflag [#allocation6], %s337
        %s339 = sand.u32 %s178, 1
        %s340 = smul.addr %s339, 256
        %s341 = scalar_lea.vmem [#allocation13], %s340
        %s342 = smul.u32 16, %s30
        %p344 = scmp.eq.s32.totalorder %s30, 0
        // Predicated region
        $region65: #{tpu_custom_call.1} parent=43 // pred_check
          %p345 = pneg %p344
        $region66: #{tpu_custom_call.1} parent=43 // pred_check_branch
          %347 = sbr.rel (%p345) target = $region68
        $region67: #{tpu_custom_call.1} parent=43 // pred_region
          %v348 = vld [vmem:[%s297] sm:$0xff]
          %v349 = vld [vmem:[%s297 + $0x8] sm:$0xff]
          %v350 = vld [vmem:[%s297 + $0x10] sm:$0xff]
          %v351 = vld [vmem:[%s297 + $0x18] sm:$0xff]
          %v352 = vld [vmem:[%s297 + $0x20] sm:$0xff]
          %v353 = vld [vmem:[%s297 + $0x28] sm:$0xff]
          %v354 = vld [vmem:[%s297 + $0x30] sm:$0xff]
          %v355 = vld [vmem:[%s297 + $0x38] sm:$0xff]
          %v356 = vld [vmem:[%s297 + $0x40] sm:$0xff]
          %v357 = vld [vmem:[%s297 + $0x48] sm:$0xff]
          %v358 = vld [vmem:[%s297 + $0x50] sm:$0xff]
          %v359 = vld [vmem:[%s297 + $0x58] sm:$0xff]
          %v360 = vld [vmem:[%s297 + $0x60] sm:$0xff]
          %v361 = vld [vmem:[%s297 + $0x68] sm:$0xff]
          %v362 = vld [vmem:[%s297 + $0x70] sm:$0xff]
          %v363 = vld [vmem:[%s297 + $0x78] sm:$0xff]
          %v364 = vld [vmem:[%s297 + $0x80] sm:$0xff]
          %v365 = vld [vmem:[%s297 + $0x88] sm:$0xff]
          %v366 = vld [vmem:[%s297 + $0x90] sm:$0xff]
          %v367 = vld [vmem:[%s297 + $0x98] sm:$0xff]
          %v368 = vld [vmem:[%s297 + $0xa0] sm:$0xff]
          %v369 = vld [vmem:[%s297 + $0xa8] sm:$0xff]
          %v370 = vld [vmem:[%s297 + $0xb0] sm:$0xff]
          %v371 = vld [vmem:[%s297 + $0xb8] sm:$0xff]
          %v372 = vld [vmem:[%s297 + $0xc0] sm:$0xff]
          %v373 = vld [vmem:[%s297 + $0xc8] sm:$0xff]
          %v374 = vld [vmem:[%s297 + $0xd0] sm:$0xff]
          %v375 = vld [vmem:[%s297 + $0xd8] sm:$0xff]
          %v376 = vld [vmem:[%s297 + $0xe0] sm:$0xff]
          %v377 = vld [vmem:[%s297 + $0xe8] sm:$0xff]
          %v378 = vld [vmem:[%s297 + $0xf0] sm:$0xff]
          %v379 = vld [vmem:[%s297 + $0xf8] sm:$0xff]
          %v380 = vld [vmem:[#allocation9] sm:$0xff]
          %v381 = vld [vmem:[#allocation9 + $0x8] sm:$0xff]
          %v382 = vld [vmem:[#allocation9 + $0x10] sm:$0xff]
          %v383 = vld [vmem:[#allocation9 + $0x18] sm:$0xff]
          %v384 = vld [vmem:[#allocation9 + $0x20] sm:$0xff]
          %v385 = vld [vmem:[#allocation9 + $0x28] sm:$0xff]
          %v386 = vld [vmem:[#allocation9 + $0x30] sm:$0xff]
          %v387 = vld [vmem:[#allocation9 + $0x38] sm:$0xff]
          %v388 = vld [vmem:[#allocation9 + $0x40] sm:$0xff]
          %v389 = vld [vmem:[#allocation9 + $0x48] sm:$0xff]
          %v390 = vld [vmem:[#allocation9 + $0x50] sm:$0xff]
          %v391 = vld [vmem:[#allocation9 + $0x58] sm:$0xff]
          %v392 = vld [vmem:[#allocation9 + $0x60] sm:$0xff]
          %v393 = vld [vmem:[#allocation9 + $0x68] sm:$0xff]
          %v394 = vld [vmem:[#allocation9 + $0x70] sm:$0xff]
          %v395 = vld [vmem:[#allocation9 + $0x78] sm:$0xff]
          %v396 = vld [vmem:[#allocation9 + $0x80] sm:$0xff]
          %v397 = vld [vmem:[#allocation9 + $0x88] sm:$0xff]
          %v398 = vld [vmem:[#allocation9 + $0x90] sm:$0xff]
          %v399 = vld [vmem:[#allocation9 + $0x98] sm:$0xff]
          %v400 = vld [vmem:[#allocation9 + $0xa0] sm:$0xff]
          %v401 = vld [vmem:[#allocation9 + $0xa8] sm:$0xff]
          %v402 = vld [vmem:[#allocation9 + $0xb0] sm:$0xff]
          %v403 = vld [vmem:[#allocation9 + $0xb8] sm:$0xff]
          %v404 = vld [vmem:[#allocation9 + $0xc0] sm:$0xff]
          %v405 = vld [vmem:[#allocation9 + $0xc8] sm:$0xff]
          %v406 = vld [vmem:[#allocation9 + $0xd0] sm:$0xff]
          %v407 = vld [vmem:[#allocation9 + $0xd8] sm:$0xff]
          %v408 = vld [vmem:[#allocation9 + $0xe0] sm:$0xff]
          %v409 = vld [vmem:[#allocation9 + $0xe8] sm:$0xff]
          %v410 = vld [vmem:[#allocation9 + $0xf0] sm:$0xff]
          %v411 = vld [vmem:[#allocation9 + $0xf8] sm:$0xff]
          %v444 = vunpack.c.l.b16 %v348
          %v445 = vunpack.c.h.b16 %v348
          %v446 = vunpack.c.l.b16 %v349
          %v447 = vunpack.c.h.b16 %v349
          %v448 = vunpack.c.l.b16 %v350
          %v449 = vunpack.c.h.b16 %v350
          %v450 = vunpack.c.l.b16 %v351
          %v451 = vunpack.c.h.b16 %v351
          %v452 = vunpack.c.l.b16 %v352
          %v453 = vunpack.c.h.b16 %v352
          %v454 = vunpack.c.l.b16 %v353
          %v455 = vunpack.c.h.b16 %v353
          %v456 = vunpack.c.l.b16 %v354
          %v457 = vunpack.c.h.b16 %v354
          %v458 = vunpack.c.l.b16 %v355
          %v459 = vunpack.c.h.b16 %v355
          %v460 = vunpack.c.l.b16 %v356
          %v461 = vunpack.c.h.b16 %v356
          %v462 = vunpack.c.l.b16 %v357
          %v463 = vunpack.c.h.b16 %v357
          %v464 = vunpack.c.l.b16 %v358
          %v465 = vunpack.c.h.b16 %v358
          %v466 = vunpack.c.l.b16 %v359
          %v467 = vunpack.c.h.b16 %v359
          %v468 = vunpack.c.l.b16 %v360
          %v469 = vunpack.c.h.b16 %v360
          %v470 = vunpack.c.l.b16 %v361
          %v471 = vunpack.c.h.b16 %v361
          %v472 = vunpack.c.l.b16 %v362
          %v473 = vunpack.c.h.b16 %v362
          %v474 = vunpack.c.l.b16 %v363
          %v475 = vunpack.c.h.b16 %v363
          %v476 = vunpack.c.l.b16 %v364
          %v477 = vunpack.c.h.b16 %v364
          %v478 = vunpack.c.l.b16 %v365
          %v479 = vunpack.c.h.b16 %v365
          %v480 = vunpack.c.l.b16 %v366
          %v481 = vunpack.c.h.b16 %v366
          %v482 = vunpack.c.l.b16 %v367
          %v483 = vunpack.c.h.b16 %v367
          %v484 = vunpack.c.l.b16 %v368
          %v485 = vunpack.c.h.b16 %v368
          %v486 = vunpack.c.l.b16 %v369
          %v487 = vunpack.c.h.b16 %v369
          %v488 = vunpack.c.l.b16 %v370
          %v489 = vunpack.c.h.b16 %v370
          %v490 = vunpack.c.l.b16 %v371
          %v491 = vunpack.c.h.b16 %v371
          %v492 = vunpack.c.l.b16 %v372
          %v493 = vunpack.c.h.b16 %v372
          %v494 = vunpack.c.l.b16 %v373
          %v495 = vunpack.c.h.b16 %v373
          %v496 = vunpack.c.l.b16 %v374
          %v497 = vunpack.c.h.b16 %v374
          %v498 = vunpack.c.l.b16 %v375
          %v499 = vunpack.c.h.b16 %v375
          %v500 = vunpack.c.l.b16 %v376
          %v501 = vunpack.c.h.b16 %v376
          %v502 = vunpack.c.l.b16 %v377
          %v503 = vunpack.c.h.b16 %v377
          %v504 = vunpack.c.l.b16 %v378
          %v505 = vunpack.c.h.b16 %v378
          %v506 = vunpack.c.l.b16 %v379
          %v507 = vunpack.c.h.b16 %v379
          %v508 = vpack.c.b16 %v446, %v444
          %v509 = vpack.c.b16 %v447, %v445
          %v510 = vpack.c.b16 %v450, %v448
          %v511 = vpack.c.b16 %v451, %v449
          %v512 = vpack.c.b16 %v454, %v452
          %v513 = vpack.c.b16 %v455, %v453
          %v514 = vpack.c.b16 %v458, %v456
          %v515 = vpack.c.b16 %v459, %v457
          %v516 = vpack.c.b16 %v462, %v460
          %v517 = vpack.c.b16 %v463, %v461
          %v518 = vpack.c.b16 %v466, %v464
          %v519 = vpack.c.b16 %v467, %v465
          %v520 = vpack.c.b16 %v470, %v468
          %v521 = vpack.c.b16 %v471, %v469
          %v522 = vpack.c.b16 %v474, %v472
          %v523 = vpack.c.b16 %v475, %v473
          %v524 = vpack.c.b16 %v478, %v476
          %v525 = vpack.c.b16 %v479, %v477
          %v526 = vpack.c.b16 %v482, %v480
          %v527 = vpack.c.b16 %v483, %v481
          %v528 = vpack.c.b16 %v486, %v484
          %v529 = vpack.c.b16 %v487, %v485
          %v530 = vpack.c.b16 %v490, %v488
          %v531 = vpack.c.b16 %v491, %v489
          %v532 = vpack.c.b16 %v494, %v492
          %v533 = vpack.c.b16 %v495, %v493
          %v534 = vpack.c.b16 %v498, %v496
          %v535 = vpack.c.b16 %v499, %v497
          %v536 = vpack.c.b16 %v502, %v500
          %v537 = vpack.c.b16 %v503, %v501
          %v538 = vpack.c.b16 %v506, %v504
          %v539 = vpack.c.b16 %v507, %v505
          %v604 = vunpack.c.l.b16 %v380
          %v605 = vunpack.c.h.b16 %v380
          %v606 = vunpack.c.l.b16 %v381
          %v607 = vunpack.c.h.b16 %v381
          %v608 = vunpack.c.l.b16 %v382
          %v609 = vunpack.c.h.b16 %v382
          %v610 = vunpack.c.l.b16 %v383
          %v611 = vunpack.c.h.b16 %v383
          %v612 = vunpack.c.l.b16 %v384
          %v613 = vunpack.c.h.b16 %v384
          %v614 = vunpack.c.l.b16 %v385
          %v615 = vunpack.c.h.b16 %v385
          %v616 = vunpack.c.l.b16 %v386
          %v617 = vunpack.c.h.b16 %v386
          %v618 = vunpack.c.l.b16 %v387
          %v619 = vunpack.c.h.b16 %v387
          %v620 = vunpack.c.l.b16 %v388
          %v621 = vunpack.c.h.b16 %v388
          %v622 = vunpack.c.l.b16 %v389
          %v623 = vunpack.c.h.b16 %v389
          %v624 = vunpack.c.l.b16 %v390
          %v625 = vunpack.c.h.b16 %v390
          %v626 = vunpack.c.l.b16 %v391
          %v627 = vunpack.c.h.b16 %v391
          %v628 = vunpack.c.l.b16 %v392
          %v629 = vunpack.c.h.b16 %v392
          %v630 = vunpack.c.l.b16 %v393
          %v631 = vunpack.c.h.b16 %v393
          %v632 = vunpack.c.l.b16 %v394
          %v633 = vunpack.c.h.b16 %v394
          %v634 = vunpack.c.l.b16 %v395
          %v635 = vunpack.c.h.b16 %v395
          %v636 = vunpack.c.l.b16 %v396
          %v637 = vunpack.c.h.b16 %v396
          %v638 = vunpack.c.l.b16 %v397
          %v639 = vunpack.c.h.b16 %v397
          %v640 = vunpack.c.l.b16 %v398
          %v641 = vunpack.c.h.b16 %v398
          %v642 = vunpack.c.l.b16 %v399
          %v643 = vunpack.c.h.b16 %v399
          %v644 = vunpack.c.l.b16 %v400
          %v645 = vunpack.c.h.b16 %v400
          %v646 = vunpack.c.l.b16 %v401
          %v647 = vunpack.c.h.b16 %v401
          %v648 = vunpack.c.l.b16 %v402
          %v649 = vunpack.c.h.b16 %v402
          %v650 = vunpack.c.l.b16 %v403
          %v651 = vunpack.c.h.b16 %v403
          %v652 = vunpack.c.l.b16 %v404
          %v653 = vunpack.c.h.b16 %v404
          %v654 = vunpack.c.l.b16 %v405
          %v655 = vunpack.c.h.b16 %v405
          %v656 = vunpack.c.l.b16 %v406
          %v657 = vunpack.c.h.b16 %v406
          %v658 = vunpack.c.l.b16 %v407
          %v659 = vunpack.c.h.b16 %v407
          %v660 = vunpack.c.l.b16 %v408
          %v661 = vunpack.c.h.b16 %v408
          %v662 = vunpack.c.l.b16 %v409
          %v663 = vunpack.c.h.b16 %v409
          %v664 = vunpack.c.l.b16 %v410
          %v665 = vunpack.c.h.b16 %v410
          %v666 = vunpack.c.l.b16 %v411
          %v667 = vunpack.c.h.b16 %v411
          %v668 = vpack.c.b16 %v606, %v604
          %v669 = vpack.c.b16 %v607, %v605
          %v670 = vpack.c.b16 %v610, %v608
          %v671 = vpack.c.b16 %v611, %v609
          %v672 = vpack.c.b16 %v614, %v612
          %v673 = vpack.c.b16 %v615, %v613
          %v674 = vpack.c.b16 %v618, %v616
          %v675 = vpack.c.b16 %v619, %v617
          %v676 = vpack.c.b16 %v622, %v620
          %v677 = vpack.c.b16 %v623, %v621
          %v678 = vpack.c.b16 %v626, %v624
          %v679 = vpack.c.b16 %v627, %v625
          %v680 = vpack.c.b16 %v630, %v628
          %v681 = vpack.c.b16 %v631, %v629
          %v682 = vpack.c.b16 %v634, %v632
          %v683 = vpack.c.b16 %v635, %v633
          %v684 = vpack.c.b16 %v638, %v636
          %v685 = vpack.c.b16 %v639, %v637
          %v686 = vpack.c.b16 %v642, %v640
          %v687 = vpack.c.b16 %v643, %v641
          %v688 = vpack.c.b16 %v646, %v644
          %v689 = vpack.c.b16 %v647, %v645
          %v690 = vpack.c.b16 %v650, %v648
          %v691 = vpack.c.b16 %v651, %v649
          %v692 = vpack.c.b16 %v654, %v652
          %v693 = vpack.c.b16 %v655, %v653
          %v694 = vpack.c.b16 %v658, %v656
          %v695 = vpack.c.b16 %v659, %v657
          %v696 = vpack.c.b16 %v662, %v660
          %v697 = vpack.c.b16 %v663, %v661
          %v698 = vpack.c.b16 %v666, %v664
          %v699 = vpack.c.b16 %v667, %v665
          %732 = vmatprep.subr.bf16.mxu0 %v669
          %733 = vmatpush1.bf16.msra.mxu0 %v668
          %734 = vmatprep.subr.bf16.mxu0 %v671
          %735 = vmatpush1.bf16.msra.mxu0 %v670
          %736 = vmatprep.subr.bf16.mxu0 %v673
          %737 = vmatpush1.bf16.msra.mxu0 %v672
          %738 = vmatprep.subr.bf16.mxu0 %v675
          %739 = vmatpush1.bf16.msra.mxu0 %v674
          %740 = vmatprep.subr.bf16.mxu0 %v677
          %741 = vmatpush1.bf16.msra.mxu0 %v676
          %742 = vmatprep.subr.bf16.mxu0 %v679
          %743 = vmatpush1.bf16.msra.mxu0 %v678
          %744 = vmatprep.subr.bf16.mxu0 %v681
          %745 = vmatpush1.bf16.msra.mxu0 %v680
          %746 = vmatprep.subr.bf16.mxu0 %v683
          %747 = vmatpush1.bf16.msra.mxu0 %v682
          %748 = vmatprep.subr.bf16.mxu0 %v685
          %749 = vmatpush1.bf16.msra.mxu0 %v684
          %750 = vmatprep.subr.bf16.mxu0 %v687
          %751 = vmatpush1.bf16.msra.mxu0 %v686
          %752 = vmatprep.subr.bf16.mxu0 %v689
          %753 = vmatpush1.bf16.msra.mxu0 %v688
          %754 = vmatprep.subr.bf16.mxu0 %v691
          %755 = vmatpush1.bf16.msra.mxu0 %v690
          %756 = vmatprep.subr.bf16.mxu0 %v693
          %757 = vmatpush1.bf16.msra.mxu0 %v692
          %758 = vmatprep.subr.bf16.mxu0 %v695
          %759 = vmatpush1.bf16.msra.mxu0 %v694
          %760 = vmatprep.subr.bf16.mxu0 %v697
          %761 = vmatpush1.bf16.msra.mxu0 %v696
          %762 = vmatprep.subr.bf16.mxu0 %v699
          %763 = vmatpush1.bf16.msra.mxu0 %v698
          %764 = vmatprep.mubr.bf16.mxu0 %v509
          %765 = vmatmul.mubr.bf16.gmra.mrb[0].mxu0 %v508
          %v766 = vpop.f32.mrb[0].mxu0
          %v767 = vadd.f32 0.0, %v766
          %v768 = vpop.f32.mrb[0].mxu0
          %v769 = vadd.f32 0.0, %v768
          %v770 = vpop.f32.mrb[0].mxu0
          %v771 = vadd.f32 0.0, %v770
          %v772 = vpop.f32.mrb[0].mxu0
          %v773 = vadd.f32 0.0, %v772
          %774 = vmatprep.mubr.bf16.mxu0 %v511
          %775 = vmatmul.mubr.bf16.gmra.mrb[0].mxu0 %v510
          %v776 = vpop.f32.mrb[0].mxu0
          %v777 = vadd.f32 0.0, %v776
          %v778 = vpop.f32.mrb[0].mxu0
          %v779 = vadd.f32 0.0, %v778
          %v780 = vpop.f32.mrb[0].mxu0
          %v781 = vadd.f32 0.0, %v780
          %v782 = vpop.f32.mrb[0].mxu0
          %v783 = vadd.f32 0.0, %v782
          %784 = vmatprep.mubr.bf16.mxu0 %v513
          %785 = vmatmul.mubr.bf16.gmra.mrb[0].mxu0 %v512
          %v786 = vpop.f32.mrb[0].mxu0
          %v787 = vadd.f32 0.0, %v786
          %v788 = vpop.f32.mrb[0].mxu0
          %v789 = vadd.f32 0.0, %v788
          %v790 = vpop.f32.mrb[0].mxu0
          %v791 = vadd.f32 0.0, %v790
          %v792 = vpop.f32.mrb[0].mxu0
          %v793 = vadd.f32 0.0, %v792
          %794 = vmatprep.mubr.bf16.mxu0 %v515
          %795 = vmatmul.mubr.bf16.gmra.mrb[0].mxu0 %v514
          %v796 = vpop.f32.mrb[0].mxu0
          %v797 = vadd.f32 0.0, %v796
          %v798 = vpop.f32.mrb[0].mxu0
          %v799 = vadd.f32 0.0, %v798
          %v800 = vpop.f32.mrb[0].mxu0
          %v801 = vadd.f32 0.0, %v800
          %v802 = vpop.f32.mrb[0].mxu0
          %v803 = vadd.f32 0.0, %v802
          %804 = vmatprep.mubr.bf16.mxu0 %v517
          %805 = vmatmul.mubr.bf16.gmra.mrb[0].mxu0 %v516
          %v806 = vpop.f32.mrb[0].mxu0
          %v807 = vadd.f32 0.0, %v806
          %v808 = vpop.f32.mrb[0].mxu0
          %v809 = vadd.f32 0.0, %v808
          %v810 = vpop.f32.mrb[0].mxu0
          %v811 = vadd.f32 0.0, %v810
          %v812 = vpop.f32.mrb[0].mxu0
          %v813 = vadd.f32 0.0, %v812
          %814 = vmatprep.mubr.bf16.mxu0 %v519
          %815 = vmatmul.mubr.bf16.gmra.mrb[0].mxu0 %v518
          %v816 = vpop.f32.mrb[0].mxu0
          %v817 = vadd.f32 0.0, %v816
          %v818 = vpop.f32.mrb[0].mxu0
          %v819 = vadd.f32 0.0, %v818
          %v820 = vpop.f32.mrb[0].mxu0
          %v821 = vadd.f32 0.0, %v820
          %v822 = vpop.f32.mrb[0].mxu0
          %v823 = vadd.f32 0.0, %v822
          %824 = vmatprep.mubr.bf16.mxu0 %v521
          %825 = vmatmul.mubr.bf16.gmra.mrb[0].mxu0 %v520
          %v826 = vpop.f32.mrb[0].mxu0
          %v827 = vadd.f32 0.0, %v826
          %v828 = vpop.f32.mrb[0].mxu0
          %v829 = vadd.f32 0.0, %v828
          %v830 = vpop.f32.mrb[0].mxu0
          %v831 = vadd.f32 0.0, %v830
          %v832 = vpop.f32.mrb[0].mxu0
          %v833 = vadd.f32 0.0, %v832
          %834 = vmatprep.mubr.bf16.mxu0 %v523
          %835 = vmatmul.mubr.bf16.gmra.mrb[0].mxu0 %v522
          %v836 = vpop.f32.mrb[0].mxu0
          %v837 = vadd.f32 0.0, %v836
          %v838 = vpop.f32.mrb[0].mxu0
          %v839 = vadd.f32 0.0, %v838
          %v840 = vpop.f32.mrb[0].mxu0
          %v841 = vadd.f32 0.0, %v840
          %v842 = vpop.f32.mrb[0].mxu0
          %v843 = vadd.f32 0.0, %v842
          %844 = vmatprep.mubr.bf16.mxu0 %v525
          %845 = vmatmul.mubr.bf16.gmra.mrb[0].mxu0 %v524
          %v846 = vpop.f32.mrb[0].mxu0
          %v847 = vadd.f32 0.0, %v846
          %v848 = vpop.f32.mrb[0].mxu0
          %v849 = vadd.f32 0.0, %v848
          %v850 = vpop.f32.mrb[0].mxu0
          %v851 = vadd.f32 0.0, %v850
          %v852 = vpop.f32.mrb[0].mxu0
          %v853 = vadd.f32 0.0, %v852
          %854 = vmatprep.mubr.bf16.mxu0 %v527
          %855 = vmatmul.mubr.bf16.gmra.mrb[0].mxu0 %v526
          %v856 = vpop.f32.mrb[0].mxu0
          %v857 = vadd.f32 0.0, %v856
          %v858 = vpop.f32.mrb[0].mxu0
          %v859 = vadd.f32 0.0, %v858
          %v860 = vpop.f32.mrb[0].mxu0
          %v861 = vadd.f32 0.0, %v860
          %v862 = vpop.f32.mrb[0].mxu0
          %v863 = vadd.f32 0.0, %v862
          %864 = vmatprep.mubr.bf16.mxu0 %v529
          %865 = vmatmul.mubr.bf16.gmra.mrb[0].mxu0 %v528
          %v866 = vpop.f32.mrb[0].mxu0
          %v867 = vadd.f32 0.0, %v866
          %v868 = vpop.f32.mrb[0].mxu0
          %v869 = vadd.f32 0.0, %v868
          %v870 = vpop.f32.mrb[0].mxu0
          %v871 = vadd.f32 0.0, %v870
          %v872 = vpop.f32.mrb[0].mxu0
          %v873 = vadd.f32 0.0, %v872
          %874 = vmatprep.mubr.bf16.mxu0 %v531
          %875 = vmatmul.mubr.bf16.gmra.mrb[0].mxu0 %v530
          %v876 = vpop.f32.mrb[0].mxu0
          %v877 = vadd.f32 0.0, %v876
          %v878 = vpop.f32.mrb[0].mxu0
          %v879 = vadd.f32 0.0, %v878
          %v880 = vpop.f32.mrb[0].mxu0
          %v881 = vadd.f32 0.0, %v880
          %v882 = vpop.f32.mrb[0].mxu0
          %v883 = vadd.f32 0.0, %v882
          %884 = vmatprep.mubr.bf16.mxu0 %v533
          %885 = vmatmul.mubr.bf16.gmra.mrb[0].mxu0 %v532
          %v886 = vpop.f32.mrb[0].mxu0
          %v887 = vadd.f32 0.0, %v886
          %v888 = vpop.f32.mrb[0].mxu0
          %v889 = vadd.f32 0.0, %v888
          %v890 = vpop.f32.mrb[0].mxu0
          %v891 = vadd.f32 0.0, %v890
          %v892 = vpop.f32.mrb[0].mxu0
          %v893 = vadd.f32 0.0, %v892
          %894 = vmatprep.mubr.bf16.mxu0 %v535
          %895 = vmatmul.mubr.bf16.gmra.mrb[0].mxu0 %v534
          %v896 = vpop.f32.mrb[0].mxu0
          %v897 = vadd.f32 0.0, %v896
          %v898 = vpop.f32.mrb[0].mxu0
          %v899 = vadd.f32 0.0, %v898
          %v900 = vpop.f32.mrb[0].mxu0
          %v901 = vadd.f32 0.0, %v900
          %v902 = vpop.f32.mrb[0].mxu0
          %v903 = vadd.f32 0.0, %v902
          %904 = vmatprep.mubr.bf16.mxu0 %v537
          %905 = vmatmul.mubr.bf16.gmra.mrb[0].mxu0 %v536
          %v906 = vpop.f32.mrb[0].mxu0
          %v907 = vadd.f32 0.0, %v906
          %v908 = vpop.f32.mrb[0].mxu0
          %v909 = vadd.f32 0.0, %v908
          %v910 = vpop.f32.mrb[0].mxu0
          %v911 = vadd.f32 0.0, %v910
          %v912 = vpop.f32.mrb[0].mxu0
          %v913 = vadd.f32 0.0, %v912
          %914 = vmatprep.mubr.bf16.mxu0 %v539
          %915 = vmatmul.mubr.bf16.gmra.mrb[0].mxu0 %v538
          %v916 = vpop.f32.mrb[0].mxu0
          %v917 = vadd.f32 0.0, %v916
          %v918 = vpop.f32.mrb[0].mxu0
          %v919 = vadd.f32 0.0, %v918
          %v920 = vpop.f32.mrb[0].mxu0
          %v921 = vadd.f32 0.0, %v920
          %v922 = vpop.f32.mrb[0].mxu0
          %v923 = vadd.f32 0.0, %v922
          %924 = vdwg.mxu0
          %v925 = vld [vmem:[#allocation10] sm:$0xff]
          %v926 = vld [vmem:[#allocation10 + $0x8] sm:$0xff]
          %v927 = vld [vmem:[#allocation10 + $0x10] sm:$0xff]
          %v928 = vld [vmem:[#allocation10 + $0x18] sm:$0xff]
          %v929 = vld [vmem:[#allocation10 + $0x20] sm:$0xff]
          %v930 = vld [vmem:[#allocation10 + $0x28] sm:$0xff]
          %v931 = vld [vmem:[#allocation10 + $0x30] sm:$0xff]
          %v932 = vld [vmem:[#allocation10 + $0x38] sm:$0xff]
          %v933 = vld [vmem:[#allocation10 + $0x40] sm:$0xff]
          %v934 = vld [vmem:[#allocation10 + $0x48] sm:$0xff]
          %v935 = vld [vmem:[#allocation10 + $0x50] sm:$0xff]
          %v936 = vld [vmem:[#allocation10 + $0x58] sm:$0xff]
          %v937 = vld [vmem:[#allocation10 + $0x60] sm:$0xff]
          %v938 = vld [vmem:[#allocation10 + $0x68] sm:$0xff]
          %v939 = vld [vmem:[#allocation10 + $0x70] sm:$0xff]
          %v940 = vld [vmem:[#allocation10 + $0x78] sm:$0xff]
          %v941 = vld [vmem:[#allocation10 + $0x80] sm:$0xff]
          %v942 = vld [vmem:[#allocation10 + $0x88] sm:$0xff]
          %v943 = vld [vmem:[#allocation10 + $0x90] sm:$0xff]
          %v944 = vld [vmem:[#allocation10 + $0x98] sm:$0xff]
          %v945 = vld [vmem:[#allocation10 + $0xa0] sm:$0xff]
          %v946 = vld [vmem:[#allocation10 + $0xa8] sm:$0xff]
          %v947 = vld [vmem:[#allocation10 + $0xb0] sm:$0xff]
          %v948 = vld [vmem:[#allocation10 + $0xb8] sm:$0xff]
          %v949 = vld [vmem:[#allocation10 + $0xc0] sm:$0xff]
          %v950 = vld [vmem:[#allocation10 + $0xc8] sm:$0xff]
          %v951 = vld [vmem:[#allocation10 + $0xd0] sm:$0xff]
          %v952 = vld [vmem:[#allocation10 + $0xd8] sm:$0xff]
          %v953 = vld [vmem:[#allocation10 + $0xe0] sm:$0xff]
          %v954 = vld [vmem:[#allocation10 + $0xe8] sm:$0xff]
          %v955 = vld [vmem:[#allocation10 + $0xf0] sm:$0xff]
          %v956 = vld [vmem:[#allocation10 + $0xf8] sm:$0xff]
          %v989 = vunpack.c.l.b16 %v925
          %v990 = vunpack.c.h.b16 %v925
          %v991 = vunpack.c.l.b16 %v926
          %v992 = vunpack.c.h.b16 %v926
          %v993 = vunpack.c.l.b16 %v927
          %v994 = vunpack.c.h.b16 %v927
          %v995 = vunpack.c.l.b16 %v928
          %v996 = vunpack.c.h.b16 %v928
          %v997 = vunpack.c.l.b16 %v929
          %v998 = vunpack.c.h.b16 %v929
          %v999 = vunpack.c.l.b16 %v930
          %v1000 = vunpack.c.h.b16 %v930
          %v1001 = vunpack.c.l.b16 %v931
          %v1002 = vunpack.c.h.b16 %v931
          %v1003 = vunpack.c.l.b16 %v932
          %v1004 = vunpack.c.h.b16 %v932
          %v1005 = vunpack.c.l.b16 %v933
          %v1006 = vunpack.c.h.b16 %v933
          %v1007 = vunpack.c.l.b16 %v934
          %v1008 = vunpack.c.h.b16 %v934
          %v1009 = vunpack.c.l.b16 %v935
          %v1010 = vunpack.c.h.b16 %v935
          %v1011 = vunpack.c.l.b16 %v936
          %v1012 = vunpack.c.h.b16 %v936
          %v1013 = vunpack.c.l.b16 %v937
          %v1014 = vunpack.c.h.b16 %v937
          %v1015 = vunpack.c.l.b16 %v938
          %v1016 = vunpack.c.h.b16 %v938
          %v1017 = vunpack.c.l.b16 %v939
          %v1018 = vunpack.c.h.b16 %v939
          %v1019 = vunpack.c.l.b16 %v940
          %v1020 = vunpack.c.h.b16 %v940
          %v1021 = vunpack.c.l.b16 %v941
          %v1022 = vunpack.c.h.b16 %v941
          %v1023 = vunpack.c.l.b16 %v942
          %v1024 = vunpack.c.h.b16 %v942
          %v1025 = vunpack.c.l.b16 %v943
          %v1026 = vunpack.c.h.b16 %v943
          %v1027 = vunpack.c.l.b16 %v944
          %v1028 = vunpack.c.h.b16 %v944
          %v1029 = vunpack.c.l.b16 %v945
          %v1030 = vunpack.c.h.b16 %v945
          %v1031 = vunpack.c.l.b16 %v946
          %v1032 = vunpack.c.h.b16 %v946
          %v1033 = vunpack.c.l.b16 %v947
          %v1034 = vunpack.c.h.b16 %v947
          %v1035 = vunpack.c.l.b16 %v948
          %v1036 = vunpack.c.h.b16 %v948
          %v1037 = vunpack.c.l.b16 %v949
          %v1038 = vunpack.c.h.b16 %v949
          %v1039 = vunpack.c.l.b16 %v950
          %v1040 = vunpack.c.h.b16 %v950
          %v1041 = vunpack.c.l.b16 %v951
          %v1042 = vunpack.c.h.b16 %v951
          %v1043 = vunpack.c.l.b16 %v952
          %v1044 = vunpack.c.h.b16 %v952
          %v1045 = vunpack.c.l.b16 %v953
          %v1046 = vunpack.c.h.b16 %v953
          %v1047 = vunpack.c.l.b16 %v954
          %v1048 = vunpack.c.h.b16 %v954
          %v1049 = vunpack.c.l.b16 %v955
          %v1050 = vunpack.c.h.b16 %v955
          %v1051 = vunpack.c.l.b16 %v956
          %v1052 = vunpack.c.h.b16 %v956
          %v1053 = vpack.c.b16 %v991, %v989
          %v1054 = vpack.c.b16 %v992, %v990
          %v1055 = vpack.c.b16 %v995, %v993
          %v1056 = vpack.c.b16 %v996, %v994
          %v1057 = vpack.c.b16 %v999, %v997
          %v1058 = vpack.c.b16 %v1000, %v998
          %v1059 = vpack.c.b16 %v1003, %v1001
          %v1060 = vpack.c.b16 %v1004, %v1002
          %v1061 = vpack.c.b16 %v1007, %v1005
          %v1062 = vpack.c.b16 %v1008, %v1006
          %v1063 = vpack.c.b16 %v1011, %v1009
          %v1064 = vpack.c.b16 %v1012, %v1010
          %v1065 = vpack.c.b16 %v1015, %v1013
          %v1066 = vpack.c.b16 %v1016, %v1014
          %v1067 = vpack.c.b16 %v1019, %v1017
          %v1068 = vpack.c.b16 %v1020, %v1018
          %v1069 = vpack.c.b16 %v1023, %v1021
          %v1070 = vpack.c.b16 %v1024, %v1022
          %v1071 = vpack.c.b16 %v1027, %v1025
          %v1072 = vpack.c.b16 %v1028, %v1026
          %v1073 = vpack.c.b16 %v1031, %v1029
          %v1074 = vpack.c.b16 %v1032, %v1030
          %v1075 = vpack.c.b16 %v1035, %v1033
          %v1076 = vpack.c.b16 %v1036, %v1034
          %v1077 = vpack.c.b16 %v1039, %v1037
          %v1078 = vpack.c.b16 %v1040, %v1038
          %v1079 = vpack.c.b16 %v1043, %v1041
          %v1080 = vpack.c.b16 %v1044, %v1042
          %v1081 = vpack.c.b16 %v1047, %v1045
          %v1082 = vpack.c.b16 %v1048, %v1046
          %v1083 = vpack.c.b16 %v1051, %v1049
          %v1084 = vpack.c.b16 %v1052, %v1050
          %1117 = vmatprep.subr.bf16.mxu0 %v1054
          %1118 = vmatpush1.bf16.msra.mxu0 %v1053
          %1119 = vmatprep.subr.bf16.mxu0 %v1056
          %1120 = vmatpush1.bf16.msra.mxu0 %v1055
          %1121 = vmatprep.subr.bf16.mxu0 %v1058
          %1122 = vmatpush1.bf16.msra.mxu0 %v1057
          %1123 = vmatprep.subr.bf16.mxu0 %v1060
          %1124 = vmatpush1.bf16.msra.mxu0 %v1059
          %1125 = vmatprep.subr.bf16.mxu0 %v1062
          %1126 = vmatpush1.bf16.msra.mxu0 %v1061
          %1127 = vmatprep.subr.bf16.mxu0 %v1064
          %1128 = vmatpush1.bf16.msra.mxu0 %v1063
          %1129 = vmatprep.subr.bf16.mxu0 %v1066
          %1130 = vmatpush1.bf16.msra.mxu0 %v1065
          %1131 = vmatprep.subr.bf16.mxu0 %v1068
          %1132 = vmatpush1.bf16.msra.mxu0 %v1067
          %1133 = vmatprep.subr.bf16.mxu0 %v1070
          %1134 = vmatpush1.bf16.msra.mxu0 %v1069
          %1135 = vmatprep.subr.bf16.mxu0 %v1072
          %1136 = vmatpush1.bf16.msra.mxu0 %v1071
          %1137 = vmatprep.subr.bf16.mxu0 %v1074
          %1138 = vmatpush1.bf16.msra.mxu0 %v1073
          %1139 = vmatprep.subr.bf16.mxu0 %v1076
          %1140 = vmatpush1.bf16.msra.mxu0 %v1075
          %1141 = vmatprep.subr.bf16.mxu0 %v1078
          %1142 = vmatpush1.bf16.msra.mxu0 %v1077
          %1143 = vmatprep.subr.bf16.mxu0 %v1080
          %1144 = vmatpush1.bf16.msra.mxu0 %v1079
          %1145 = vmatprep.subr.bf16.mxu0 %v1082
          %1146 = vmatpush1.bf16.msra.mxu0 %v1081
          %1147 = vmatprep.subr.bf16.mxu0 %v1084
          %1148 = vmatpush1.bf16.msra.mxu0 %v1083
          %1149 = vmatprep.mubr.bf16.mxu0 %v509
          %1150 = vmatmul.mubr.bf16.gmra.mrb[0].mxu0 %v508
          %v1151 = vpop.f32.mrb[0].mxu0
          %v1152 = vadd.f32 0.0, %v1151
          %v1153 = vpop.f32.mrb[0].mxu0
          %v1154 = vadd.f32 0.0, %v1153
          %v1155 = vpop.f32.mrb[0].mxu0
          %v1156 = vadd.f32 0.0, %v1155
          %v1157 = vpop.f32.mrb[0].mxu0
          %v1158 = vadd.f32 0.0, %v1157
          %1159 = vmatprep.mubr.bf16.mxu0 %v511
          %1160 = vmatmul.mubr.bf16.gmra.mrb[0].mxu0 %v510
          %v1161 = vpop.f32.mrb[0].mxu0
          %v1162 = vadd.f32 0.0, %v1161
          %v1163 = vpop.f32.mrb[0].mxu0
          %v1164 = vadd.f32 0.0, %v1163
          %v1165 = vpop.f32.mrb[0].mxu0
          %v1166 = vadd.f32 0.0, %v1165
          %v1167 = vpop.f32.mrb[0].mxu0
          %v1168 = vadd.f32 0.0, %v1167
          %1169 = vmatprep.mubr.bf16.mxu0 %v513
          %1170 = vmatmul.mubr.bf16.gmra.mrb[0].mxu0 %v512
          %v1171 = vpop.f32.mrb[0].mxu0
          %v1172 = vadd.f32 0.0, %v1171
          %v1173 = vpop.f32.mrb[0].mxu0
          %v1174 = vadd.f32 0.0, %v1173
          %v1175 = vpop.f32.mrb[0].mxu0
          %v1176 = vadd.f32 0.0, %v1175
          %v1177 = vpop.f32.mrb[0].mxu0
          %v1178 = vadd.f32 0.0, %v1177
          %1179 = vmatprep.mubr.bf16.mxu0 %v515
          %1180 = vmatmul.mubr.bf16.gmra.mrb[0].mxu0 %v514
          %v1181 = vpop.f32.mrb[0].mxu0
          %v1182 = vadd.f32 0.0, %v1181
          %v1183 = vpop.f32.mrb[0].mxu0
          %v1184 = vadd.f32 0.0, %v1183
          %v1185 = vpop.f32.mrb[0].mxu0
          %v1186 = vadd.f32 0.0, %v1185
          %v1187 = vpop.f32.mrb[0].mxu0
          %v1188 = vadd.f32 0.0, %v1187
          %1189 = vmatprep.mubr.bf16.mxu0 %v517
          %1190 = vmatmul.mubr.bf16.gmra.mrb[0].mxu0 %v516
          %v1191 = vpop.f32.mrb[0].mxu0
          %v1192 = vadd.f32 0.0, %v1191
          %v1193 = vpop.f32.mrb[0].mxu0
          %v1194 = vadd.f32 0.0, %v1193
          %v1195 = vpop.f32.mrb[0].mxu0
          %v1196 = vadd.f32 0.0, %v1195
          %v1197 = vpop.f32.mrb[0].mxu0
          %v1198 = vadd.f32 0.0, %v1197
          %1199 = vmatprep.mubr.bf16.mxu0 %v519
          %1200 = vmatmul.mubr.bf16.gmra.mrb[0].mxu0 %v518
          %v1201 = vpop.f32.mrb[0].mxu0
          %v1202 = vadd.f32 0.0, %v1201
          %v1203 = vpop.f32.mrb[0].mxu0
          %v1204 = vadd.f32 0.0, %v1203
          %v1205 = vpop.f32.mrb[0].mxu0
          %v1206 = vadd.f32 0.0, %v1205
          %v1207 = vpop.f32.mrb[0].mxu0
          %v1208 = vadd.f32 0.0, %v1207
          %1209 = vmatprep.mubr.bf16.mxu0 %v521
          %1210 = vmatmul.mubr.bf16.gmra.mrb[0].mxu0 %v520
          %v1211 = vpop.f32.mrb[0].mxu0
          %v1212 = vadd.f32 0.0, %v1211
          %v1213 = vpop.f32.mrb[0].mxu0
          %v1214 = vadd.f32 0.0, %v1213
          %v1215 = vpop.f32.mrb[0].mxu0
          %v1216 = vadd.f32 0.0, %v1215
          %v1217 = vpop.f32.mrb[0].mxu0
          %v1218 = vadd.f32 0.0, %v1217
          %1219 = vmatprep.mubr.bf16.mxu0 %v523
          %1220 = vmatmul.mubr.bf16.gmra.mrb[0].mxu0 %v522
          %v1221 = vpop.f32.mrb[0].mxu0
          %v1222 = vadd.f32 0.0, %v1221
          %v1223 = vpop.f32.mrb[0].mxu0
          %v1224 = vadd.f32 0.0, %v1223
          %v1225 = vpop.f32.mrb[0].mxu0
          %v1226 = vadd.f32 0.0, %v1225
          %v1227 = vpop.f32.mrb[0].mxu0
          %v1228 = vadd.f32 0.0, %v1227
          %1229 = vmatprep.mubr.bf16.mxu0 %v525
          %1230 = vmatmul.mubr.bf16.gmra.mrb[0].mxu0 %v524
          %v1231 = vpop.f32.mrb[0].mxu0
          %v1232 = vadd.f32 0.0, %v1231
          %v1233 = vpop.f32.mrb[0].mxu0
          %v1234 = vadd.f32 0.0, %v1233
          %v1235 = vpop.f32.mrb[0].mxu0
          %v1236 = vadd.f32 0.0, %v1235
          %v1237 = vpop.f32.mrb[0].mxu0
          %v1238 = vadd.f32 0.0, %v1237
          %1239 = vmatprep.mubr.bf16.mxu0 %v527
          %1240 = vmatmul.mubr.bf16.gmra.mrb[0].mxu0 %v526
          %v1241 = vpop.f32.mrb[0].mxu0
          %v1242 = vadd.f32 0.0, %v1241
          %v1243 = vpop.f32.mrb[0].mxu0
          %v1244 = vadd.f32 0.0, %v1243
          %v1245 = vpop.f32.mrb[0].mxu0
          %v1246 = vadd.f32 0.0, %v1245
          %v1247 = vpop.f32.mrb[0].mxu0
          %v1248 = vadd.f32 0.0, %v1247
          %1249 = vmatprep.mubr.bf16.mxu0 %v529
          %1250 = vmatmul.mubr.bf16.gmra.mrb[0].mxu0 %v528
          %v1251 = vpop.f32.mrb[0].mxu0
          %v1252 = vadd.f32 0.0, %v1251
          %v1253 = vpop.f32.mrb[0].mxu0
          %v1254 = vadd.f32 0.0, %v1253
          %v1255 = vpop.f32.mrb[0].mxu0
          %v1256 = vadd.f32 0.0, %v1255
          %v1257 = vpop.f32.mrb[0].mxu0
          %v1258 = vadd.f32 0.0, %v1257
          %1259 = vmatprep.mubr.bf16.mxu0 %v531
          %1260 = vmatmul.mubr.bf16.gmra.mrb[0].mxu0 %v530
          %v1261 = vpop.f32.mrb[0].mxu0
          %v1262 = vadd.f32 0.0, %v1261
          %v1263 = vpop.f32.mrb[0].mxu0
          %v1264 = vadd.f32 0.0, %v1263
          %v1265 = vpop.f32.mrb[0].mxu0
          %v1266 = vadd.f32 0.0, %v1265
          %v1267 = vpop.f32.mrb[0].mxu0
          %v1268 = vadd.f32 0.0, %v1267
          %1269 = vmatprep.mubr.bf16.mxu0 %v533
          %1270 = vmatmul.mubr.bf16.gmra.mrb[0].mxu0 %v532
          %v1271 = vpop.f32.mrb[0].mxu0
          %v1272 = vadd.f32 0.0, %v1271
          %v1273 = vpop.f32.mrb[0].mxu0
          %v1274 = vadd.f32 0.0, %v1273
          %v1275 = vpop.f32.mrb[0].mxu0
          %v1276 = vadd.f32 0.0, %v1275
          %v1277 = vpop.f32.mrb[0].mxu0
          %v1278 = vadd.f32 0.0, %v1277
          %1279 = vmatprep.mubr.bf16.mxu0 %v535
          %1280 = vmatmul.mubr.bf16.gmra.mrb[0].mxu0 %v534
          %v1281 = vpop.f32.mrb[0].mxu0
          %v1282 = vadd.f32 0.0, %v1281
          %v1283 = vpop.f32.mrb[0].mxu0
          %v1284 = vadd.f32 0.0, %v1283
          %v1285 = vpop.f32.mrb[0].mxu0
          %v1286 = vadd.f32 0.0, %v1285
          %v1287 = vpop.f32.mrb[0].mxu0
          %v1288 = vadd.f32 0.0, %v1287
          %1289 = vmatprep.mubr.bf16.mxu0 %v537
          %1290 = vmatmul.mubr.bf16.gmra.mrb[0].mxu0 %v536
          %v1291 = vpop.f32.mrb[0].mxu0
          %v1292 = vadd.f32 0.0, %v1291
          %v1293 = vpop.f32.mrb[0].mxu0
          %v1294 = vadd.f32 0.0, %v1293
          %v1295 = vpop.f32.mrb[0].mxu0
          %v1296 = vadd.f32 0.0, %v1295
          %v1297 = vpop.f32.mrb[0].mxu0
          %v1298 = vadd.f32 0.0, %v1297
          %1299 = vmatprep.mubr.bf16.mxu0 %v539
          %1300 = vmatmul.mubr.bf16.gmra.mrb[0].mxu0 %v538
          %v1301 = vpop.f32.mrb[0].mxu0
          %v1302 = vadd.f32 0.0, %v1301
          %v1303 = vpop.f32.mrb[0].mxu0
          %v1304 = vadd.f32 0.0, %v1303
          %v1305 = vpop.f32.mrb[0].mxu0
          %v1306 = vadd.f32 0.0, %v1305
          %v1307 = vpop.f32.mrb[0].mxu0
          %v1308 = vadd.f32 0.0, %v1307
          %1309 = vdwg.mxu0
          %v1310 = vpack.c.bf16 %v771, %v767
          %v1311 = vpack.c.bf16 %v773, %v769
          %v1312 = vpack.c.bf16 %v781, %v777
          %v1313 = vpack.c.bf16 %v783, %v779
          %v1314 = vpack.c.bf16 %v791, %v787
          %v1315 = vpack.c.bf16 %v793, %v789
          %v1316 = vpack.c.bf16 %v801, %v797
          %v1317 = vpack.c.bf16 %v803, %v799
          %v1318 = vpack.c.bf16 %v811, %v807
          %v1319 = vpack.c.bf16 %v813, %v809
          %v1320 = vpack.c.bf16 %v821, %v817
          %v1321 = vpack.c.bf16 %v823, %v819
          %v1322 = vpack.c.bf16 %v831, %v827
          %v1323 = vpack.c.bf16 %v833, %v829
          %v1324 = vpack.c.bf16 %v841, %v837
          %v1325 = vpack.c.bf16 %v843, %v839
          %v1326 = vpack.c.bf16 %v851, %v847
          %v1327 = vpack.c.bf16 %v853, %v849
          %v1328 = vpack.c.bf16 %v861, %v857
          %v1329 = vpack.c.bf16 %v863, %v859
          %v1330 = vpack.c.bf16 %v871, %v867
          %v1331 = vpack.c.bf16 %v873, %v869
          %v1332 = vpack.c.bf16 %v881, %v877
          %v1333 = vpack.c.bf16 %v883, %v879
          %v1334 = vpack.c.bf16 %v891, %v887
          %v1335 = vpack.c.bf16 %v893, %v889
          %v1336 = vpack.c.bf16 %v901, %v897
          %v1337 = vpack.c.bf16 %v903, %v899
          %v1338 = vpack.c.bf16 %v911, %v907
          %v1339 = vpack.c.bf16 %v913, %v909
          %v1340 = vpack.c.bf16 %v921, %v917
          %v1341 = vpack.c.bf16 %v923, %v919
          %v1342 = vpack.c.bf16 %v1156, %v1152
          %v1343 = vpack.c.bf16 %v1158, %v1154
          %v1344 = vpack.c.bf16 %v1166, %v1162
          %v1345 = vpack.c.bf16 %v1168, %v1164
          %v1346 = vpack.c.bf16 %v1176, %v1172
          %v1347 = vpack.c.bf16 %v1178, %v1174
          %v1348 = vpack.c.bf16 %v1186, %v1182
          %v1349 = vpack.c.bf16 %v1188, %v1184
          %v1350 = vpack.c.bf16 %v1196, %v1192
          %v1351 = vpack.c.bf16 %v1198, %v1194
          %v1352 = vpack.c.bf16 %v1206, %v1202
          %v1353 = vpack.c.bf16 %v1208, %v1204
          %v1354 = vpack.c.bf16 %v1216, %v1212
          %v1355 = vpack.c.bf16 %v1218, %v1214
          %v1356 = vpack.c.bf16 %v1226, %v1222
          %v1357 = vpack.c.bf16 %v1228, %v1224
          %v1358 = vpack.c.bf16 %v1236, %v1232
          %v1359 = vpack.c.bf16 %v1238, %v1234
          %v1360 = vpack.c.bf16 %v1246, %v1242
          %v1361 = vpack.c.bf16 %v1248, %v1244
          %v1362 = vpack.c.bf16 %v1256, %v1252
          %v1363 = vpack.c.bf16 %v1258, %v1254
          %v1364 = vpack.c.bf16 %v1266, %v1262
          %v1365 = vpack.c.bf16 %v1268, %v1264
          %v1366 = vpack.c.bf16 %v1276, %v1272
          %v1367 = vpack.c.bf16 %v1278, %v1274
          %v1368 = vpack.c.bf16 %v1286, %v1282
          %v1369 = vpack.c.bf16 %v1288, %v1284
          %v1370 = vpack.c.bf16 %v1296, %v1292
          %v1371 = vpack.c.bf16 %v1298, %v1294
          %v1372 = vpack.c.bf16 %v1306, %v1302
          %v1373 = vpack.c.bf16 %v1308, %v1304
          %1374 = vst [vmem:[#allocation2] sm:$0xff] %v1310
          %1375 = vst [vmem:[#allocation2 + $0x8] sm:$0xff] %v1312
          %1376 = vst [vmem:[#allocation2 + $0x10] sm:$0xff] %v1314
          %1377 = vst [vmem:[#allocation2 + $0x18] sm:$0xff] %v1316
          %1378 = vst [vmem:[#allocation2 + $0x20] sm:$0xff] %v1318
          %1379 = vst [vmem:[#allocation2 + $0x28] sm:$0xff] %v1320
          %1380 = vst [vmem:[#allocation2 + $0x30] sm:$0xff] %v1322
          %1381 = vst [vmem:[#allocation2 + $0x38] sm:$0xff] %v1324
          %1382 = vst [vmem:[#allocation2 + $0x40] sm:$0xff] %v1326
          %1383 = vst [vmem:[#allocation2 + $0x48] sm:$0xff] %v1328
          %1384 = vst [vmem:[#allocation2 + $0x50] sm:$0xff] %v1330
          %1385 = vst [vmem:[#allocation2 + $0x58] sm:$0xff] %v1332
          %1386 = vst [vmem:[#allocation2 + $0x60] sm:$0xff] %v1334
          %1387 = vst [vmem:[#allocation2 + $0x68] sm:$0xff] %v1336
          %1388 = vst [vmem:[#allocation2 + $0x70] sm:$0xff] %v1338
          %1389 = vst [vmem:[#allocation2 + $0x78] sm:$0xff] %v1340
          %1390 = vst [vmem:[#allocation2 + $0x80] sm:$0xff] %v1311
          %1391 = vst [vmem:[#allocation2 + $0x88] sm:$0xff] %v1313
          %1392 = vst [vmem:[#allocation2 + $0x90] sm:$0xff] %v1315
          %1393 = vst [vmem:[#allocation2 + $0x98] sm:$0xff] %v1317
          %1394 = vst [vmem:[#allocation2 + $0xa0] sm:$0xff] %v1319
          %1395 = vst [vmem:[#allocation2 + $0xa8] sm:$0xff] %v1321
          %1396 = vst [vmem:[#allocation2 + $0xb0] sm:$0xff] %v1323
          %1397 = vst [vmem:[#allocation2 + $0xb8] sm:$0xff] %v1325
          %1398 = vst [vmem:[#allocation2 + $0xc0] sm:$0xff] %v1327
          %1399 = vst [vmem:[#allocation2 + $0xc8] sm:$0xff] %v1329
          %1400 = vst [vmem:[#allocation2 + $0xd0] sm:$0xff] %v1331
          %1401 = vst [vmem:[#allocation2 + $0xd8] sm:$0xff] %v1333
          %1402 = vst [vmem:[#allocation2 + $0xe0] sm:$0xff] %v1335
          %1403 = vst [vmem:[#allocation2 + $0xe8] sm:$0xff] %v1337
          %1404 = vst [vmem:[#allocation2 + $0xf0] sm:$0xff] %v1339
          %1405 = vst [vmem:[#allocation2 + $0xf8] sm:$0xff] %v1341
          %1406 = vst [vmem:[#allocation3] sm:$0xff] %v1342
          %1407 = vst [vmem:[#allocation3 + $0x8] sm:$0xff] %v1344
          %1408 = vst [vmem:[#allocation3 + $0x10] sm:$0xff] %v1346
          %1409 = vst [vmem:[#allocation3 + $0x18] sm:$0xff] %v1348
          %1410 = vst [vmem:[#allocation3 + $0x20] sm:$0xff] %v1350
          %1411 = vst [vmem:[#allocation3 + $0x28] sm:$0xff] %v1352
          %1412 = vst [vmem:[#allocation3 + $0x30] sm:$0xff] %v1354
          %1413 = vst [vmem:[#allocation3 + $0x38] sm:$0xff] %v1356
          %1414 = vst [vmem:[#allocation3 + $0x40] sm:$0xff] %v1358
          %1415 = vst [vmem:[#allocation3 + $0x48] sm:$0xff] %v1360
          %1416 = vst [vmem:[#allocation3 + $0x50] sm:$0xff] %v1362
          %1417 = vst [vmem:[#allocation3 + $0x58] sm:$0xff] %v1364
          %1418 = vst [vmem:[#allocation3 + $0x60] sm:$0xff] %v1366
          %1419 = vst [vmem:[#allocation3 + $0x68] sm:$0xff] %v1368
          %1420 = vst [vmem:[#allocation3 + $0x70] sm:$0xff] %v1370
          %1421 = vst [vmem:[#allocation3 + $0x78] sm:$0xff] %v1372
          %1422 = vst [vmem:[#allocation3 + $0x80] sm:$0xff] %v1343
          %1423 = vst [vmem:[#allocation3 + $0x88] sm:$0xff] %v1345
          %1424 = vst [vmem:[#allocation3 + $0x90] sm:$0xff] %v1347
          %1425 = vst [vmem:[#allocation3 + $0x98] sm:$0xff] %v1349
          %1426 = vst [vmem:[#allocation3 + $0xa0] sm:$0xff] %v1351
          %1427 = vst [vmem:[#allocation3 + $0xa8] sm:$0xff] %v1353
          %1428 = vst [vmem:[#allocation3 + $0xb0] sm:$0xff] %v1355
          %1429 = vst [vmem:[#allocation3 + $0xb8] sm:$0xff] %v1357
          %1430 = vst [vmem:[#allocation3 + $0xc0] sm:$0xff] %v1359
          %1431 = vst [vmem:[#allocation3 + $0xc8] sm:$0xff] %v1361
          %1432 = vst [vmem:[#allocation3 + $0xd0] sm:$0xff] %v1363
          %1433 = vst [vmem:[#allocation3 + $0xd8] sm:$0xff] %v1365
          %1434 = vst [vmem:[#allocation3 + $0xe0] sm:$0xff] %v1367
          %1435 = vst [vmem:[#allocation3 + $0xe8] sm:$0xff] %v1369
          %1436 = vst [vmem:[#allocation3 + $0xf0] sm:$0xff] %v1371
          %1437 = vst [vmem:[#allocation3 + $0xf8] sm:$0xff] %v1373
        $region68: #{tpu_custom_call.1} parent=43 // pred_fallthru
          _
        %s1438 = smul.u32 %s30, 128
        %s1439 = sshra.s32 %s1438, 3
        %s1440 = sand.u32 %s1438, 7
        %s1441 = smul.u32 %s1439, 2
        %s1442 = smul.addr %s1441, 4
        %s1443 = scalar_lea.vmem %s297, %s1442 [#allocation4]
        %v1444 = vld [vmem:[%s1443] sm:$0xff]
        %v1445 = vld [vmem:[%s1443 + $0x8] sm:$0xff]
        %v1446 = vld [vmem:[%s1443 + $0x10] sm:$0xff]
        %v1447 = vld [vmem:[%s1443 + $0x18] sm:$0xff]
        %v1448 = vld [vmem:[%s1443 + $0x20] sm:$0xff]
        %v1449 = vld [vmem:[%s1443 + $0x28] sm:$0xff]
        %v1450 = vld [vmem:[%s1443 + $0x30] sm:$0xff]
        %v1451 = vld [vmem:[%s1443 + $0x38] sm:$0xff]
        %v1452 = vld [vmem:[%s1443 + $0x40] sm:$0xff]
        %v1453 = vld [vmem:[%s1443 + $0x48] sm:$0xff]
        %v1454 = vld [vmem:[%s1443 + $0x50] sm:$0xff]
        %v1455 = vld [vmem:[%s1443 + $0x58] sm:$0xff]
        %v1456 = vld [vmem:[%s1443 + $0x60] sm:$0xff]
        %v1457 = vld [vmem:[%s1443 + $0x68] sm:$0xff]
        %v1458 = vld [vmem:[%s1443 + $0x70] sm:$0xff]
        %v1459 = vld [vmem:[%s1443 + $0x78] sm:$0xff]
        %v1460 = vld [vmem:[#allocation7] sm:$0xff]
        %v1461 = vld [vmem:[#allocation7 + $0x8] sm:$0xff]
        %v1462 = vld [vmem:[#allocation7 + $0x10] sm:$0xff]
        %v1463 = vld [vmem:[#allocation7 + $0x18] sm:$0xff]
        %v1464 = vld [vmem:[#allocation7 + $0x20] sm:$0xff]
        %v1465 = vld [vmem:[#allocation7 + $0x28] sm:$0xff]
        %v1466 = vld [vmem:[#allocation7 + $0x30] sm:$0xff]
        %v1467 = vld [vmem:[#allocation7 + $0x38] sm:$0xff]
        %v1468 = vld [vmem:[#allocation7 + $0x40] sm:$0xff]
        %v1469 = vld [vmem:[#allocation7 + $0x48] sm:$0xff]
        %v1470 = vld [vmem:[#allocation7 + $0x50] sm:$0xff]
        %v1471 = vld [vmem:[#allocation7 + $0x58] sm:$0xff]
        %v1472 = vld [vmem:[#allocation7 + $0x60] sm:$0xff]
        %v1473 = vld [vmem:[#allocation7 + $0x68] sm:$0xff]
        %v1474 = vld [vmem:[#allocation7 + $0x70] sm:$0xff]
        %v1475 = vld [vmem:[#allocation7 + $0x78] sm:$0xff]
        %v1476 = vld [vmem:[#allocation7 + $0x80] sm:$0xff]
        %v1477 = vld [vmem:[#allocation7 + $0x88] sm:$0xff]
        %v1478 = vld [vmem:[#allocation7 + $0x90] sm:$0xff]
        %v1479 = vld [vmem:[#allocation7 + $0x98] sm:$0xff]
        %v1480 = vld [vmem:[#allocation7 + $0xa0] sm:$0xff]
        %v1481 = vld [vmem:[#allocation7 + $0xa8] sm:$0xff]
        %v1482 = vld [vmem:[#allocation7 + $0xb0] sm:$0xff]
        %v1483 = vld [vmem:[#allocation7 + $0xb8] sm:$0xff]
        %v1484 = vld [vmem:[#allocation7 + $0xc0] sm:$0xff]
        %v1485 = vld [vmem:[#allocation7 + $0xc8] sm:$0xff]
        %v1486 = vld [vmem:[#allocation7 + $0xd0] sm:$0xff]
        %v1487 = vld [vmem:[#allocation7 + $0xd8] sm:$0xff]
        %v1488 = vld [vmem:[#allocation7 + $0xe0] sm:$0xff]
        %v1489 = vld [vmem:[#allocation7 + $0xe8] sm:$0xff]
        %v1490 = vld [vmem:[#allocation7 + $0xf0] sm:$0xff]
        %v1491 = vld [vmem:[#allocation7 + $0xf8] sm:$0xff]
        %v1508 = vunpack.c.l.b16 %v1444
        %v1509 = vunpack.c.h.b16 %v1444
        %v1510 = vunpack.c.l.b16 %v1445
        %v1511 = vunpack.c.h.b16 %v1445
        %v1512 = vunpack.c.l.b16 %v1446
        %v1513 = vunpack.c.h.b16 %v1446
        %v1514 = vunpack.c.l.b16 %v1447
        %v1515 = vunpack.c.h.b16 %v1447
        %v1516 = vunpack.c.l.b16 %v1448
        %v1517 = vunpack.c.h.b16 %v1448
        %v1518 = vunpack.c.l.b16 %v1449
        %v1519 = vunpack.c.h.b16 %v1449
        %v1520 = vunpack.c.l.b16 %v1450
        %v1521 = vunpack.c.h.b16 %v1450
        %v1522 = vunpack.c.l.b16 %v1451
        %v1523 = vunpack.c.h.b16 %v1451
        %v1524 = vunpack.c.l.b16 %v1452
        %v1525 = vunpack.c.h.b16 %v1452
        %v1526 = vunpack.c.l.b16 %v1453
        %v1527 = vunpack.c.h.b16 %v1453
        %v1528 = vunpack.c.l.b16 %v1454
        %v1529 = vunpack.c.h.b16 %v1454
        %v1530 = vunpack.c.l.b16 %v1455
        %v1531 = vunpack.c.h.b16 %v1455
        %v1532 = vunpack.c.l.b16 %v1456
        %v1533 = vunpack.c.h.b16 %v1456
        %v1534 = vunpack.c.l.b16 %v1457
        %v1535 = vunpack.c.h.b16 %v1457
        %v1536 = vunpack.c.l.b16 %v1458
        %v1537 = vunpack.c.h.b16 %v1458
        %v1538 = vunpack.c.l.b16 %v1459
        %v1539 = vunpack.c.h.b16 %v1459
        %v1540 = vpack.c.b16 %v1510, %v1508
        %v1541 = vpack.c.b16 %v1511, %v1509
        %v1542 = vpack.c.b16 %v1514, %v1512
        %v1543 = vpack.c.b16 %v1515, %v1513
        %v1544 = vpack.c.b16 %v1518, %v1516
        %v1545 = vpack.c.b16 %v1519, %v1517
        %v1546 = vpack.c.b16 %v1522, %v1520
        %v1547 = vpack.c.b16 %v1523, %v1521
        %v1548 = vpack.c.b16 %v1526, %v1524
        %v1549 = vpack.c.b16 %v1527, %v1525
        %v1550 = vpack.c.b16 %v1530, %v1528
        %v1551 = vpack.c.b16 %v1531, %v1529
        %v1552 = vpack.c.b16 %v1534, %v1532
        %v1553 = vpack.c.b16 %v1535, %v1533
        %v1554 = vpack.c.b16 %v1538, %v1536
        %v1555 = vpack.c.b16 %v1539, %v1537
        %v1604 = vunpack.c.l.b16 %v1460
        %v1605 = vunpack.c.h.b16 %v1460
        %v1606 = vunpack.c.l.b16 %v1461
        %v1607 = vunpack.c.h.b16 %v1461
        %v1608 = vunpack.c.l.b16 %v1462
        %v1609 = vunpack.c.h.b16 %v1462
        %v1610 = vunpack.c.l.b16 %v1463
        %v1611 = vunpack.c.h.b16 %v1463
        %v1612 = vunpack.c.l.b16 %v1464
        %v1613 = vunpack.c.h.b16 %v1464
        %v1614 = vunpack.c.l.b16 %v1465
        %v1615 = vunpack.c.h.b16 %v1465
        %v1616 = vunpack.c.l.b16 %v1466
        %v1617 = vunpack.c.h.b16 %v1466
        %v1618 = vunpack.c.l.b16 %v1467
        %v1619 = vunpack.c.h.b16 %v1467
        %v1620 = vunpack.c.l.b16 %v1468
        %v1621 = vunpack.c.h.b16 %v1468
        %v1622 = vunpack.c.l.b16 %v1469
        %v1623 = vunpack.c.h.b16 %v1469
        %v1624 = vunpack.c.l.b16 %v1470
        %v1625 = vunpack.c.h.b16 %v1470
        %v1626 = vunpack.c.l.b16 %v1471
        %v1627 = vunpack.c.h.b16 %v1471
        %v1628 = vunpack.c.l.b16 %v1472
        %v1629 = vunpack.c.h.b16 %v1472
        %v1630 = vunpack.c.l.b16 %v1473
        %v1631 = vunpack.c.h.b16 %v1473
        %v1632 = vunpack.c.l.b16 %v1474
        %v1633 = vunpack.c.h.b16 %v1474
        %v1634 = vunpack.c.l.b16 %v1475
        %v1635 = vunpack.c.h.b16 %v1475
        %v1636 = vunpack.c.l.b16 %v1476
        %v1637 = vunpack.c.h.b16 %v1476
        %v1638 = vunpack.c.l.b16 %v1477
        %v1639 = vunpack.c.h.b16 %v1477
        %v1640 = vunpack.c.l.b16 %v1478
        %v1641 = vunpack.c.h.b16 %v1478
        %v1642 = vunpack.c.l.b16 %v1479
        %v1643 = vunpack.c.h.b16 %v1479
        %v1644 = vunpack.c.l.b16 %v1480
        %v1645 = vunpack.c.h.b16 %v1480
        %v1646 = vunpack.c.l.b16 %v1481
        %v1647 = vunpack.c.h.b16 %v1481
        %v1648 = vunpack.c.l.b16 %v1482
        %v1649 = vunpack.c.h.b16 %v1482
        %v1650 = vunpack.c.l.b16 %v1483
        %v1651 = vunpack.c.h.b16 %v1483
        %v1652 = vunpack.c.l.b16 %v1484
        %v1653 = vunpack.c.h.b16 %v1484
        %v1654 = vunpack.c.l.b16 %v1485
        %v1655 = vunpack.c.h.b16 %v1485
        %v1656 = vunpack.c.l.b16 %v1486
        %v1657 = vunpack.c.h.b16 %v1486
        %v1658 = vunpack.c.l.b16 %v1487
        %v1659 = vunpack.c.h.b16 %v1487
        %v1660 = vunpack.c.l.b16 %v1488
        %v1661 = vunpack.c.h.b16 %v1488
        %v1662 = vunpack.c.l.b16 %v1489
        %v1663 = vunpack.c.h.b16 %v1489
        %v1664 = vunpack.c.l.b16 %v1490
        %v1665 = vunpack.c.h.b16 %v1490
        %v1666 = vunpack.c.l.b16 %v1491
        %v1667 = vunpack.c.h.b16 %v1491
        %v1668 = vpack.c.b16 %v1606, %v1604
        %v1669 = vpack.c.b16 %v1607, %v1605
        %v1670 = vpack.c.b16 %v1610, %v1608
        %v1671 = vpack.c.b16 %v1611, %v1609
        %v1672 = vpack.c.b16 %v1614, %v1612
        %v1673 = vpack.c.b16 %v1615, %v1613
        %v1674 = vpack.c.b16 %v1618, %v1616
        %v1675 = vpack.c.b16 %v1619, %v1617
        %v1676 = vpack.c.b16 %v1622, %v1620
        %v1677 = vpack.c.b16 %v1623, %v1621
        %v1678 = vpack.c.b16 %v1626, %v1624
        %v1679 = vpack.c.b16 %v1627, %v1625
        %v1680 = vpack.c.b16 %v1630, %v1628
        %v1681 = vpack.c.b16 %v1631, %v1629
        %v1682 = vpack.c.b16 %v1634, %v1632
        %v1683 = vpack.c.b16 %v1635, %v1633
        %v1684 = vpack.c.b16 %v1638, %v1636
        %v1685 = vpack.c.b16 %v1639, %v1637
        %v1686 = vpack.c.b16 %v1642, %v1640
        %v1687 = vpack.c.b16 %v1643, %v1641
        %v1688 = vpack.c.b16 %v1646, %v1644
        %v1689 = vpack.c.b16 %v1647, %v1645
        %v1690 = vpack.c.b16 %v1650, %v1648
        %v1691 = vpack.c.b16 %v1651, %v1649
        %v1692 = vpack.c.b16 %v1654, %v1652
        %v1693 = vpack.c.b16 %v1655, %v1653
        %v1694 = vpack.c.b16 %v1658, %v1656
        %v1695 = vpack.c.b16 %v1659, %v1657
        %v1696 = vpack.c.b16 %v1662, %v1660
        %v1697 = vpack.c.b16 %v1663, %v1661
        %v1698 = vpack.c.b16 %v1666, %v1664
        %v1699 = vpack.c.b16 %v1667, %v1665
        %1732 = vmatprep.subr.bf16.mxu0 %v1669
        %1733 = vmatpush1.bf16.msra.mxu0 %v1668
        %1734 = vmatprep.subr.bf16.mxu0 %v1671
        %1735 = vmatpush1.bf16.msra.mxu0 %v1670
        %1736 = vmatprep.subr.bf16.mxu0 %v1673
        %1737 = vmatpush1.bf16.msra.mxu0 %v1672
        %1738 = vmatprep.subr.bf16.mxu0 %v1675
        %1739 = vmatpush1.bf16.msra.mxu0 %v1674
        %1740 = vmatprep.subr.bf16.mxu0 %v1677
        %1741 = vmatpush1.bf16.msra.mxu0 %v1676
        %1742 = vmatprep.subr.bf16.mxu0 %v1679
        %1743 = vmatpush1.bf16.msra.mxu0 %v1678
        %1744 = vmatprep.subr.bf16.mxu0 %v1681
        %1745 = vmatpush1.bf16.msra.mxu0 %v1680
        %1746 = vmatprep.subr.bf16.mxu0 %v1683
        %1747 = vmatpush1.bf16.msra.mxu0 %v1682
        %1748 = vmatprep.subr.bf16.mxu0 %v1685
        %1749 = vmatpush1.bf16.msra.mxu0 %v1684
        %1750 = vmatprep.subr.bf16.mxu0 %v1687
        %1751 = vmatpush1.bf16.msra.mxu0 %v1686
        %1752 = vmatprep.subr.bf16.mxu0 %v1689
        %1753 = vmatpush1.bf16.msra.mxu0 %v1688
        %1754 = vmatprep.subr.bf16.mxu0 %v1691
        %1755 = vmatpush1.bf16.msra.mxu0 %v1690
        %1756 = vmatprep.subr.bf16.mxu0 %v1693
        %1757 = vmatpush1.bf16.msra.mxu0 %v1692
        %1758 = vmatprep.subr.bf16.mxu0 %v1695
        %1759 = vmatpush1.bf16.msra.mxu0 %v1694
        %1760 = vmatprep.subr.bf16.mxu0 %v1697
        %1761 = vmatpush1.bf16.msra.mxu0 %v1696
        %1762 = vmatprep.subr.bf16.mxu0 %v1699
        %1763 = vmatpush1.bf16.msra.mxu0 %v1698
        %1764 = vmatprep.mubr.bf16.mxu0 %v1541
        %1765 = vmatmul.mubr.bf16.gmra.mrb[0].mxu0 %v1540
        %v1766 = vpop.f32.mrb[0].mxu0
        %v1767 = vadd.f32 0.0, %v1766
        %v1768 = vpop.f32.mrb[0].mxu0
        %v1769 = vadd.f32 0.0, %v1768
        %v1770 = vpop.f32.mrb[0].mxu0
        %v1771 = vadd.f32 0.0, %v1770
        %v1772 = vpop.f32.mrb[0].mxu0
        %v1773 = vadd.f32 0.0, %v1772
        %1774 = vmatprep.mubr.bf16.mxu0 %v1543
        %1775 = vmatmul.mubr.bf16.gmra.mrb[0].mxu0 %v1542
        %v1776 = vpop.f32.mrb[0].mxu0
        %v1777 = vadd.f32 0.0, %v1776
        %v1778 = vpop.f32.mrb[0].mxu0
        %v1779 = vadd.f32 0.0, %v1778
        %v1780 = vpop.f32.mrb[0].mxu0
        %v1781 = vadd.f32 0.0, %v1780
        %v1782 = vpop.f32.mrb[0].mxu0
        %v1783 = vadd.f32 0.0, %v1782
        %1784 = vmatprep.mubr.bf16.mxu0 %v1545
        %1785 = vmatmul.mubr.bf16.gmra.mrb[0].mxu0 %v1544
        %v1786 = vpop.f32.mrb[0].mxu0
        %v1787 = vadd.f32 0.0, %v1786
        %v1788 = vpop.f32.mrb[0].mxu0
        %v1789 = vadd.f32 0.0, %v1788
        %v1790 = vpop.f32.mrb[0].mxu0
        %v1791 = vadd.f32 0.0, %v1790
        %v1792 = vpop.f32.mrb[0].mxu0
        %v1793 = vadd.f32 0.0, %v1792
        %1794 = vmatprep.mubr.bf16.mxu0 %v1547
        %1795 = vmatmul.mubr.bf16.gmra.mrb[0].mxu0 %v1546
        %v1796 = vpop.f32.mrb[0].mxu0
        %v1797 = vadd.f32 0.0, %v1796
        %v1798 = vpop.f32.mrb[0].mxu0
        %v1799 = vadd.f32 0.0, %v1798
        %v1800 = vpop.f32.mrb[0].mxu0
        %v1801 = vadd.f32 0.0, %v1800
        %v1802 = vpop.f32.mrb[0].mxu0
        %v1803 = vadd.f32 0.0, %v1802
        %1804 = vmatprep.mubr.bf16.mxu0 %v1549
        %1805 = vmatmul.mubr.bf16.gmra.mrb[0].mxu0 %v1548
        %v1806 = vpop.f32.mrb[0].mxu0
        %v1807 = vadd.f32 0.0, %v1806
        %v1808 = vpop.f32.mrb[0].mxu0
        %v1809 = vadd.f32 0.0, %v1808
        %v1810 = vpop.f32.mrb[0].mxu0
        %v1811 = vadd.f32 0.0, %v1810
        %v1812 = vpop.f32.mrb[0].mxu0
        %v1813 = vadd.f32 0.0, %v1812
        %1814 = vmatprep.mubr.bf16.mxu0 %v1551
        %1815 = vmatmul.mubr.bf16.gmra.mrb[0].mxu0 %v1550
        %v1816 = vpop.f32.mrb[0].mxu0
        %v1817 = vadd.f32 0.0, %v1816
        %v1818 = vpop.f32.mrb[0].mxu0
        %v1819 = vadd.f32 0.0, %v1818
        %v1820 = vpop.f32.mrb[0].mxu0
        %v1821 = vadd.f32 0.0, %v1820
        %v1822 = vpop.f32.mrb[0].mxu0
        %v1823 = vadd.f32 0.0, %v1822
        %1824 = vmatprep.mubr.bf16.mxu0 %v1553
        %1825 = vmatmul.mubr.bf16.gmra.mrb[0].mxu0 %v1552
        %v1826 = vpop.f32.mrb[0].mxu0
        %v1827 = vadd.f32 0.0, %v1826
        %v1828 = vpop.f32.mrb[0].mxu0
        %v1829 = vadd.f32 0.0, %v1828
        %v1830 = vpop.f32.mrb[0].mxu0
        %v1831 = vadd.f32 0.0, %v1830
        %v1832 = vpop.f32.mrb[0].mxu0
        %v1833 = vadd.f32 0.0, %v1832
        %1834 = vmatprep.mubr.bf16.mxu0 %v1555
        %1835 = vmatmul.mubr.bf16.gmra.mrb[0].mxu0 %v1554
        %v1836 = vpop.f32.mrb[0].mxu0
        %v1837 = vadd.f32 0.0, %v1836
        %v1838 = vpop.f32.mrb[0].mxu0
        %v1839 = vadd.f32 0.0, %v1838
        %v1840 = vpop.f32.mrb[0].mxu0
        %v1841 = vadd.f32 0.0, %v1840
        %v1842 = vpop.f32.mrb[0].mxu0
        %v1843 = vadd.f32 0.0, %v1842
        %1844 = vdwg.mxu0
        %v1845 = vmul.f32 %v1767, 0.088388346
        %v1846 = vmul.f32 %v1769, 0.088388346
        %v1847 = vmul.f32 %v1771, 0.088388346
        %v1848 = vmul.f32 %v1773, 0.088388346
        %v1849 = vmul.f32 %v1777, 0.088388346
        %v1850 = vmul.f32 %v1779, 0.088388346
        %v1851 = vmul.f32 %v1781, 0.088388346
        %v1852 = vmul.f32 %v1783, 0.088388346
        %v1853 = vmul.f32 %v1787, 0.088388346
        %v1854 = vmul.f32 %v1789, 0.088388346
        %v1855 = vmul.f32 %v1791, 0.088388346
        %v1856 = vmul.f32 %v1793, 0.088388346
        %v1857 = vmul.f32 %v1797, 0.088388346
        %v1858 = vmul.f32 %v1799, 0.088388346
        %v1859 = vmul.f32 %v1801, 0.088388346
        %v1860 = vmul.f32 %v1803, 0.088388346
        %v1861 = vmul.f32 %v1807, 0.088388346
        %v1862 = vmul.f32 %v1809, 0.088388346
        %v1863 = vmul.f32 %v1811, 0.088388346
        %v1864 = vmul.f32 %v1813, 0.088388346
        %v1865 = vmul.f32 %v1817, 0.088388346
        %v1866 = vmul.f32 %v1819, 0.088388346
        %v1867 = vmul.f32 %v1821, 0.088388346
        %v1868 = vmul.f32 %v1823, 0.088388346
        %v1869 = vmul.f32 %v1827, 0.088388346
        %v1870 = vmul.f32 %v1829, 0.088388346
        %v1871 = vmul.f32 %v1831, 0.088388346
        %v1872 = vmul.f32 %v1833, 0.088388346
        %v1873 = vmul.f32 %v1837, 0.088388346
        %v1874 = vmul.f32 %v1839, 0.088388346
        %v1875 = vmul.f32 %v1841, 0.088388346
        %v1876 = vmul.f32 %v1843, 0.088388346
        %v1877 = vpack.c.bf16 %v1847, %v1845
        %v1878 = vpack.c.bf16 %v1848, %v1846
        %v1879 = vpack.c.bf16 %v1851, %v1849
        %v1880 = vpack.c.bf16 %v1852, %v1850
        %v1881 = vpack.c.bf16 %v1855, %v1853
        %v1882 = vpack.c.bf16 %v1856, %v1854
        %v1883 = vpack.c.bf16 %v1859, %v1857
        %v1884 = vpack.c.bf16 %v1860, %v1858
        %v1885 = vpack.c.bf16 %v1863, %v1861
        %v1886 = vpack.c.bf16 %v1864, %v1862
        %v1887 = vpack.c.bf16 %v1867, %v1865
        %v1888 = vpack.c.bf16 %v1868, %v1866
        %v1889 = vpack.c.bf16 %v1871, %v1869
        %v1890 = vpack.c.bf16 %v1872, %v1870
        %v1891 = vpack.c.bf16 %v1875, %v1873
        %v1892 = vpack.c.bf16 %v1876, %v1874
        loop: start=0, step=1, limit=2
        $region69: #{tpu_custom_call.1} parent=43 // loop_pre_header
          _
        $region70: #{tpu_custom_call.1} parent=43 // loop_header
          %s1894 = sphi 0, %s1898
          %p1895 = scmp.ge.s32.totalorder %s1894, 2
          %v1899 = vphi -inf, %v2292
          %v1900 = vphi -inf, %v2293
          %v1901 = vphi -inf, %v2294
          %v1902 = vphi -inf, %v2295
          %v1903 = vphi -inf, %v2296
          %v1904 = vphi -inf, %v2297
          %v1905 = vphi -inf, %v2298
          %v1906 = vphi -inf, %v2299
          %v1907 = vphi -inf, %v2300
          %v1908 = vphi -inf, %v2301
          %v1909 = vphi -inf, %v2302
          %v1910 = vphi -inf, %v2303
          %v1911 = vphi -inf, %v2304
          %v1912 = vphi -inf, %v2305
          %v1913 = vphi -inf, %v2306
          %v1914 = vphi -inf, %v2307
          %v1915 = vphi -inf, %v2308
          %v1916 = vphi -inf, %v2309
          %v1917 = vphi -inf, %v2310
          %v1918 = vphi -inf, %v2311
          %v1919 = vphi -inf, %v2312
          %v1920 = vphi -inf, %v2313
          %v1921 = vphi -inf, %v2314
          %v1922 = vphi -inf, %v2315
          %v1923 = vphi -inf, %v2316
          %v1924 = vphi -inf, %v2317
          %v1925 = vphi -inf, %v2318
          %v1926 = vphi -inf, %v2319
          %v1927 = vphi -inf, %v2320
          %v1928 = vphi -inf, %v2321
          %v1929 = vphi -inf, %v2322
          %v1930 = vphi -inf, %v2323
          %v1931 = vphi 0.0, %v2612
          %v1932 = vphi 0.0, %v2613
          %v1933 = vphi 0.0, %v2614
          %v1934 = vphi 0.0, %v2615
          %v1935 = vphi 0.0, %v2616
          %v1936 = vphi 0.0, %v2617
          %v1937 = vphi 0.0, %v2618
          %v1938 = vphi 0.0, %v2619
          %v1939 = vphi 0.0, %v2620
          %v1940 = vphi 0.0, %v2621
          %v1941 = vphi 0.0, %v2622
          %v1942 = vphi 0.0, %v2623
          %v1943 = vphi 0.0, %v2624
          %v1944 = vphi 0.0, %v2625
          %v1945 = vphi 0.0, %v2626
          %v1946 = vphi 0.0, %v2627
          %v1947 = vphi 0.0, %v2628
          %v1948 = vphi 0.0, %v2629
          %v1949 = vphi 0.0, %v2630
          %v1950 = vphi 0.0, %v2631
          %v1951 = vphi 0.0, %v2632
          %v1952 = vphi 0.0, %v2633
          %v1953 = vphi 0.0, %v2634
          %v1954 = vphi 0.0, %v2635
          %v1955 = vphi 0.0, %v2636
          %v1956 = vphi 0.0, %v2637
          %v1957 = vphi 0.0, %v2638
          %v1958 = vphi 0.0, %v2639
          %v1959 = vphi 0.0, %v2640
          %v1960 = vphi 0.0, %v2641
          %v1961 = vphi 0.0, %v2642
          %v1962 = vphi 0.0, %v2643
          %v1963 = vphi 0.0, %v2886
          %v1964 = vphi 0.0, %v2887
          %v1965 = vphi 0.0, %v2888
          %v1966 = vphi 0.0, %v2889
          %v1967 = vphi 0.0, %v2890
          %v1968 = vphi 0.0, %v2891
          %v1969 = vphi 0.0, %v2892
          %v1970 = vphi 0.0, %v2893
          %v1971 = vphi 0.0, %v2894
          %v1972 = vphi 0.0, %v2895
          %v1973 = vphi 0.0, %v2896
          %v1974 = vphi 0.0, %v2897
          %v1975 = vphi 0.0, %v2898
          %v1976 = vphi 0.0, %v2899
          %v1977 = vphi 0.0, %v2900
          %v1978 = vphi 0.0, %v2901
          %v1979 = vphi 0.0, %v2902
          %v1980 = vphi 0.0, %v2903
          %v1981 = vphi 0.0, %v2904
          %v1982 = vphi 0.0, %v2905
          %v1983 = vphi 0.0, %v2906
          %v1984 = vphi 0.0, %v2907
          %v1985 = vphi 0.0, %v2908
          %v1986 = vphi 0.0, %v2909
          %v1987 = vphi 0.0, %v2910
          %v1988 = vphi 0.0, %v2911
          %v1989 = vphi 0.0, %v2912
          %v1990 = vphi 0.0, %v2913
          %v1991 = vphi 0.0, %v2914
          %v1992 = vphi 0.0, %v2915
          %v1993 = vphi 0.0, %v2916
          %v1994 = vphi 0.0, %v2917
        $region71: #{tpu_custom_call.1} parent=43 // loop_header_branch
          %1897 = sbr.rel (%p1895) target = $region75
        $region72: #{tpu_custom_call.1} parent=43 // loop_body
          %s1995 = smul.u32 %s1894, 128
          %s1996 = sshra.s32 %s1995, 4
          %s1997 = sand.u32 %s1995, 15
          %s1998 = smul.addr %s1996, 8
          %s1999 = scalar_lea.vmem [#allocation2], %s1998
          %v2000 = vld [vmem:[%s1999] sm:$0xff]
          %v2001 = vld [vmem:[%s1999 + $0x8] sm:$0xff]
          %v2002 = vld [vmem:[%s1999 + $0x10] sm:$0xff]
          %v2003 = vld [vmem:[%s1999 + $0x18] sm:$0xff]
          %v2004 = vld [vmem:[%s1999 + $0x20] sm:$0xff]
          %v2005 = vld [vmem:[%s1999 + $0x28] sm:$0xff]
          %v2006 = vld [vmem:[%s1999 + $0x30] sm:$0xff]
          %v2007 = vld [vmem:[%s1999 + $0x38] sm:$0xff]
          %v2008 = vld [vmem:[%s1999 + $0x80] sm:$0xff]
          %v2009 = vld [vmem:[%s1999 + $0x88] sm:$0xff]
          %v2010 = vld [vmem:[%s1999 + $0x90] sm:$0xff]
          %v2011 = vld [vmem:[%s1999 + $0x98] sm:$0xff]
          %v2012 = vld [vmem:[%s1999 + $0xa0] sm:$0xff]
          %v2013 = vld [vmem:[%s1999 + $0xa8] sm:$0xff]
          %v2014 = vld [vmem:[%s1999 + $0xb0] sm:$0xff]
          %v2015 = vld [vmem:[%s1999 + $0xb8] sm:$0xff]
          %s2016 = smul.addr %s1996, 8
          %s2017 = scalar_lea.vmem [#allocation3], %s2016
          %v2018 = vld [vmem:[%s2017] sm:$0xff]
          %v2019 = vld [vmem:[%s2017 + $0x8] sm:$0xff]
          %v2020 = vld [vmem:[%s2017 + $0x10] sm:$0xff]
          %v2021 = vld [vmem:[%s2017 + $0x18] sm:$0xff]
          %v2022 = vld [vmem:[%s2017 + $0x20] sm:$0xff]
          %v2023 = vld [vmem:[%s2017 + $0x28] sm:$0xff]
          %v2024 = vld [vmem:[%s2017 + $0x30] sm:$0xff]
          %v2025 = vld [vmem:[%s2017 + $0x38] sm:$0xff]
          %v2026 = vld [vmem:[%s2017 + $0x80] sm:$0xff]
          %v2027 = vld [vmem:[%s2017 + $0x88] sm:$0xff]
          %v2028 = vld [vmem:[%s2017 + $0x90] sm:$0xff]
          %v2029 = vld [vmem:[%s2017 + $0x98] sm:$0xff]
          %v2030 = vld [vmem:[%s2017 + $0xa0] sm:$0xff]
          %v2031 = vld [vmem:[%s2017 + $0xa8] sm:$0xff]
          %v2032 = vld [vmem:[%s2017 + $0xb0] sm:$0xff]
          %v2033 = vld [vmem:[%s2017 + $0xb8] sm:$0xff]
          %2034 = vmatprep.subr.bf16.mxu0 0
          %2035 = vmatpush1.bf16.xpose.msra.mxu0 %v2000
          %2036 = vmatprep.subr.bf16.mxu0 0
          %2037 = vmatpush1.bf16.xpose.msra.mxu0 %v2001
          %2038 = vmatprep.subr.bf16.mxu0 0
          %2039 = vmatpush1.bf16.xpose.msra.mxu0 %v2002
          %2040 = vmatprep.subr.bf16.mxu0 0
          %2041 = vmatpush1.bf16.xpose.msra.mxu0 %v2003
          %2042 = vmatprep.subr.bf16.mxu0 0
          %2043 = vmatpush1.bf16.xpose.msra.mxu0 %v2004
          %2044 = vmatprep.subr.bf16.mxu0 0
          %2045 = vmatpush1.bf16.xpose.msra.mxu0 %v2005
          %2046 = vmatprep.subr.bf16.mxu0 0
          %2047 = vmatpush1.bf16.xpose.msra.mxu0 %v2006
          %2048 = vmatprep.subr.bf16.mxu0 0
          %2049 = vmatpush1.bf16.xpose.msra.mxu0 %v2007
          %2050 = vmatprep.subr.bf16.mxu0 0
          %2051 = vmatpush1.bf16.xpose.msra.mxu0 0
          %2052 = vmatprep.subr.bf16.mxu0 0
          %2053 = vmatpush1.bf16.xpose.msra.mxu0 0
          %2054 = vmatprep.subr.bf16.mxu0 0
          %2055 = vmatpush1.bf16.xpose.msra.mxu0 0
          %2056 = vmatprep.subr.bf16.mxu0 0
          %2057 = vmatpush1.bf16.xpose.msra.mxu0 0
          %2058 = vmatprep.subr.bf16.mxu0 0
          %2059 = vmatpush1.bf16.xpose.msra.mxu0 0
          %2060 = vmatprep.subr.bf16.mxu0 0
          %2061 = vmatpush1.bf16.xpose.msra.mxu0 0
          %2062 = vmatprep.subr.bf16.mxu0 0
          %2063 = vmatpush1.bf16.xpose.msra.mxu0 0
          %2064 = vmatprep.subr.bf16.mxu0 0
          %2065 = vmatpush1.bf16.xpose.msra.mxu0 0
          %2066 = vmatprep.mubr.bf16.mxu0 0
          %2067 = vmatmul.mubr.bf16.gmra.mrb[0].mxu0 %v1877
          %v2068 = vpop.f32.mrb[0].mxu0
          %v2069 = vadd.f32 0.0, %v2068
          %v2070 = vpop.f32.mrb[0].mxu0
          %v2071 = vpop.f32.mrb[0].mxu0
          %v2072 = vadd.f32 0.0, %v2071
          %v2073 = vpop.f32.mrb[0].mxu0
          %2074 = vmatprep.mubr.bf16.mxu0 0
          %2075 = vmatmul.mubr.bf16.gmra.mrb[0].mxu0 %v1879
          %v2076 = vpop.f32.mrb[0].mxu0
          %v2077 = vadd.f32 0.0, %v2076
          %v2078 = vpop.f32.mrb[0].mxu0
          %v2079 = vpop.f32.mrb[0].mxu0
          %v2080 = vadd.f32 0.0, %v2079
          %v2081 = vpop.f32.mrb[0].mxu0
          %2082 = vmatprep.mubr.bf16.mxu0 0
          %2083 = vmatmul.mubr.bf16.gmra.mrb[0].mxu0 %v1881
          %v2084 = vpop.f32.mrb[0].mxu0
          %v2085 = vadd.f32 0.0, %v2084
          %v2086 = vpop.f32.mrb[0].mxu0
          %v2087 = vpop.f32.mrb[0].mxu0
          %v2088 = vadd.f32 0.0, %v2087
          %v2089 = vpop.f32.mrb[0].mxu0
          %2090 = vmatprep.mubr.bf16.mxu0 0
          %2091 = vmatmul.mubr.bf16.gmra.mrb[0].mxu0 %v1883
          %v2092 = vpop.f32.mrb[0].mxu0
          %v2093 = vadd.f32 0.0, %v2092
          %v2094 = vpop.f32.mrb[0].mxu0
          %v2095 = vpop.f32.mrb[0].mxu0
          %v2096 = vadd.f32 0.0, %v2095
          %v2097 = vpop.f32.mrb[0].mxu0
          %2098 = vmatprep.mubr.bf16.mxu0 0
          %2099 = vmatmul.mubr.bf16.gmra.mrb[0].mxu0 %v1885
          %v2100 = vpop.f32.mrb[0].mxu0
          %v2101 = vadd.f32 0.0, %v2100
          %v2102 = vpop.f32.mrb[0].mxu0
          %v2103 = vpop.f32.mrb[0].mxu0
          %v2104 = vadd.f32 0.0, %v2103
          %v2105 = vpop.f32.mrb[0].mxu0
          %2106 = vmatprep.mubr.bf16.mxu0 0
          %2107 = vmatmul.mubr.bf16.gmra.mrb[0].mxu0 %v1887
          %v2108 = vpop.f32.mrb[0].mxu0
          %v2109 = vadd.f32 0.0, %v2108
          %v2110 = vpop.f32.mrb[0].mxu0
          %v2111 = vpop.f32.mrb[0].mxu0
          %v2112 = vadd.f32 0.0, %v2111
          %v2113 = vpop.f32.mrb[0].mxu0
          %2114 = vmatprep.mubr.bf16.mxu0 0
          %2115 = vmatmul.mubr.bf16.gmra.mrb[0].mxu0 %v1889
          %v2116 = vpop.f32.mrb[0].mxu0
          %v2117 = vadd.f32 0.0, %v2116
          %v2118 = vpop.f32.mrb[0].mxu0
          %v2119 = vpop.f32.mrb[0].mxu0
          %v2120 = vadd.f32 0.0, %v2119
          %v2121 = vpop.f32.mrb[0].mxu0
          %2122 = vmatprep.mubr.bf16.mxu0 0
          %2123 = vmatmul.mubr.bf16.gmra.mrb[0].mxu0 %v1891
          %v2124 = vpop.f32.mrb[0].mxu0
          %v2125 = vadd.f32 0.0, %v2124
          %v2126 = vpop.f32.mrb[0].mxu0
          %v2127 = vpop.f32.mrb[0].mxu0
          %v2128 = vadd.f32 0.0, %v2127
          %v2129 = vpop.f32.mrb[0].mxu0
          %2130 = vdwg.mxu0
          %2131 = vmatprep.subr.bf16.mxu0 0
          %2132 = vmatpush1.bf16.xpose.msra.mxu0 %v2008
          %2133 = vmatprep.subr.bf16.mxu0 0
          %2134 = vmatpush1.bf16.xpose.msra.mxu0 %v2009
          %2135 = vmatprep.subr.bf16.mxu0 0
          %2136 = vmatpush1.bf16.xpose.msra.mxu0 %v2010
          %2137 = vmatprep.subr.bf16.mxu0 0
          %2138 = vmatpush1.bf16.xpose.msra.mxu0 %v2011
          %2139 = vmatprep.subr.bf16.mxu0 0
          %2140 = vmatpush1.bf16.xpose.msra.mxu0 %v2012
          %2141 = vmatprep.subr.bf16.mxu0 0
          %2142 = vmatpush1.bf16.xpose.msra.mxu0 %v2013
          %2143 = vmatprep.subr.bf16.mxu0 0
          %2144 = vmatpush1.bf16.xpose.msra.mxu0 %v2014
          %2145 = vmatprep.subr.bf16.mxu0 0
          %2146 = vmatpush1.bf16.xpose.msra.mxu0 %v2015
          %2147 = vmatprep.subr.bf16.mxu0 0
          %2148 = vmatpush1.bf16.xpose.msra.mxu0 0
          %2149 = vmatprep.subr.bf16.mxu0 0
          %2150 = vmatpush1.bf16.xpose.msra.mxu0 0
          %2151 = vmatprep.subr.bf16.mxu0 0
          %2152 = vmatpush1.bf16.xpose.msra.mxu0 0
          %2153 = vmatprep.subr.bf16.mxu0 0
          %2154 = vmatpush1.bf16.xpose.msra.mxu0 0
          %2155 = vmatprep.subr.bf16.mxu0 0
          %2156 = vmatpush1.bf16.xpose.msra.mxu0 0
          %2157 = vmatprep.subr.bf16.mxu0 0
          %2158 = vmatpush1.bf16.xpose.msra.mxu0 0
          %2159 = vmatprep.subr.bf16.mxu0 0
          %2160 = vmatpush1.bf16.xpose.msra.mxu0 0
          %2161 = vmatprep.subr.bf16.mxu0 0
          %2162 = vmatpush1.bf16.xpose.msra.mxu0 0
          %2163 = vmatprep.mubr.bf16.mxu0 0
          %2164 = vmatmul.mubr.bf16.gmra.mrb[0].mxu0 %v1878
          %v2165 = vpop.f32.mrb[0].mxu0
          %v2166 = vadd.f32 0.0, %v2165
          %v2167 = vpop.f32.mrb[0].mxu0
          %v2168 = vpop.f32.mrb[0].mxu0
          %v2169 = vadd.f32 0.0, %v2168
          %v2170 = vpop.f32.mrb[0].mxu0
          %2171 = vmatprep.mubr.bf16.mxu0 0
          %2172 = vmatmul.mubr.bf16.gmra.mrb[0].mxu0 %v1880
          %v2173 = vpop.f32.mrb[0].mxu0
          %v2174 = vadd.f32 0.0, %v2173
          %v2175 = vpop.f32.mrb[0].mxu0
          %v2176 = vpop.f32.mrb[0].mxu0
          %v2177 = vadd.f32 0.0, %v2176
          %v2178 = vpop.f32.mrb[0].mxu0
          %2179 = vmatprep.mubr.bf16.mxu0 0
          %2180 = vmatmul.mubr.bf16.gmra.mrb[0].mxu0 %v1882
          %v2181 = vpop.f32.mrb[0].mxu0
          %v2182 = vadd.f32 0.0, %v2181
          %v2183 = vpop.f32.mrb[0].mxu0
          %v2184 = vpop.f32.mrb[0].mxu0
          %v2185 = vadd.f32 0.0, %v2184
          %v2186 = vpop.f32.mrb[0].mxu0
          %2187 = vmatprep.mubr.bf16.mxu0 0
          %2188 = vmatmul.mubr.bf16.gmra.mrb[0].mxu0 %v1884
          %v2189 = vpop.f32.mrb[0].mxu0
          %v2190 = vadd.f32 0.0, %v2189
          %v2191 = vpop.f32.mrb[0].mxu0
          %v2192 = vpop.f32.mrb[0].mxu0
          %v2193 = vadd.f32 0.0, %v2192
          %v2194 = vpop.f32.mrb[0].mxu0
          %2195 = vmatprep.mubr.bf16.mxu0 0
          %2196 = vmatmul.mubr.bf16.gmra.mrb[0].mxu0 %v1886
          %v2197 = vpop.f32.mrb[0].mxu0
          %v2198 = vadd.f32 0.0, %v2197
          %v2199 = vpop.f32.mrb[0].mxu0
          %v2200 = vpop.f32.mrb[0].mxu0
          %v2201 = vadd.f32 0.0, %v2200
          %v2202 = vpop.f32.mrb[0].mxu0
          %2203 = vmatprep.mubr.bf16.mxu0 0
          %2204 = vmatmul.mubr.bf16.gmra.mrb[0].mxu0 %v1888
          %v2205 = vpop.f32.mrb[0].mxu0
          %v2206 = vadd.f32 0.0, %v2205
          %v2207 = vpop.f32.mrb[0].mxu0
          %v2208 = vpop.f32.mrb[0].mxu0
          %v2209 = vadd.f32 0.0, %v2208
          %v2210 = vpop.f32.mrb[0].mxu0
          %2211 = vmatprep.mubr.bf16.mxu0 0
          %2212 = vmatmul.mubr.bf16.gmra.mrb[0].mxu0 %v1890
          %v2213 = vpop.f32.mrb[0].mxu0
          %v2214 = vadd.f32 0.0, %v2213
          %v2215 = vpop.f32.mrb[0].mxu0
          %v2216 = vpop.f32.mrb[0].mxu0
          %v2217 = vadd.f32 0.0, %v2216
          %v2218 = vpop.f32.mrb[0].mxu0
          %2219 = vmatprep.mubr.bf16.mxu0 0
          %2220 = vmatmul.mubr.bf16.gmra.mrb[0].mxu0 %v1892
          %v2221 = vpop.f32.mrb[0].mxu0
          %v2222 = vadd.f32 0.0, %v2221
          %v2223 = vpop.f32.mrb[0].mxu0
          %v2224 = vpop.f32.mrb[0].mxu0
          %v2225 = vadd.f32 0.0, %v2224
          %v2226 = vpop.f32.mrb[0].mxu0
          %2227 = vdwg.mxu0
          %2228 = vmax.xlane.f32.xlu0 %v2069
          %v2229 = vpop.xlane.xlu0 %2228
          %2230 = vmax.xlane.f32.xlu0 %v2072
          %v2231 = vpop.xlane.xlu0 %2230
          %2232 = vmax.xlane.f32.xlu0 %v2077
          %v2233 = vpop.xlane.xlu0 %2232
          %2234 = vmax.xlane.f32.xlu0 %v2080
          %v2235 = vpop.xlane.xlu0 %2234
          %2236 = vmax.xlane.f32.xlu0 %v2085
          %v2237 = vpop.xlane.xlu0 %2236
          %2238 = vmax.xlane.f32.xlu0 %v2088
          %v2239 = vpop.xlane.xlu0 %2238
          %2240 = vmax.xlane.f32.xlu0 %v2093
          %v2241 = vpop.xlane.xlu0 %2240
          %2242 = vmax.xlane.f32.xlu0 %v2096
          %v2243 = vpop.xlane.xlu0 %2242
          %2244 = vmax.xlane.f32.xlu0 %v2101
          %v2245 = vpop.xlane.xlu0 %2244
          %2246 = vmax.xlane.f32.xlu0 %v2104
          %v2247 = vpop.xlane.xlu0 %2246
          %2248 = vmax.xlane.f32.xlu0 %v2109
          %v2249 = vpop.xlane.xlu0 %2248
          %2250 = vmax.xlane.f32.xlu0 %v2112
          %v2251 = vpop.xlane.xlu0 %2250
          %2252 = vmax.xlane.f32.xlu0 %v2117
          %v2253 = vpop.xlane.xlu0 %2252
          %2254 = vmax.xlane.f32.xlu0 %v2120
          %v2255 = vpop.xlane.xlu0 %2254
          %2256 = vmax.xlane.f32.xlu0 %v2125
          %v2257 = vpop.xlane.xlu0 %2256
          %2258 = vmax.xlane.f32.xlu0 %v2128
          %v2259 = vpop.xlane.xlu0 %2258
          %2260 = vmax.xlane.f32.xlu0 %v2166
          %v2261 = vpop.xlane.xlu0 %2260
          %2262 = vmax.xlane.f32.xlu0 %v2169
          %v2263 = vpop.xlane.xlu0 %2262
          %2264 = vmax.xlane.f32.xlu0 %v2174
          %v2265 = vpop.xlane.xlu0 %2264
          %2266 = vmax.xlane.f32.xlu0 %v2177
          %v2267 = vpop.xlane.xlu0 %2266
          %2268 = vmax.xlane.f32.xlu0 %v2182
          %v2269 = vpop.xlane.xlu0 %2268
          %2270 = vmax.xlane.f32.xlu0 %v2185
          %v2271 = vpop.xlane.xlu0 %2270
          %2272 = vmax.xlane.f32.xlu0 %v2190
          %v2273 = vpop.xlane.xlu0 %2272
          %2274 = vmax.xlane.f32.xlu0 %v2193
          %v2275 = vpop.xlane.xlu0 %2274
          %2276 = vmax.xlane.f32.xlu0 %v2198
          %v2277 = vpop.xlane.xlu0 %2276
          %2278 = vmax.xlane.f32.xlu0 %v2201
          %v2279 = vpop.xlane.xlu0 %2278
          %2280 = vmax.xlane.f32.xlu0 %v2206
          %v2281 = vpop.xlane.xlu0 %2280
          %2282 = vmax.xlane.f32.xlu0 %v2209
          %v2283 = vpop.xlane.xlu0 %2282
          %2284 = vmax.xlane.f32.xlu0 %v2214
          %v2285 = vpop.xlane.xlu0 %2284
          %2286 = vmax.xlane.f32.xlu0 %v2217
          %v2287 = vpop.xlane.xlu0 %2286
          %2288 = vmax.xlane.f32.xlu0 %v2222
          %v2289 = vpop.xlane.xlu0 %2288
          %2290 = vmax.xlane.f32.xlu0 %v2225
          %v2291 = vpop.xlane.xlu0 %2290
          %v2292 = vmax.f32 %v1899, %v2229
          %v2293 = vmax.f32 %v1900, %v2231
          %v2294 = vmax.f32 %v1901, %v2233
          %v2295 = vmax.f32 %v1902, %v2235
          %v2296 = vmax.f32 %v1903, %v2237
          %v2297 = vmax.f32 %v1904, %v2239
          %v2298 = vmax.f32 %v1905, %v2241
          %v2299 = vmax.f32 %v1906, %v2243
          %v2300 = vmax.f32 %v1907, %v2245
          %v2301 = vmax.f32 %v1908, %v2247
          %v2302 = vmax.f32 %v1909, %v2249
          %v2303 = vmax.f32 %v1910, %v2251
          %v2304 = vmax.f32 %v1911, %v2253
          %v2305 = vmax.f32 %v1912, %v2255
          %v2306 = vmax.f32 %v1913, %v2257
          %v2307 = vmax.f32 %v1914, %v2259
          %v2308 = vmax.f32 %v1915, %v2261
          %v2309 = vmax.f32 %v1916, %v2263
          %v2310 = vmax.f32 %v1917, %v2265
          %v2311 = vmax.f32 %v1918, %v2267
          %v2312 = vmax.f32 %v1919, %v2269
          %v2313 = vmax.f32 %v1920, %v2271
          %v2314 = vmax.f32 %v1921, %v2273
          %v2315 = vmax.f32 %v1922, %v2275
          %v2316 = vmax.f32 %v1923, %v2277
          %v2317 = vmax.f32 %v1924, %v2279
          %v2318 = vmax.f32 %v1925, %v2281
          %v2319 = vmax.f32 %v1926, %v2283
          %v2320 = vmax.f32 %v1927, %v2285
          %v2321 = vmax.f32 %v1928, %v2287
          %v2322 = vmax.f32 %v1929, %v2289
          %v2323 = vmax.f32 %v1930, %v2291
          %v2324 = vsub.f32 %v1899, %v2292
          %v2325 = vsub.f32 %v1900, %v2293
          %v2326 = vsub.f32 %v1901, %v2294
          %v2327 = vsub.f32 %v1902, %v2295
          %v2328 = vsub.f32 %v1903, %v2296
          %v2329 = vsub.f32 %v1904, %v2297
          %v2330 = vsub.f32 %v1905, %v2298
          %v2331 = vsub.f32 %v1906, %v2299
          %v2332 = vsub.f32 %v1907, %v2300
          %v2333 = vsub.f32 %v1908, %v2301
          %v2334 = vsub.f32 %v1909, %v2302
          %v2335 = vsub.f32 %v1910, %v2303
          %v2336 = vsub.f32 %v1911, %v2304
          %v2337 = vsub.f32 %v1912, %v2305
          %v2338 = vsub.f32 %v1913, %v2306
          %v2339 = vsub.f32 %v1914, %v2307
          %v2340 = vsub.f32 %v1915, %v2308
          %v2341 = vsub.f32 %v1916, %v2309
          %v2342 = vsub.f32 %v1917, %v2310
          %v2343 = vsub.f32 %v1918, %v2311
          %v2344 = vsub.f32 %v1919, %v2312
          %v2345 = vsub.f32 %v1920, %v2313
          %v2346 = vsub.f32 %v1921, %v2314
          %v2347 = vsub.f32 %v1922, %v2315
          %v2348 = vsub.f32 %v1923, %v2316
          %v2349 = vsub.f32 %v1924, %v2317
          %v2350 = vsub.f32 %v1925, %v2318
          %v2351 = vsub.f32 %v1926, %v2319
          %v2352 = vsub.f32 %v1927, %v2320
          %v2353 = vsub.f32 %v1928, %v2321
          %v2354 = vsub.f32 %v1929, %v2322
          %v2355 = vsub.f32 %v1930, %v2323
          %v2356 = vmul.f32 %v2324, 1.442695
          %v2357 = vpow.pop %v2356
          %v2358 = vmul.f32 %v2325, 1.442695
          %v2359 = vpow.pop %v2358
          %v2360 = vmul.f32 %v2326, 1.442695
          %v2361 = vpow.pop %v2360
          %v2362 = vmul.f32 %v2327, 1.442695
          %v2363 = vpow.pop %v2362
          %v2364 = vmul.f32 %v2328, 1.442695
          %v2365 = vpow.pop %v2364
          %v2366 = vmul.f32 %v2329, 1.442695
          %v2367 = vpow.pop %v2366
          %v2368 = vmul.f32 %v2330, 1.442695
          %v2369 = vpow.pop %v2368
          %v2370 = vmul.f32 %v2331, 1.442695
          %v2371 = vpow.pop %v2370
          %v2372 = vmul.f32 %v2332, 1.442695
          %v2373 = vpow.pop %v2372
          %v2374 = vmul.f32 %v2333, 1.442695
          %v2375 = vpow.pop %v2374
          %v2376 = vmul.f32 %v2334, 1.442695
          %v2377 = vpow.pop %v2376
          %v2378 = vmul.f32 %v2335, 1.442695
          %v2379 = vpow.pop %v2378
          %v2380 = vmul.f32 %v2336, 1.442695
          %v2381 = vpow.pop %v2380
          %v2382 = vmul.f32 %v2337, 1.442695
          %v2383 = vpow.pop %v2382
          %v2384 = vmul.f32 %v2338, 1.442695
          %v2385 = vpow.pop %v2384
          %v2386 = vmul.f32 %v2339, 1.442695
          %v2387 = vpow.pop %v2386
          %v2388 = vmul.f32 %v2340, 1.442695
          %v2389 = vpow.pop %v2388
          %v2390 = vmul.f32 %v2341, 1.442695
          %v2391 = vpow.pop %v2390
          %v2392 = vmul.f32 %v2342, 1.442695
          %v2393 = vpow.pop %v2392
          %v2394 = vmul.f32 %v2343, 1.442695
          %v2395 = vpow.pop %v2394
          %v2396 = vmul.f32 %v2344, 1.442695
          %v2397 = vpow.pop %v2396
          %v2398 = vmul.f32 %v2345, 1.442695
          %v2399 = vpow.pop %v2398
          %v2400 = vmul.f32 %v2346, 1.442695
          %v2401 = vpow.pop %v2400
          %v2402 = vmul.f32 %v2347, 1.442695
          %v2403 = vpow.pop %v2402
          %v2404 = vmul.f32 %v2348, 1.442695
          %v2405 = vpow.pop %v2404
          %v2406 = vmul.f32 %v2349, 1.442695
          %v2407 = vpow.pop %v2406
          %v2408 = vmul.f32 %v2350, 1.442695
          %v2409 = vpow.pop %v2408
          %v2410 = vmul.f32 %v2351, 1.442695
          %v2411 = vpow.pop %v2410
          %v2412 = vmul.f32 %v2352, 1.442695
          %v2413 = vpow.pop %v2412
          %v2414 = vmul.f32 %v2353, 1.442695
          %v2415 = vpow.pop %v2414
          %v2416 = vmul.f32 %v2354, 1.442695
          %v2417 = vpow.pop %v2416
          %v2418 = vmul.f32 %v2355, 1.442695
          %v2419 = vpow.pop %v2418
          %v2420 = vsub.f32 %v2069, %v2292
          %v2421 = vsub.f32 %v2072, %v2293
          %v2422 = vsub.f32 %v2077, %v2294
          %v2423 = vsub.f32 %v2080, %v2295
          %v2424 = vsub.f32 %v2085, %v2296
          %v2425 = vsub.f32 %v2088, %v2297
          %v2426 = vsub.f32 %v2093, %v2298
          %v2427 = vsub.f32 %v2096, %v2299
          %v2428 = vsub.f32 %v2101, %v2300
          %v2429 = vsub.f32 %v2104, %v2301
          %v2430 = vsub.f32 %v2109, %v2302
          %v2431 = vsub.f32 %v2112, %v2303
          %v2432 = vsub.f32 %v2117, %v2304
          %v2433 = vsub.f32 %v2120, %v2305
          %v2434 = vsub.f32 %v2125, %v2306
          %v2435 = vsub.f32 %v2128, %v2307
          %v2436 = vsub.f32 %v2166, %v2308
          %v2437 = vsub.f32 %v2169, %v2309
          %v2438 = vsub.f32 %v2174, %v2310
          %v2439 = vsub.f32 %v2177, %v2311
          %v2440 = vsub.f32 %v2182, %v2312
          %v2441 = vsub.f32 %v2185, %v2313
          %v2442 = vsub.f32 %v2190, %v2314
          %v2443 = vsub.f32 %v2193, %v2315
          %v2444 = vsub.f32 %v2198, %v2316
          %v2445 = vsub.f32 %v2201, %v2317
          %v2446 = vsub.f32 %v2206, %v2318
          %v2447 = vsub.f32 %v2209, %v2319
          %v2448 = vsub.f32 %v2214, %v2320
          %v2449 = vsub.f32 %v2217, %v2321
          %v2450 = vsub.f32 %v2222, %v2322
          %v2451 = vsub.f32 %v2225, %v2323
          %v2452 = vmul.f32 %v2420, 1.442695
          %v2453 = vpow.pop %v2452
          %v2454 = vmul.f32 %v2421, 1.442695
          %v2455 = vpow.pop %v2454
          %v2456 = vmul.f32 %v2422, 1.442695
          %v2457 = vpow.pop %v2456
          %v2458 = vmul.f32 %v2423, 1.442695
          %v2459 = vpow.pop %v2458
          %v2460 = vmul.f32 %v2424, 1.442695
          %v2461 = vpow.pop %v2460
          %v2462 = vmul.f32 %v2425, 1.442695
          %v2463 = vpow.pop %v2462
          %v2464 = vmul.f32 %v2426, 1.442695
          %v2465 = vpow.pop %v2464
          %v2466 = vmul.f32 %v2427, 1.442695
          %v2467 = vpow.pop %v2466
          %v2468 = vmul.f32 %v2428, 1.442695
          %v2469 = vpow.pop %v2468
          %v2470 = vmul.f32 %v2429, 1.442695
          %v2471 = vpow.pop %v2470
          %v2472 = vmul.f32 %v2430, 1.442695
          %v2473 = vpow.pop %v2472
          %v2474 = vmul.f32 %v2431, 1.442695
          %v2475 = vpow.pop %v2474
          %v2476 = vmul.f32 %v2432, 1.442695
          %v2477 = vpow.pop %v2476
          %v2478 = vmul.f32 %v2433, 1.442695
          %v2479 = vpow.pop %v2478
          %v2480 = vmul.f32 %v2434, 1.442695
          %v2481 = vpow.pop %v2480
          %v2482 = vmul.f32 %v2435, 1.442695
          %v2483 = vpow.pop %v2482
          %v2484 = vmul.f32 %v2436, 1.442695
          %v2485 = vpow.pop %v2484
          %v2486 = vmul.f32 %v2437, 1.442695
          %v2487 = vpow.pop %v2486
          %v2488 = vmul.f32 %v2438, 1.442695
          %v2489 = vpow.pop %v2488
          %v2490 = vmul.f32 %v2439, 1.442695
          %v2491 = vpow.pop %v2490
          %v2492 = vmul.f32 %v2440, 1.442695
          %v2493 = vpow.pop %v2492
          %v2494 = vmul.f32 %v2441, 1.442695
          %v2495 = vpow.pop %v2494
          %v2496 = vmul.f32 %v2442, 1.442695
          %v2497 = vpow.pop %v2496
          %v2498 = vmul.f32 %v2443, 1.442695
          %v2499 = vpow.pop %v2498
          %v2500 = vmul.f32 %v2444, 1.442695
          %v2501 = vpow.pop %v2500
          %v2502 = vmul.f32 %v2445, 1.442695
          %v2503 = vpow.pop %v2502
          %v2504 = vmul.f32 %v2446, 1.442695
          %v2505 = vpow.pop %v2504
          %v2506 = vmul.f32 %v2447, 1.442695
          %v2507 = vpow.pop %v2506
          %v2508 = vmul.f32 %v2448, 1.442695
          %v2509 = vpow.pop %v2508
          %v2510 = vmul.f32 %v2449, 1.442695
          %v2511 = vpow.pop %v2510
          %v2512 = vmul.f32 %v2450, 1.442695
          %v2513 = vpow.pop %v2512
          %v2514 = vmul.f32 %v2451, 1.442695
          %v2515 = vpow.pop %v2514
          %v2516 = vmul.f32 %v2357, %v1931
          %v2517 = vmul.f32 %v2359, %v1932
          %v2518 = vmul.f32 %v2361, %v1933
          %v2519 = vmul.f32 %v2363, %v1934
          %v2520 = vmul.f32 %v2365, %v1935
          %v2521 = vmul.f32 %v2367, %v1936
          %v2522 = vmul.f32 %v2369, %v1937
          %v2523 = vmul.f32 %v2371, %v1938
          %v2524 = vmul.f32 %v2373, %v1939
          %v2525 = vmul.f32 %v2375, %v1940
          %v2526 = vmul.f32 %v2377, %v1941
          %v2527 = vmul.f32 %v2379, %v1942
          %v2528 = vmul.f32 %v2381, %v1943
          %v2529 = vmul.f32 %v2383, %v1944
          %v2530 = vmul.f32 %v2385, %v1945
          %v2531 = vmul.f32 %v2387, %v1946
          %v2532 = vmul.f32 %v2389, %v1947
          %v2533 = vmul.f32 %v2391, %v1948
          %v2534 = vmul.f32 %v2393, %v1949
          %v2535 = vmul.f32 %v2395, %v1950
          %v2536 = vmul.f32 %v2397, %v1951
          %v2537 = vmul.f32 %v2399, %v1952
          %v2538 = vmul.f32 %v2401, %v1953
          %v2539 = vmul.f32 %v2403, %v1954
          %v2540 = vmul.f32 %v2405, %v1955
          %v2541 = vmul.f32 %v2407, %v1956
          %v2542 = vmul.f32 %v2409, %v1957
          %v2543 = vmul.f32 %v2411, %v1958
          %v2544 = vmul.f32 %v2413, %v1959
          %v2545 = vmul.f32 %v2415, %v1960
          %v2546 = vmul.f32 %v2417, %v1961
          %v2547 = vmul.f32 %v2419, %v1962
          %2548 = vadd.xlane.f32.xlu0 %v2453
          %v2549 = vpop.xlane.xlu0 %2548
          %2550 = vadd.xlane.f32.xlu0 %v2455
          %v2551 = vpop.xlane.xlu0 %2550
          %2552 = vadd.xlane.f32.xlu0 %v2457
          %v2553 = vpop.xlane.xlu0 %2552
          %2554 = vadd.xlane.f32.xlu0 %v2459
          %v2555 = vpop.xlane.xlu0 %2554
          %2556 = vadd.xlane.f32.xlu0 %v2461
          %v2557 = vpop.xlane.xlu0 %2556
          %2558 = vadd.xlane.f32.xlu0 %v2463
          %v2559 = vpop.xlane.xlu0 %2558
          %2560 = vadd.xlane.f32.xlu0 %v2465
          %v2561 = vpop.xlane.xlu0 %2560
          %2562 = vadd.xlane.f32.xlu0 %v2467
          %v2563 = vpop.xlane.xlu0 %2562
          %2564 = vadd.xlane.f32.xlu0 %v2469
          %v2565 = vpop.xlane.xlu0 %2564
          %2566 = vadd.xlane.f32.xlu0 %v2471
          %v2567 = vpop.xlane.xlu0 %2566
          %2568 = vadd.xlane.f32.xlu0 %v2473
          %v2569 = vpop.xlane.xlu0 %2568
          %2570 = vadd.xlane.f32.xlu0 %v2475
          %v2571 = vpop.xlane.xlu0 %2570
          %2572 = vadd.xlane.f32.xlu0 %v2477
          %v2573 = vpop.xlane.xlu0 %2572
          %2574 = vadd.xlane.f32.xlu0 %v2479
          %v2575 = vpop.xlane.xlu0 %2574
          %2576 = vadd.xlane.f32.xlu0 %v2481
          %v2577 = vpop.xlane.xlu0 %2576
          %2578 = vadd.xlane.f32.xlu0 %v2483
          %v2579 = vpop.xlane.xlu0 %2578
          %2580 = vadd.xlane.f32.xlu0 %v2485
          %v2581 = vpop.xlane.xlu0 %2580
          %2582 = vadd.xlane.f32.xlu0 %v2487
          %v2583 = vpop.xlane.xlu0 %2582
          %2584 = vadd.xlane.f32.xlu0 %v2489
          %v2585 = vpop.xlane.xlu0 %2584
          %2586 = vadd.xlane.f32.xlu0 %v2491
          %v2587 = vpop.xlane.xlu0 %2586
          %2588 = vadd.xlane.f32.xlu0 %v2493
          %v2589 = vpop.xlane.xlu0 %2588
          %2590 = vadd.xlane.f32.xlu0 %v2495
          %v2591 = vpop.xlane.xlu0 %2590
          %2592 = vadd.xlane.f32.xlu0 %v2497
          %v2593 = vpop.xlane.xlu0 %2592
          %2594 = vadd.xlane.f32.xlu0 %v2499
          %v2595 = vpop.xlane.xlu0 %2594
          %2596 = vadd.xlane.f32.xlu0 %v2501
          %v2597 = vpop.xlane.xlu0 %2596
          %2598 = vadd.xlane.f32.xlu0 %v2503
          %v2599 = vpop.xlane.xlu0 %2598
          %2600 = vadd.xlane.f32.xlu0 %v2505
          %v2601 = vpop.xlane.xlu0 %2600
          %2602 = vadd.xlane.f32.xlu0 %v2507
          %v2603 = vpop.xlane.xlu0 %2602
          %2604 = vadd.xlane.f32.xlu0 %v2509
          %v2605 = vpop.xlane.xlu0 %2604
          %2606 = vadd.xlane.f32.xlu0 %v2511
          %v2607 = vpop.xlane.xlu0 %2606
          %2608 = vadd.xlane.f32.xlu0 %v2513
          %v2609 = vpop.xlane.xlu0 %2608
          %2610 = vadd.xlane.f32.xlu0 %v2515
          %v2611 = vpop.xlane.xlu0 %2610
          %v2612 = vadd.f32 %v2516, %v2549
          %v2613 = vadd.f32 %v2517, %v2551
          %v2614 = vadd.f32 %v2518, %v2553
          %v2615 = vadd.f32 %v2519, %v2555
          %v2616 = vadd.f32 %v2520, %v2557
          %v2617 = vadd.f32 %v2521, %v2559
          %v2618 = vadd.f32 %v2522, %v2561
          %v2619 = vadd.f32 %v2523, %v2563
          %v2620 = vadd.f32 %v2524, %v2565
          %v2621 = vadd.f32 %v2525, %v2567
          %v2622 = vadd.f32 %v2526, %v2569
          %v2623 = vadd.f32 %v2527, %v2571
          %v2624 = vadd.f32 %v2528, %v2573
          %v2625 = vadd.f32 %v2529, %v2575
          %v2626 = vadd.f32 %v2530, %v2577
          %v2627 = vadd.f32 %v2531, %v2579
          %v2628 = vadd.f32 %v2532, %v2581
          %v2629 = vadd.f32 %v2533, %v2583
          %v2630 = vadd.f32 %v2534, %v2585
          %v2631 = vadd.f32 %v2535, %v2587
          %v2632 = vadd.f32 %v2536, %v2589
          %v2633 = vadd.f32 %v2537, %v2591
          %v2634 = vadd.f32 %v2538, %v2593
          %v2635 = vadd.f32 %v2539, %v2595
          %v2636 = vadd.f32 %v2540, %v2597
          %v2637 = vadd.f32 %v2541, %v2599
          %v2638 = vadd.f32 %v2542, %v2601
          %v2639 = vadd.f32 %v2543, %v2603
          %v2640 = vadd.f32 %v2544, %v2605
          %v2641 = vadd.f32 %v2545, %v2607
          %v2642 = vadd.f32 %v2546, %v2609
          %v2643 = vadd.f32 %v2547, %v2611
          %v2644 = vmul.f32 %v2357, %v1963
          %v2645 = vmul.f32 %v2359, %v1964
          %v2646 = vmul.f32 %v2361, %v1965
          %v2647 = vmul.f32 %v2363, %v1966
          %v2648 = vmul.f32 %v2365, %v1967
          %v2649 = vmul.f32 %v2367, %v1968
          %v2650 = vmul.f32 %v2369, %v1969
          %v2651 = vmul.f32 %v2371, %v1970
          %v2652 = vmul.f32 %v2373, %v1971
          %v2653 = vmul.f32 %v2375, %v1972
          %v2654 = vmul.f32 %v2377, %v1973
          %v2655 = vmul.f32 %v2379, %v1974
          %v2656 = vmul.f32 %v2381, %v1975
          %v2657 = vmul.f32 %v2383, %v1976
          %v2658 = vmul.f32 %v2385, %v1977
          %v2659 = vmul.f32 %v2387, %v1978
          %v2660 = vmul.f32 %v2389, %v1979
          %v2661 = vmul.f32 %v2391, %v1980
          %v2662 = vmul.f32 %v2393, %v1981
          %v2663 = vmul.f32 %v2395, %v1982
          %v2664 = vmul.f32 %v2397, %v1983
          %v2665 = vmul.f32 %v2399, %v1984
          %v2666 = vmul.f32 %v2401, %v1985
          %v2667 = vmul.f32 %v2403, %v1986
          %v2668 = vmul.f32 %v2405, %v1987
          %v2669 = vmul.f32 %v2407, %v1988
          %v2670 = vmul.f32 %v2409, %v1989
          %v2671 = vmul.f32 %v2411, %v1990
          %v2672 = vmul.f32 %v2413, %v1991
          %v2673 = vmul.f32 %v2415, %v1992
          %v2674 = vmul.f32 %v2417, %v1993
          %v2675 = vmul.f32 %v2419, %v1994
          %v2676 = vpack.c.bf16 %v2455, %v2453
          %v2677 = vpack.c.bf16 %v2459, %v2457
          %v2678 = vpack.c.bf16 %v2463, %v2461
          %v2679 = vpack.c.bf16 %v2467, %v2465
          %v2680 = vpack.c.bf16 %v2471, %v2469
          %v2681 = vpack.c.bf16 %v2475, %v2473
          %v2682 = vpack.c.bf16 %v2479, %v2477
          %v2683 = vpack.c.bf16 %v2483, %v2481
          %v2684 = vpack.c.bf16 %v2487, %v2485
          %v2685 = vpack.c.bf16 %v2491, %v2489
          %v2686 = vpack.c.bf16 %v2495, %v2493
          %v2687 = vpack.c.bf16 %v2499, %v2497
          %v2688 = vpack.c.bf16 %v2503, %v2501
          %v2689 = vpack.c.bf16 %v2507, %v2505
          %v2690 = vpack.c.bf16 %v2511, %v2509
          %v2691 = vpack.c.bf16 %v2515, %v2513
          %2692 = vmatprep.subr.bf16.mxu0 0
          %2693 = vmatpush1.bf16.msra.mxu0 %v2018
          %2694 = vmatprep.subr.bf16.mxu0 0
          %2695 = vmatpush1.bf16.msra.mxu0 %v2019
          %2696 = vmatprep.subr.bf16.mxu0 0
          %2697 = vmatpush1.bf16.msra.mxu0 %v2020
          %2698 = vmatprep.subr.bf16.mxu0 0
          %2699 = vmatpush1.bf16.msra.mxu0 %v2021
          %2700 = vmatprep.subr.bf16.mxu0 0
          %2701 = vmatpush1.bf16.msra.mxu0 %v2022
          %2702 = vmatprep.subr.bf16.mxu0 0
          %2703 = vmatpush1.bf16.msra.mxu0 %v2023
          %2704 = vmatprep.subr.bf16.mxu0 0
          %2705 = vmatpush1.bf16.msra.mxu0 %v2024
          %2706 = vmatprep.subr.bf16.mxu0 0
          %2707 = vmatpush1.bf16.msra.mxu0 %v2025
          %2708 = vmatprep.subr.bf16.mxu0 0
          %2709 = vmatpush1.bf16.msra.mxu0 0
          %2710 = vmatprep.subr.bf16.mxu0 0
          %2711 = vmatpush1.bf16.msra.mxu0 0
          %2712 = vmatprep.subr.bf16.mxu0 0
          %2713 = vmatpush1.bf16.msra.mxu0 0
          %2714 = vmatprep.subr.bf16.mxu0 0
          %2715 = vmatpush1.bf16.msra.mxu0 0
          %2716 = vmatprep.subr.bf16.mxu0 0
          %2717 = vmatpush1.bf16.msra.mxu0 0
          %2718 = vmatprep.subr.bf16.mxu0 0
          %2719 = vmatpush1.bf16.msra.mxu0 0
          %2720 = vmatprep.subr.bf16.mxu0 0
          %2721 = vmatpush1.bf16.msra.mxu0 0
          %2722 = vmatprep.subr.bf16.mxu0 0
          %2723 = vmatpush1.bf16.msra.mxu0 0
          %2724 = vmatprep.mubr.bf16.mxu0 0
          %2725 = vmatmul.mubr.bf16.gmra.mrb[0].mxu0 %v2676
          %v2726 = vpop.f32.mrb[0].mxu0
          %v2727 = vadd.f32 0.0, %v2726
          %v2728 = vpop.f32.mrb[0].mxu0
          %v2729 = vpop.f32.mrb[0].mxu0
          %v2730 = vadd.f32 0.0, %v2729
          %v2731 = vpop.f32.mrb[0].mxu0
          %2732 = vmatprep.mubr.bf16.mxu0 0
          %2733 = vmatmul.mubr.bf16.gmra.mrb[0].mxu0 %v2677
          %v2734 = vpop.f32.mrb[0].mxu0
          %v2735 = vadd.f32 0.0, %v2734
          %v2736 = vpop.f32.mrb[0].mxu0
          %v2737 = vpop.f32.mrb[0].mxu0
          %v2738 = vadd.f32 0.0, %v2737
          %v2739 = vpop.f32.mrb[0].mxu0
          %2740 = vmatprep.mubr.bf16.mxu0 0
          %2741 = vmatmul.mubr.bf16.gmra.mrb[0].mxu0 %v2678
          %v2742 = vpop.f32.mrb[0].mxu0
          %v2743 = vadd.f32 0.0, %v2742
          %v2744 = vpop.f32.mrb[0].mxu0
          %v2745 = vpop.f32.mrb[0].mxu0
          %v2746 = vadd.f32 0.0, %v2745
          %v2747 = vpop.f32.mrb[0].mxu0
          %2748 = vmatprep.mubr.bf16.mxu0 0
          %2749 = vmatmul.mubr.bf16.gmra.mrb[0].mxu0 %v2679
          %v2750 = vpop.f32.mrb[0].mxu0
          %v2751 = vadd.f32 0.0, %v2750
          %v2752 = vpop.f32.mrb[0].mxu0
          %v2753 = vpop.f32.mrb[0].mxu0
          %v2754 = vadd.f32 0.0, %v2753
          %v2755 = vpop.f32.mrb[0].mxu0
          %2756 = vmatprep.mubr.bf16.mxu0 0
          %2757 = vmatmul.mubr.bf16.gmra.mrb[0].mxu0 %v2680
          %v2758 = vpop.f32.mrb[0].mxu0
          %v2759 = vadd.f32 0.0, %v2758
          %v2760 = vpop.f32.mrb[0].mxu0
          %v2761 = vpop.f32.mrb[0].mxu0
          %v2762 = vadd.f32 0.0, %v2761
          %v2763 = vpop.f32.mrb[0].mxu0
          %2764 = vmatprep.mubr.bf16.mxu0 0
          %2765 = vmatmul.mubr.bf16.gmra.mrb[0].mxu0 %v2681
          %v2766 = vpop.f32.mrb[0].mxu0
          %v2767 = vadd.f32 0.0, %v2766
          %v2768 = vpop.f32.mrb[0].mxu0
          %v2769 = vpop.f32.mrb[0].mxu0
          %v2770 = vadd.f32 0.0, %v2769
          %v2771 = vpop.f32.mrb[0].mxu0
          %2772 = vmatprep.mubr.bf16.mxu0 0
          %2773 = vmatmul.mubr.bf16.gmra.mrb[0].mxu0 %v2682
          %v2774 = vpop.f32.mrb[0].mxu0
          %v2775 = vadd.f32 0.0, %v2774
          %v2776 = vpop.f32.mrb[0].mxu0
          %v2777 = vpop.f32.mrb[0].mxu0
          %v2778 = vadd.f32 0.0, %v2777
          %v2779 = vpop.f32.mrb[0].mxu0
          %2780 = vmatprep.mubr.bf16.mxu0 0
          %2781 = vmatmul.mubr.bf16.gmra.mrb[0].mxu0 %v2683
          %v2782 = vpop.f32.mrb[0].mxu0
          %v2783 = vadd.f32 0.0, %v2782
          %v2784 = vpop.f32.mrb[0].mxu0
          %v2785 = vpop.f32.mrb[0].mxu0
          %v2786 = vadd.f32 0.0, %v2785
          %v2787 = vpop.f32.mrb[0].mxu0
          %2788 = vdwg.mxu0
          %2789 = vmatprep.subr.bf16.mxu0 0
          %2790 = vmatpush1.bf16.msra.mxu0 %v2026
          %2791 = vmatprep.subr.bf16.mxu0 0
          %2792 = vmatpush1.bf16.msra.mxu0 %v2027
          %2793 = vmatprep.subr.bf16.mxu0 0
          %2794 = vmatpush1.bf16.msra.mxu0 %v2028
          %2795 = vmatprep.subr.bf16.mxu0 0
          %2796 = vmatpush1.bf16.msra.mxu0 %v2029
          %2797 = vmatprep.subr.bf16.mxu0 0
          %2798 = vmatpush1.bf16.msra.mxu0 %v2030
          %2799 = vmatprep.subr.bf16.mxu0 0
          %2800 = vmatpush1.bf16.msra.mxu0 %v2031
          %2801 = vmatprep.subr.bf16.mxu0 0
          %2802 = vmatpush1.bf16.msra.mxu0 %v2032
          %2803 = vmatprep.subr.bf16.mxu0 0
          %2804 = vmatpush1.bf16.msra.mxu0 %v2033
          %2805 = vmatprep.subr.bf16.mxu0 0
          %2806 = vmatpush1.bf16.msra.mxu0 0
          %2807 = vmatprep.subr.bf16.mxu0 0
          %2808 = vmatpush1.bf16.msra.mxu0 0
          %2809 = vmatprep.subr.bf16.mxu0 0
          %2810 = vmatpush1.bf16.msra.mxu0 0
          %2811 = vmatprep.subr.bf16.mxu0 0
          %2812 = vmatpush1.bf16.msra.mxu0 0
          %2813 = vmatprep.subr.bf16.mxu0 0
          %2814 = vmatpush1.bf16.msra.mxu0 0
          %2815 = vmatprep.subr.bf16.mxu0 0
          %2816 = vmatpush1.bf16.msra.mxu0 0
          %2817 = vmatprep.subr.bf16.mxu0 0
          %2818 = vmatpush1.bf16.msra.mxu0 0
          %2819 = vmatprep.subr.bf16.mxu0 0
          %2820 = vmatpush1.bf16.msra.mxu0 0
          %2821 = vmatprep.mubr.bf16.mxu0 0
          %2822 = vmatmul.mubr.bf16.gmra.mrb[0].mxu0 %v2684
          %v2823 = vpop.f32.mrb[0].mxu0
          %v2824 = vadd.f32 0.0, %v2823
          %v2825 = vpop.f32.mrb[0].mxu0
          %v2826 = vpop.f32.mrb[0].mxu0
          %v2827 = vadd.f32 0.0, %v2826
          %v2828 = vpop.f32.mrb[0].mxu0
          %2829 = vmatprep.mubr.bf16.mxu0 0
          %2830 = vmatmul.mubr.bf16.gmra.mrb[0].mxu0 %v2685
          %v2831 = vpop.f32.mrb[0].mxu0
          %v2832 = vadd.f32 0.0, %v2831
          %v2833 = vpop.f32.mrb[0].mxu0
          %v2834 = vpop.f32.mrb[0].mxu0
          %v2835 = vadd.f32 0.0, %v2834
          %v2836 = vpop.f32.mrb[0].mxu0
          %2837 = vmatprep.mubr.bf16.mxu0 0
          %2838 = vmatmul.mubr.bf16.gmra.mrb[0].mxu0 %v2686
          %v2839 = vpop.f32.mrb[0].mxu0
          %v2840 = vadd.f32 0.0, %v2839
          %v2841 = vpop.f32.mrb[0].mxu0
          %v2842 = vpop.f32.mrb[0].mxu0
          %v2843 = vadd.f32 0.0, %v2842
          %v2844 = vpop.f32.mrb[0].mxu0
          %2845 = vmatprep.mubr.bf16.mxu0 0
          %2846 = vmatmul.mubr.bf16.gmra.mrb[0].mxu0 %v2687
          %v2847 = vpop.f32.mrb[0].mxu0
          %v2848 = vadd.f32 0.0, %v2847
          %v2849 = vpop.f32.mrb[0].mxu0
          %v2850 = vpop.f32.mrb[0].mxu0
          %v2851 = vadd.f32 0.0, %v2850
          %v2852 = vpop.f32.mrb[0].mxu0
          %2853 = vmatprep.mubr.bf16.mxu0 0
          %2854 = vmatmul.mubr.bf16.gmra.mrb[0].mxu0 %v2688
          %v2855 = vpop.f32.mrb[0].mxu0
          %v2856 = vadd.f32 0.0, %v2855
          %v2857 = vpop.f32.mrb[0].mxu0
          %v2858 = vpop.f32.mrb[0].mxu0
          %v2859 = vadd.f32 0.0, %v2858
          %v2860 = vpop.f32.mrb[0].mxu0
          %2861 = vmatprep.mubr.bf16.mxu0 0
          %2862 = vmatmul.mubr.bf16.gmra.mrb[0].mxu0 %v2689
          %v2863 = vpop.f32.mrb[0].mxu0
          %v2864 = vadd.f32 0.0, %v2863
          %v2865 = vpop.f32.mrb[0].mxu0
          %v2866 = vpop.f32.mrb[0].mxu0
          %v2867 = vadd.f32 0.0, %v2866
          %v2868 = vpop.f32.mrb[0].mxu0
          %2869 = vmatprep.mubr.bf16.mxu0 0
          %2870 = vmatmul.mubr.bf16.gmra.mrb[0].mxu0 %v2690
          %v2871 = vpop.f32.mrb[0].mxu0
          %v2872 = vadd.f32 0.0, %v2871
          %v2873 = vpop.f32.mrb[0].mxu0
          %v2874 = vpop.f32.mrb[0].mxu0
          %v2875 = vadd.f32 0.0, %v2874
          %v2876 = vpop.f32.mrb[0].mxu0
          %2877 = vmatprep.mubr.bf16.mxu0 0
          %2878 = vmatmul.mubr.bf16.gmra.mrb[0].mxu0 %v2691
          %v2879 = vpop.f32.mrb[0].mxu0
          %v2880 = vadd.f32 0.0, %v2879
          %v2881 = vpop.f32.mrb[0].mxu0
          %v2882 = vpop.f32.mrb[0].mxu0
          %v2883 = vadd.f32 0.0, %v2882
          %v2884 = vpop.f32.mrb[0].mxu0
          %2885 = vdwg.mxu0
          %v2886 = vadd.f32 %v2644, %v2727
          %v2887 = vadd.f32 %v2645, %v2730
          %v2888 = vadd.f32 %v2646, %v2735
          %v2889 = vadd.f32 %v2647, %v2738
          %v2890 = vadd.f32 %v2648, %v2743
          %v2891 = vadd.f32 %v2649, %v2746
          %v2892 = vadd.f32 %v2650, %v2751
          %v2893 = vadd.f32 %v2651, %v2754
          %v2894 = vadd.f32 %v2652, %v2759
          %v2895 = vadd.f32 %v2653, %v2762
          %v2896 = vadd.f32 %v2654, %v2767
          %v2897 = vadd.f32 %v2655, %v2770
          %v2898 = vadd.f32 %v2656, %v2775
          %v2899 = vadd.f32 %v2657, %v2778
          %v2900 = vadd.f32 %v2658, %v2783
          %v2901 = vadd.f32 %v2659, %v2786
          %v2902 = vadd.f32 %v2660, %v2824
          %v2903 = vadd.f32 %v2661, %v2827
          %v2904 = vadd.f32 %v2662, %v2832
          %v2905 = vadd.f32 %v2663, %v2835
          %v2906 = vadd.f32 %v2664, %v2840
          %v2907 = vadd.f32 %v2665, %v2843
          %v2908 = vadd.f32 %v2666, %v2848
          %v2909 = vadd.f32 %v2667, %v2851
          %v2910 = vadd.f32 %v2668, %v2856
          %v2911 = vadd.f32 %v2669, %v2859
          %v2912 = vadd.f32 %v2670, %v2864
          %v2913 = vadd.f32 %v2671, %v2867
          %v2914 = vadd.f32 %v2672, %v2872
          %v2915 = vadd.f32 %v2673, %v2875
          %v2916 = vadd.f32 %v2674, %v2880
          %v2917 = vadd.f32 %v2675, %v2883
        $region73: #{tpu_custom_call.1} parent=43 // loop_footer
          %s1898 = sadd.s32 1, %s1894
        $region74: #{tpu_custom_call.1} parent=43 // loop_footer_branch
          %1893 = sbr.rel target = $region70
        $region75: #{tpu_custom_call.1} parent=43 // loop_exit
          _
        %v2918 = vrcp.pop %v1931
        %v2919 = vrcp.pop %v1932
        %v2920 = vrcp.pop %v1933
        %v2921 = vrcp.pop %v1934
        %v2922 = vrcp.pop %v1935
        %v2923 = vrcp.pop %v1936
        %v2924 = vrcp.pop %v1937
        %v2925 = vrcp.pop %v1938
        %v2926 = vrcp.pop %v1939
        %v2927 = vrcp.pop %v1940
        %v2928 = vrcp.pop %v1941
        %v2929 = vrcp.pop %v1942
        %v2930 = vrcp.pop %v1943
        %v2931 = vrcp.pop %v1944
        %v2932 = vrcp.pop %v1945
        %v2933 = vrcp.pop %v1946
        %v2934 = vrcp.pop %v1947
        %v2935 = vrcp.pop %v1948
        %v2936 = vrcp.pop %v1949
        %v2937 = vrcp.pop %v1950
        %v2938 = vrcp.pop %v1951
        %v2939 = vrcp.pop %v1952
        %v2940 = vrcp.pop %v1953
        %v2941 = vrcp.pop %v1954
        %v2942 = vrcp.pop %v1955
        %v2943 = vrcp.pop %v1956
        %v2944 = vrcp.pop %v1957
        %v2945 = vrcp.pop %v1958
        %v2946 = vrcp.pop %v1959
        %v2947 = vrcp.pop %v1960
        %v2948 = vrcp.pop %v1961
        %v2949 = vrcp.pop %v1962
        %v2950 = vmul.f32 %v1963, %v2918
        %v2951 = vmul.f32 %v1964, %v2919
        %v2952 = vmul.f32 %v1965, %v2920
        %v2953 = vmul.f32 %v1966, %v2921
        %v2954 = vmul.f32 %v1967, %v2922
        %v2955 = vmul.f32 %v1968, %v2923
        %v2956 = vmul.f32 %v1969, %v2924
        %v2957 = vmul.f32 %v1970, %v2925
        %v2958 = vmul.f32 %v1971, %v2926
        %v2959 = vmul.f32 %v1972, %v2927
        %v2960 = vmul.f32 %v1973, %v2928
        %v2961 = vmul.f32 %v1974, %v2929
        %v2962 = vmul.f32 %v1975, %v2930
        %v2963 = vmul.f32 %v1976, %v2931
        %v2964 = vmul.f32 %v1977, %v2932
        %v2965 = vmul.f32 %v1978, %v2933
        %v2966 = vmul.f32 %v1979, %v2934
        %v2967 = vmul.f32 %v1980, %v2935
        %v2968 = vmul.f32 %v1981, %v2936
        %v2969 = vmul.f32 %v1982, %v2937
        %v2970 = vmul.f32 %v1983, %v2938
        %v2971 = vmul.f32 %v1984, %v2939
        %v2972 = vmul.f32 %v1985, %v2940
        %v2973 = vmul.f32 %v1986, %v2941
        %v2974 = vmul.f32 %v1987, %v2942
        %v2975 = vmul.f32 %v1988, %v2943
        %v2976 = vmul.f32 %v1989, %v2944
        %v2977 = vmul.f32 %v1990, %v2945
        %v2978 = vmul.f32 %v1991, %v2946
        %v2979 = vmul.f32 %v1992, %v2947
        %v2980 = vmul.f32 %v1993, %v2948
        %v2981 = vmul.f32 %v1994, %v2949
        %v2982 = vpack.c.bf16 %v2951, %v2950
        %v2983 = vpack.c.bf16 %v2953, %v2952
        %v2984 = vpack.c.bf16 %v2955, %v2954
        %v2985 = vpack.c.bf16 %v2957, %v2956
        %v2986 = vpack.c.bf16 %v2959, %v2958
        %v2987 = vpack.c.bf16 %v2961, %v2960
        %v2988 = vpack.c.bf16 %v2963, %v2962
        %v2989 = vpack.c.bf16 %v2965, %v2964
        %v2990 = vpack.c.bf16 %v2967, %v2966
        %v2991 = vpack.c.bf16 %v2969, %v2968
        %v2992 = vpack.c.bf16 %v2971, %v2970
        %v2993 = vpack.c.bf16 %v2973, %v2972
        %v2994 = vpack.c.bf16 %v2975, %v2974
        %v2995 = vpack.c.bf16 %v2977, %v2976
        %v2996 = vpack.c.bf16 %v2979, %v2978
        %v2997 = vpack.c.bf16 %v2981, %v2980
        %v2998 = vld [vmem:[#allocation12] sm:$0xff]
        %v2999 = vld [vmem:[#allocation12 + $0x8] sm:$0xff]
        %v3000 = vld [vmem:[#allocation12 + $0x10] sm:$0xff]
        %v3001 = vld [vmem:[#allocation12 + $0x18] sm:$0xff]
        %v3002 = vld [vmem:[#allocation12 + $0x20] sm:$0xff]
        %v3003 = vld [vmem:[#allocation12 + $0x28] sm:$0xff]
        %v3004 = vld [vmem:[#allocation12 + $0x30] sm:$0xff]
        %v3005 = vld [vmem:[#allocation12 + $0x38] sm:$0xff]
        %v3006 = vld [vmem:[#allocation12 + $0x40] sm:$0xff]
        %v3007 = vld [vmem:[#allocation12 + $0x48] sm:$0xff]
        %v3008 = vld [vmem:[#allocation12 + $0x50] sm:$0xff]
        %v3009 = vld [vmem:[#allocation12 + $0x58] sm:$0xff]
        %v3010 = vld [vmem:[#allocation12 + $0x60] sm:$0xff]
        %v3011 = vld [vmem:[#allocation12 + $0x68] sm:$0xff]
        %v3012 = vld [vmem:[#allocation12 + $0x70] sm:$0xff]
        %v3013 = vld [vmem:[#allocation12 + $0x78] sm:$0xff]
        %v3014 = vld [vmem:[#allocation12 + $0x80] sm:$0xff]
        %v3015 = vld [vmem:[#allocation12 + $0x88] sm:$0xff]
        %v3016 = vld [vmem:[#allocation12 + $0x90] sm:$0xff]
        %v3017 = vld [vmem:[#allocation12 + $0x98] sm:$0xff]
        %v3018 = vld [vmem:[#allocation12 + $0xa0] sm:$0xff]
        %v3019 = vld [vmem:[#allocation12 + $0xa8] sm:$0xff]
        %v3020 = vld [vmem:[#allocation12 + $0xb0] sm:$0xff]
        %v3021 = vld [vmem:[#allocation12 + $0xb8] sm:$0xff]
        %v3022 = vld [vmem:[#allocation12 + $0xc0] sm:$0xff]
        %v3023 = vld [vmem:[#allocation12 + $0xc8] sm:$0xff]
        %v3024 = vld [vmem:[#allocation12 + $0xd0] sm:$0xff]
        %v3025 = vld [vmem:[#allocation12 + $0xd8] sm:$0xff]
        %v3026 = vld [vmem:[#allocation12 + $0xe0] sm:$0xff]
        %v3027 = vld [vmem:[#allocation12 + $0xe8] sm:$0xff]
        %v3028 = vld [vmem:[#allocation12 + $0xf0] sm:$0xff]
        %v3029 = vld [vmem:[#allocation12 + $0xf8] sm:$0xff]
        %v3030 = vld [vmem:[%s5] sm:$0x3]
        %v3032 = vlaneseq
        %v3033 = vshrl.u32 %v3032, 7
        %v3034 = vsub.s32 0, %v3033
        %v3035 = vrot.slane %v3030, %v3034
        %v3036 = vlaneseq
        %v3037 = vshrl.u32 %v3036, 7
        %v3038 = vsub.s32 1, %v3037
        %v3039 = vrot.slane %v3030, %v3038
        %v3074 = vunpack.c.l.b16 %v2998
        %v3075 = vunpack.c.h.b16 %v2998
        %v3076 = vunpack.c.l.b16 %v2999
        %v3077 = vunpack.c.h.b16 %v2999
        %v3078 = vunpack.c.l.b16 %v3000
        %v3079 = vunpack.c.h.b16 %v3000
        %v3080 = vunpack.c.l.b16 %v3001
        %v3081 = vunpack.c.h.b16 %v3001
        %v3082 = vunpack.c.l.b16 %v3002
        %v3083 = vunpack.c.h.b16 %v3002
        %v3084 = vunpack.c.l.b16 %v3003
        %v3085 = vunpack.c.h.b16 %v3003
        %v3086 = vunpack.c.l.b16 %v3004
        %v3087 = vunpack.c.h.b16 %v3004
        %v3088 = vunpack.c.l.b16 %v3005
        %v3089 = vunpack.c.h.b16 %v3005
        %v3090 = vunpack.c.l.b16 %v3006
        %v3091 = vunpack.c.h.b16 %v3006
        %v3092 = vunpack.c.l.b16 %v3007
        %v3093 = vunpack.c.h.b16 %v3007
        %v3094 = vunpack.c.l.b16 %v3008
        %v3095 = vunpack.c.h.b16 %v3008
        %v3096 = vunpack.c.l.b16 %v3009
        %v3097 = vunpack.c.h.b16 %v3009
        %v3098 = vunpack.c.l.b16 %v3010
        %v3099 = vunpack.c.h.b16 %v3010
        %v3100 = vunpack.c.l.b16 %v3011
        %v3101 = vunpack.c.h.b16 %v3011
        %v3102 = vunpack.c.l.b16 %v3012
        %v3103 = vunpack.c.h.b16 %v3012
        %v3104 = vunpack.c.l.b16 %v3013
        %v3105 = vunpack.c.h.b16 %v3013
        %v3106 = vunpack.c.l.b16 %v3014
        %v3107 = vunpack.c.h.b16 %v3014
        %v3108 = vunpack.c.l.b16 %v3015
        %v3109 = vunpack.c.h.b16 %v3015
        %v3110 = vunpack.c.l.b16 %v3016
        %v3111 = vunpack.c.h.b16 %v3016
        %v3112 = vunpack.c.l.b16 %v3017
        %v3113 = vunpack.c.h.b16 %v3017
        %v3114 = vunpack.c.l.b16 %v3018
        %v3115 = vunpack.c.h.b16 %v3018
        %v3116 = vunpack.c.l.b16 %v3019
        %v3117 = vunpack.c.h.b16 %v3019
        %v3118 = vunpack.c.l.b16 %v3020
        %v3119 = vunpack.c.h.b16 %v3020
        %v3120 = vunpack.c.l.b16 %v3021
        %v3121 = vunpack.c.h.b16 %v3021
        %v3122 = vunpack.c.l.b16 %v3022
        %v3123 = vunpack.c.h.b16 %v3022
        %v3124 = vunpack.c.l.b16 %v3023
        %v3125 = vunpack.c.h.b16 %v3023
        %v3126 = vunpack.c.l.b16 %v3024
        %v3127 = vunpack.c.h.b16 %v3024
        %v3128 = vunpack.c.l.b16 %v3025
        %v3129 = vunpack.c.h.b16 %v3025
        %v3130 = vunpack.c.l.b16 %v3026
        %v3131 = vunpack.c.h.b16 %v3026
        %v3132 = vunpack.c.l.b16 %v3027
        %v3133 = vunpack.c.h.b16 %v3027
        %v3134 = vunpack.c.l.b16 %v3028
        %v3135 = vunpack.c.h.b16 %v3028
        %v3136 = vunpack.c.l.b16 %v3029
        %v3137 = vunpack.c.h.b16 %v3029
        %v3138 = vpack.c.b16 %v3076, %v3074
        %v3139 = vpack.c.b16 %v3077, %v3075
        %v3140 = vpack.c.b16 %v3080, %v3078
        %v3141 = vpack.c.b16 %v3081, %v3079
        %v3142 = vpack.c.b16 %v3084, %v3082
        %v3143 = vpack.c.b16 %v3085, %v3083
        %v3144 = vpack.c.b16 %v3088, %v3086
        %v3145 = vpack.c.b16 %v3089, %v3087
        %v3146 = vpack.c.b16 %v3092, %v3090
        %v3147 = vpack.c.b16 %v3093, %v3091
        %v3148 = vpack.c.b16 %v3096, %v3094
        %v3149 = vpack.c.b16 %v3097, %v3095
        %v3150 = vpack.c.b16 %v3100, %v3098
        %v3151 = vpack.c.b16 %v3101, %v3099
        %v3152 = vpack.c.b16 %v3104, %v3102
        %v3153 = vpack.c.b16 %v3105, %v3103
        %v3154 = vpack.c.b16 %v3108, %v3106
        %v3155 = vpack.c.b16 %v3109, %v3107
        %v3156 = vpack.c.b16 %v3112, %v3110
        %v3157 = vpack.c.b16 %v3113, %v3111
        %v3158 = vpack.c.b16 %v3116, %v3114
        %v3159 = vpack.c.b16 %v3117, %v3115
        %v3160 = vpack.c.b16 %v3120, %v3118
        %v3161 = vpack.c.b16 %v3121, %v3119
        %v3162 = vpack.c.b16 %v3124, %v3122
        %v3163 = vpack.c.b16 %v3125, %v3123
        %v3164 = vpack.c.b16 %v3128, %v3126
        %v3165 = vpack.c.b16 %v3129, %v3127
        %v3166 = vpack.c.b16 %v3132, %v3130
        %v3167 = vpack.c.b16 %v3133, %v3131
        %v3168 = vpack.c.b16 %v3136, %v3134
        %v3169 = vpack.c.b16 %v3137, %v3135
        %3202 = vmatprep.subr.bf16.mxu0 %v3139
        %3203 = vmatpush1.bf16.msra.mxu0 %v3138
        %3204 = vmatprep.subr.bf16.mxu0 %v3141
        %3205 = vmatpush1.bf16.msra.mxu0 %v3140
        %3206 = vmatprep.subr.bf16.mxu0 %v3143
        %3207 = vmatpush1.bf16.msra.mxu0 %v3142
        %3208 = vmatprep.subr.bf16.mxu0 %v3145
        %3209 = vmatpush1.bf16.msra.mxu0 %v3144
        %3210 = vmatprep.subr.bf16.mxu0 %v3147
        %3211 = vmatpush1.bf16.msra.mxu0 %v3146
        %3212 = vmatprep.subr.bf16.mxu0 %v3149
        %3213 = vmatpush1.bf16.msra.mxu0 %v3148
        %3214 = vmatprep.subr.bf16.mxu0 %v3151
        %3215 = vmatpush1.bf16.msra.mxu0 %v3150
        %3216 = vmatprep.subr.bf16.mxu0 %v3153
        %3217 = vmatpush1.bf16.msra.mxu0 %v3152
        %3218 = vmatprep.subr.bf16.mxu0 %v3155
        %3219 = vmatpush1.bf16.msra.mxu0 %v3154
        %3220 = vmatprep.subr.bf16.mxu0 %v3157
        %3221 = vmatpush1.bf16.msra.mxu0 %v3156
        %3222 = vmatprep.subr.bf16.mxu0 %v3159
        %3223 = vmatpush1.bf16.msra.mxu0 %v3158
        %3224 = vmatprep.subr.bf16.mxu0 %v3161
        %3225 = vmatpush1.bf16.msra.mxu0 %v3160
        %3226 = vmatprep.subr.bf16.mxu0 %v3163
        %3227 = vmatpush1.bf16.msra.mxu0 %v3162
        %3228 = vmatprep.subr.bf16.mxu0 %v3165
        %3229 = vmatpush1.bf16.msra.mxu0 %v3164
        %3230 = vmatprep.subr.bf16.mxu0 %v3167
        %3231 = vmatpush1.bf16.msra.mxu0 %v3166
        %3232 = vmatprep.subr.bf16.mxu0 %v3169
        %3233 = vmatpush1.bf16.msra.mxu0 %v3168
        %3234 = vmatprep.mubr.bf16.mxu0 %v2990
        %3235 = vmatmul.mubr.bf16.gmra.mrb[0].mxu0 %v2982
        %v3236 = vpop.f32.mrb[0].mxu0
        %v3237 = vadd.f32 %v3035, %v3236
        %v3238 = vpop.f32.mrb[0].mxu0
        %v3239 = vadd.f32 %v3039, %v3238
        %v3240 = vpop.f32.mrb[0].mxu0
        %v3241 = vadd.f32 %v3035, %v3240
        %v3242 = vpop.f32.mrb[0].mxu0
        %v3243 = vadd.f32 %v3039, %v3242
        %3244 = vmatprep.mubr.bf16.mxu0 %v2991
        %3245 = vmatmul.mubr.bf16.gmra.mrb[0].mxu0 %v2983
        %v3246 = vpop.f32.mrb[0].mxu0
        %v3247 = vadd.f32 %v3035, %v3246
        %v3248 = vpop.f32.mrb[0].mxu0
        %v3249 = vadd.f32 %v3039, %v3248
        %v3250 = vpop.f32.mrb[0].mxu0
        %v3251 = vadd.f32 %v3035, %v3250
        %v3252 = vpop.f32.mrb[0].mxu0
        %v3253 = vadd.f32 %v3039, %v3252
        %3254 = vmatprep.mubr.bf16.mxu0 %v2992
        %3255 = vmatmul.mubr.bf16.gmra.mrb[0].mxu0 %v2984
        %v3256 = vpop.f32.mrb[0].mxu0
        %v3257 = vadd.f32 %v3035, %v3256
        %v3258 = vpop.f32.mrb[0].mxu0
        %v3259 = vadd.f32 %v3039, %v3258
        %v3260 = vpop.f32.mrb[0].mxu0
        %v3261 = vadd.f32 %v3035, %v3260
        %v3262 = vpop.f32.mrb[0].mxu0
        %v3263 = vadd.f32 %v3039, %v3262
        %3264 = vmatprep.mubr.bf16.mxu0 %v2993
        %3265 = vmatmul.mubr.bf16.gmra.mrb[0].mxu0 %v2985
        %v3266 = vpop.f32.mrb[0].mxu0
        %v3267 = vadd.f32 %v3035, %v3266
        %v3268 = vpop.f32.mrb[0].mxu0
        %v3269 = vadd.f32 %v3039, %v3268
        %v3270 = vpop.f32.mrb[0].mxu0
        %v3271 = vadd.f32 %v3035, %v3270
        %v3272 = vpop.f32.mrb[0].mxu0
        %v3273 = vadd.f32 %v3039, %v3272
        %3274 = vmatprep.mubr.bf16.mxu0 %v2994
        %3275 = vmatmul.mubr.bf16.gmra.mrb[0].mxu0 %v2986
        %v3276 = vpop.f32.mrb[0].mxu0
        %v3277 = vadd.f32 %v3035, %v3276
        %v3278 = vpop.f32.mrb[0].mxu0
        %v3279 = vadd.f32 %v3039, %v3278
        %v3280 = vpop.f32.mrb[0].mxu0
        %v3281 = vadd.f32 %v3035, %v3280
        %v3282 = vpop.f32.mrb[0].mxu0
        %v3283 = vadd.f32 %v3039, %v3282
        %3284 = vmatprep.mubr.bf16.mxu0 %v2995
        %3285 = vmatmul.mubr.bf16.gmra.mrb[0].mxu0 %v2987
        %v3286 = vpop.f32.mrb[0].mxu0
        %v3287 = vadd.f32 %v3035, %v3286
        %v3288 = vpop.f32.mrb[0].mxu0
        %v3289 = vadd.f32 %v3039, %v3288
        %v3290 = vpop.f32.mrb[0].mxu0
        %v3291 = vadd.f32 %v3035, %v3290
        %v3292 = vpop.f32.mrb[0].mxu0
        %v3293 = vadd.f32 %v3039, %v3292
        %3294 = vmatprep.mubr.bf16.mxu0 %v2996
        %3295 = vmatmul.mubr.bf16.gmra.mrb[0].mxu0 %v2988
        %v3296 = vpop.f32.mrb[0].mxu0
        %v3297 = vadd.f32 %v3035, %v3296
        %v3298 = vpop.f32.mrb[0].mxu0
        %v3299 = vadd.f32 %v3039, %v3298
        %v3300 = vpop.f32.mrb[0].mxu0
        %v3301 = vadd.f32 %v3035, %v3300
        %v3302 = vpop.f32.mrb[0].mxu0
        %v3303 = vadd.f32 %v3039, %v3302
        %3304 = vmatprep.mubr.bf16.mxu0 %v2997
        %3305 = vmatmul.mubr.bf16.gmra.mrb[0].mxu0 %v2989
        %v3306 = vpop.f32.mrb[0].mxu0
        %v3307 = vadd.f32 %v3035, %v3306
        %v3308 = vpop.f32.mrb[0].mxu0
        %v3309 = vadd.f32 %v3039, %v3308
        %v3310 = vpop.f32.mrb[0].mxu0
        %v3311 = vadd.f32 %v3035, %v3310
        %v3312 = vpop.f32.mrb[0].mxu0
        %v3313 = vadd.f32 %v3039, %v3312
        %3314 = vdwg.mxu0
        %3315 = vst [vmem:[%s341] sm:$0xff] %v3237
        %3316 = vst [vmem:[%s341 + $0x8] sm:$0xff] %v3239
        %3317 = vst [vmem:[%s341 + $0x10] sm:$0xff] %v3241
        %3318 = vst [vmem:[%s341 + $0x18] sm:$0xff] %v3243
        %3319 = vst [vmem:[%s341 + $0x20] sm:$0xff] %v3247
        %3320 = vst [vmem:[%s341 + $0x28] sm:$0xff] %v3249
        %3321 = vst [vmem:[%s341 + $0x30] sm:$0xff] %v3251
        %3322 = vst [vmem:[%s341 + $0x38] sm:$0xff] %v3253
        %3323 = vst [vmem:[%s341 + $0x40] sm:$0xff] %v3257
        %3324 = vst [vmem:[%s341 + $0x48] sm:$0xff] %v3259
        %3325 = vst [vmem:[%s341 + $0x50] sm:$0xff] %v3261
        %3326 = vst [vmem:[%s341 + $0x58] sm:$0xff] %v3263
        %3327 = vst [vmem:[%s341 + $0x60] sm:$0xff] %v3267
        %3328 = vst [vmem:[%s341 + $0x68] sm:$0xff] %v3269
        %3329 = vst [vmem:[%s341 + $0x70] sm:$0xff] %v3271
        %3330 = vst [vmem:[%s341 + $0x78] sm:$0xff] %v3273
        %3331 = vst [vmem:[%s341 + $0x80] sm:$0xff] %v3277
        %3332 = vst [vmem:[%s341 + $0x88] sm:$0xff] %v3279
        %3333 = vst [vmem:[%s341 + $0x90] sm:$0xff] %v3281
        %3334 = vst [vmem:[%s341 + $0x98] sm:$0xff] %v3283
        %3335 = vst [vmem:[%s341 + $0xa0] sm:$0xff] %v3287
        %3336 = vst [vmem:[%s341 + $0xa8] sm:$0xff] %v3289
        %3337 = vst [vmem:[%s341 + $0xb0] sm:$0xff] %v3291
        %3338 = vst [vmem:[%s341 + $0xb8] sm:$0xff] %v3293
        %3339 = vst [vmem:[%s341 + $0xc0] sm:$0xff] %v3297
        %3340 = vst [vmem:[%s341 + $0xc8] sm:$0xff] %v3299
        %3341 = vst [vmem:[%s341 + $0xd0] sm:$0xff] %v3301
        %3342 = vst [vmem:[%s341 + $0xd8] sm:$0xff] %v3303
        %3343 = vst [vmem:[%s341 + $0xe0] sm:$0xff] %v3307
        %3344 = vst [vmem:[%s341 + $0xe8] sm:$0xff] %v3309
        %3345 = vst [vmem:[%s341 + $0xf0] sm:$0xff] %v3311
        %3346 = vst [vmem:[%s341 + $0xf8] sm:$0xff] %v3313
        %s3347 = sand.u32 %s178, 1
        %s3348 = scalar_lea.sflag [#allocation6], %s3347
        %s3349 = sand.u32 %s178, 1
        %s3350 = smul.addr %s3349, 256
        %s3351 = scalar_lea.vmem [#allocation13], %s3350
        // Predicated region
        $region76: #{tpu_custom_call.1} parent=43 // pred_check
          %p3352 = pneg %p188
        $region77: #{tpu_custom_call.1} parent=43 // pred_check_branch
          %3354 = sbr.rel (%p3352) target = $region79
        $region78: #{tpu_custom_call.1} parent=43 // pred_region
          %s3355 = smul.u32 16, %s30
          %s3357 = ssub.s32 4096, 4096
          %3358 = vsyncadd %s3348, %s3357
          %s3359 = smul.addr %s3355, 2
          %s3360 = smul.addr %s29, 64
          %s3361 = sadd.s32 %s3359, %s3360
          %s3362 = smul.addr %s3361, 128
          %s3363 = scalar_lea.hbm %s6, %s3362
          %s3364 = sshll.u32 %s3351, 4
          %s3365 = int_to_ptr.vmem [resolvable:$true] %s3364
          %3370 = dma.vmem_to_hbm [thread:$0]  %s3365, 4096, %s3363, %s3348, 256, 256, 16
        $region79: #{tpu_custom_call.1} parent=43 // pred_fallthru
          _
      $region44: #{tpu_custom_call.1} parent=5 // pred_fallthru
        _
      %p3371 = scmp.le.s32.totalorder 2, %s20
      // Predicated region
      $region80: #{tpu_custom_call.1} parent=5 // pred_check
        %p3372 = pneg %p3371
      $region81: #{tpu_custom_call.1} parent=5 // pred_check_branch
        %3374 = sbr.rel (%p3372) target = $region83
      $region82: #{tpu_custom_call.1} parent=5 // pred_region
        %s3375 = ssub.s32 %s20, 2
        // Predicated region
        $region84: #{tpu_custom_call.1} parent=82 // pred_check
          %p3376 = pneg %p194
        $region85: #{tpu_custom_call.1} parent=82 // pred_check_branch
          %3378 = sbr.rel (%p3376) target = $region87
        $region86: #{tpu_custom_call.1} parent=82 // pred_region
          %s3379 = sand.u32 %s179, 1
          %s3380 = scalar_lea.sflag [#allocation6], %s3379
          %s3381 = sand.u32 %s179, 1
          %s3382 = smul.addr %s3381, 256
          %s3383 = scalar_lea.vmem [#allocation13], %s3382
          %3384 = dma.done %s3380, 4096
        $region87: #{tpu_custom_call.1} parent=82 // pred_fallthru
          _
      $region83: #{tpu_custom_call.1} parent=5 // pred_fallthru
        _
    $region6: #{tpu_custom_call.1} parent=1 // loop_footer
      %s24 = sadd.s32 1, %s20
    $region7: #{tpu_custom_call.1} parent=1 // loop_footer_branch
      %19 = sbr.rel target = $region3
    $region8: #{tpu_custom_call.1} parent=1 // loop_exit
      _
    %3385 = vsyncpa [#allocation5], 1
    %s3386 = scalar_lea.sflag [#allocation5], 1
    %3387 = vsyncpa %s3386, 1
    %3388 = vsyncpa [#allocation8], 1
    %3389 = vsyncpa [#allocation11], 1
    %3390 = vsyncpa [#allocation6], 1
    %s3391 = scalar_lea.sflag [#allocation6], 1
    %3392 = vsyncpa %s3391, 1

// kernel: tpu_custom_call.1
$region0: #{tpu_custom_call.1}
  #allocation0 [shape = 'u32[]', space=smem, size = 0x4, offset = 0x4, fixed_abs, tag = 'smem constant byte address 0x4 - core index']
  #allocation1 [shape = 'u32[144,128]{1,0:T(1,128)}', space=vmem, size = 0x12000, scoped, tag = 'internal scratch']
  #allocation2 [shape = 'bf16[2,256,128]{2,1,0:T(16,128)(2,1)}', space=vmem, size = 0x20000, scoped, tag = 'scratch operand']
  #allocation3 [shape = 'bf16[2,256,128]{2,1,0:T(16,128)(2,1)}', space=vmem, size = 0x20000, scoped, tag = 'scratch operand']
  %s0 = inlined_call_operand.hbm [shape: bf16[2,256,256], index: 0, kind: input, shape index: {}]
  %s1 = inlined_call_operand.hbm [shape: bf16[256,256], index: 1, kind: input, shape index: {}]
  %s2 = inlined_call_operand.hbm [shape: bf16[256,256], index: 2, kind: input, shape index: {}]
  %s3 = inlined_call_operand.hbm [shape: bf16[256,256], index: 3, kind: input, shape index: {}]
  %s4 = inlined_call_operand.hbm [shape: bf16[256,256], index: 4, kind: input, shape index: {}]
  %s5 = inlined_call_operand.vmem [shape: f32[1,256], index: 5, kind: input, shape index: {}]
  %s6 = inlined_call_operand.hbm [shape: f32[2,256,256], index: 6, kind: output, shape index: {}]
  %s7 = sld [smem:[#allocation0]]
  $region88: #{tpu_custom_call.1} parent=0
    _
  %s9 = ssub.s32 1, %s7
  %s10 = scalar_select 0, %s9, %s7
  $region1: #{tpu_custom_call.1} parent=0
    #allocation4 [shape = 'u8[262144]{0}', space=vmem, size = 0x40000, scoped, tag = 'input window, operand 0']
    #allocation5 [shape = 's32[2]{0}', space=sflag, size = 0x8, scoped, tag = 'scoped memory for tpu_custom_call.1']
    #allocation6 [shape = 's32[2]{0}', space=sflag, size = 0x8, scoped, tag = 'scoped memory for tpu_custom_call.1']
    #allocation7 [shape = 'u8[131072]{0}', space=vmem, size = 0x20000, scoped, tag = 'input window, operand 1, single buffered']
    #allocation8 [shape = 's32[1]{0}', space=sflag, size = 0x4, scoped, tag = 'scoped memory for tpu_custom_call.1']
    #allocation9 [shape = 'u8[131072]{0}', space=vmem, size = 0x20000, scoped, tag = 'input window, operand 2, single buffered']
    #allocation10 [shape = 'u8[131072]{0}', space=vmem, size = 0x20000, scoped, tag = 'input window, operand 3, single buffered']
    #allocation11 [shape = 's32[1]{0}', space=sflag, size = 0x4, scoped, tag = 'scoped memory for tpu_custom_call.1']
    #allocation12 [shape = 'u8[131072]{0}', space=vmem, size = 0x20000, scoped, tag = 'input window, operand 4, single buffered']
    #allocation13 [shape = 'u8[262144]{0}', space=vmem, size = 0x40000, scoped, tag = 'output window, operand 0']
    %11 = vsyncpa [#allocation5], 0
    %s12 = scalar_lea.sflag [#allocation5], 1
    %13 = vsyncpa %s12, 0
    %14 = vsyncpa [#allocation8], 0
    %15 = vsyncpa [#allocation11], 0
    %16 = vsyncpa [#allocation6], 0
    %s17 = scalar_lea.sflag [#allocation6], 1
    %18 = vsyncpa %s17, 0
    loop: start=0, step=1, limit=6
    $region2: #{tpu_custom_call.1} parent=1 // loop_pre_header
      _
    $region3: #{tpu_custom_call.1} parent=1 // loop_header
      %s20 = sphi 0, %s24
      %p21 = scmp.ge.s32.totalorder %s20, 6
      %s27 = sphi 0, %s39
      %s28 = sphi 0, %s35
      %s29 = sphi 0, %s27
      %s30 = sphi 0, %s28
      %s31 = sphi 0, %s29
      %s32 = sphi 0, %s30
      %s42 = sphi 0, %s44
      %s45 = sphi 0, %s42
      %s46 = sphi 0, %s45
      %s62 = sphi 0, %s46
      %s66 = sphi 0, %s66
      %s68 = sphi 0, %s66
      %s69 = sphi 0, %s68
      %s83 = sphi 0, %s69
      %s87 = sphi 0, %s87
      %s89 = sphi 0, %s87
      %s90 = sphi 0, %s89
      %s104 = sphi 0, %s90
      %s108 = sphi 0, %s108
      %s110 = sphi 0, %s108
      %s111 = sphi 0, %s110
      %s125 = sphi 0, %s111
      %s129 = sphi 0, %s129
      %s131 = sphi 0, %s129
      %s132 = sphi 0, %s131
      %s146 = sphi 0, %s132
      %s150 = sphi 0, %s150
      %s152 = sphi 0, %s150
      %s153 = sphi 0, %s152
      %s167 = sphi 0, %s153
      %s175 = sphi 0, %s177
      %s178 = sphi 0, %s175
      %s179 = sphi 0, %s178
      %s195 = sphi 0, %s179
    $region4: #{tpu_custom_call.1} parent=1 // loop_header_branch
      %23 = sbr.rel (%p21) target = $region8
    $region5: #{tpu_custom_call.1} parent=1 // loop_body
      %s25 = ssub.s32 %s20, 1
      %s26 = ssub.s32 %s20, 2
      %s33 = sadd.s32 1, %s28
      %p34 = scmp.ge.s32.totalorder %s33, 2
      %s35 = scalar_select %p34, 0, %s33
      %s36 = sadd.s32 1, %s27
      %s37 = scalar_select %p34, %s36, %s27
      %p38 = scmp.ge.s32.totalorder %s37, 2
      %s39 = scalar_select %p38, 0, %s37
      %s40 = ssub.s32 %s27, %s39
      %p41 = scmp.eq.s32.totalorder %s40, 0
      %s43 = sadd.s32 %s42, 1
      %s44 = scalar_select %p41, %s42, %s43
      %p47 = pneg %p41
      %p48 = scmp.eq.s32.totalorder %s20, 3
      %p49 = por %p47, %p48
      %p50 = scmp.ne.s32.totalorder %s42, %s45
      %p51 = scmp.eq.s32.totalorder %s20, 0
      %p52 = por %p50, %p51
      %p53 = scmp.ne.s32.totalorder %s42, %s45
      %p54 = scmp.eq.s32.totalorder %s25, 3
      %p55 = por %p53, %p54
      %p56 = scmp.ne.s32.totalorder %s45, %s46
      %p57 = scmp.eq.s32.totalorder %s25, 0
      %p58 = por %p56, %p57
      %p59 = scmp.ne.s32.totalorder %s45, %s46
      %p60 = scmp.eq.s32.totalorder %s26, 3
      %p61 = por %p59, %p60
      %p63 = scmp.ne.s32.totalorder %s46, %s62
      %p64 = scmp.eq.s32.totalorder %s26, 0
      %p65 = por %p63, %p64
      %s67 = sadd.s32 %s66, 1
      %p70 = scmp.eq.s32.totalorder %s20, 3
      %p71 = scmp.ne.s32.totalorder %s66, %s68
      %p72 = scmp.eq.s32.totalorder %s20, 0
      %p73 = por %p71, %p72
      %p74 = scmp.ne.s32.totalorder %s66, %s68
      %p75 = scmp.eq.s32.totalorder %s25, 3
      %p76 = por %p74, %p75
      %p77 = scmp.ne.s32.totalorder %s68, %s69
      %p78 = scmp.eq.s32.totalorder %s25, 0
      %p79 = por %p77, %p78
      %p80 = scmp.ne.s32.totalorder %s68, %s69
      %p81 = scmp.eq.s32.totalorder %s26, 3
      %p82 = por %p80, %p81
      %p84 = scmp.ne.s32.totalorder %s69, %s83
      %p85 = scmp.eq.s32.totalorder %s26, 0
      %p86 = por %p84, %p85
      %s88 = sadd.s32 %s87, 1
      %p91 = scmp.eq.s32.totalorder %s20, 3
      %p92 = scmp.ne.s32.totalorder %s87, %s89
      %p93 = scmp.eq.s32.totalorder %s20, 0
      %p94 = por %p92, %p93
      %p95 = scmp.ne.s32.totalorder %s87, %s89
      %p96 = scmp.eq.s32.totalorder %s25, 3
      %p97 = por %p95, %p96
      %p98 = scmp.ne.s32.totalorder %s89, %s90
      %p99 = scmp.eq.s32.totalorder %s25, 0
      %p100 = por %p98, %p99
      %p101 = scmp.ne.s32.totalorder %s89, %s90
      %p102 = scmp.eq.s32.totalorder %s26, 3
      %p103 = por %p101, %p102
      %p105 = scmp.ne.s32.totalorder %s90, %s104
      %p106 = scmp.eq.s32.totalorder %s26, 0
      %p107 = por %p105, %p106
      %s109 = sadd.s32 %s108, 1
      %p112 = scmp.eq.s32.totalorder %s20, 3
      %p113 = scmp.ne.s32.totalorder %s108, %s110
      %p114 = scmp.eq.s32.totalorder %s20, 0
      %p115 = por %p113, %p114
      %p116 = scmp.ne.s32.totalorder %s108, %s110
      %p117 = scmp.eq.s32.totalorder %s25, 3
      %p118 = por %p116, %p117
      %p119 = scmp.ne.s32.totalorder %s110, %s111
      %p120 = scmp.eq.s32.totalorder %s25, 0
      %p121 = por %p119, %p120
      %p122 = scmp.ne.s32.totalorder %s110, %s111
      %p123 = scmp.eq.s32.totalorder %s26, 3
      %p124 = por %p122, %p123
      %p126 = scmp.ne.s32.totalorder %s111, %s125
      %p127 = scmp.eq.s32.totalorder %s26, 0
      %p128 = por %p126, %p127
      %s130 = sadd.s32 %s129, 1
      %p133 = scmp.eq.s32.totalorder %s20, 3
      %p134 = scmp.ne.s32.totalorder %s129, %s131
      %p135 = scmp.eq.s32.totalorder %s20, 0
      %p136 = por %p134, %p135
      %p137 = scmp.ne.s32.totalorder %s129, %s131
      %p138 = scmp.eq.s32.totalorder %s25, 3
      %p139 = por %p137, %p138
      %p140 = scmp.ne.s32.totalorder %s131, %s132
      %p141 = scmp.eq.s32.totalorder %s25, 0
      %p142 = por %p140, %p141
      %p143 = scmp.ne.s32.totalorder %s131, %s132
      %p144 = scmp.eq.s32.totalorder %s26, 3
      %p145 = por %p143, %p144
      %p147 = scmp.ne.s32.totalorder %s132, %s146
      %p148 = scmp.eq.s32.totalorder %s26, 0
      %p149 = por %p147, %p148
      %s151 = sadd.s32 %s150, 1
      %p154 = scmp.eq.s32.totalorder %s20, 3
      %p155 = scmp.ne.s32.totalorder %s150, %s152
      %p156 = scmp.eq.s32.totalorder %s20, 0
      %p157 = por %p155, %p156
      %p158 = scmp.ne.s32.totalorder %s150, %s152
      %p159 = scmp.eq.s32.totalorder %s25, 3
      %p160 = por %p158, %p159
      %p161 = scmp.ne.s32.totalorder %s152, %s153
      %p162 = scmp.eq.s32.totalorder %s25, 0
      %p163 = por %p161, %p162
      %p164 = scmp.ne.s32.totalorder %s152, %s153
      %p165 = scmp.eq.s32.totalorder %s26, 3
      %p166 = por %p164, %p165
      %p168 = scmp.ne.s32.totalorder %s153, %s167
      %p169 = scmp.eq.s32.totalorder %s26, 0
      %p170 = por %p168, %p169
      %s171 = ssub.s32 %s27, %s39
      %s172 = ssub.s32 %s28, %s35
      %s173 = sor.u32 %s171, %s172
      %p174 = scmp.eq.s32.totalorder %s173, 0
      %s176 = sadd.s32 %s175, 1
      %s177 = scalar_select %p174, %s175, %s176
      %p180 = pneg %p174
      %p181 = scmp.eq.s32.totalorder %s20, 3
      %p182 = por %p180, %p181
      %p183 = scmp.ne.s32.totalorder %s175, %s178
      %p184 = scmp.eq.s32.totalorder %s20, 0
      %p185 = por %p183, %p184
      %p186 = scmp.ne.s32.totalorder %s175, %s178
      %p187 = scmp.eq.s32.totalorder %s25, 3
      %p188 = por %p186, %p187
      %p189 = scmp.ne.s32.totalorder %s178, %s179
      %p190 = scmp.eq.s32.totalorder %s25, 0
      %p191 = por %p189, %p190
      %p192 = scmp.ne.s32.totalorder %s178, %s179
      %p193 = scmp.eq.s32.totalorder %s26, 3
      %p194 = por %p192, %p193
      %p196 = scmp.ne.s32.totalorder %s179, %s195
      %p197 = scmp.eq.s32.totalorder %s26, 0
      %p198 = por %p196, %p197
      %p199 = scmp.le.s32.totalorder 1, %s20
      %p200 = scmp.lt.s32.totalorder %s20, 5
      %p201 = pnand %p199, %p200
      %p202 = pneg %p201
      // Predicated region
      $region9: #{tpu_custom_call.1} parent=5 // pred_check
        _
      $region10: #{tpu_custom_call.1} parent=5 // pred_check_branch
        %204 = sbr.rel (%p201) target = $region12
      $region11: #{tpu_custom_call.1} parent=5 // pred_region
        %s205 = ssub.s32 %s20, 1
        // Predicated region
        $region13: #{tpu_custom_call.1} parent=11 // pred_check
          %p206 = pneg %p79
        $region14: #{tpu_custom_call.1} parent=11 // pred_check_branch
          %208 = sbr.rel (%p206) target = $region16
        $region15: #{tpu_custom_call.1} parent=11 // pred_region
          %s210 = ssub.s32 4096, 4096
          %211 = vsyncadd [#allocation8], %s210
          %s212 = sshll.u32 [#allocation7], 4
          %s213 = int_to_ptr.vmem [resolvable:$true] %s212
          %218 = dma.hbm_to_vmem [thread:$0]  %s1, 4096, %s213, [#allocation8], 128, 128, 8
        $region16: #{tpu_custom_call.1} parent=11 // pred_fallthru
          _
        // Predicated region
        $region17: #{tpu_custom_call.1} parent=11 // pred_check
          %p219 = pneg %p100
        $region18: #{tpu_custom_call.1} parent=11 // pred_check_branch
          %221 = sbr.rel (%p219) target = $region20
        $region19: #{tpu_custom_call.1} parent=11 // pred_region
          %s223 = ssub.s32 4096, 4096
          %224 = vsyncadd [#allocation8], %s223
          %s225 = sshll.u32 [#allocation9], 4
          %s226 = int_to_ptr.vmem [resolvable:$true] %s225
          %231 = dma.hbm_to_vmem [thread:$0]  %s2, 4096, %s226, [#allocation8], 128, 128, 8
        $region20: #{tpu_custom_call.1} parent=11 // pred_fallthru
          _
        // Predicated region
        $region21: #{tpu_custom_call.1} parent=11 // pred_check
          %p232 = pneg %p121
        $region22: #{tpu_custom_call.1} parent=11 // pred_check_branch
          %234 = sbr.rel (%p232) target = $region24
        $region23: #{tpu_custom_call.1} parent=11 // pred_region
          %s236 = ssub.s32 4096, 4096
          %237 = vsyncadd [#allocation11], %s236
          %s238 = sshll.u32 [#allocation10], 4
          %s239 = int_to_ptr.vmem [resolvable:$true] %s238
          %244 = dma.hbm_to_vmem [thread:$0]  %s3, 4096, %s239, [#allocation11], 128, 128, 8
        $region24: #{tpu_custom_call.1} parent=11 // pred_fallthru
          _
        // Predicated region
        $region25: #{tpu_custom_call.1} parent=11 // pred_check
          %p245 = pneg %p142
        $region26: #{tpu_custom_call.1} parent=11 // pred_check_branch
          %247 = sbr.rel (%p245) target = $region28
        $region27: #{tpu_custom_call.1} parent=11 // pred_region
          %s249 = ssub.s32 4096, 4096
          %250 = vsyncadd [#allocation11], %s249
          %s251 = sshll.u32 [#allocation12], 4
          %s252 = int_to_ptr.vmem [resolvable:$true] %s251
          %257 = dma.hbm_to_vmem [thread:$0]  %s4, 4096, %s252, [#allocation11], 128, 128, 8
        $region28: #{tpu_custom_call.1} parent=11 // pred_fallthru
          _
        // Predicated region
        $region29: #{tpu_custom_call.1} parent=11 // pred_check
          %p258 = pneg %p163
        $region30: #{tpu_custom_call.1} parent=11 // pred_check_branch
          %260 = sbr.rel (%p258) target = $region32
        $region31: #{tpu_custom_call.1} parent=11 // pred_region
          _
        $region32: #{tpu_custom_call.1} parent=11 // pred_fallthru
          _
      $region12: #{tpu_custom_call.1} parent=5 // pred_fallthru
        _
      %p261 = scmp.lt.s32.totalorder %s20, 4
      // Predicated region
      $region33: #{tpu_custom_call.1} parent=5 // pred_check
        %p262 = pneg %p261
      $region34: #{tpu_custom_call.1} parent=5 // pred_check_branch
        %264 = sbr.rel (%p262) target = $region36
      $region35: #{tpu_custom_call.1} parent=5 // pred_region
        // Predicated region
        $region37: #{tpu_custom_call.1} parent=35 // pred_check
          %p265 = pneg %p52
        $region38: #{tpu_custom_call.1} parent=35 // pred_check_branch
          %267 = sbr.rel (%p265) target = $region40
        $region39: #{tpu_custom_call.1} parent=35 // pred_region
          %s268 = sand.u32 %s42, 1
          %s269 = scalar_lea.sflag [#allocation5], %s268
          %s270 = sand.u32 %s42, 1
          %s271 = smul.addr %s270, 256
          %s272 = scalar_lea.vmem [#allocation4], %s271
          %s274 = ssub.s32 4096, 4096
          %275 = vsyncadd %s269, %s274
          %s276 = smul.addr %s27, 64
          %s277 = smul.addr %s276, 64
          %s278 = scalar_lea.hbm %s0, %s277
          %s279 = sshll.u32 %s272, 4
          %s280 = int_to_ptr.vmem [resolvable:$true] %s279
          %285 = dma.hbm_to_vmem [thread:$0]  %s278, 4096, %s280, %s269, 128, 128, 8
        $region40: #{tpu_custom_call.1} parent=35 // pred_fallthru
          _
      $region36: #{tpu_custom_call.1} parent=5 // pred_fallthru
        _
      %p286 = scmp.le.s32.totalorder 1, %s20
      %p287 = scmp.lt.s32.totalorder %s20, 5
      %p288 = pnand %p286, %p287
      %p289 = pneg %p288
      // Predicated region
      $region41: #{tpu_custom_call.1} parent=5 // pred_check
        _
      $region42: #{tpu_custom_call.1} parent=5 // pred_check_branch
        %291 = sbr.rel (%p288) target = $region44
      $region43: #{tpu_custom_call.1} parent=5 // pred_region
        %s292 = ssub.s32 %s20, 1
        %s293 = sand.u32 %s45, 1
        %s294 = scalar_lea.sflag [#allocation5], %s293
        %s295 = sand.u32 %s45, 1
        %s296 = smul.addr %s295, 256
        %s297 = scalar_lea.vmem [#allocation4], %s296
        // Predicated region
        $region45: #{tpu_custom_call.1} parent=43 // pred_check
          %p298 = pneg %p58
        $region46: #{tpu_custom_call.1} parent=43 // pred_check_branch
          %300 = sbr.rel (%p298) target = $region48
        $region47: #{tpu_custom_call.1} parent=43 // pred_region
          %301 = dma.done %s294, 4096
        $region48: #{tpu_custom_call.1} parent=43 // pred_fallthru
          _
        // Predicated region
        $region49: #{tpu_custom_call.1} parent=43 // pred_check
          %p302 = pneg %p79
        $region50: #{tpu_custom_call.1} parent=43 // pred_check_branch
          %304 = sbr.rel (%p302) target = $region52
        $region51: #{tpu_custom_call.1} parent=43 // pred_region
          %305 = dma.done [#allocation8], 4096
        $region52: #{tpu_custom_call.1} parent=43 // pred_fallthru
          _
        // Predicated region
        $region53: #{tpu_custom_call.1} parent=43 // pred_check
          %p306 = pneg %p100
        $region54: #{tpu_custom_call.1} parent=43 // pred_check_branch
          %308 = sbr.rel (%p306) target = $region56
        $region55: #{tpu_custom_call.1} parent=43 // pred_region
          %309 = dma.done [#allocation8], 4096
        $region56: #{tpu_custom_call.1} parent=43 // pred_fallthru
          _
        // Predicated region
        $region57: #{tpu_custom_call.1} parent=43 // pred_check
          %p310 = pneg %p121
        $region58: #{tpu_custom_call.1} parent=43 // pred_check_branch
          %312 = sbr.rel (%p310) target = $region60
        $region59: #{tpu_custom_call.1} parent=43 // pred_region
          %313 = dma.done [#allocation11], 4096
        $region60: #{tpu_custom_call.1} parent=43 // pred_fallthru
          _
        // Predicated region
        $region61: #{tpu_custom_call.1} parent=43 // pred_check
          %p314 = pneg %p142
        $region62: #{tpu_custom_call.1} parent=43 // pred_check_branch
          %316 = sbr.rel (%p314) target = $region64
        $region63: #{tpu_custom_call.1} parent=43 // pred_region
          %317 = dma.done [#allocation11], 4096
        $region64: #{tpu_custom_call.1} parent=43 // pred_fallthru
          _
        %s318 = sand.u32 %s45, 1
        %s319 = scalar_lea.sflag [#allocation5], %s318
        %s320 = sand.u32 %s45, 1
        %s321 = smul.addr %s320, 256
        %s322 = scalar_lea.vmem [#allocation4], %s321
        %p323 = pneg %p58
        %p324 = pneg %p55
        %p325 = pneg %p79
        %p326 = pneg %p76
        %p327 = pneg %p100
        %p328 = pneg %p97
        %p329 = pneg %p121
        %p330 = pneg %p118
        %p331 = pneg %p142
        %p332 = pneg %p139
        %p333 = pneg %p163
        %p334 = pneg %p160
        %p335 = pneg %p191
        %p336 = pneg %p188
        %s337 = sand.u32 %s178, 1
        %s338 = scalar_lea.sflag [#allocation6], %s337
        %s339 = sand.u32 %s178, 1
        %s340 = smul.addr %s339, 256
        %s341 = scalar_lea.vmem [#allocation13], %s340
        %s342 = smul.u32 16, %s30
        %p344 = scmp.eq.s32.totalorder %s30, 0
        // Predicated region
        $region65: #{tpu_custom_call.1} parent=43 // pred_check
          %p345 = pneg %p344
        $region66: #{tpu_custom_call.1} parent=43 // pred_check_branch
          %347 = sbr.rel (%p345) target = $region68
        $region67: #{tpu_custom_call.1} parent=43 // pred_region
          %v348 = vld [vmem:[%s297] sm:$0xff]
          %v349 = vld [vmem:[%s297 + $0x8] sm:$0xff]
          %v350 = vld [vmem:[%s297 + $0x10] sm:$0xff]
          %v351 = vld [vmem:[%s297 + $0x18] sm:$0xff]
          %v352 = vld [vmem:[%s297 + $0x20] sm:$0xff]
          %v353 = vld [vmem:[%s297 + $0x28] sm:$0xff]
          %v354 = vld [vmem:[%s297 + $0x30] sm:$0xff]
          %v355 = vld [vmem:[%s297 + $0x38] sm:$0xff]
          %v356 = vld [vmem:[%s297 + $0x40] sm:$0xff]
          %v357 = vld [vmem:[%s297 + $0x48] sm:$0xff]
          %v358 = vld [vmem:[%s297 + $0x50] sm:$0xff]
          %v359 = vld [vmem:[%s297 + $0x58] sm:$0xff]
          %v360 = vld [vmem:[%s297 + $0x60] sm:$0xff]
          %v361 = vld [vmem:[%s297 + $0x68] sm:$0xff]
          %v362 = vld [vmem:[%s297 + $0x70] sm:$0xff]
          %v363 = vld [vmem:[%s297 + $0x78] sm:$0xff]
          %v364 = vld [vmem:[%s297 + $0x80] sm:$0xff]
          %v365 = vld [vmem:[%s297 + $0x88] sm:$0xff]
          %v366 = vld [vmem:[%s297 + $0x90] sm:$0xff]
          %v367 = vld [vmem:[%s297 + $0x98] sm:$0xff]
          %v368 = vld [vmem:[%s297 + $0xa0] sm:$0xff]
          %v369 = vld [vmem:[%s297 + $0xa8] sm:$0xff]
          %v370 = vld [vmem:[%s297 + $0xb0] sm:$0xff]
          %v371 = vld [vmem:[%s297 + $0xb8] sm:$0xff]
          %v372 = vld [vmem:[%s297 + $0xc0] sm:$0xff]
          %v373 = vld [vmem:[%s297 + $0xc8] sm:$0xff]
          %v374 = vld [vmem:[%s297 + $0xd0] sm:$0xff]
          %v375 = vld [vmem:[%s297 + $0xd8] sm:$0xff]
          %v376 = vld [vmem:[%s297 + $0xe0] sm:$0xff]
          %v377 = vld [vmem:[%s297 + $0xe8] sm:$0xff]
          %v378 = vld [vmem:[%s297 + $0xf0] sm:$0xff]
          %v379 = vld [vmem:[%s297 + $0xf8] sm:$0xff]
          %v380 = vld [vmem:[#allocation9] sm:$0xff]
          %v381 = vld [vmem:[#allocation9 + $0x8] sm:$0xff]
          %v382 = vld [vmem:[#allocation9 + $0x10] sm:$0xff]
          %v383 = vld [vmem:[#allocation9 + $0x18] sm:$0xff]
          %v384 = vld [vmem:[#allocation9 + $0x20] sm:$0xff]
          %v385 = vld [vmem:[#allocation9 + $0x28] sm:$0xff]
          %v386 = vld [vmem:[#allocation9 + $0x30] sm:$0xff]
          %v387 = vld [vmem:[#allocation9 + $0x38] sm:$0xff]
          %v388 = vld [vmem:[#allocation9 + $0x40] sm:$0xff]
          %v389 = vld [vmem:[#allocation9 + $0x48] sm:$0xff]
          %v390 = vld [vmem:[#allocation9 + $0x50] sm:$0xff]
          %v391 = vld [vmem:[#allocation9 + $0x58] sm:$0xff]
          %v392 = vld [vmem:[#allocation9 + $0x60] sm:$0xff]
          %v393 = vld [vmem:[#allocation9 + $0x68] sm:$0xff]
          %v394 = vld [vmem:[#allocation9 + $0x70] sm:$0xff]
          %v395 = vld [vmem:[#allocation9 + $0x78] sm:$0xff]
          %v396 = vld [vmem:[#allocation9 + $0x80] sm:$0xff]
          %v397 = vld [vmem:[#allocation9 + $0x88] sm:$0xff]
          %v398 = vld [vmem:[#allocation9 + $0x90] sm:$0xff]
          %v399 = vld [vmem:[#allocation9 + $0x98] sm:$0xff]
          %v400 = vld [vmem:[#allocation9 + $0xa0] sm:$0xff]
          %v401 = vld [vmem:[#allocation9 + $0xa8] sm:$0xff]
          %v402 = vld [vmem:[#allocation9 + $0xb0] sm:$0xff]
          %v403 = vld [vmem:[#allocation9 + $0xb8] sm:$0xff]
          %v404 = vld [vmem:[#allocation9 + $0xc0] sm:$0xff]
          %v405 = vld [vmem:[#allocation9 + $0xc8] sm:$0xff]
          %v406 = vld [vmem:[#allocation9 + $0xd0] sm:$0xff]
          %v407 = vld [vmem:[#allocation9 + $0xd8] sm:$0xff]
          %v408 = vld [vmem:[#allocation9 + $0xe0] sm:$0xff]
          %v409 = vld [vmem:[#allocation9 + $0xe8] sm:$0xff]
          %v410 = vld [vmem:[#allocation9 + $0xf0] sm:$0xff]
          %v411 = vld [vmem:[#allocation9 + $0xf8] sm:$0xff]
          %v444 = vunpack.c.l.b16 %v348
          %v445 = vunpack.c.h.b16 %v348
          %v446 = vunpack.c.l.b16 %v349
          %v447 = vunpack.c.h.b16 %v349
          %v448 = vunpack.c.l.b16 %v350
          %v449 = vunpack.c.h.b16 %v350
          %v450 = vunpack.c.l.b16 %v351
          %v451 = vunpack.c.h.b16 %v351
          %v452 = vunpack.c.l.b16 %v352
          %v453 = vunpack.c.h.b16 %v352
          %v454 = vunpack.c.l.b16 %v353
          %v455 = vunpack.c.h.b16 %v353
          %v456 = vunpack.c.l.b16 %v354
          %v457 = vunpack.c.h.b16 %v354
          %v458 = vunpack.c.l.b16 %v355
          %v459 = vunpack.c.h.b16 %v355
          %v460 = vunpack.c.l.b16 %v356
          %v461 = vunpack.c.h.b16 %v356
          %v462 = vunpack.c.l.b16 %v357
          %v463 = vunpack.c.h.b16 %v357
          %v464 = vunpack.c.l.b16 %v358
          %v465 = vunpack.c.h.b16 %v358
          %v466 = vunpack.c.l.b16 %v359
          %v467 = vunpack.c.h.b16 %v359
          %v468 = vunpack.c.l.b16 %v360
          %v469 = vunpack.c.h.b16 %v360
          %v470 = vunpack.c.l.b16 %v361
          %v471 = vunpack.c.h.b16 %v361
          %v472 = vunpack.c.l.b16 %v362
          %v473 = vunpack.c.h.b16 %v362
          %v474 = vunpack.c.l.b16 %v363
          %v475 = vunpack.c.h.b16 %v363
          %v476 = vunpack.c.l.b16 %v364
          %v477 = vunpack.c.h.b16 %v364
          %v478 = vunpack.c.l.b16 %v365
          %v479 = vunpack.c.h.b16 %v365
          %v480 = vunpack.c.l.b16 %v366
          %v481 = vunpack.c.h.b16 %v366
          %v482 = vunpack.c.l.b16 %v367
          %v483 = vunpack.c.h.b16 %v367
          %v484 = vunpack.c.l.b16 %v368
          %v485 = vunpack.c.h.b16 %v368
          %v486 = vunpack.c.l.b16 %v369
          %v487 = vunpack.c.h.b16 %v369
          %v488 = vunpack.c.l.b16 %v370
          %v489 = vunpack.c.h.b16 %v370
          %v490 = vunpack.c.l.b16 %v371
          %v491 = vunpack.c.h.b16 %v371
          %v492 = vunpack.c.l.b16 %v372
          %v493 = vunpack.c.h.b16 %v372
          %v494 = vunpack.c.l.b16 %v373
          %v495 = vunpack.c.h.b16 %v373
          %v496 = vunpack.c.l.b16 %v374
          %v497 = vunpack.c.h.b16 %v374
          %v498 = vunpack.c.l.b16 %v375
          %v499 = vunpack.c.h.b16 %v375
          %v500 = vunpack.c.l.b16 %v376
          %v501 = vunpack.c.h.b16 %v376
          %v502 = vunpack.c.l.b16 %v377
          %v503 = vunpack.c.h.b16 %v377
          %v504 = vunpack.c.l.b16 %v378
          %v505 = vunpack.c.h.b16 %v378
          %v506 = vunpack.c.l.b16 %v379
          %v507 = vunpack.c.h.b16 %v379
          %v508 = vpack.c.b16 %v446, %v444
          %v509 = vpack.c.b16 %v447, %v445
          %v510 = vpack.c.b16 %v450, %v448
          %v511 = vpack.c.b16 %v451, %v449
          %v512 = vpack.c.b16 %v454, %v452
          %v513 = vpack.c.b16 %v455, %v453
          %v514 = vpack.c.b16 %v458, %v456
          %v515 = vpack.c.b16 %v459, %v457
          %v516 = vpack.c.b16 %v462, %v460
          %v517 = vpack.c.b16 %v463, %v461
          %v518 = vpack.c.b16 %v466, %v464
          %v519 = vpack.c.b16 %v467, %v465
          %v520 = vpack.c.b16 %v470, %v468
          %v521 = vpack.c.b16 %v471, %v469
          %v522 = vpack.c.b16 %v474, %v472
          %v523 = vpack.c.b16 %v475, %v473
          %v524 = vpack.c.b16 %v478, %v476
          %v525 = vpack.c.b16 %v479, %v477
          %v526 = vpack.c.b16 %v482, %v480
          %v527 = vpack.c.b16 %v483, %v481
          %v528 = vpack.c.b16 %v486, %v484
          %v529 = vpack.c.b16 %v487, %v485
          %v530 = vpack.c.b16 %v490, %v488
          %v531 = vpack.c.b16 %v491, %v489
          %v532 = vpack.c.b16 %v494, %v492
          %v533 = vpack.c.b16 %v495, %v493
          %v534 = vpack.c.b16 %v498, %v496
          %v535 = vpack.c.b16 %v499, %v497
          %v536 = vpack.c.b16 %v502, %v500
          %v537 = vpack.c.b16 %v503, %v501
          %v538 = vpack.c.b16 %v506, %v504
          %v539 = vpack.c.b16 %v507, %v505
          %v604 = vunpack.c.l.b16 %v380
          %v605 = vunpack.c.h.b16 %v380
          %v606 = vunpack.c.l.b16 %v381
          %v607 = vunpack.c.h.b16 %v381
          %v608 = vunpack.c.l.b16 %v382
          %v609 = vunpack.c.h.b16 %v382
          %v610 = vunpack.c.l.b16 %v383
          %v611 = vunpack.c.h.b16 %v383
          %v612 = vunpack.c.l.b16 %v384
          %v613 = vunpack.c.h.b16 %v384
          %v614 = vunpack.c.l.b16 %v385
          %v615 = vunpack.c.h.b16 %v385
          %v616 = vunpack.c.l.b16 %v386
          %v617 = vunpack.c.h.b16 %v386
          %v618 = vunpack.c.l.b16 %v387
          %v619 = vunpack.c.h.b16 %v387
          %v620 = vunpack.c.l.b16 %v388
          %v621 = vunpack.c.h.b16 %v388
          %v622 = vunpack.c.l.b16 %v389
          %v623 = vunpack.c.h.b16 %v389
          %v624 = vunpack.c.l.b16 %v390
          %v625 = vunpack.c.h.b16 %v390
          %v626 = vunpack.c.l.b16 %v391
          %v627 = vunpack.c.h.b16 %v391
          %v628 = vunpack.c.l.b16 %v392
          %v629 = vunpack.c.h.b16 %v392
          %v630 = vunpack.c.l.b16 %v393
          %v631 = vunpack.c.h.b16 %v393
          %v632 = vunpack.c.l.b16 %v394
          %v633 = vunpack.c.h.b16 %v394
          %v634 = vunpack.c.l.b16 %v395
          %v635 = vunpack.c.h.b16 %v395
          %v636 = vunpack.c.l.b16 %v396
          %v637 = vunpack.c.h.b16 %v396
          %v638 = vunpack.c.l.b16 %v397
          %v639 = vunpack.c.h.b16 %v397
          %v640 = vunpack.c.l.b16 %v398
          %v641 = vunpack.c.h.b16 %v398
          %v642 = vunpack.c.l.b16 %v399
          %v643 = vunpack.c.h.b16 %v399
          %v644 = vunpack.c.l.b16 %v400
          %v645 = vunpack.c.h.b16 %v400
          %v646 = vunpack.c.l.b16 %v401
          %v647 = vunpack.c.h.b16 %v401
          %v648 = vunpack.c.l.b16 %v402
          %v649 = vunpack.c.h.b16 %v402
          %v650 = vunpack.c.l.b16 %v403
          %v651 = vunpack.c.h.b16 %v403
          %v652 = vunpack.c.l.b16 %v404
          %v653 = vunpack.c.h.b16 %v404
          %v654 = vunpack.c.l.b16 %v405
          %v655 = vunpack.c.h.b16 %v405
          %v656 = vunpack.c.l.b16 %v406
          %v657 = vunpack.c.h.b16 %v406
          %v658 = vunpack.c.l.b16 %v407
          %v659 = vunpack.c.h.b16 %v407
          %v660 = vunpack.c.l.b16 %v408
          %v661 = vunpack.c.h.b16 %v408
          %v662 = vunpack.c.l.b16 %v409
          %v663 = vunpack.c.h.b16 %v409
          %v664 = vunpack.c.l.b16 %v410
          %v665 = vunpack.c.h.b16 %v410
          %v666 = vunpack.c.l.b16 %v411
          %v667 = vunpack.c.h.b16 %v411
          %v668 = vpack.c.b16 %v606, %v604
          %v669 = vpack.c.b16 %v607, %v605
          %v670 = vpack.c.b16 %v610, %v608
          %v671 = vpack.c.b16 %v611, %v609
          %v672 = vpack.c.b16 %v614, %v612
          %v673 = vpack.c.b16 %v615, %v613
          %v674 = vpack.c.b16 %v618, %v616
          %v675 = vpack.c.b16 %v619, %v617
          %v676 = vpack.c.b16 %v622, %v620
          %v677 = vpack.c.b16 %v623, %v621
          %v678 = vpack.c.b16 %v626, %v624
          %v679 = vpack.c.b16 %v627, %v625
          %v680 = vpack.c.b16 %v630, %v628
          %v681 = vpack.c.b16 %v631, %v629
          %v682 = vpack.c.b16 %v634, %v632
          %v683 = vpack.c.b16 %v635, %v633
          %v684 = vpack.c.b16 %v638, %v636
          %v685 = vpack.c.b16 %v639, %v637
          %v686 = vpack.c.b16 %v642, %v640
          %v687 = vpack.c.b16 %v643, %v641
          %v688 = vpack.c.b16 %v646, %v644
          %v689 = vpack.c.b16 %v647, %v645
          %v690 = vpack.c.b16 %v650, %v648
          %v691 = vpack.c.b16 %v651, %v649
          %v692 = vpack.c.b16 %v654, %v652
          %v693 = vpack.c.b16 %v655, %v653
          %v694 = vpack.c.b16 %v658, %v656
          %v695 = vpack.c.b16 %v659, %v657
          %v696 = vpack.c.b16 %v662, %v660
          %v697 = vpack.c.b16 %v663, %v661
          %v698 = vpack.c.b16 %v666, %v664
          %v699 = vpack.c.b16 %v667, %v665
          %732 = vmatprep.subr.bf16.mxu0 %v669
          %733 = vmatpush1.bf16.msra.mxu0 %v668
          %734 = vmatprep.subr.bf16.mxu0 %v671
          %735 = vmatpush1.bf16.msra.mxu0 %v670
          %736 = vmatprep.subr.bf16.mxu0 %v673
          %737 = vmatpush1.bf16.msra.mxu0 %v672
          %738 = vmatprep.subr.bf16.mxu0 %v675
          %739 = vmatpush1.bf16.msra.mxu0 %v674
          %740 = vmatprep.subr.bf16.mxu0 %v677
          %741 = vmatpush1.bf16.msra.mxu0 %v676
          %742 = vmatprep.subr.bf16.mxu0 %v679
          %743 = vmatpush1.bf16.msra.mxu0 %v678
          %744 = vmatprep.subr.bf16.mxu0 %v681
          %745 = vmatpush1.bf16.msra.mxu0 %v680
          %746 = vmatprep.subr.bf16.mxu0 %v683
          %747 = vmatpush1.bf16.msra.mxu0 %v682
          %748 = vmatprep.subr.bf16.mxu0 %v685
          %749 = vmatpush1.bf16.msra.mxu0 %v684
          %750 = vmatprep.subr.bf16.mxu0 %v687
          %751 = vmatpush1.bf16.msra.mxu0 %v686
          %752 = vmatprep.subr.bf16.mxu0 %v689
          %753 = vmatpush1.bf16.msra.mxu0 %v688
          %754 = vmatprep.subr.bf16.mxu0 %v691
          %755 = vmatpush1.bf16.msra.mxu0 %v690
          %756 = vmatprep.subr.bf16.mxu0 %v693
          %757 = vmatpush1.bf16.msra.mxu0 %v692
          %758 = vmatprep.subr.bf16.mxu0 %v695
          %759 = vmatpush1.bf16.msra.mxu0 %v694
          %760 = vmatprep.subr.bf16.mxu0 %v697
          %761 = vmatpush1.bf16.msra.mxu0 %v696
          %762 = vmatprep.subr.bf16.mxu0 %v699
          %763 = vmatpush1.bf16.msra.mxu0 %v698
          %764 = vmatprep.mubr.bf16.mxu0 %v509
          %765 = vmatmul.mubr.bf16.gmra.mrb[0].mxu0 %v508
          %v766 = vpop.f32.mrb[0].mxu0
          %v767 = vadd.f32 0.0, %v766
          %v768 = vpop.f32.mrb[0].mxu0
          %v769 = vadd.f32 0.0, %v768
          %v770 = vpop.f32.mrb[0].mxu0
          %v771 = vadd.f32 0.0, %v770
          %v772 = vpop.f32.mrb[0].mxu0
          %v773 = vadd.f32 0.0, %v772
          %774 = vmatprep.mubr.bf16.mxu0 %v511
          %775 = vmatmul.mubr.bf16.gmra.mrb[0].mxu0 %v510
          %v776 = vpop.f32.mrb[0].mxu0
          %v777 = vadd.f32 0.0, %v776
          %v778 = vpop.f32.mrb[0].mxu0
          %v779 = vadd.f32 0.0, %v778
          %v780 = vpop.f32.mrb[0].mxu0
          %v781 = vadd.f32 0.0, %v780
          %v782 = vpop.f32.mrb[0].mxu0
          %v783 = vadd.f32 0.0, %v782
          %784 = vmatprep.mubr.bf16.mxu0 %v513
          %785 = vmatmul.mubr.bf16.gmra.mrb[0].mxu0 %v512
          %v786 = vpop.f32.mrb[0].mxu0
          %v787 = vadd.f32 0.0, %v786
          %v788 = vpop.f32.mrb[0].mxu0
          %v789 = vadd.f32 0.0, %v788
          %v790 = vpop.f32.mrb[0].mxu0
          %v791 = vadd.f32 0.0, %v790
          %v792 = vpop.f32.mrb[0].mxu0
          %v793 = vadd.f32 0.0, %v792
          %794 = vmatprep.mubr.bf16.mxu0 %v515
          %795 = vmatmul.mubr.bf16.gmra.mrb[0].mxu0 %v514
          %v796 = vpop.f32.mrb[0].mxu0
          %v797 = vadd.f32 0.0, %v796
          %v798 = vpop.f32.mrb[0].mxu0
          %v799 = vadd.f32 0.0, %v798
          %v800 = vpop.f32.mrb[0].mxu0
          %v801 = vadd.f32 0.0, %v800
          %v802 = vpop.f32.mrb[0].mxu0
          %v803 = vadd.f32 0.0, %v802
          %804 = vmatprep.mubr.bf16.mxu0 %v517
          %805 = vmatmul.mubr.bf16.gmra.mrb[0].mxu0 %v516
          %v806 = vpop.f32.mrb[0].mxu0
          %v807 = vadd.f32 0.0, %v806
          %v808 = vpop.f32.mrb[0].mxu0
          %v809 = vadd.f32 0.0, %v808
          %v810 = vpop.f32.mrb[0].mxu0
          %v811 = vadd.f32 0.0, %v810
          %v812 = vpop.f32.mrb[0].mxu0
          %v813 = vadd.f32 0.0, %v812
          %814 = vmatprep.mubr.bf16.mxu0 %v519
          %815 = vmatmul.mubr.bf16.gmra.mrb[0].mxu0 %v518
          %v816 = vpop.f32.mrb[0].mxu0
          %v817 = vadd.f32 0.0, %v816
          %v818 = vpop.f32.mrb[0].mxu0
          %v819 = vadd.f32 0.0, %v818
          %v820 = vpop.f32.mrb[0].mxu0
          %v821 = vadd.f32 0.0, %v820
          %v822 = vpop.f32.mrb[0].mxu0
          %v823 = vadd.f32 0.0, %v822
          %824 = vmatprep.mubr.bf16.mxu0 %v521
          %825 = vmatmul.mubr.bf16.gmra.mrb[0].mxu0 %v520
          %v826 = vpop.f32.mrb[0].mxu0
          %v827 = vadd.f32 0.0, %v826
          %v828 = vpop.f32.mrb[0].mxu0
          %v829 = vadd.f32 0.0, %v828
          %v830 = vpop.f32.mrb[0].mxu0
          %v831 = vadd.f32 0.0, %v830
          %v832 = vpop.f32.mrb[0].mxu0
          %v833 = vadd.f32 0.0, %v832
          %834 = vmatprep.mubr.bf16.mxu0 %v523
          %835 = vmatmul.mubr.bf16.gmra.mrb[0].mxu0 %v522
          %v836 = vpop.f32.mrb[0].mxu0
          %v837 = vadd.f32 0.0, %v836
          %v838 = vpop.f32.mrb[0].mxu0
          %v839 = vadd.f32 0.0, %v838
          %v840 = vpop.f32.mrb[0].mxu0
          %v841 = vadd.f32 0.0, %v840
          %v842 = vpop.f32.mrb[0].mxu0
          %v843 = vadd.f32 0.0, %v842
          %844 = vmatprep.mubr.bf16.mxu0 %v525
          %845 = vmatmul.mubr.bf16.gmra.mrb[0].mxu0 %v524
          %v846 = vpop.f32.mrb[0].mxu0
          %v847 = vadd.f32 0.0, %v846
          %v848 = vpop.f32.mrb[0].mxu0
          %v849 = vadd.f32 0.0, %v848
          %v850 = vpop.f32.mrb[0].mxu0
          %v851 = vadd.f32 0.0, %v850
          %v852 = vpop.f32.mrb[0].mxu0
          %v853 = vadd.f32 0.0, %v852
          %854 = vmatprep.mubr.bf16.mxu0 %v527
          %855 = vmatmul.mubr.bf16.gmra.mrb[0].mxu0 %v526
          %v856 = vpop.f32.mrb[0].mxu0
          %v857 = vadd.f32 0.0, %v856
          %v858 = vpop.f32.mrb[0].mxu0
          %v859 = vadd.f32 0.0, %v858
          %v860 = vpop.f32.mrb[0].mxu0
          %v861 = vadd.f32 0.0, %v860
          %v862 = vpop.f32.mrb[0].mxu0
          %v863 = vadd.f32 0.0, %v862
          %864 = vmatprep.mubr.bf16.mxu0 %v529
          %865 = vmatmul.mubr.bf16.gmra.mrb[0].mxu0 %v528
          %v866 = vpop.f32.mrb[0].mxu0
          %v867 = vadd.f32 0.0, %v866
          %v868 = vpop.f32.mrb[0].mxu0
          %v869 = vadd.f32 0.0, %v868
          %v870 = vpop.f32.mrb[0].mxu0
          %v871 = vadd.f32 0.0, %v870
          %v872 = vpop.f32.mrb[0].mxu0
          %v873 = vadd.f32 0.0, %v872
          %874 = vmatprep.mubr.bf16.mxu0 %v531
          %875 = vmatmul.mubr.bf16.gmra.mrb[0].mxu0 %v530
          %v876 = vpop.f32.mrb[0].mxu0
          %v877 = vadd.f32 0.0, %v876
          %v878 = vpop.f32.mrb[0].mxu0
          %v879 = vadd.f32 0.0, %v878
          %v880 = vpop.f32.mrb[0].mxu0
          %v881 = vadd.f32 0.0, %v880
          %v882 = vpop.f32.mrb[0].mxu0
          %v883 = vadd.f32 0.0, %v882
          %884 = vmatprep.mubr.bf16.mxu0 %v533
          %885 = vmatmul.mubr.bf16.gmra.mrb[0].mxu0 %v532
          %v886 = vpop.f32.mrb[0].mxu0
          %v887 = vadd.f32 0.0, %v886
          %v888 = vpop.f32.mrb[0].mxu0
          %v889 = vadd.f32 0.0, %v888
          %v890 = vpop.f32.mrb[0].mxu0
          %v891 = vadd.f32 0.0, %v890
          %v892 = vpop.f32.mrb[0].mxu0
          %v893 = vadd.f32 0.0, %v892
          %894 = vmatprep.mubr.bf16.mxu0 %v535
          %895 = vmatmul.mubr.bf16.gmra.mrb[0].mxu0 %v534
          %v896 = vpop.f32.mrb[0].mxu0
          %v897 = vadd.f32 0.0, %v896
          %v898 = vpop.f32.mrb[0].mxu0
          %v899 = vadd.f32 0.0, %v898
          %v900 = vpop.f32.mrb[0].mxu0
          %v901 = vadd.f32 0.0, %v900
          %v902 = vpop.f32.mrb[0].mxu0
          %v903 = vadd.f32 0.0, %v902
          %904 = vmatprep.mubr.bf16.mxu0 %v537
          %905 = vmatmul.mubr.bf16.gmra.mrb[0].mxu0 %v536
          %v906 = vpop.f32.mrb[0].mxu0
          %v907 = vadd.f32 0.0, %v906
          %v908 = vpop.f32.mrb[0].mxu0
          %v909 = vadd.f32 0.0, %v908
          %v910 = vpop.f32.mrb[0].mxu0
          %v911 = vadd.f32 0.0, %v910
          %v912 = vpop.f32.mrb[0].mxu0
          %v913 = vadd.f32 0.0, %v912
          %914 = vmatprep.mubr.bf16.mxu0 %v539
          %915 = vmatmul.mubr.bf16.gmra.mrb[0].mxu0 %v538
          %v916 = vpop.f32.mrb[0].mxu0
          %v917 = vadd.f32 0.0, %v916
          %v918 = vpop.f32.mrb[0].mxu0
          %v919 = vadd.f32 0.0, %v918
          %v920 = vpop.f32.mrb[0].mxu0
          %v921 = vadd.f32 0.0, %v920
          %v922 = vpop.f32.mrb[0].mxu0
          %v923 = vadd.f32 0.0, %v922
          %924 = vdwg.mxu0
          %v925 = vld [vmem:[#allocation10] sm:$0xff]
          %v926 = vld [vmem:[#allocation10 + $0x8] sm:$0xff]
          %v927 = vld [vmem:[#allocation10 + $0x10] sm:$0xff]
          %v928 = vld [vmem:[#allocation10 + $0x18] sm:$0xff]
          %v929 = vld [vmem:[#allocation10 + $0x20] sm:$0xff]
          %v930 = vld [vmem:[#allocation10 + $0x28] sm:$0xff]
          %v931 = vld [vmem:[#allocation10 + $0x30] sm:$0xff]
          %v932 = vld [vmem:[#allocation10 + $0x38] sm:$0xff]
          %v933 = vld [vmem:[#allocation10 + $0x40] sm:$0xff]
          %v934 = vld [vmem:[#allocation10 + $0x48] sm:$0xff]
          %v935 = vld [vmem:[#allocation10 + $0x50] sm:$0xff]
          %v936 = vld [vmem:[#allocation10 + $0x58] sm:$0xff]
          %v937 = vld [vmem:[#allocation10 + $0x60] sm:$0xff]
          %v938 = vld [vmem:[#allocation10 + $0x68] sm:$0xff]
          %v939 = vld [vmem:[#allocation10 + $0x70] sm:$0xff]
          %v940 = vld [vmem:[#allocation10 + $0x78] sm:$0xff]
          %v941 = vld [vmem:[#allocation10 + $0x80] sm:$0xff]
          %v942 = vld [vmem:[#allocation10 + $0x88] sm:$0xff]
          %v943 = vld [vmem:[#allocation10 + $0x90] sm:$0xff]
          %v944 = vld [vmem:[#allocation10 + $0x98] sm:$0xff]
          %v945 = vld [vmem:[#allocation10 + $0xa0] sm:$0xff]
          %v946 = vld [vmem:[#allocation10 + $0xa8] sm:$0xff]
          %v947 = vld [vmem:[#allocation10 + $0xb0] sm:$0xff]
          %v948 = vld [vmem:[#allocation10 + $0xb8] sm:$0xff]
          %v949 = vld [vmem:[#allocation10 + $0xc0] sm:$0xff]
          %v950 = vld [vmem:[#allocation10 + $0xc8] sm:$0xff]
          %v951 = vld [vmem:[#allocation10 + $0xd0] sm:$0xff]
          %v952 = vld [vmem:[#allocation10 + $0xd8] sm:$0xff]
          %v953 = vld [vmem:[#allocation10 + $0xe0] sm:$0xff]
          %v954 = vld [vmem:[#allocation10 + $0xe8] sm:$0xff]
          %v955 = vld [vmem:[#allocation10 + $0xf0] sm:$0xff]
          %v956 = vld [vmem:[#allocation10 + $0xf8] sm:$0xff]
          %v989 = vunpack.c.l.b16 %v925
          %v990 = vunpack.c.h.b16 %v925
          %v991 = vunpack.c.l.b16 %v926
          %v992 = vunpack.c.h.b16 %v926
          %v993 = vunpack.c.l.b16 %v927
          %v994 = vunpack.c.h.b16 %v927
          %v995 = vunpack.c.l.b16 %v928
          %v996 = vunpack.c.h.b16 %v928
          %v997 = vunpack.c.l.b16 %v929
          %v998 = vunpack.c.h.b16 %v929
          %v999 = vunpack.c.l.b16 %v930
          %v1000 = vunpack.c.h.b16 %v930
          %v1001 = vunpack.c.l.b16 %v931
          %v1002 = vunpack.c.h.b16 %v931
          %v1003 = vunpack.c.l.b16 %v932
          %v1004 = vunpack.c.h.b16 %v932
          %v1005 = vunpack.c.l.b16 %v933
          %v1006 = vunpack.c.h.b16 %v933
          %v1007 = vunpack.c.l.b16 %v934
          %v1008 = vunpack.c.h.b16 %v934
          %v1009 = vunpack.c.l.b16 %v935
          %v1010 = vunpack.c.h.b16 %v935
          %v1011 = vunpack.c.l.b16 %v936
          %v1012 = vunpack.c.h.b16 %v936
          %v1013 = vunpack.c.l.b16 %v937
          %v1014 = vunpack.c.h.b16 %v937
          %v1015 = vunpack.c.l.b16 %v938
          %v1016 = vunpack.c.h.b16 %v938
          %v1017 = vunpack.c.l.b16 %v939
          %v1018 = vunpack.c.h.b16 %v939
          %v1019 = vunpack.c.l.b16 %v940
          %v1020 = vunpack.c.h.b16 %v940
          %v1021 = vunpack.c.l.b16 %v941
          %v1022 = vunpack.c.h.b16 %v941
          %v1023 = vunpack.c.l.b16 %v942
          %v1024 = vunpack.c.h.b16 %v942
          %v1025 = vunpack.c.l.b16 %v943
          %v1026 = vunpack.c.h.b16 %v943
          %v1027 = vunpack.c.l.b16 %v944
          %v1028 = vunpack.c.h.b16 %v944
          %v1029 = vunpack.c.l.b16 %v945
          %v1030 = vunpack.c.h.b16 %v945
          %v1031 = vunpack.c.l.b16 %v946
          %v1032 = vunpack.c.h.b16 %v946
          %v1033 = vunpack.c.l.b16 %v947
          %v1034 = vunpack.c.h.b16 %v947
          %v1035 = vunpack.c.l.b16 %v948
          %v1036 = vunpack.c.h.b16 %v948
          %v1037 = vunpack.c.l.b16 %v949
          %v1038 = vunpack.c.h.b16 %v949
          %v1039 = vunpack.c.l.b16 %v950
          %v1040 = vunpack.c.h.b16 %v950
          %v1041 = vunpack.c.l.b16 %v951
          %v1042 = vunpack.c.h.b16 %v951
          %v1043 = vunpack.c.l.b16 %v952
          %v1044 = vunpack.c.h.b16 %v952
          %v1045 = vunpack.c.l.b16 %v953
          %v1046 = vunpack.c.h.b16 %v953
          %v1047 = vunpack.c.l.b16 %v954
          %v1048 = vunpack.c.h.b16 %v954
          %v1049 = vunpack.c.l.b16 %v955
          %v1050 = vunpack.c.h.b16 %v955
          %v1051 = vunpack.c.l.b16 %v956
          %v1052 = vunpack.c.h.b16 %v956
          %v1053 = vpack.c.b16 %v991, %v989
          %v1054 = vpack.c.b16 %v992, %v990
          %v1055 = vpack.c.b16 %v995, %v993
          %v1056 = vpack.c.b16 %v996, %v994
          %v1057 = vpack.c.b16 %v999, %v997
          %v1058 = vpack.c.b16 %v1000, %v998
          %v1059 = vpack.c.b16 %v1003, %v1001
          %v1060 = vpack.c.b16 %v1004, %v1002
          %v1061 = vpack.c.b16 %v1007, %v1005
          %v1062 = vpack.c.b16 %v1008, %v1006
          %v1063 = vpack.c.b16 %v1011, %v1009
          %v1064 = vpack.c.b16 %v1012, %v1010
          %v1065 = vpack.c.b16 %v1015, %v1013
          %v1066 = vpack.c.b16 %v1016, %v1014
          %v1067 = vpack.c.b16 %v1019, %v1017
          %v1068 = vpack.c.b16 %v1020, %v1018
          %v1069 = vpack.c.b16 %v1023, %v1021
          %v1070 = vpack.c.b16 %v1024, %v1022
          %v1071 = vpack.c.b16 %v1027, %v1025
          %v1072 = vpack.c.b16 %v1028, %v1026
          %v1073 = vpack.c.b16 %v1031, %v1029
          %v1074 = vpack.c.b16 %v1032, %v1030
          %v1075 = vpack.c.b16 %v1035, %v1033
          %v1076 = vpack.c.b16 %v1036, %v1034
          %v1077 = vpack.c.b16 %v1039, %v1037
          %v1078 = vpack.c.b16 %v1040, %v1038
          %v1079 = vpack.c.b16 %v1043, %v1041
          %v1080 = vpack.c.b16 %v1044, %v1042
          %v1081 = vpack.c.b16 %v1047, %v1045
          %v1082 = vpack.c.b16 %v1048, %v1046
          %v1083 = vpack.c.b16 %v1051, %v1049
          %v1084 = vpack.c.b16 %v1052, %v1050
          %1117 = vmatprep.subr.bf16.mxu0 %v1054
          %1118 = vmatpush1.bf16.msra.mxu0 %v1053
          %1119 = vmatprep.subr.bf16.mxu0 %v1056
          %1120 = vmatpush1.bf16.msra.mxu0 %v1055
          %1121 = vmatprep.subr.bf16.mxu0 %v1058
          %1122 = vmatpush1.bf16.msra.mxu0 %v1057
          %1123 = vmatprep.subr.bf16.mxu0 %v1060
          %1124 = vmatpush1.bf16.msra.mxu0 %v1059
          %1125 = vmatprep.subr.bf16.mxu0 %v1062
          %1126 = vmatpush1.bf16.msra.mxu0 %v1061
          %1127 = vmatprep.subr.bf16.mxu0 %v1064
          %1128 = vmatpush1.bf16.msra.mxu0 %v1063
          %1129 = vmatprep.subr.bf16.mxu0 %v1066
          %1130 = vmatpush1.bf16.msra.mxu0 %v1065
          %1131 = vmatprep.subr.bf16.mxu0 %v1068
          %1132 = vmatpush1.bf16.msra.mxu0 %v1067
          %1133 = vmatprep.subr.bf16.mxu0 %v1070
          %1134 = vmatpush1.bf16.msra.mxu0 %v1069
          %1135 = vmatprep.subr.bf16.mxu0 %v1072
          %1136 = vmatpush1.bf16.msra.mxu0 %v1071
          %1137 = vmatprep.subr.bf16.mxu0 %v1074
          %1138 = vmatpush1.bf16.msra.mxu0 %v1073
          %1139 = vmatprep.subr.bf16.mxu0 %v1076
          %1140 = vmatpush1.bf16.msra.mxu0 %v1075
          %1141 = vmatprep.subr.bf16.mxu0 %v1078
          %1142 = vmatpush1.bf16.msra.mxu0 %v1077
          %1143 = vmatprep.subr.bf16.mxu0 %v1080
          %1144 = vmatpush1.bf16.msra.mxu0 %v1079
          %1145 = vmatprep.subr.bf16.mxu0 %v1082
          %1146 = vmatpush1.bf16.msra.mxu0 %v1081
          %1147 = vmatprep.subr.bf16.mxu0 %v1084
          %1148 = vmatpush1.bf16.msra.mxu0 %v1083
          %1149 = vmatprep.mubr.bf16.mxu0 %v509
          %1150 = vmatmul.mubr.bf16.gmra.mrb[0].mxu0 %v508
          %v1151 = vpop.f32.mrb[0].mxu0
          %v1152 = vadd.f32 0.0, %v1151
          %v1153 = vpop.f32.mrb[0].mxu0
          %v1154 = vadd.f32 0.0, %v1153
          %v1155 = vpop.f32.mrb[0].mxu0
          %v1156 = vadd.f32 0.0, %v1155
          %v1157 = vpop.f32.mrb[0].mxu0
          %v1158 = vadd.f32 0.0, %v1157
          %1159 = vmatprep.mubr.bf16.mxu0 %v511
          %1160 = vmatmul.mubr.bf16.gmra.mrb[0].mxu0 %v510
          %v1161 = vpop.f32.mrb[0].mxu0
          %v1162 = vadd.f32 0.0, %v1161
          %v1163 = vpop.f32.mrb[0].mxu0
          %v1164 = vadd.f32 0.0, %v1163
          %v1165 = vpop.f32.mrb[0].mxu0
          %v1166 = vadd.f32 0.0, %v1165
          %v1167 = vpop.f32.mrb[0].mxu0
          %v1168 = vadd.f32 0.0, %v1167
          %1169 = vmatprep.mubr.bf16.mxu0 %v513
          %1170 = vmatmul.mubr.bf16.gmra.mrb[0].mxu0 %v512
          %v1171 = vpop.f32.mrb[0].mxu0
          %v1172 = vadd.f32 0.0, %v1171
          %v1173 = vpop.f32.mrb[0].mxu0
          %v1174 = vadd.f32 0.0, %v1173
          %v1175 = vpop.f32.mrb[0].mxu0
          %v1176 = vadd.f32 0.0, %v1175
          %v1177 = vpop.f32.mrb[0].mxu0
          %v1178 = vadd.f32 0.0, %v1177
          %1179 = vmatprep.mubr.bf16.mxu0 %v515
          %1180 = vmatmul.mubr.bf16.gmra.mrb[0].mxu0 %v514
          %v1181 = vpop.f32.mrb[0].mxu0
          %v1182 = vadd.f32 0.0, %v1181
          %v1183 = vpop.f32.mrb[0].mxu0
          %v1184 = vadd.f32 0.0, %v1183
          %v1185 = vpop.f32.mrb[0].mxu0
          %v1186 = vadd.f32 0.0, %v1185
          %v1187 = vpop.f32.mrb[0].mxu0
          %v1188 = vadd.f32 0.0, %v1187
          %1189 = vmatprep.mubr.bf16.mxu0 %v517
          %1190 = vmatmul.mubr.bf16.gmra.mrb[0].mxu0 %v516
          %v1191 = vpop.f32.mrb[0].mxu0
          %v1192 = vadd.f32 0.0, %v1191
          %v1193 = vpop.f32.mrb[0].mxu0
          %v1194 = vadd.f32 0.0, %v1193
          %v1195 = vpop.f32.mrb[0].mxu0
          %v1196 = vadd.f32 0.0, %v1195
          %v1197 = vpop.f32.mrb[0].mxu0
          %v1198 = vadd.f32 0.0, %v1197
          %1199 = vmatprep.mubr.bf16.mxu0 %v519
          %1200 = vmatmul.mubr.bf16.gmra.mrb[0].mxu0 %v518
          %v1201 = vpop.f32.mrb[0].mxu0
          %v1202 = vadd.f32 0.0, %v1201
          %v1203 = vpop.f32.mrb[0].mxu0
          %v1204 = vadd.f32 0.0, %v1203
          %v1205 = vpop.f32.mrb[0].mxu0
          %v1206 = vadd.f32 0.0, %v1205
          %v1207 = vpop.f32.mrb[0].mxu0
          %v1208 = vadd.f32 0.0, %v1207
          %1209 = vmatprep.mubr.bf16.mxu0 %v521
          %1210 = vmatmul.mubr.bf16.gmra.mrb[0].mxu0 %v520
          %v1211 = vpop.f32.mrb[0].mxu0
          %v1212 = vadd.f32 0.0, %v1211
          %v1213 = vpop.f32.mrb[0].mxu0
          %v1214 = vadd.f32 0.0, %v1213
          %v1215 = vpop.f32.mrb[0].mxu0
          %v1216 = vadd.f32 0.0, %v1215
          %v1217 = vpop.f32.mrb[0].mxu0
          %v1218 = vadd.f32 0.0, %v1217
          %1219 = vmatprep.mubr.bf16.mxu0 %v523
          %1220 = vmatmul.mubr.bf16.gmra.mrb[0].mxu0 %v522
          %v1221 = vpop.f32.mrb[0].mxu0
          %v1222 = vadd.f32 0.0, %v1221
          %v1223 = vpop.f32.mrb[0].mxu0
          %v1224 = vadd.f32 0.0, %v1223
          %v1225 = vpop.f32.mrb[0].mxu0
          %v1226 = vadd.f32 0.0, %v1225
          %v1227 = vpop.f32.mrb[0].mxu0
          %v1228 = vadd.f32 0.0, %v1227
          %1229 = vmatprep.mubr.bf16.mxu0 %v525
          %1230 = vmatmul.mubr.bf16.gmra.mrb[0].mxu0 %v524
          %v1231 = vpop.f32.mrb[0].mxu0
          %v1232 = vadd.f32 0.0, %v1231
          %v1233 = vpop.f32.mrb[0].mxu0
          %v1234 = vadd.f32 0.0, %v1233
          %v1235 = vpop.f32.mrb[0].mxu0
          %v1236 = vadd.f32 0.0, %v1235
          %v1237 = vpop.f32.mrb[0].mxu0
          %v1238 = vadd.f32 0.0, %v1237
          %1239 = vmatprep.mubr.bf16.mxu0 %v527
          %1240 = vmatmul.mubr.bf16.gmra.mrb[0].mxu0 %v526
          %v1241 = vpop.f32.mrb[0].mxu0
          %v1242 = vadd.f32 0.0, %v1241
          %v1243 = vpop.f32.mrb[0].mxu0
          %v1244 = vadd.f32 0.0, %v1243
          %v1245 = vpop.f32.mrb[0].mxu0
          %v1246 = vadd.f32 0.0, %v1245
          %v1247 = vpop.f32.mrb[0].mxu0
          %v1248 = vadd.f32 0.0, %v1247
          %1249 = vmatprep.mubr.bf16.mxu0 %v529
          %1250 = vmatmul.mubr.bf16.gmra.mrb[0].mxu0 %v528
          %v1251 = vpop.f32.mrb[0].mxu0
          %v1252 = vadd.f32 0.0, %v1251
          %v1253 = vpop.f32.mrb[0].mxu0
          %v1254 = vadd.f32 0.0, %v1253
          %v1255 = vpop.f32.mrb[0].mxu0
          %v1256 = vadd.f32 0.0, %v1255
          %v1257 = vpop.f32.mrb[0].mxu0
          %v1258 = vadd.f32 0.0, %v1257
          %1259 = vmatprep.mubr.bf16.mxu0 %v531
          %1260 = vmatmul.mubr.bf16.gmra.mrb[0].mxu0 %v530
          %v1261 = vpop.f32.mrb[0].mxu0
          %v1262 = vadd.f32 0.0, %v1261
          %v1263 = vpop.f32.mrb[0].mxu0
          %v1264 = vadd.f32 0.0, %v1263
          %v1265 = vpop.f32.mrb[0].mxu0
          %v1266 = vadd.f32 0.0, %v1265
          %v1267 = vpop.f32.mrb[0].mxu0
          %v1268 = vadd.f32 0.0, %v1267
          %1269 = vmatprep.mubr.bf16.mxu0 %v533
          %1270 = vmatmul.mubr.bf16.gmra.mrb[0].mxu0 %v532
          %v1271 = vpop.f32.mrb[0].mxu0
          %v1272 = vadd.f32 0.0, %v1271
          %v1273 = vpop.f32.mrb[0].mxu0
          %v1274 = vadd.f32 0.0, %v1273
          %v1275 = vpop.f32.mrb[0].mxu0
          %v1276 = vadd.f32 0.0, %v1275
          %v1277 = vpop.f32.mrb[0].mxu0
          %v1278 = vadd.f32 0.0, %v1277
          %1279 = vmatprep.mubr.bf16.mxu0 %v535
          %1280 = vmatmul.mubr.bf16.gmra.mrb[0].mxu0 %v534
          %v1281 = vpop.f32.mrb[0].mxu0
          %v1282 = vadd.f32 0.0, %v1281
          %v1283 = vpop.f32.mrb[0].mxu0
          %v1284 = vadd.f32 0.0, %v1283
          %v1285 = vpop.f32.mrb[0].mxu0
          %v1286 = vadd.f32 0.0, %v1285
          %v1287 = vpop.f32.mrb[0].mxu0
          %v1288 = vadd.f32 0.0, %v1287
          %1289 = vmatprep.mubr.bf16.mxu0 %v537
          %1290 = vmatmul.mubr.bf16.gmra.mrb[0].mxu0 %v536
          %v1291 = vpop.f32.mrb[0].mxu0
          %v1292 = vadd.f32 0.0, %v1291
          %v1293 = vpop.f32.mrb[0].mxu0
          %v1294 = vadd.f32 0.0, %v1293
          %v1295 = vpop.f32.mrb[0].mxu0
          %v1296 = vadd.f32 0.0, %v1295
          %v1297 = vpop.f32.mrb[0].mxu0
          %v1298 = vadd.f32 0.0, %v1297
          %1299 = vmatprep.mubr.bf16.mxu0 %v539
          %1300 = vmatmul.mubr.bf16.gmra.mrb[0].mxu0 %v538
          %v1301 = vpop.f32.mrb[0].mxu0
          %v1302 = vadd.f32 0.0, %v1301
          %v1303 = vpop.f32.mrb[0].mxu0
          %v1304 = vadd.f32 0.0, %v1303
          %v1305 = vpop.f32.mrb[0].mxu0
          %v1306 = vadd.f32 0.0, %v1305
          %v1307 = vpop.f32.mrb[0].mxu0
          %v1308 = vadd.f32 0.0, %v1307
          %1309 = vdwg.mxu0
          %v1310 = vpack.c.bf16 %v771, %v767
          %v1311 = vpack.c.bf16 %v773, %v769
          %v1312 = vpack.c.bf16 %v781, %v777
          %v1313 = vpack.c.bf16 %v783, %v779
          %v1314 = vpack.c.bf16 %v791, %v787
          %v1315 = vpack.c.bf16 %v793, %v789
          %v1316 = vpack.c.bf16 %v801, %v797
          %v1317 = vpack.c.bf16 %v803, %v799
          %v1318 = vpack.c.bf16 %v811, %v807
          %v1319 = vpack.c.bf16 %v813, %v809
          %v1320 = vpack.c.bf16 %v821, %v817
          %v1321 = vpack.c.bf16 %v823, %v819
          %v1322 = vpack.c.bf16 %v831, %v827
          %v1323 = vpack.c.bf16 %v833, %v829
          %v1324 = vpack.c.bf16 %v841, %v837
          %v1325 = vpack.c.bf16 %v843, %v839
          %v1326 = vpack.c.bf16 %v851, %v847
          %v1327 = vpack.c.bf16 %v853, %v849
          %v1328 = vpack.c.bf16 %v861, %v857
          %v1329 = vpack.c.bf16 %v863, %v859
          %v1330 = vpack.c.bf16 %v871, %v867
          %v1331 = vpack.c.bf16 %v873, %v869
          %v1332 = vpack.c.bf16 %v881, %v877
          %v1333 = vpack.c.bf16 %v883, %v879
          %v1334 = vpack.c.bf16 %v891, %v887
          %v1335 = vpack.c.bf16 %v893, %v889
          %v1336 = vpack.c.bf16 %v901, %v897
          %v1337 = vpack.c.bf16 %v903, %v899
          %v1338 = vpack.c.bf16 %v911, %v907
          %v1339 = vpack.c.bf16 %v913, %v909
          %v1340 = vpack.c.bf16 %v921, %v917
          %v1341 = vpack.c.bf16 %v923, %v919
          %v1342 = vpack.c.bf16 %v1156, %v1152
          %v1343 = vpack.c.bf16 %v1158, %v1154
          %v1344 = vpack.c.bf16 %v1166, %v1162
          %v1345 = vpack.c.bf16 %v1168, %v1164
          %v1346 = vpack.c.bf16 %v1176, %v1172
          %v1347 = vpack.c.bf16 %v1178, %v1174
          %v1348 = vpack.c.bf16 %v1186, %v1182
          %v1349 = vpack.c.bf16 %v1188, %v1184
          %v1350 = vpack.c.bf16 %v1196, %v1192
          %v1351 = vpack.c.bf16 %v1198, %v1194
          %v1352 = vpack.c.bf16 %v1206, %v1202
          %v1353 = vpack.c.bf16 %v1208, %v1204
          %v1354 = vpack.c.bf16 %v1216, %v1212
          %v1355 = vpack.c.bf16 %v1218, %v1214
          %v1356 = vpack.c.bf16 %v1226, %v1222
          %v1357 = vpack.c.bf16 %v1228, %v1224
          %v1358 = vpack.c.bf16 %v1236, %v1232
          %v1359 = vpack.c.bf16 %v1238, %v1234
          %v1360 = vpack.c.bf16 %v1246, %v1242
          %v1361 = vpack.c.bf16 %v1248, %v1244
          %v1362 = vpack.c.bf16 %v1256, %v1252
          %v1363 = vpack.c.bf16 %v1258, %v1254
          %v1364 = vpack.c.bf16 %v1266, %v1262
          %v1365 = vpack.c.bf16 %v1268, %v1264
          %v1366 = vpack.c.bf16 %v1276, %v1272
          %v1367 = vpack.c.bf16 %v1278, %v1274
          %v1368 = vpack.c.bf16 %v1286, %v1282
          %v1369 = vpack.c.bf16 %v1288, %v1284
          %v1370 = vpack.c.bf16 %v1296, %v1292
          %v1371 = vpack.c.bf16 %v1298, %v1294
          %v1372 = vpack.c.bf16 %v1306, %v1302
          %v1373 = vpack.c.bf16 %v1308, %v1304
          %1374 = vst [vmem:[#allocation2] sm:$0xff] %v1310
          %1375 = vst [vmem:[#allocation2 + $0x8] sm:$0xff] %v1312
          %1376 = vst [vmem:[#allocation2 + $0x10] sm:$0xff] %v1314
          %1377 = vst [vmem:[#allocation2 + $0x18] sm:$0xff] %v1316
          %1378 = vst [vmem:[#allocation2 + $0x20] sm:$0xff] %v1318
          %1379 = vst [vmem:[#allocation2 + $0x28] sm:$0xff] %v1320
          %1380 = vst [vmem:[#allocation2 + $0x30] sm:$0xff] %v1322
          %1381 = vst [vmem:[#allocation2 + $0x38] sm:$0xff] %v1324
          %1382 = vst [vmem:[#allocation2 + $0x40] sm:$0xff] %v1326
          %1383 = vst [vmem:[#allocation2 + $0x48] sm:$0xff] %v1328
          %1384 = vst [vmem:[#allocation2 + $0x50] sm:$0xff] %v1330
          %1385 = vst [vmem:[#allocation2 + $0x58] sm:$0xff] %v1332
          %1386 = vst [vmem:[#allocation2 + $0x60] sm:$0xff] %v1334
          %1387 = vst [vmem:[#allocation2 + $0x68] sm:$0xff] %v1336
          %1388 = vst [vmem:[#allocation2 + $0x70] sm:$0xff] %v1338
          %1389 = vst [vmem:[#allocation2 + $0x78] sm:$0xff] %v1340
          %1390 = vst [vmem:[#allocation2 + $0x80] sm:$0xff] %v1311
          %1391 = vst [vmem:[#allocation2 + $0x88] sm:$0xff] %v1313
          %1392 = vst [vmem:[#allocation2 + $0x90] sm:$0xff] %v1315
          %1393 = vst [vmem:[#allocation2 + $0x98] sm:$0xff] %v1317
          %1394 = vst [vmem:[#allocation2 + $0xa0] sm:$0xff] %v1319
          %1395 = vst [vmem:[#allocation2 + $0xa8] sm:$0xff] %v1321
          %1396 = vst [vmem:[#allocation2 + $0xb0] sm:$0xff] %v1323
          %1397 = vst [vmem:[#allocation2 + $0xb8] sm:$0xff] %v1325
          %1398 = vst [vmem:[#allocation2 + $0xc0] sm:$0xff] %v1327
          %1399 = vst [vmem:[#allocation2 + $0xc8] sm:$0xff] %v1329
          %1400 = vst [vmem:[#allocation2 + $0xd0] sm:$0xff] %v1331
          %1401 = vst [vmem:[#allocation2 + $0xd8] sm:$0xff] %v1333
          %1402 = vst [vmem:[#allocation2 + $0xe0] sm:$0xff] %v1335
          %1403 = vst [vmem:[#allocation2 + $0xe8] sm:$0xff] %v1337
          %1404 = vst [vmem:[#allocation2 + $0xf0] sm:$0xff] %v1339
          %1405 = vst [vmem:[#allocation2 + $0xf8] sm:$0xff] %v1341
          %1406 = vst [vmem:[#allocation3] sm:$0xff] %v1342
          %1407 = vst [vmem:[#allocation3 + $0x8] sm:$0xff] %v1344
          %1408 = vst [vmem:[#allocation3 + $0x10] sm:$0xff] %v1346
          %1409 = vst [vmem:[#allocation3 + $0x18] sm:$0xff] %v1348
          %1410 = vst [vmem:[#allocation3 + $0x20] sm:$0xff] %v1350
          %1411 = vst [vmem:[#allocation3 + $0x28] sm:$0xff] %v1352
          %1412 = vst [vmem:[#allocation3 + $0x30] sm:$0xff] %v1354
          %1413 = vst [vmem:[#allocation3 + $0x38] sm:$0xff] %v1356
          %1414 = vst [vmem:[#allocation3 + $0x40] sm:$0xff] %v1358
          %1415 = vst [vmem:[#allocation3 + $0x48] sm:$0xff] %v1360
          %1416 = vst [vmem:[#allocation3 + $0x50] sm:$0xff] %v1362
          %1417 = vst [vmem:[#allocation3 + $0x58] sm:$0xff] %v1364
          %1418 = vst [vmem:[#allocation3 + $0x60] sm:$0xff] %v1366
          %1419 = vst [vmem:[#allocation3 + $0x68] sm:$0xff] %v1368
          %1420 = vst [vmem:[#allocation3 + $0x70] sm:$0xff] %v1370
          %1421 = vst [vmem:[#allocation3 + $0x78] sm:$0xff] %v1372
          %1422 = vst [vmem:[#allocation3 + $0x80] sm:$0xff] %v1343
          %1423 = vst [vmem:[#allocation3 + $0x88] sm:$0xff] %v1345
          %1424 = vst [vmem:[#allocation3 + $0x90] sm:$0xff] %v1347
          %1425 = vst [vmem:[#allocation3 + $0x98] sm:$0xff] %v1349
          %1426 = vst [vmem:[#allocation3 + $0xa0] sm:$0xff] %v1351
          %1427 = vst [vmem:[#allocation3 + $0xa8] sm:$0xff] %v1353
          %1428 = vst [vmem:[#allocation3 + $0xb0] sm:$0xff] %v1355
          %1429 = vst [vmem:[#allocation3 + $0xb8] sm:$0xff] %v1357
          %1430 = vst [vmem:[#allocation3 + $0xc0] sm:$0xff] %v1359
          %1431 = vst [vmem:[#allocation3 + $0xc8] sm:$0xff] %v1361
          %1432 = vst [vmem:[#allocation3 + $0xd0] sm:$0xff] %v1363
          %1433 = vst [vmem:[#allocation3 + $0xd8] sm:$0xff] %v1365
          %1434 = vst [vmem:[#allocation3 + $0xe0] sm:$0xff] %v1367
          %1435 = vst [vmem:[#allocation3 + $0xe8] sm:$0xff] %v1369
          %1436 = vst [vmem:[#allocation3 + $0xf0] sm:$0xff] %v1371
          %1437 = vst [vmem:[#allocation3 + $0xf8] sm:$0xff] %v1373
        $region68: #{tpu_custom_call.1} parent=43 // pred_fallthru
          _
        %s1438 = smul.u32 %s30, 128
        %s1439 = sshra.s32 %s1438, 3
        %s1440 = sand.u32 %s1438, 7
        %s1441 = smul.u32 %s1439, 2
        %s1442 = smul.addr %s1441, 4
        %s1443 = scalar_lea.vmem %s297, %s1442 [#allocation4]
        %v1444 = vld [vmem:[%s1443] sm:$0xff]
        %v1445 = vld [vmem:[%s1443 + $0x8] sm:$0xff]
        %v1446 = vld [vmem:[%s1443 + $0x10] sm:$0xff]
        %v1447 = vld [vmem:[%s1443 + $0x18] sm:$0xff]
        %v1448 = vld [vmem:[%s1443 + $0x20] sm:$0xff]
        %v1449 = vld [vmem:[%s1443 + $0x28] sm:$0xff]
        %v1450 = vld [vmem:[%s1443 + $0x30] sm:$0xff]
        %v1451 = vld [vmem:[%s1443 + $0x38] sm:$0xff]
        %v1452 = vld [vmem:[%s1443 + $0x40] sm:$0xff]
        %v1453 = vld [vmem:[%s1443 + $0x48] sm:$0xff]
        %v1454 = vld [vmem:[%s1443 + $0x50] sm:$0xff]
        %v1455 = vld [vmem:[%s1443 + $0x58] sm:$0xff]
        %v1456 = vld [vmem:[%s1443 + $0x60] sm:$0xff]
        %v1457 = vld [vmem:[%s1443 + $0x68] sm:$0xff]
        %v1458 = vld [vmem:[%s1443 + $0x70] sm:$0xff]
        %v1459 = vld [vmem:[%s1443 + $0x78] sm:$0xff]
        %v1460 = vld [vmem:[#allocation7] sm:$0xff]
        %v1461 = vld [vmem:[#allocation7 + $0x8] sm:$0xff]
        %v1462 = vld [vmem:[#allocation7 + $0x10] sm:$0xff]
        %v1463 = vld [vmem:[#allocation7 + $0x18] sm:$0xff]
        %v1464 = vld [vmem:[#allocation7 + $0x20] sm:$0xff]
        %v1465 = vld [vmem:[#allocation7 + $0x28] sm:$0xff]
        %v1466 = vld [vmem:[#allocation7 + $0x30] sm:$0xff]
        %v1467 = vld [vmem:[#allocation7 + $0x38] sm:$0xff]
        %v1468 = vld [vmem:[#allocation7 + $0x40] sm:$0xff]
        %v1469 = vld [vmem:[#allocation7 + $0x48] sm:$0xff]
        %v1470 = vld [vmem:[#allocation7 + $0x50] sm:$0xff]
        %v1471 = vld [vmem:[#allocation7 + $0x58] sm:$0xff]
        %v1472 = vld [vmem:[#allocation7 + $0x60] sm:$0xff]
        %v1473 = vld [vmem:[#allocation7 + $0x68] sm:$0xff]
        %v1474 = vld [vmem:[#allocation7 + $0x70] sm:$0xff]
        %v1475 = vld [vmem:[#allocation7 + $0x78] sm:$0xff]
        %v1476 = vld [vmem:[#allocation7 + $0x80] sm:$0xff]
        %v1477 = vld [vmem:[#allocation7 + $0x88] sm:$0xff]
        %v1478 = vld [vmem:[#allocation7 + $0x90] sm:$0xff]
        %v1479 = vld [vmem:[#allocation7 + $0x98] sm:$0xff]
        %v1480 = vld [vmem:[#allocation7 + $0xa0] sm:$0xff]
        %v1481 = vld [vmem:[#allocation7 + $0xa8] sm:$0xff]
        %v1482 = vld [vmem:[#allocation7 + $0xb0] sm:$0xff]
        %v1483 = vld [vmem:[#allocation7 + $0xb8] sm:$0xff]
        %v1484 = vld [vmem:[#allocation7 + $0xc0] sm:$0xff]
        %v1485 = vld [vmem:[#allocation7 + $0xc8] sm:$0xff]
        %v1486 = vld [vmem:[#allocation7 + $0xd0] sm:$0xff]
        %v1487 = vld [vmem:[#allocation7 + $0xd8] sm:$0xff]
        %v1488 = vld [vmem:[#allocation7 + $0xe0] sm:$0xff]
        %v1489 = vld [vmem:[#allocation7 + $0xe8] sm:$0xff]
        %v1490 = vld [vmem:[#allocation7 + $0xf0] sm:$0xff]
        %v1491 = vld [vmem:[#allocation7 + $0xf8] sm:$0xff]
        %v1508 = vunpack.c.l.b16 %v1444
        %v1509 = vunpack.c.h.b16 %v1444
        %v1510 = vunpack.c.l.b16 %v1445
        %v1511 = vunpack.c.h.b16 %v1445
        %v1512 = vunpack.c.l.b16 %v1446
        %v1513 = vunpack.c.h.b16 %v1446
        %v1514 = vunpack.c.l.b16 %v1447
        %v1515 = vunpack.c.h.b16 %v1447
        %v1516 = vunpack.c.l.b16 %v1448
        %v1517 = vunpack.c.h.b16 %v1448
        %v1518 = vunpack.c.l.b16 %v1449
        %v1519 = vunpack.c.h.b16 %v1449
        %v1520 = vunpack.c.l.b16 %v1450
        %v1521 = vunpack.c.h.b16 %v1450
        %v1522 = vunpack.c.l.b16 %v1451
        %v1523 = vunpack.c.h.b16 %v1451
        %v1524 = vunpack.c.l.b16 %v1452
        %v1525 = vunpack.c.h.b16 %v1452
        %v1526 = vunpack.c.l.b16 %v1453
        %v1527 = vunpack.c.h.b16 %v1453
        %v1528 = vunpack.c.l.b16 %v1454
        %v1529 = vunpack.c.h.b16 %v1454
        %v1530 = vunpack.c.l.b16 %v1455
        %v1531 = vunpack.c.h.b16 %v1455
        %v1532 = vunpack.c.l.b16 %v1456
        %v1533 = vunpack.c.h.b16 %v1456
        %v1534 = vunpack.c.l.b16 %v1457
        %v1535 = vunpack.c.h.b16 %v1457
        %v1536 = vunpack.c.l.b16 %v1458
        %v1537 = vunpack.c.h.b16 %v1458
        %v1538 = vunpack.c.l.b16 %v1459
        %v1539 = vunpack.c.h.b16 %v1459
        %v1540 = vpack.c.b16 %v1510, %v1508
        %v1541 = vpack.c.b16 %v1511, %v1509
        %v1542 = vpack.c.b16 %v1514, %v1512
        %v1543 = vpack.c.b16 %v1515, %v1513
        %v1544 = vpack.c.b16 %v1518, %v1516
        %v1545 = vpack.c.b16 %v1519, %v1517
        %v1546 = vpack.c.b16 %v1522, %v1520
        %v1547 = vpack.c.b16 %v1523, %v1521
        %v1548 = vpack.c.b16 %v1526, %v1524
        %v1549 = vpack.c.b16 %v1527, %v1525
        %v1550 = vpack.c.b16 %v1530, %v1528
        %v1551 = vpack.c.b16 %v1531, %v1529
        %v1552 = vpack.c.b16 %v1534, %v1532
        %v1553 = vpack.c.b16 %v1535, %v1533
        %v1554 = vpack.c.b16 %v1538, %v1536
        %v1555 = vpack.c.b16 %v1539, %v1537
        %v1604 = vunpack.c.l.b16 %v1460
        %v1605 = vunpack.c.h.b16 %v1460
        %v1606 = vunpack.c.l.b16 %v1461
        %v1607 = vunpack.c.h.b16 %v1461
        %v1608 = vunpack.c.l.b16 %v1462
        %v1609 = vunpack.c.h.b16 %v1462
        %v1610 = vunpack.c.l.b16 %v1463
        %v1611 = vunpack.c.h.b16 %v1463
        %v1612 = vunpack.c.l.b16 %v1464
        %v1613 = vunpack.c.h.b16 %v1464
        %v1614 = vunpack.c.l.b16 %v1465
        %v1615 = vunpack.c.h.b16 %v1465
        %v1616 = vunpack.c.l.b16 %v1466
        %v1617 = vunpack.c.h.b16 %v1466
        %v1618 = vunpack.c.l.b16 %v1467
        %v1619 = vunpack.c.h.b16 %v1467
        %v1620 = vunpack.c.l.b16 %v1468
        %v1621 = vunpack.c.h.b16 %v1468
        %v1622 = vunpack.c.l.b16 %v1469
        %v1623 = vunpack.c.h.b16 %v1469
        %v1624 = vunpack.c.l.b16 %v1470
        %v1625 = vunpack.c.h.b16 %v1470
        %v1626 = vunpack.c.l.b16 %v1471
        %v1627 = vunpack.c.h.b16 %v1471
        %v1628 = vunpack.c.l.b16 %v1472
        %v1629 = vunpack.c.h.b16 %v1472
        %v1630 = vunpack.c.l.b16 %v1473
        %v1631 = vunpack.c.h.b16 %v1473
        %v1632 = vunpack.c.l.b16 %v1474
        %v1633 = vunpack.c.h.b16 %v1474
        %v1634 = vunpack.c.l.b16 %v1475
        %v1635 = vunpack.c.h.b16 %v1475
        %v1636 = vunpack.c.l.b16 %v1476
        %v1637 = vunpack.c.h.b16 %v1476
        %v1638 = vunpack.c.l.b16 %v1477
        %v1639 = vunpack.c.h.b16 %v1477
        %v1640 = vunpack.c.l.b16 %v1478
        %v1641 = vunpack.c.h.b16 %v1478
        %v1642 = vunpack.c.l.b16 %v1479
        %v1643 = vunpack.c.h.b16 %v1479
        %v1644 = vunpack.c.l.b16 %v1480
        %v1645 = vunpack.c.h.b16 %v1480
        %v1646 = vunpack.c.l.b16 %v1481
        %v1647 = vunpack.c.h.b16 %v1481
        %v1648 = vunpack.c.l.b16 %v1482
        %v1649 = vunpack.c.h.b16 %v1482
        %v1650 = vunpack.c.l.b16 %v1483
        %v1651 = vunpack.c.h.b16 %v1483
        %v1652 = vunpack.c.l.b16 %v1484
        %v1653 = vunpack.c.h.b16 %v1484
        %v1654 = vunpack.c.l.b16 %v1485
        %v1655 = vunpack.c.h.b16 %v1485
        %v1656 = vunpack.c.l.b16 %v1486
        %v1657 = vunpack.c.h.b16 %v1486
        %v1658 = vunpack.c.l.b16 %v1487
        %v1659 = vunpack.c.h.b16 %v1487
        %v1660 = vunpack.c.l.b16 %v1488
        %v1661 = vunpack.c.h.b16 %v1488
        %v1662 = vunpack.c.l.b16 %v1489
        %v1663 = vunpack.c.h.b16 %v1489
        %v1664 = vunpack.c.l.b16 %v1490
        %v1665 = vunpack.c.h.b16 %v1490
        %v1666 = vunpack.c.l.b16 %v1491
        %v1667 = vunpack.c.h.b16 %v1491
        %v1668 = vpack.c.b16 %v1606, %v1604
        %v1669 = vpack.c.b16 %v1607, %v1605
        %v1670 = vpack.c.b16 %v1610, %v1608
        %v1671 = vpack.c.b16 %v1611, %v1609
        %v1672 = vpack.c.b16 %v1614, %v1612
        %v1673 = vpack.c.b16 %v1615, %v1613
        %v1674 = vpack.c.b16 %v1618, %v1616
        %v1675 = vpack.c.b16 %v1619, %v1617
        %v1676 = vpack.c.b16 %v1622, %v1620
        %v1677 = vpack.c.b16 %v1623, %v1621
        %v1678 = vpack.c.b16 %v1626, %v1624
        %v1679 = vpack.c.b16 %v1627, %v1625
        %v1680 = vpack.c.b16 %v1630, %v1628
        %v1681 = vpack.c.b16 %v1631, %v1629
        %v1682 = vpack.c.b16 %v1634, %v1632
        %v1683 = vpack.c.b16 %v1635, %v1633
        %v1684 = vpack.c.b16 %v1638, %v1636
        %v1685 = vpack.c.b16 %v1639, %v1637
        %v1686 = vpack.c.b16 %v1642, %v1640
        %v1687 = vpack.c.b16 %v1643, %v1641
        %v1688 = vpack.c.b16 %v1646, %v1644
        %v1689 = vpack.c.b16 %v1647, %v1645
        %v1690 = vpack.c.b16 %v1650, %v1648
        %v1691 = vpack.c.b16 %v1651, %v1649
        %v1692 = vpack.c.b16 %v1654, %v1652
        %v1693 = vpack.c.b16 %v1655, %v1653
        %v1694 = vpack.c.b16 %v1658, %v1656
        %v1695 = vpack.c.b16 %v1659, %v1657
        %v1696 = vpack.c.b16 %v1662, %v1660
        %v1697 = vpack.c.b16 %v1663, %v1661
        %v1698 = vpack.c.b16 %v1666, %v1664
        %v1699 = vpack.c.b16 %v1667, %v1665
        %1732 = vmatprep.subr.bf16.mxu0 %v1669
        %1733 = vmatpush1.bf16.msra.mxu0 %v1668
        %1734 = vmatprep.subr.bf16.mxu0 %v1671
        %1735 = vmatpush1.bf16.msra.mxu0 %v1670
        %1736 = vmatprep.subr.bf16.mxu0 %v1673
        %1737 = vmatpush1.bf16.msra.mxu0 %v1672
        %1738 = vmatprep.subr.bf16.mxu0 %v1675
        %1739 = vmatpush1.bf16.msra.mxu0 %v1674
        %1740 = vmatprep.subr.bf16.mxu0 %v1677
        %1741 = vmatpush1.bf16.msra.mxu0 %v1676
        %1742 = vmatprep.subr.bf16.mxu0 %v1679
        %1743 = vmatpush1.bf16.msra.mxu0 %v1678
        %1744 = vmatprep.subr.bf16.mxu0 %v1681
        %1745 = vmatpush1.bf16.msra.mxu0 %v1680
        %1746 = vmatprep.subr.bf16.mxu0 %v1683
        %1747 = vmatpush1.bf16.msra.mxu0 %v1682
        %1748 = vmatprep.subr.bf16.mxu0 %v1685
        %1749 = vmatpush1.bf16.msra.mxu0 %v1684
        %1750 = vmatprep.subr.bf16.mxu0 %v1687
        %1751 = vmatpush1.bf16.msra.mxu0 %v1686
        %1752 = vmatprep.subr.bf16.mxu0 %v1689
        %1753 = vmatpush1.bf16.msra.mxu0 %v1688
        %1754 = vmatprep.subr.bf16.mxu0 %v1691
        %1755 = vmatpush1.bf16.msra.mxu0 %v1690
        %1756 = vmatprep.subr.bf16.mxu0 %v1693
        %1757 = vmatpush1.bf16.msra.mxu0 %v1692
        %1758 = vmatprep.subr.bf16.mxu0 %v1695
        %1759 = vmatpush1.bf16.msra.mxu0 %v1694
        %1760 = vmatprep.subr.bf16.mxu0 %v1697
        %1761 = vmatpush1.bf16.msra.mxu0 %v1696
        %1762 = vmatprep.subr.bf16.mxu0 %v1699
        %1763 = vmatpush1.bf16.msra.mxu0 %v1698
        %1764 = vmatprep.mubr.bf16.mxu0 %v1541
        %1765 = vmatmul.mubr.bf16.gmra.mrb[0].mxu0 %v1540
        %v1766 = vpop.f32.mrb[0].mxu0
        %v1767 = vadd.f32 0.0, %v1766
        %v1768 = vpop.f32.mrb[0].mxu0
        %v1769 = vadd.f32 0.0, %v1768
        %v1770 = vpop.f32.mrb[0].mxu0
        %v1771 = vadd.f32 0.0, %v1770
        %v1772 = vpop.f32.mrb[0].mxu0
        %v1773 = vadd.f32 0.0, %v1772
        %1774 = vmatprep.mubr.bf16.mxu0 %v1543
        %1775 = vmatmul.mubr.bf16.gmra.mrb[0].mxu0 %v1542
        %v1776 = vpop.f32.mrb[0].mxu0
        %v1777 = vadd.f32 0.0, %v1776
        %v1778 = vpop.f32.mrb[0].mxu0
        %v1779 = vadd.f32 0.0, %v1778
        %v1780 = vpop.f32.mrb[0].mxu0
        %v1781 = vadd.f32 0.0, %v1780
        %v1782 = vpop.f32.mrb[0].mxu0
        %v1783 = vadd.f32 0.0, %v1782
        %1784 = vmatprep.mubr.bf16.mxu0 %v1545
        %1785 = vmatmul.mubr.bf16.gmra.mrb[0].mxu0 %v1544
        %v1786 = vpop.f32.mrb[0].mxu0
        %v1787 = vadd.f32 0.0, %v1786
        %v1788 = vpop.f32.mrb[0].mxu0
        %v1789 = vadd.f32 0.0, %v1788
        %v1790 = vpop.f32.mrb[0].mxu0
        %v1791 = vadd.f32 0.0, %v1790
        %v1792 = vpop.f32.mrb[0].mxu0
        %v1793 = vadd.f32 0.0, %v1792
        %1794 = vmatprep.mubr.bf16.mxu0 %v1547
        %1795 = vmatmul.mubr.bf16.gmra.mrb[0].mxu0 %v1546
        %v1796 = vpop.f32.mrb[0].mxu0
        %v1797 = vadd.f32 0.0, %v1796
        %v1798 = vpop.f32.mrb[0].mxu0
        %v1799 = vadd.f32 0.0, %v1798
        %v1800 = vpop.f32.mrb[0].mxu0
        %v1801 = vadd.f32 0.0, %v1800
        %v1802 = vpop.f32.mrb[0].mxu0
        %v1803 = vadd.f32 0.0, %v1802
        %1804 = vmatprep.mubr.bf16.mxu0 %v1549
        %1805 = vmatmul.mubr.bf16.gmra.mrb[0].mxu0 %v1548
        %v1806 = vpop.f32.mrb[0].mxu0
        %v1807 = vadd.f32 0.0, %v1806
        %v1808 = vpop.f32.mrb[0].mxu0
        %v1809 = vadd.f32 0.0, %v1808
        %v1810 = vpop.f32.mrb[0].mxu0
        %v1811 = vadd.f32 0.0, %v1810
        %v1812 = vpop.f32.mrb[0].mxu0
        %v1813 = vadd.f32 0.0, %v1812
        %1814 = vmatprep.mubr.bf16.mxu0 %v1551
        %1815 = vmatmul.mubr.bf16.gmra.mrb[0].mxu0 %v1550
        %v1816 = vpop.f32.mrb[0].mxu0
        %v1817 = vadd.f32 0.0, %v1816
        %v1818 = vpop.f32.mrb[0].mxu0
        %v1819 = vadd.f32 0.0, %v1818
        %v1820 = vpop.f32.mrb[0].mxu0
        %v1821 = vadd.f32 0.0, %v1820
        %v1822 = vpop.f32.mrb[0].mxu0
        %v1823 = vadd.f32 0.0, %v1822
        %1824 = vmatprep.mubr.bf16.mxu0 %v1553
        %1825 = vmatmul.mubr.bf16.gmra.mrb[0].mxu0 %v1552
        %v1826 = vpop.f32.mrb[0].mxu0
        %v1827 = vadd.f32 0.0, %v1826
        %v1828 = vpop.f32.mrb[0].mxu0
        %v1829 = vadd.f32 0.0, %v1828
        %v1830 = vpop.f32.mrb[0].mxu0
        %v1831 = vadd.f32 0.0, %v1830
        %v1832 = vpop.f32.mrb[0].mxu0
        %v1833 = vadd.f32 0.0, %v1832
        %1834 = vmatprep.mubr.bf16.mxu0 %v1555
        %1835 = vmatmul.mubr.bf16.gmra.mrb[0].mxu0 %v1554
        %v1836 = vpop.f32.mrb[0].mxu0
        %v1837 = vadd.f32 0.0, %v1836
        %v1838 = vpop.f32.mrb[0].mxu0
        %v1839 = vadd.f32 0.0, %v1838
        %v1840 = vpop.f32.mrb[0].mxu0
        %v1841 = vadd.f32 0.0, %v1840
        %v1842 = vpop.f32.mrb[0].mxu0
        %v1843 = vadd.f32 0.0, %v1842
        %1844 = vdwg.mxu0
        %v1845 = vmul.f32 %v1767, 0.088388346
        %v1846 = vmul.f32 %v1769, 0.088388346
        %v1847 = vmul.f32 %v1771, 0.088388346
        %v1848 = vmul.f32 %v1773, 0.088388346
        %v1849 = vmul.f32 %v1777, 0.088388346
        %v1850 = vmul.f32 %v1779, 0.088388346
        %v1851 = vmul.f32 %v1781, 0.088388346
        %v1852 = vmul.f32 %v1783, 0.088388346
        %v1853 = vmul.f32 %v1787, 0.088388346
        %v1854 = vmul.f32 %v1789, 0.088388346
        %v1855 = vmul.f32 %v1791, 0.088388346
        %v1856 = vmul.f32 %v1793, 0.088388346
        %v1857 = vmul.f32 %v1797, 0.088388346
        %v1858 = vmul.f32 %v1799, 0.088388346
        %v1859 = vmul.f32 %v1801, 0.088388346
        %v1860 = vmul.f32 %v1803, 0.088388346
        %v1861 = vmul.f32 %v1807, 0.088388346
        %v1862 = vmul.f32 %v1809, 0.088388346
        %v1863 = vmul.f32 %v1811, 0.088388346
        %v1864 = vmul.f32 %v1813, 0.088388346
        %v1865 = vmul.f32 %v1817, 0.088388346
        %v1866 = vmul.f32 %v1819, 0.088388346
        %v1867 = vmul.f32 %v1821, 0.088388346
        %v1868 = vmul.f32 %v1823, 0.088388346
        %v1869 = vmul.f32 %v1827, 0.088388346
        %v1870 = vmul.f32 %v1829, 0.088388346
        %v1871 = vmul.f32 %v1831, 0.088388346
        %v1872 = vmul.f32 %v1833, 0.088388346
        %v1873 = vmul.f32 %v1837, 0.088388346
        %v1874 = vmul.f32 %v1839, 0.088388346
        %v1875 = vmul.f32 %v1841, 0.088388346
        %v1876 = vmul.f32 %v1843, 0.088388346
        %v1877 = vpack.c.bf16 %v1847, %v1845
        %v1878 = vpack.c.bf16 %v1848, %v1846
        %v1879 = vpack.c.bf16 %v1851, %v1849
        %v1880 = vpack.c.bf16 %v1852, %v1850
        %v1881 = vpack.c.bf16 %v1855, %v1853
        %v1882 = vpack.c.bf16 %v1856, %v1854
        %v1883 = vpack.c.bf16 %v1859, %v1857
        %v1884 = vpack.c.bf16 %v1860, %v1858
        %v1885 = vpack.c.bf16 %v1863, %v1861
        %v1886 = vpack.c.bf16 %v1864, %v1862
        %v1887 = vpack.c.bf16 %v1867, %v1865
        %v1888 = vpack.c.bf16 %v1868, %v1866
        %v1889 = vpack.c.bf16 %v1871, %v1869
        %v1890 = vpack.c.bf16 %v1872, %v1870
        %v1891 = vpack.c.bf16 %v1875, %v1873
        %v1892 = vpack.c.bf16 %v1876, %v1874
        loop: start=0, step=1, limit=2
        $region69: #{tpu_custom_call.1} parent=43 // loop_pre_header
          _
        $region70: #{tpu_custom_call.1} parent=43 // loop_header
          %s1894 = sphi 0, %s1898
          %p1895 = scmp.ge.s32.totalorder %s1894, 2
          %v1899 = vphi -inf, %v2292
          %v1900 = vphi -inf, %v2293
          %v1901 = vphi -inf, %v2294
          %v1902 = vphi -inf, %v2295
          %v1903 = vphi -inf, %v2296
          %v1904 = vphi -inf, %v2297
          %v1905 = vphi -inf, %v2298
          %v1906 = vphi -inf, %v2299
          %v1907 = vphi -inf, %v2300
          %v1908 = vphi -inf, %v2301
          %v1909 = vphi -inf, %v2302
          %v1910 = vphi -inf, %v2303
          %v1911 = vphi -inf, %v2304
          %v1912 = vphi -inf, %v2305
          %v1913 = vphi -inf, %v2306
          %v1914 = vphi -inf, %v2307
          %v1915 = vphi -inf, %v2308
          %v1916 = vphi -inf, %v2309
          %v1917 = vphi -inf, %v2310
          %v1918 = vphi -inf, %v2311
          %v1919 = vphi -inf, %v2312
          %v1920 = vphi -inf, %v2313
          %v1921 = vphi -inf, %v2314
          %v1922 = vphi -inf, %v2315
          %v1923 = vphi -inf, %v2316
          %v1924 = vphi -inf, %v2317
          %v1925 = vphi -inf, %v2318
          %v1926 = vphi -inf, %v2319
          %v1927 = vphi -inf, %v2320
          %v1928 = vphi -inf, %v2321
          %v1929 = vphi -inf, %v2322
          %v1930 = vphi -inf, %v2323
          %v1931 = vphi 0.0, %v2612
          %v1932 = vphi 0.0, %v2613
          %v1933 = vphi 0.0, %v2614
          %v1934 = vphi 0.0, %v2615
          %v1935 = vphi 0.0, %v2616
          %v1936 = vphi 0.0, %v2617
          %v1937 = vphi 0.0, %v2618
          %v1938 = vphi 0.0, %v2619
          %v1939 = vphi 0.0, %v2620
          %v1940 = vphi 0.0, %v2621
          %v1941 = vphi 0.0, %v2622
          %v1942 = vphi 0.0, %v2623
          %v1943 = vphi 0.0, %v2624
          %v1944 = vphi 0.0, %v2625
          %v1945 = vphi 0.0, %v2626
          %v1946 = vphi 0.0, %v2627
          %v1947 = vphi 0.0, %v2628
          %v1948 = vphi 0.0, %v2629
          %v1949 = vphi 0.0, %v2630
          %v1950 = vphi 0.0, %v2631
          %v1951 = vphi 0.0, %v2632
          %v1952 = vphi 0.0, %v2633
          %v1953 = vphi 0.0, %v2634
          %v1954 = vphi 0.0, %v2635
          %v1955 = vphi 0.0, %v2636
          %v1956 = vphi 0.0, %v2637
          %v1957 = vphi 0.0, %v2638
          %v1958 = vphi 0.0, %v2639
          %v1959 = vphi 0.0, %v2640
          %v1960 = vphi 0.0, %v2641
          %v1961 = vphi 0.0, %v2642
          %v1962 = vphi 0.0, %v2643
          %v1963 = vphi 0.0, %v2886
          %v1964 = vphi 0.0, %v2887
          %v1965 = vphi 0.0, %v2888
          %v1966 = vphi 0.0, %v2889
          %v1967 = vphi 0.0, %v2890
          %v1968 = vphi 0.0, %v2891
          %v1969 = vphi 0.0, %v2892
          %v1970 = vphi 0.0, %v2893
          %v1971 = vphi 0.0, %v2894
          %v1972 = vphi 0.0, %v2895
          %v1973 = vphi 0.0, %v2896
          %v1974 = vphi 0.0, %v2897
          %v1975 = vphi 0.0, %v2898
          %v1976 = vphi 0.0, %v2899
          %v1977 = vphi 0.0, %v2900
          %v1978 = vphi 0.0, %v2901
          %v1979 = vphi 0.0, %v2902
          %v1980 = vphi 0.0, %v2903
          %v1981 = vphi 0.0, %v2904
          %v1982 = vphi 0.0, %v2905
          %v1983 = vphi 0.0, %v2906
          %v1984 = vphi 0.0, %v2907
          %v1985 = vphi 0.0, %v2908
          %v1986 = vphi 0.0, %v2909
          %v1987 = vphi 0.0, %v2910
          %v1988 = vphi 0.0, %v2911
          %v1989 = vphi 0.0, %v2912
          %v1990 = vphi 0.0, %v2913
          %v1991 = vphi 0.0, %v2914
          %v1992 = vphi 0.0, %v2915
          %v1993 = vphi 0.0, %v2916
          %v1994 = vphi 0.0, %v2917
        $region71: #{tpu_custom_call.1} parent=43 // loop_header_branch
          %1897 = sbr.rel (%p1895) target = $region75
        $region72: #{tpu_custom_call.1} parent=43 // loop_body
          %s1995 = smul.u32 %s1894, 128
          %s1996 = sshra.s32 %s1995, 4
          %s1997 = sand.u32 %s1995, 15
          %s1998 = smul.addr %s1996, 8
          %s1999 = scalar_lea.vmem [#allocation2], %s1998
          %v2000 = vld [vmem:[%s1999] sm:$0xff]
          %v2001 = vld [vmem:[%s1999 + $0x8] sm:$0xff]
          %v2002 = vld [vmem:[%s1999 + $0x10] sm:$0xff]
          %v2003 = vld [vmem:[%s1999 + $0x18] sm:$0xff]
          %v2004 = vld [vmem:[%s1999 + $0x20] sm:$0xff]
          %v2005 = vld [vmem:[%s1999 + $0x28] sm:$0xff]
          %v2006 = vld [vmem:[%s1999 + $0x30] sm:$0xff]
          %v2007 = vld [vmem:[%s1999 + $0x38] sm:$0xff]
          %v2008 = vld [vmem:[%s1999 + $0x80] sm:$0xff]
          %v2009 = vld [vmem:[%s1999 + $0x88] sm:$0xff]
          %v2010 = vld [vmem:[%s1999 + $0x90] sm:$0xff]
          %v2011 = vld [vmem:[%s1999 + $0x98] sm:$0xff]
          %v2012 = vld [vmem:[%s1999 + $0xa0] sm:$0xff]
          %v2013 = vld [vmem:[%s1999 + $0xa8] sm:$0xff]
          %v2014 = vld [vmem:[%s1999 + $0xb0] sm:$0xff]
          %v2015 = vld [vmem:[%s1999 + $0xb8] sm:$0xff]
          %s2016 = smul.addr %s1996, 8
          %s2017 = scalar_lea.vmem [#allocation3], %s2016
          %v2018 = vld [vmem:[%s2017] sm:$0xff]
          %v2019 = vld [vmem:[%s2017 + $0x8] sm:$0xff]
          %v2020 = vld [vmem:[%s2017 + $0x10] sm:$0xff]
          %v2021 = vld [vmem:[%s2017 + $0x18] sm:$0xff]
          %v2022 = vld [vmem:[%s2017 + $0x20] sm:$0xff]
          %v2023 = vld [vmem:[%s2017 + $0x28] sm:$0xff]
          %v2024 = vld [vmem:[%s2017 + $0x30] sm:$0xff]
          %v2025 = vld [vmem:[%s2017 + $0x38] sm:$0xff]
          %v2026 = vld [vmem:[%s2017 + $0x80] sm:$0xff]
          %v2027 = vld [vmem:[%s2017 + $0x88] sm:$0xff]
          %v2028 = vld [vmem:[%s2017 + $0x90] sm:$0xff]
          %v2029 = vld [vmem:[%s2017 + $0x98] sm:$0xff]
          %v2030 = vld [vmem:[%s2017 + $0xa0] sm:$0xff]
          %v2031 = vld [vmem:[%s2017 + $0xa8] sm:$0xff]
          %v2032 = vld [vmem:[%s2017 + $0xb0] sm:$0xff]
          %v2033 = vld [vmem:[%s2017 + $0xb8] sm:$0xff]
          %2034 = vmatprep.subr.bf16.mxu0 0
          %2035 = vmatpush1.bf16.xpose.msra.mxu0 %v2000
          %2036 = vmatprep.subr.bf16.mxu0 0
          %2037 = vmatpush1.bf16.xpose.msra.mxu0 %v2001
          %2038 = vmatprep.subr.bf16.mxu0 0
          %2039 = vmatpush1.bf16.xpose.msra.mxu0 %v2002
          %2040 = vmatprep.subr.bf16.mxu0 0
          %2041 = vmatpush1.bf16.xpose.msra.mxu0 %v2003
          %2042 = vmatprep.subr.bf16.mxu0 0
          %2043 = vmatpush1.bf16.xpose.msra.mxu0 %v2004
          %2044 = vmatprep.subr.bf16.mxu0 0
          %2045 = vmatpush1.bf16.xpose.msra.mxu0 %v2005
          %2046 = vmatprep.subr.bf16.mxu0 0
          %2047 = vmatpush1.bf16.xpose.msra.mxu0 %v2006
          %2048 = vmatprep.subr.bf16.mxu0 0
          %2049 = vmatpush1.bf16.xpose.msra.mxu0 %v2007
          %2050 = vmatprep.subr.bf16.mxu0 0
          %2051 = vmatpush1.bf16.xpose.msra.mxu0 0
          %2052 = vmatprep.subr.bf16.mxu0 0
          %2053 = vmatpush1.bf16.xpose.msra.mxu0 0
          %2054 = vmatprep.subr.bf16.mxu0 0
          %2055 = vmatpush1.bf16.xpose.msra.mxu0 0
          %2056 = vmatprep.subr.bf16.mxu0 0
          %2057 = vmatpush1.bf16.xpose.msra.mxu0 0
          %2058 = vmatprep.subr.bf16.mxu0 0
          %2059 = vmatpush1.bf16.xpose.msra.mxu0 0
          %2060 = vmatprep.subr.bf16.mxu0 0
          %2061 = vmatpush1.bf16.xpose.msra.mxu0 0
          %2062 = vmatprep.subr.bf16.mxu0 0
          %2063 = vmatpush1.bf16.xpose.msra.mxu0 0
          %2064 = vmatprep.subr.bf16.mxu0 0
          %2065 = vmatpush1.bf16.xpose.msra.mxu0 0
          %2066 = vmatprep.mubr.bf16.mxu0 0
          %2067 = vmatmul.mubr.bf16.gmra.mrb[0].mxu0 %v1877
          %v2068 = vpop.f32.mrb[0].mxu0
          %v2069 = vadd.f32 0.0, %v2068
          %v2070 = vpop.f32.mrb[0].mxu0
          %v2071 = vpop.f32.mrb[0].mxu0
          %v2072 = vadd.f32 0.0, %v2071
          %v2073 = vpop.f32.mrb[0].mxu0
          %2074 = vmatprep.mubr.bf16.mxu0 0
          %2075 = vmatmul.mubr.bf16.gmra.mrb[0].mxu0 %v1879
          %v2076 = vpop.f32.mrb[0].mxu0
          %v2077 = vadd.f32 0.0, %v2076
          %v2078 = vpop.f32.mrb[0].mxu0
          %v2079 = vpop.f32.mrb[0].mxu0
          %v2080 = vadd.f32 0.0, %v2079
          %v2081 = vpop.f32.mrb[0].mxu0
          %2082 = vmatprep.mubr.bf16.mxu0 0
          %2083 = vmatmul.mubr.bf16.gmra.mrb[0].mxu0 %v1881
          %v2084 = vpop.f32.mrb[0].mxu0
          %v2085 = vadd.f32 0.0, %v2084
          %v2086 = vpop.f32.mrb[0].mxu0
          %v2087 = vpop.f32.mrb[0].mxu0
          %v2088 = vadd.f32 0.0, %v2087
          %v2089 = vpop.f32.mrb[0].mxu0
          %2090 = vmatprep.mubr.bf16.mxu0 0
          %2091 = vmatmul.mubr.bf16.gmra.mrb[0].mxu0 %v1883
          %v2092 = vpop.f32.mrb[0].mxu0
          %v2093 = vadd.f32 0.0, %v2092
          %v2094 = vpop.f32.mrb[0].mxu0
          %v2095 = vpop.f32.mrb[0].mxu0
          %v2096 = vadd.f32 0.0, %v2095
          %v2097 = vpop.f32.mrb[0].mxu0
          %2098 = vmatprep.mubr.bf16.mxu0 0
          %2099 = vmatmul.mubr.bf16.gmra.mrb[0].mxu0 %v1885
          %v2100 = vpop.f32.mrb[0].mxu0
          %v2101 = vadd.f32 0.0, %v2100
          %v2102 = vpop.f32.mrb[0].mxu0
          %v2103 = vpop.f32.mrb[0].mxu0
          %v2104 = vadd.f32 0.0, %v2103
          %v2105 = vpop.f32.mrb[0].mxu0
          %2106 = vmatprep.mubr.bf16.mxu0 0
          %2107 = vmatmul.mubr.bf16.gmra.mrb[0].mxu0 %v1887
          %v2108 = vpop.f32.mrb[0].mxu0
          %v2109 = vadd.f32 0.0, %v2108
          %v2110 = vpop.f32.mrb[0].mxu0
          %v2111 = vpop.f32.mrb[0].mxu0
          %v2112 = vadd.f32 0.0, %v2111
          %v2113 = vpop.f32.mrb[0].mxu0
          %2114 = vmatprep.mubr.bf16.mxu0 0
          %2115 = vmatmul.mubr.bf16.gmra.mrb[0].mxu0 %v1889
          %v2116 = vpop.f32.mrb[0].mxu0
          %v2117 = vadd.f32 0.0, %v2116
          %v2118 = vpop.f32.mrb[0].mxu0
          %v2119 = vpop.f32.mrb[0].mxu0
          %v2120 = vadd.f32 0.0, %v2119
          %v2121 = vpop.f32.mrb[0].mxu0
          %2122 = vmatprep.mubr.bf16.mxu0 0
          %2123 = vmatmul.mubr.bf16.gmra.mrb[0].mxu0 %v1891
          %v2124 = vpop.f32.mrb[0].mxu0
          %v2125 = vadd.f32 0.0, %v2124
          %v2126 = vpop.f32.mrb[0].mxu0
          %v2127 = vpop.f32.mrb[0].mxu0
          %v2128 = vadd.f32 0.0, %v2127
          %v2129 = vpop.f32.mrb[0].mxu0
          %2130 = vdwg.mxu0
          %2131 = vmatprep.subr.bf16.mxu0 0
          %2132 = vmatpush1.bf16.xpose.msra.mxu0 %v2008
          %2133 = vmatprep.subr.bf16.mxu0 0
          %2134 = vmatpush1.bf16.xpose.msra.mxu0 %v2009
          %2135 = vmatprep.subr.bf16.mxu0 0
          %2136 = vmatpush1.bf16.xpose.msra.mxu0 %v2010
          %2137 = vmatprep.subr.bf16.mxu0 0
          %2138 = vmatpush1.bf16.xpose.msra.mxu0 %v2011
          %2139 = vmatprep.subr.bf16.mxu0 0
          %2140 = vmatpush1.bf16.xpose.msra.mxu0 %v2012
          %2141 = vmatprep.subr.bf16.mxu0 0
          %2142 = vmatpush1.bf16.xpose.msra.mxu0 %v2013
          %2143 = vmatprep.subr.bf16.mxu0 0
          %2144 = vmatpush1.bf16.xpose.msra.mxu0 %v2014
          %2145 = vmatprep.subr.bf16.mxu0 0
          %2146 = vmatpush1.bf16.xpose.msra.mxu0 %v2015
          %2147 = vmatprep.subr.bf16.mxu0 0
          %2148 = vmatpush1.bf16.xpose.msra.mxu0 0
          %2149 = vmatprep.subr.bf16.mxu0 0
          %2150 = vmatpush1.bf16.xpose.msra.mxu0 0
          %2151 = vmatprep.subr.bf16.mxu0 0
          %2152 = vmatpush1.bf16.xpose.msra.mxu0 0
          %2153 = vmatprep.subr.bf16.mxu0 0
          %2154 = vmatpush1.bf16.xpose.msra.mxu0 0
          %2155 = vmatprep.subr.bf16.mxu0 0
          %2156 = vmatpush1.bf16.xpose.msra.mxu0 0
          %2157 = vmatprep.subr.bf16.mxu0 0
          %2158 = vmatpush1.bf16.xpose.msra.mxu0 0
          %2159 = vmatprep.subr.bf16.mxu0 0
          %2160 = vmatpush1.bf16.xpose.msra.mxu0 0
          %2161 = vmatprep.subr.bf16.mxu0 0
          %2162 = vmatpush1.bf16.xpose.msra.mxu0 0
          %2163 = vmatprep.mubr.bf16.mxu0 0
          %2164 = vmatmul.mubr.bf16.gmra.mrb[0].mxu0 %v1878
          %v2165 = vpop.f32.mrb[0].mxu0
          %v2166 = vadd.f32 0.0, %v2165
          %v2167 = vpop.f32.mrb[0].mxu0
          %v2168 = vpop.f32.mrb[0].mxu0
          %v2169 = vadd.f32 0.0, %v2168
          %v2170 = vpop.f32.mrb[0].mxu0
          %2171 = vmatprep.mubr.bf16.mxu0 0
          %2172 = vmatmul.mubr.bf16.gmra.mrb[0].mxu0 %v1880
          %v2173 = vpop.f32.mrb[0].mxu0
          %v2174 = vadd.f32 0.0, %v2173
          %v2175 = vpop.f32.mrb[0].mxu0
          %v2176 = vpop.f32.mrb[0].mxu0
          %v2177 = vadd.f32 0.0, %v2176
          %v2178 = vpop.f32.mrb[0].mxu0
          %2179 = vmatprep.mubr.bf16.mxu0 0
          %2180 = vmatmul.mubr.bf16.gmra.mrb[0].mxu0 %v1882
          %v2181 = vpop.f32.mrb[0].mxu0
          %v2182 = vadd.f32 0.0, %v2181
          %v2183 = vpop.f32.mrb[0].mxu0
          %v2184 = vpop.f32.mrb[0].mxu0
          %v2185 = vadd.f32 0.0, %v2184
          %v2186 = vpop.f32.mrb[0].mxu0
          %2187 = vmatprep.mubr.bf16.mxu0 0
          %2188 = vmatmul.mubr.bf16.gmra.mrb[0].mxu0 %v1884
          %v2189 = vpop.f32.mrb[0].mxu0
          %v2190 = vadd.f32 0.0, %v2189
          %v2191 = vpop.f32.mrb[0].mxu0
          %v2192 = vpop.f32.mrb[0].mxu0
          %v2193 = vadd.f32 0.0, %v2192
          %v2194 = vpop.f32.mrb[0].mxu0
          %2195 = vmatprep.mubr.bf16.mxu0 0
          %2196 = vmatmul.mubr.bf16.gmra.mrb[0].mxu0 %v1886
          %v2197 = vpop.f32.mrb[0].mxu0
          %v2198 = vadd.f32 0.0, %v2197
          %v2199 = vpop.f32.mrb[0].mxu0
          %v2200 = vpop.f32.mrb[0].mxu0
          %v2201 = vadd.f32 0.0, %v2200
          %v2202 = vpop.f32.mrb[0].mxu0
          %2203 = vmatprep.mubr.bf16.mxu0 0
          %2204 = vmatmul.mubr.bf16.gmra.mrb[0].mxu0 %v1888
          %v2205 = vpop.f32.mrb[0].mxu0
          %v2206 = vadd.f32 0.0, %v2205
          %v2207 = vpop.f32.mrb[0].mxu0
          %v2208 = vpop.f32.mrb[0].mxu0
          %v2209 = vadd.f32 0.0, %v2208
          %v2210 = vpop.f32.mrb[0].mxu0
          %2211 = vmatprep.mubr.bf16.mxu0 0
          %2212 = vmatmul.mubr.bf16.gmra.mrb[0].mxu0 %v1890
          %v2213 = vpop.f32.mrb[0].mxu0
          %v2214 = vadd.f32 0.0, %v2213
          %v2215 = vpop.f32.mrb[0].mxu0
          %v2216 = vpop.f32.mrb[0].mxu0
          %v2217 = vadd.f32 0.0, %v2216
          %v2218 = vpop.f32.mrb[0].mxu0
          %2219 = vmatprep.mubr.bf16.mxu0 0
          %2220 = vmatmul.mubr.bf16.gmra.mrb[0].mxu0 %v1892
          %v2221 = vpop.f32.mrb[0].mxu0
          %v2222 = vadd.f32 0.0, %v2221
          %v2223 = vpop.f32.mrb[0].mxu0
          %v2224 = vpop.f32.mrb[0].mxu0
          %v2225 = vadd.f32 0.0, %v2224
          %v2226 = vpop.f32.mrb[0].mxu0
          %2227 = vdwg.mxu0
          %2228 = vmax.xlane.f32.xlu0 %v2069
          %v2229 = vpop.xlane.xlu0 %2228
          %2230 = vmax.xlane.f32.xlu0 %v2072
          %v2231 = vpop.xlane.xlu0 %2230
          %2232 = vmax.xlane.f32.xlu0 %v2077
          %v2233 = vpop.xlane.xlu0 %2232
          %2234 = vmax.xlane.f32.xlu0 %v2080
          %v2235 = vpop.xlane.xlu0 %2234
          %2236 = vmax.xlane.f32.xlu0 %v2085
          %v2237 = vpop.xlane.xlu0 %2236
          %2238 = vmax.xlane.f32.xlu0 %v2088
          %v2239 = vpop.xlane.xlu0 %2238
          %2240 = vmax.xlane.f32.xlu0 %v2093
          %v2241 = vpop.xlane.xlu0 %2240
          %2242 = vmax.xlane.f32.xlu0 %v2096
          %v2243 = vpop.xlane.xlu0 %2242
          %2244 = vmax.xlane.f32.xlu0 %v2101
          %v2245 = vpop.xlane.xlu0 %2244
          %2246 = vmax.xlane.f32.xlu0 %v2104
          %v2247 = vpop.xlane.xlu0 %2246
          %2248 = vmax.xlane.f32.xlu0 %v2109
          %v2249 = vpop.xlane.xlu0 %2248
          %2250 = vmax.xlane.f32.xlu0 %v2112
          %v2251 = vpop.xlane.xlu0 %2250
          %2252 = vmax.xlane.f32.xlu0 %v2117
          %v2253 = vpop.xlane.xlu0 %2252
          %2254 = vmax.xlane.f32.xlu0 %v2120
          %v2255 = vpop.xlane.xlu0 %2254
          %2256 = vmax.xlane.f32.xlu0 %v2125
          %v2257 = vpop.xlane.xlu0 %2256
          %2258 = vmax.xlane.f32.xlu0 %v2128
          %v2259 = vpop.xlane.xlu0 %2258
          %2260 = vmax.xlane.f32.xlu0 %v2166
          %v2261 = vpop.xlane.xlu0 %2260
          %2262 = vmax.xlane.f32.xlu0 %v2169
          %v2263 = vpop.xlane.xlu0 %2262
          %2264 = vmax.xlane.f32.xlu0 %v2174
          %v2265 = vpop.xlane.xlu0 %2264
          %2266 = vmax.xlane.f32.xlu0 %v2177
          %v2267 = vpop.xlane.xlu0 %2266
          %2268 = vmax.xlane.f32.xlu0 %v2182
          %v2269 = vpop.xlane.xlu0 %2268
          %2270 = vmax.xlane.f32.xlu0 %v2185
          %v2271 = vpop.xlane.xlu0 %2270
          %2272 = vmax.xlane.f32.xlu0 %v2190
          %v2273 = vpop.xlane.xlu0 %2272
          %2274 = vmax.xlane.f32.xlu0 %v2193
          %v2275 = vpop.xlane.xlu0 %2274
          %2276 = vmax.xlane.f32.xlu0 %v2198
          %v2277 = vpop.xlane.xlu0 %2276
          %2278 = vmax.xlane.f32.xlu0 %v2201
          %v2279 = vpop.xlane.xlu0 %2278
          %2280 = vmax.xlane.f32.xlu0 %v2206
          %v2281 = vpop.xlane.xlu0 %2280
          %2282 = vmax.xlane.f32.xlu0 %v2209
          %v2283 = vpop.xlane.xlu0 %2282
          %2284 = vmax.xlane.f32.xlu0 %v2214
          %v2285 = vpop.xlane.xlu0 %2284
          %2286 = vmax.xlane.f32.xlu0 %v2217
          %v2287 = vpop.xlane.xlu0 %2286
          %2288 = vmax.xlane.f32.xlu0 %v2222
          %v2289 = vpop.xlane.xlu0 %2288
          %2290 = vmax.xlane.f32.xlu0 %v2225
          %v2291 = vpop.xlane.xlu0 %2290
          %v2292 = vmax.f32 %v1899, %v2229
          %v2293 = vmax.f32 %v1900, %v2231
          %v2294 = vmax.f32 %v1901, %v2233
          %v2295 = vmax.f32 %v1902, %v2235
          %v2296 = vmax.f32 %v1903, %v2237
          %v2297 = vmax.f32 %v1904, %v2239
          %v2298 = vmax.f32 %v1905, %v2241
          %v2299 = vmax.f32 %v1906, %v2243
          %v2300 = vmax.f32 %v1907, %v2245
          %v2301 = vmax.f32 %v1908, %v2247
          %v2302 = vmax.f32 %v1909, %v2249
          %v2303 = vmax.f32 %v1910, %v2251
          %v2304 = vmax.f32 %v1911, %v2253
          %v2305 = vmax.f32 %v1912, %v2255
          %v2306 = vmax.f32 %v1913, %v2257
          %v2307 = vmax.f32 %v1914, %v2259
          %v2308 = vmax.f32 %v1915, %v2261
          %v2309 = vmax.f32 %v1916, %v2263
          %v2310 = vmax.f32 %v1917, %v2265
          %v2311 = vmax.f32 %v1918, %v2267
          %v2312 = vmax.f32 %v1919, %v2269
          %v2313 = vmax.f32 %v1920, %v2271
          %v2314 = vmax.f32 %v1921, %v2273
          %v2315 = vmax.f32 %v1922, %v2275
          %v2316 = vmax.f32 %v1923, %v2277
          %v2317 = vmax.f32 %v1924, %v2279
          %v2318 = vmax.f32 %v1925, %v2281
          %v2319 = vmax.f32 %v1926, %v2283
          %v2320 = vmax.f32 %v1927, %v2285
          %v2321 = vmax.f32 %v1928, %v2287
          %v2322 = vmax.f32 %v1929, %v2289
          %v2323 = vmax.f32 %v1930, %v2291
          %v2324 = vsub.f32 %v1899, %v2292
          %v2325 = vsub.f32 %v1900, %v2293
          %v2326 = vsub.f32 %v1901, %v2294
          %v2327 = vsub.f32 %v1902, %v2295
          %v2328 = vsub.f32 %v1903, %v2296
          %v2329 = vsub.f32 %v1904, %v2297
          %v2330 = vsub.f32 %v1905, %v2298
          %v2331 = vsub.f32 %v1906, %v2299
          %v2332 = vsub.f32 %v1907, %v2300
          %v2333 = vsub.f32 %v1908, %v2301
          %v2334 = vsub.f32 %v1909, %v2302
          %v2335 = vsub.f32 %v1910, %v2303
          %v2336 = vsub.f32 %v1911, %v2304
          %v2337 = vsub.f32 %v1912, %v2305
          %v2338 = vsub.f32 %v1913, %v2306
          %v2339 = vsub.f32 %v1914, %v2307
          %v2340 = vsub.f32 %v1915, %v2308
          %v2341 = vsub.f32 %v1916, %v2309
          %v2342 = vsub.f32 %v1917, %v2310
          %v2343 = vsub.f32 %v1918, %v2311
          %v2344 = vsub.f32 %v1919, %v2312
          %v2345 = vsub.f32 %v1920, %v2313
          %v2346 = vsub.f32 %v1921, %v2314
          %v2347 = vsub.f32 %v1922, %v2315
          %v2348 = vsub.f32 %v1923, %v2316
          %v2349 = vsub.f32 %v1924, %v2317
          %v2350 = vsub.f32 %v1925, %v2318
          %v2351 = vsub.f32 %v1926, %v2319
          %v2352 = vsub.f32 %v1927, %v2320
          %v2353 = vsub.f32 %v1928, %v2321
          %v2354 = vsub.f32 %v1929, %v2322
          %v2355 = vsub.f32 %v1930, %v2323
          %v2356 = vmul.f32 %v2324, 1.442695
          %v2357 = vpow.pop %v2356
          %v2358 = vmul.f32 %v2325, 1.442695
          %v2359 = vpow.pop %v2358
          %v2360 = vmul.f32 %v2326, 1.442695
          %v2361 = vpow.pop %v2360
          %v2362 = vmul.f32 %v2327, 1.442695
          %v2363 = vpow.pop %v2362
          %v2364 = vmul.f32 %v2328, 1.442695
          %v2365 = vpow.pop %v2364
          %v2366 = vmul.f32 %v2329, 1.442695
          %v2367 = vpow.pop %v2366
          %v2368 = vmul.f32 %v2330, 1.442695
          %v2369 = vpow.pop %v2368
          %v2370 = vmul.f32 %v2331, 1.442695
          %v2371 = vpow.pop %v2370
          %v2372 = vmul.f32 %v2332, 1.442695
          %v2373 = vpow.pop %v2372
          %v2374 = vmul.f32 %v2333, 1.442695
          %v2375 = vpow.pop %v2374
          %v2376 = vmul.f32 %v2334, 1.442695
          %v2377 = vpow.pop %v2376
          %v2378 = vmul.f32 %v2335, 1.442695
          %v2379 = vpow.pop %v2378
          %v2380 = vmul.f32 %v2336, 1.442695
          %v2381 = vpow.pop %v2380
          %v2382 = vmul.f32 %v2337, 1.442695
          %v2383 = vpow.pop %v2382
          %v2384 = vmul.f32 %v2338, 1.442695
          %v2385 = vpow.pop %v2384
          %v2386 = vmul.f32 %v2339, 1.442695
          %v2387 = vpow.pop %v2386
          %v2388 = vmul.f32 %v2340, 1.442695
          %v2389 = vpow.pop %v2388
          %v2390 = vmul.f32 %v2341, 1.442695
          %v2391 = vpow.pop %v2390
          %v2392 = vmul.f32 %v2342, 1.442695
          %v2393 = vpow.pop %v2392
          %v2394 = vmul.f32 %v2343, 1.442695
          %v2395 = vpow.pop %v2394
          %v2396 = vmul.f32 %v2344, 1.442695
          %v2397 = vpow.pop %v2396
          %v2398 = vmul.f32 %v2345, 1.442695
          %v2399 = vpow.pop %v2398
          %v2400 = vmul.f32 %v2346, 1.442695
          %v2401 = vpow.pop %v2400
          %v2402 = vmul.f32 %v2347, 1.442695
          %v2403 = vpow.pop %v2402
          %v2404 = vmul.f32 %v2348, 1.442695
          %v2405 = vpow.pop %v2404
          %v2406 = vmul.f32 %v2349, 1.442695
          %v2407 = vpow.pop %v2406
          %v2408 = vmul.f32 %v2350, 1.442695
          %v2409 = vpow.pop %v2408
          %v2410 = vmul.f32 %v2351, 1.442695
          %v2411 = vpow.pop %v2410
          %v2412 = vmul.f32 %v2352, 1.442695
          %v2413 = vpow.pop %v2412
          %v2414 = vmul.f32 %v2353, 1.442695
          %v2415 = vpow.pop %v2414
          %v2416 = vmul.f32 %v2354, 1.442695
          %v2417 = vpow.pop %v2416
          %v2418 = vmul.f32 %v2355, 1.442695
          %v2419 = vpow.pop %v2418
          %v2420 = vsub.f32 %v2069, %v2292
          %v2421 = vsub.f32 %v2072, %v2293
          %v2422 = vsub.f32 %v2077, %v2294
          %v2423 = vsub.f32 %v2080, %v2295
          %v2424 = vsub.f32 %v2085, %v2296
          %v2425 = vsub.f32 %v2088, %v2297
          %v2426 = vsub.f32 %v2093, %v2298
          %v2427 = vsub.f32 %v2096, %v2299
          %v2428 = vsub.f32 %v2101, %v2300
          %v2429 = vsub.f32 %v2104, %v2301
          %v2430 = vsub.f32 %v2109, %v2302
          %v2431 = vsub.f32 %v2112, %v2303
          %v2432 = vsub.f32 %v2117, %v2304
          %v2433 = vsub.f32 %v2120, %v2305
          %v2434 = vsub.f32 %v2125, %v2306
          %v2435 = vsub.f32 %v2128, %v2307
          %v2436 = vsub.f32 %v2166, %v2308
          %v2437 = vsub.f32 %v2169, %v2309
          %v2438 = vsub.f32 %v2174, %v2310
          %v2439 = vsub.f32 %v2177, %v2311
          %v2440 = vsub.f32 %v2182, %v2312
          %v2441 = vsub.f32 %v2185, %v2313
          %v2442 = vsub.f32 %v2190, %v2314
          %v2443 = vsub.f32 %v2193, %v2315
          %v2444 = vsub.f32 %v2198, %v2316
          %v2445 = vsub.f32 %v2201, %v2317
          %v2446 = vsub.f32 %v2206, %v2318
          %v2447 = vsub.f32 %v2209, %v2319
          %v2448 = vsub.f32 %v2214, %v2320
          %v2449 = vsub.f32 %v2217, %v2321
          %v2450 = vsub.f32 %v2222, %v2322
          %v2451 = vsub.f32 %v2225, %v2323
          %v2452 = vmul.f32 %v2420, 1.442695
          %v2453 = vpow.pop %v2452
          %v2454 = vmul.f32 %v2421, 1.442695
          %v2455 = vpow.pop %v2454
          %v2456 = vmul.f32 %v2422, 1.442695
          %v2457 = vpow.pop %v2456
          %v2458 = vmul.f32 %v2423, 1.442695
          %v2459 = vpow.pop %v2458
          %v2460 = vmul.f32 %v2424, 1.442695
          %v2461 = vpow.pop %v2460
          %v2462 = vmul.f32 %v2425, 1.442695
          %v2463 = vpow.pop %v2462
          %v2464 = vmul.f32 %v2426, 1.442695
          %v2465 = vpow.pop %v2464
          %v2466 = vmul.f32 %v2427, 1.442695
          %v2467 = vpow.pop %v2466
          %v2468 = vmul.f32 %v2428, 1.442695
          %v2469 = vpow.pop %v2468
          %v2470 = vmul.f32 %v2429, 1.442695
          %v2471 = vpow.pop %v2470
          %v2472 = vmul.f32 %v2430, 1.442695
          %v2473 = vpow.pop %v2472
          %v2474 = vmul.f32 %v2431, 1.442695
          %v2475 = vpow.pop %v2474
          %v2476 = vmul.f32 %v2432, 1.442695
          %v2477 = vpow.pop %v2476
          %v2478 = vmul.f32 %v2433, 1.442695
          %v2479 = vpow.pop %v2478
          %v2480 = vmul.f32 %v2434, 1.442695
          %v2481 = vpow.pop %v2480
          %v2482 = vmul.f32 %v2435, 1.442695
          %v2483 = vpow.pop %v2482
          %v2484 = vmul.f32 %v2436, 1.442695
          %v2485 = vpow.pop %v2484
          %v2486 = vmul.f32 %v2437, 1.442695
          %v2487 = vpow.pop %v2486
          %v2488 = vmul.f32 %v2438, 1.442695
          %v2489 = vpow.pop %v2488
          %v2490 = vmul.f32 %v2439, 1.442695
          %v2491 = vpow.pop %v2490
          %v2492 = vmul.f32 %v2440, 1.442695
          %v2493 = vpow.pop %v2492
          %v2494 = vmul.f32 %v2441, 1.442695
          %v2495 = vpow.pop %v2494
          %v2496 = vmul.f32 %v2442, 1.442695
          %v2497 = vpow.pop %v2496
          %v2498 = vmul.f32 %v2443, 1.442695
          %v2499 = vpow.pop %v2498
          %v2500 = vmul.f32 %v2444, 1.442695
          %v2501 = vpow.pop %v2500
          %v2502 = vmul.f32 %v2445, 1.442695
          %v2503 = vpow.pop %v2502
          %v2504 = vmul.f32 %v2446, 1.442695
          %v2505 = vpow.pop %v2504
          %v2506 = vmul.f32 %v2447, 1.442695
          %v2507 = vpow.pop %v2506
          %v2508 = vmul.f32 %v2448, 1.442695
          %v2509 = vpow.pop %v2508
          %v2510 = vmul.f32 %v2449, 1.442695
          %v2511 = vpow.pop %v2510
          %v2512 = vmul.f32 %v2450, 1.442695
          %v2513 = vpow.pop %v2512
          %v2514 = vmul.f32 %v2451, 1.442695
          %v2515 = vpow.pop %v2514
          %v2516 = vmul.f32 %v2357, %v1931
          %v2517 = vmul.f32 %v2359, %v1932
          %v2518 = vmul.f32 %v2361, %v1933
          %v2519 = vmul.f32 %v2363, %v1934
          %v2520 = vmul.f32 %v2365, %v1935
          %v2521 = vmul.f32 %v2367, %v1936
          %v2522 = vmul.f32 %v2369, %v1937
          %v2523 = vmul.f32 %v2371, %v1938
          %v2524 = vmul.f32 %v2373, %v1939
          %v2525 = vmul.f32 %v2375, %v1940
          %v2526 = vmul.f32 %v2377, %v1941
          %v2527 = vmul.f32 %v2379, %v1942
          %v2528 = vmul.f32 %v2381, %v1943
          %v2529 = vmul.f32 %v2383, %v1944
          %v2530 = vmul.f32 %v2385, %v1945
          %v2531 = vmul.f32 %v2387, %v1946
          %v2532 = vmul.f32 %v2389, %v1947
          %v2533 = vmul.f32 %v2391, %v1948
          %v2534 = vmul.f32 %v2393, %v1949
          %v2535 = vmul.f32 %v2395, %v1950
          %v2536 = vmul.f32 %v2397, %v1951
          %v2537 = vmul.f32 %v2399, %v1952
          %v2538 = vmul.f32 %v2401, %v1953
          %v2539 = vmul.f32 %v2403, %v1954
          %v2540 = vmul.f32 %v2405, %v1955
          %v2541 = vmul.f32 %v2407, %v1956
          %v2542 = vmul.f32 %v2409, %v1957
          %v2543 = vmul.f32 %v2411, %v1958
          %v2544 = vmul.f32 %v2413, %v1959
          %v2545 = vmul.f32 %v2415, %v1960
          %v2546 = vmul.f32 %v2417, %v1961
          %v2547 = vmul.f32 %v2419, %v1962
          %2548 = vadd.xlane.f32.xlu0 %v2453
          %v2549 = vpop.xlane.xlu0 %2548
          %2550 = vadd.xlane.f32.xlu0 %v2455
          %v2551 = vpop.xlane.xlu0 %2550
          %2552 = vadd.xlane.f32.xlu0 %v2457
          %v2553 = vpop.xlane.xlu0 %2552
          %2554 = vadd.xlane.f32.xlu0 %v2459
          %v2555 = vpop.xlane.xlu0 %2554
          %2556 = vadd.xlane.f32.xlu0 %v2461
          %v2557 = vpop.xlane.xlu0 %2556
          %2558 = vadd.xlane.f32.xlu0 %v2463
          %v2559 = vpop.xlane.xlu0 %2558
          %2560 = vadd.xlane.f32.xlu0 %v2465
          %v2561 = vpop.xlane.xlu0 %2560
          %2562 = vadd.xlane.f32.xlu0 %v2467
          %v2563 = vpop.xlane.xlu0 %2562
          %2564 = vadd.xlane.f32.xlu0 %v2469
          %v2565 = vpop.xlane.xlu0 %2564
          %2566 = vadd.xlane.f32.xlu0 %v2471
          %v2567 = vpop.xlane.xlu0 %2566
          %2568 = vadd.xlane.f32.xlu0 %v2473
          %v2569 = vpop.xlane.xlu0 %2568
          %2570 = vadd.xlane.f32.xlu0 %v2475
          %v2571 = vpop.xlane.xlu0 %2570
          %2572 = vadd.xlane.f32.xlu0 %v2477
          %v2573 = vpop.xlane.xlu0 %2572
          %2574 = vadd.xlane.f32.xlu0 %v2479
          %v2575 = vpop.xlane.xlu0 %2574
          %2576 = vadd.xlane.f32.xlu0 %v2481
          %v2577 = vpop.xlane.xlu0 %2576
          %2578 = vadd.xlane.f32.xlu0 %v2483
          %v2579 = vpop.xlane.xlu0 %2578
          %2580 = vadd.xlane.f32.xlu0 %v2485
          %v2581 = vpop.xlane.xlu0 %2580
          %2582 = vadd.xlane.f32.xlu0 %v2487
          %v2583 = vpop.xlane.xlu0 %2582
          %2584 = vadd.xlane.f32.xlu0 %v2489
          %v2585 = vpop.xlane.xlu0 %2584
          %2586 = vadd.xlane.f32.xlu0 %v2491
          %v2587 = vpop.xlane.xlu0 %2586
          %2588 = vadd.xlane.f32.xlu0 %v2493
          %v2589 = vpop.xlane.xlu0 %2588
          %2590 = vadd.xlane.f32.xlu0 %v2495
          %v2591 = vpop.xlane.xlu0 %2590
          %2592 = vadd.xlane.f32.xlu0 %v2497
          %v2593 = vpop.xlane.xlu0 %2592
          %2594 = vadd.xlane.f32.xlu0 %v2499
          %v2595 = vpop.xlane.xlu0 %2594
          %2596 = vadd.xlane.f32.xlu0 %v2501
          %v2597 = vpop.xlane.xlu0 %2596
          %2598 = vadd.xlane.f32.xlu0 %v2503
          %v2599 = vpop.xlane.xlu0 %2598
          %2600 = vadd.xlane.f32.xlu0 %v2505
          %v2601 = vpop.xlane.xlu0 %2600
          %2602 = vadd.xlane.f32.xlu0 %v2507
          %v2603 = vpop.xlane.xlu0 %2602
          %2604 = vadd.xlane.f32.xlu0 %v2509
          %v2605 = vpop.xlane.xlu0 %2604
          %2606 = vadd.xlane.f32.xlu0 %v2511
          %v2607 = vpop.xlane.xlu0 %2606
          %2608 = vadd.xlane.f32.xlu0 %v2513
          %v2609 = vpop.xlane.xlu0 %2608
          %2610 = vadd.xlane.f32.xlu0 %v2515
          %v2611 = vpop.xlane.xlu0 %2610
          %v2612 = vadd.f32 %v2516, %v2549
          %v2613 = vadd.f32 %v2517, %v2551
          %v2614 = vadd.f32 %v2518, %v2553
          %v2615 = vadd.f32 %v2519, %v2555
          %v2616 = vadd.f32 %v2520, %v2557
          %v2617 = vadd.f32 %v2521, %v2559
          %v2618 = vadd.f32 %v2522, %v2561
          %v2619 = vadd.f32 %v2523, %v2563
          %v2620 = vadd.f32 %v2524, %v2565
          %v2621 = vadd.f32 %v2525, %v2567
          %v2622 = vadd.f32 %v2526, %v2569
          %v2623 = vadd.f32 %v2527, %v2571
          %v2624 = vadd.f32 %v2528, %v2573
          %v2625 = vadd.f32 %v2529, %v2575
          %v2626 = vadd.f32 %v2530, %v2577
          %v2627 = vadd.f32 %v2531, %v2579
          %v2628 = vadd.f32 %v2532, %v2581
          %v2629 = vadd.f32 %v2533, %v2583
          %v2630 = vadd.f32 %v2534, %v2585
          %v2631 = vadd.f32 %v2535, %v2587
          %v2632 = vadd.f32 %v2536, %v2589
          %v2633 = vadd.f32 %v2537, %v2591
          %v2634 = vadd.f32 %v2538, %v2593
          %v2635 = vadd.f32 %v2539, %v2595
          %v2636 = vadd.f32 %v2540, %v2597
          %v2637 = vadd.f32 %v2541, %v2599
          %v2638 = vadd.f32 %v2542, %v2601
          %v2639 = vadd.f32 %v2543, %v2603
          %v2640 = vadd.f32 %v2544, %v2605
          %v2641 = vadd.f32 %v2545, %v2607
          %v2642 = vadd.f32 %v2546, %v2609
          %v2643 = vadd.f32 %v2547, %v2611
          %v2644 = vmul.f32 %v2357, %v1963
          %v2645 = vmul.f32 %v2359, %v1964
          %v2646 = vmul.f32 %v2361, %v1965
          %v2647 = vmul.f32 %v2363, %v1966
          %v2648 = vmul.f32 %v2365, %v1967
          %v2649 = vmul.f32 %v2367, %v1968
          %v2650 = vmul.f32 %v2369, %v1969
          %v2651 = vmul.f32 %v2371, %v1970
          %v2652 = vmul.f32 %v2373, %v1971
          %v2653 = vmul.f32 %v2375, %v1972
          %v2654 = vmul.f32 %v2377, %v1973
          %v2655 = vmul.f32 %v2379, %v1974
          %v2656 = vmul.f32 %v2381, %v1975
          %v2657 = vmul.f32 %v2383, %v1976
          %v2658 = vmul.f32 %v2385, %v1977
          %v2659 = vmul.f32 %v2387, %v1978
          %v2660 = vmul.f32 %v2389, %v1979
          %v2661 = vmul.f32 %v2391, %v1980
          %v2662 = vmul.f32 %v2393, %v1981
          %v2663 = vmul.f32 %v2395, %v1982
          %v2664 = vmul.f32 %v2397, %v1983
          %v2665 = vmul.f32 %v2399, %v1984
          %v2666 = vmul.f32 %v2401, %v1985
          %v2667 = vmul.f32 %v2403, %v1986
          %v2668 = vmul.f32 %v2405, %v1987
          %v2669 = vmul.f32 %v2407, %v1988
          %v2670 = vmul.f32 %v2409, %v1989
          %v2671 = vmul.f32 %v2411, %v1990
          %v2672 = vmul.f32 %v2413, %v1991
          %v2673 = vmul.f32 %v2415, %v1992
          %v2674 = vmul.f32 %v2417, %v1993
          %v2675 = vmul.f32 %v2419, %v1994
          %v2676 = vpack.c.bf16 %v2455, %v2453
          %v2677 = vpack.c.bf16 %v2459, %v2457
          %v2678 = vpack.c.bf16 %v2463, %v2461
          %v2679 = vpack.c.bf16 %v2467, %v2465
          %v2680 = vpack.c.bf16 %v2471, %v2469
          %v2681 = vpack.c.bf16 %v2475, %v2473
          %v2682 = vpack.c.bf16 %v2479, %v2477
          %v2683 = vpack.c.bf16 %v2483, %v2481
          %v2684 = vpack.c.bf16 %v2487, %v2485
          %v2685 = vpack.c.bf16 %v2491, %v2489
          %v2686 = vpack.c.bf16 %v2495, %v2493
          %v2687 = vpack.c.bf16 %v2499, %v2497
          %v2688 = vpack.c.bf16 %v2503, %v2501
          %v2689 = vpack.c.bf16 %v2507, %v2505
          %v2690 = vpack.c.bf16 %v2511, %v2509
          %v2691 = vpack.c.bf16 %v2515, %v2513
          %2692 = vmatprep.subr.bf16.mxu0 0
          %2693 = vmatpush1.bf16.msra.mxu0 %v2018
          %2694 = vmatprep.subr.bf16.mxu0 0
          %2695 = vmatpush1.bf16.msra.mxu0 %v2019
          %2696 = vmatprep.subr.bf16.mxu0 0
          %2697 = vmatpush1.bf16.msra.mxu0 %v2020
          %2698 = vmatprep.subr.bf16.mxu0 0
          %2699 = vmatpush1.bf16.msra.mxu0 %v2021
          %2700 = vmatprep.subr.bf16.mxu0 0
          %2701 = vmatpush1.bf16.msra.mxu0 %v2022
          %2702 = vmatprep.subr.bf16.mxu0 0
          %2703 = vmatpush1.bf16.msra.mxu0 %v2023
          %2704 = vmatprep.subr.bf16.mxu0 0
          %2705 = vmatpush1.bf16.msra.mxu0 %v2024
          %2706 = vmatprep.subr.bf16.mxu0 0
          %2707 = vmatpush1.bf16.msra.mxu0 %v2025
          %2708 = vmatprep.subr.bf16.mxu0 0
          %2709 = vmatpush1.bf16.msra.mxu0 0
          %2710 = vmatprep.subr.bf16.mxu0 0
          %2711 = vmatpush1.bf16.msra.mxu0 0
          %2712 = vmatprep.subr.bf16.mxu0 0
          %2713 = vmatpush1.bf16.msra.mxu0 0
          %2714 = vmatprep.subr.bf16.mxu0 0
          %2715 = vmatpush1.bf16.msra.mxu0 0
          %2716 = vmatprep.subr.bf16.mxu0 0
          %2717 = vmatpush1.bf16.msra.mxu0 0
          %2718 = vmatprep.subr.bf16.mxu0 0
          %2719 = vmatpush1.bf16.msra.mxu0 0
          %2720 = vmatprep.subr.bf16.mxu0 0
          %2721 = vmatpush1.bf16.msra.mxu0 0
          %2722 = vmatprep.subr.bf16.mxu0 0
          %2723 = vmatpush1.bf16.msra.mxu0 0
          %2724 = vmatprep.mubr.bf16.mxu0 0
          %2725 = vmatmul.mubr.bf16.gmra.mrb[0].mxu0 %v2676
          %v2726 = vpop.f32.mrb[0].mxu0
          %v2727 = vadd.f32 0.0, %v2726
          %v2728 = vpop.f32.mrb[0].mxu0
          %v2729 = vpop.f32.mrb[0].mxu0
          %v2730 = vadd.f32 0.0, %v2729
          %v2731 = vpop.f32.mrb[0].mxu0
          %2732 = vmatprep.mubr.bf16.mxu0 0
          %2733 = vmatmul.mubr.bf16.gmra.mrb[0].mxu0 %v2677
          %v2734 = vpop.f32.mrb[0].mxu0
          %v2735 = vadd.f32 0.0, %v2734
          %v2736 = vpop.f32.mrb[0].mxu0
          %v2737 = vpop.f32.mrb[0].mxu0
          %v2738 = vadd.f32 0.0, %v2737
          %v2739 = vpop.f32.mrb[0].mxu0
          %2740 = vmatprep.mubr.bf16.mxu0 0
          %2741 = vmatmul.mubr.bf16.gmra.mrb[0].mxu0 %v2678
          %v2742 = vpop.f32.mrb[0].mxu0
          %v2743 = vadd.f32 0.0, %v2742
          %v2744 = vpop.f32.mrb[0].mxu0
          %v2745 = vpop.f32.mrb[0].mxu0
          %v2746 = vadd.f32 0.0, %v2745
          %v2747 = vpop.f32.mrb[0].mxu0
          %2748 = vmatprep.mubr.bf16.mxu0 0
          %2749 = vmatmul.mubr.bf16.gmra.mrb[0].mxu0 %v2679
          %v2750 = vpop.f32.mrb[0].mxu0
          %v2751 = vadd.f32 0.0, %v2750
          %v2752 = vpop.f32.mrb[0].mxu0
          %v2753 = vpop.f32.mrb[0].mxu0
          %v2754 = vadd.f32 0.0, %v2753
          %v2755 = vpop.f32.mrb[0].mxu0
          %2756 = vmatprep.mubr.bf16.mxu0 0
          %2757 = vmatmul.mubr.bf16.gmra.mrb[0].mxu0 %v2680
          %v2758 = vpop.f32.mrb[0].mxu0
          %v2759 = vadd.f32 0.0, %v2758
          %v2760 = vpop.f32.mrb[0].mxu0
          %v2761 = vpop.f32.mrb[0].mxu0
          %v2762 = vadd.f32 0.0, %v2761
          %v2763 = vpop.f32.mrb[0].mxu0
          %2764 = vmatprep.mubr.bf16.mxu0 0
          %2765 = vmatmul.mubr.bf16.gmra.mrb[0].mxu0 %v2681
          %v2766 = vpop.f32.mrb[0].mxu0
          %v2767 = vadd.f32 0.0, %v2766
          %v2768 = vpop.f32.mrb[0].mxu0
          %v2769 = vpop.f32.mrb[0].mxu0
          %v2770 = vadd.f32 0.0, %v2769
          %v2771 = vpop.f32.mrb[0].mxu0
          %2772 = vmatprep.mubr.bf16.mxu0 0
          %2773 = vmatmul.mubr.bf16.gmra.mrb[0].mxu0 %v2682
          %v2774 = vpop.f32.mrb[0].mxu0
          %v2775 = vadd.f32 0.0, %v2774
          %v2776 = vpop.f32.mrb[0].mxu0
          %v2777 = vpop.f32.mrb[0].mxu0
          %v2778 = vadd.f32 0.0, %v2777
          %v2779 = vpop.f32.mrb[0].mxu0
          %2780 = vmatprep.mubr.bf16.mxu0 0
          %2781 = vmatmul.mubr.bf16.gmra.mrb[0].mxu0 %v2683
          %v2782 = vpop.f32.mrb[0].mxu0
          %v2783 = vadd.f32 0.0, %v2782
          %v2784 = vpop.f32.mrb[0].mxu0
          %v2785 = vpop.f32.mrb[0].mxu0
          %v2786 = vadd.f32 0.0, %v2785
          %v2787 = vpop.f32.mrb[0].mxu0
          %2788 = vdwg.mxu0
          %2789 = vmatprep.subr.bf16.mxu0 0
          %2790 = vmatpush1.bf16.msra.mxu0 %v2026
          %2791 = vmatprep.subr.bf16.mxu0 0
          %2792 = vmatpush1.bf16.msra.mxu0 %v2027
          %2793 = vmatprep.subr.bf16.mxu0 0
          %2794 = vmatpush1.bf16.msra.mxu0 %v2028
          %2795 = vmatprep.subr.bf16.mxu0 0
          %2796 = vmatpush1.bf16.msra.mxu0 %v2029
          %2797 = vmatprep.subr.bf16.mxu0 0
          %2798 = vmatpush1.bf16.msra.mxu0 %v2030
          %2799 = vmatprep.subr.bf16.mxu0 0
          %2800 = vmatpush1.bf16.msra.mxu0 %v2031
          %2801 = vmatprep.subr.bf16.mxu0 0
          %2802 = vmatpush1.bf16.msra.mxu0 %v2032
          %2803 = vmatprep.subr.bf16.mxu0 0
          %2804 = vmatpush1.bf16.msra.mxu0 %v2033
          %2805 = vmatprep.subr.bf16.mxu0 0
          %2806 = vmatpush1.bf16.msra.mxu0 0
          %2807 = vmatprep.subr.bf16.mxu0 0
          %2808 = vmatpush1.bf16.msra.mxu0 0
          %2809 = vmatprep.subr.bf16.mxu0 0
          %2810 = vmatpush1.bf16.msra.mxu0 0
          %2811 = vmatprep.subr.bf16.mxu0 0
          %2812 = vmatpush1.bf16.msra.mxu0 0
          %2813 = vmatprep.subr.bf16.mxu0 0
          %2814 = vmatpush1.bf16.msra.mxu0 0
          %2815 = vmatprep.subr.bf16.mxu0 0
          %2816 = vmatpush1.bf16.msra.mxu0 0
          %2817 = vmatprep.subr.bf16.mxu0 0
          %2818 = vmatpush1.bf16.msra.mxu0 0
          %2819 = vmatprep.subr.bf16.mxu0 0
          %2820 = vmatpush1.bf16.msra.mxu0 0
          %2821 = vmatprep.mubr.bf16.mxu0 0
          %2822 = vmatmul.mubr.bf16.gmra.mrb[0].mxu0 %v2684
          %v2823 = vpop.f32.mrb[0].mxu0
          %v2824 = vadd.f32 0.0, %v2823
          %v2825 = vpop.f32.mrb[0].mxu0
          %v2826 = vpop.f32.mrb[0].mxu0
          %v2827 = vadd.f32 0.0, %v2826
          %v2828 = vpop.f32.mrb[0].mxu0
          %2829 = vmatprep.mubr.bf16.mxu0 0
          %2830 = vmatmul.mubr.bf16.gmra.mrb[0].mxu0 %v2685
          %v2831 = vpop.f32.mrb[0].mxu0
          %v2832 = vadd.f32 0.0, %v2831
          %v2833 = vpop.f32.mrb[0].mxu0
          %v2834 = vpop.f32.mrb[0].mxu0
          %v2835 = vadd.f32 0.0, %v2834
          %v2836 = vpop.f32.mrb[0].mxu0
          %2837 = vmatprep.mubr.bf16.mxu0 0
          %2838 = vmatmul.mubr.bf16.gmra.mrb[0].mxu0 %v2686
          %v2839 = vpop.f32.mrb[0].mxu0
          %v2840 = vadd.f32 0.0, %v2839
          %v2841 = vpop.f32.mrb[0].mxu0
          %v2842 = vpop.f32.mrb[0].mxu0
          %v2843 = vadd.f32 0.0, %v2842
          %v2844 = vpop.f32.mrb[0].mxu0
          %2845 = vmatprep.mubr.bf16.mxu0 0
          %2846 = vmatmul.mubr.bf16.gmra.mrb[0].mxu0 %v2687
          %v2847 = vpop.f32.mrb[0].mxu0
          %v2848 = vadd.f32 0.0, %v2847
          %v2849 = vpop.f32.mrb[0].mxu0
          %v2850 = vpop.f32.mrb[0].mxu0
          %v2851 = vadd.f32 0.0, %v2850
          %v2852 = vpop.f32.mrb[0].mxu0
          %2853 = vmatprep.mubr.bf16.mxu0 0
          %2854 = vmatmul.mubr.bf16.gmra.mrb[0].mxu0 %v2688
          %v2855 = vpop.f32.mrb[0].mxu0
          %v2856 = vadd.f32 0.0, %v2855
          %v2857 = vpop.f32.mrb[0].mxu0
          %v2858 = vpop.f32.mrb[0].mxu0
          %v2859 = vadd.f32 0.0, %v2858
          %v2860 = vpop.f32.mrb[0].mxu0
          %2861 = vmatprep.mubr.bf16.mxu0 0
          %2862 = vmatmul.mubr.bf16.gmra.mrb[0].mxu0 %v2689
          %v2863 = vpop.f32.mrb[0].mxu0
          %v2864 = vadd.f32 0.0, %v2863
          %v2865 = vpop.f32.mrb[0].mxu0
          %v2866 = vpop.f32.mrb[0].mxu0
          %v2867 = vadd.f32 0.0, %v2866
          %v2868 = vpop.f32.mrb[0].mxu0
          %2869 = vmatprep.mubr.bf16.mxu0 0
          %2870 = vmatmul.mubr.bf16.gmra.mrb[0].mxu0 %v2690
          %v2871 = vpop.f32.mrb[0].mxu0
          %v2872 = vadd.f32 0.0, %v2871
          %v2873 = vpop.f32.mrb[0].mxu0
          %v2874 = vpop.f32.mrb[0].mxu0
          %v2875 = vadd.f32 0.0, %v2874
          %v2876 = vpop.f32.mrb[0].mxu0
          %2877 = vmatprep.mubr.bf16.mxu0 0
          %2878 = vmatmul.mubr.bf16.gmra.mrb[0].mxu0 %v2691
          %v2879 = vpop.f32.mrb[0].mxu0
          %v2880 = vadd.f32 0.0, %v2879
          %v2881 = vpop.f32.mrb[0].mxu0
          %v2882 = vpop.f32.mrb[0].mxu0
          %v2883 = vadd.f32 0.0, %v2882
          %v2884 = vpop.f32.mrb[0].mxu0
          %2885 = vdwg.mxu0
          %v2886 = vadd.f32 %v2644, %v2727
          %v2887 = vadd.f32 %v2645, %v2730
          %v2888 = vadd.f32 %v2646, %v2735
          %v2889 = vadd.f32 %v2647, %v2738
          %v2890 = vadd.f32 %v2648, %v2743
          %v2891 = vadd.f32 %v2649, %v2746
          %v2892 = vadd.f32 %v2650, %v2751
          %v2893 = vadd.f32 %v2651, %v2754
          %v2894 = vadd.f32 %v2652, %v2759
          %v2895 = vadd.f32 %v2653, %v2762
          %v2896 = vadd.f32 %v2654, %v2767
          %v2897 = vadd.f32 %v2655, %v2770
          %v2898 = vadd.f32 %v2656, %v2775
          %v2899 = vadd.f32 %v2657, %v2778
          %v2900 = vadd.f32 %v2658, %v2783
          %v2901 = vadd.f32 %v2659, %v2786
          %v2902 = vadd.f32 %v2660, %v2824
          %v2903 = vadd.f32 %v2661, %v2827
          %v2904 = vadd.f32 %v2662, %v2832
          %v2905 = vadd.f32 %v2663, %v2835
          %v2906 = vadd.f32 %v2664, %v2840
          %v2907 = vadd.f32 %v2665, %v2843
          %v2908 = vadd.f32 %v2666, %v2848
          %v2909 = vadd.f32 %v2667, %v2851
          %v2910 = vadd.f32 %v2668, %v2856
          %v2911 = vadd.f32 %v2669, %v2859
          %v2912 = vadd.f32 %v2670, %v2864
          %v2913 = vadd.f32 %v2671, %v2867
          %v2914 = vadd.f32 %v2672, %v2872
          %v2915 = vadd.f32 %v2673, %v2875
          %v2916 = vadd.f32 %v2674, %v2880
          %v2917 = vadd.f32 %v2675, %v2883
        $region73: #{tpu_custom_call.1} parent=43 // loop_footer
          %s1898 = sadd.s32 1, %s1894
        $region74: #{tpu_custom_call.1} parent=43 // loop_footer_branch
          %1893 = sbr.rel target = $region70
        $region75: #{tpu_custom_call.1} parent=43 // loop_exit
          _
        %v2918 = vrcp.pop %v1931
        %v2919 = vrcp.pop %v1932
        %v2920 = vrcp.pop %v1933
        %v2921 = vrcp.pop %v1934
        %v2922 = vrcp.pop %v1935
        %v2923 = vrcp.pop %v1936
        %v2924 = vrcp.pop %v1937
        %v2925 = vrcp.pop %v1938
        %v2926 = vrcp.pop %v1939
        %v2927 = vrcp.pop %v1940
        %v2928 = vrcp.pop %v1941
        %v2929 = vrcp.pop %v1942
        %v2930 = vrcp.pop %v1943
        %v2931 = vrcp.pop %v1944
        %v2932 = vrcp.pop %v1945
        %v2933 = vrcp.pop %v1946
        %v2934 = vrcp.pop %v1947
        %v2935 = vrcp.pop %v1948
        %v2936 = vrcp.pop %v1949
        %v2937 = vrcp.pop %v1950
        %v2938 = vrcp.pop %v1951
        %v2939 = vrcp.pop %v1952
        %v2940 = vrcp.pop %v1953
        %v2941 = vrcp.pop %v1954
        %v2942 = vrcp.pop %v1955
        %v2943 = vrcp.pop %v1956
        %v2944 = vrcp.pop %v1957
        %v2945 = vrcp.pop %v1958
        %v2946 = vrcp.pop %v1959
        %v2947 = vrcp.pop %v1960
        %v2948 = vrcp.pop %v1961
        %v2949 = vrcp.pop %v1962
        %v2950 = vmul.f32 %v1963, %v2918
        %v2951 = vmul.f32 %v1964, %v2919
        %v2952 = vmul.f32 %v1965, %v2920
        %v2953 = vmul.f32 %v1966, %v2921
        %v2954 = vmul.f32 %v1967, %v2922
        %v2955 = vmul.f32 %v1968, %v2923
        %v2956 = vmul.f32 %v1969, %v2924
        %v2957 = vmul.f32 %v1970, %v2925
        %v2958 = vmul.f32 %v1971, %v2926
        %v2959 = vmul.f32 %v1972, %v2927
        %v2960 = vmul.f32 %v1973, %v2928
        %v2961 = vmul.f32 %v1974, %v2929
        %v2962 = vmul.f32 %v1975, %v2930
        %v2963 = vmul.f32 %v1976, %v2931
        %v2964 = vmul.f32 %v1977, %v2932
        %v2965 = vmul.f32 %v1978, %v2933
        %v2966 = vmul.f32 %v1979, %v2934
        %v2967 = vmul.f32 %v1980, %v2935
        %v2968 = vmul.f32 %v1981, %v2936
        %v2969 = vmul.f32 %v1982, %v2937
        %v2970 = vmul.f32 %v1983, %v2938
        %v2971 = vmul.f32 %v1984, %v2939
        %v2972 = vmul.f32 %v1985, %v2940
        %v2973 = vmul.f32 %v1986, %v2941
        %v2974 = vmul.f32 %v1987, %v2942
        %v2975 = vmul.f32 %v1988, %v2943
        %v2976 = vmul.f32 %v1989, %v2944
        %v2977 = vmul.f32 %v1990, %v2945
        %v2978 = vmul.f32 %v1991, %v2946
        %v2979 = vmul.f32 %v1992, %v2947
        %v2980 = vmul.f32 %v1993, %v2948
        %v2981 = vmul.f32 %v1994, %v2949
        %v2982 = vpack.c.bf16 %v2951, %v2950
        %v2983 = vpack.c.bf16 %v2953, %v2952
        %v2984 = vpack.c.bf16 %v2955, %v2954
        %v2985 = vpack.c.bf16 %v2957, %v2956
        %v2986 = vpack.c.bf16 %v2959, %v2958
        %v2987 = vpack.c.bf16 %v2961, %v2960
        %v2988 = vpack.c.bf16 %v2963, %v2962
        %v2989 = vpack.c.bf16 %v2965, %v2964
        %v2990 = vpack.c.bf16 %v2967, %v2966
        %v2991 = vpack.c.bf16 %v2969, %v2968
        %v2992 = vpack.c.bf16 %v2971, %v2970
        %v2993 = vpack.c.bf16 %v2973, %v2972
        %v2994 = vpack.c.bf16 %v2975, %v2974
        %v2995 = vpack.c.bf16 %v2977, %v2976
        %v2996 = vpack.c.bf16 %v2979, %v2978
        %v2997 = vpack.c.bf16 %v2981, %v2980
        %v2998 = vld [vmem:[#allocation12] sm:$0xff]
        %v2999 = vld [vmem:[#allocation12 + $0x8] sm:$0xff]
        %v3000 = vld [vmem:[#allocation12 + $0x10] sm:$0xff]
        %v3001 = vld [vmem:[#allocation12 + $0x18] sm:$0xff]
        %v3002 = vld [vmem:[#allocation12 + $0x20] sm:$0xff]
        %v3003 = vld [vmem:[#allocation12 + $0x28] sm:$0xff]
        %v3004 = vld [vmem:[#allocation12 + $0x30] sm:$0xff]
        %v3005 = vld [vmem:[#allocation12 + $0x38] sm:$0xff]
        %v3006 = vld [vmem:[#allocation12 + $0x40] sm:$0xff]
        %v3007 = vld [vmem:[#allocation12 + $0x48] sm:$0xff]
        %v3008 = vld [vmem:[#allocation12 + $0x50] sm:$0xff]
        %v3009 = vld [vmem:[#allocation12 + $0x58] sm:$0xff]
        %v3010 = vld [vmem:[#allocation12 + $0x60] sm:$0xff]
        %v3011 = vld [vmem:[#allocation12 + $0x68] sm:$0xff]
        %v3012 = vld [vmem:[#allocation12 + $0x70] sm:$0xff]
        %v3013 = vld [vmem:[#allocation12 + $0x78] sm:$0xff]
        %v3014 = vld [vmem:[#allocation12 + $0x80] sm:$0xff]
        %v3015 = vld [vmem:[#allocation12 + $0x88] sm:$0xff]
        %v3016 = vld [vmem:[#allocation12 + $0x90] sm:$0xff]
        %v3017 = vld [vmem:[#allocation12 + $0x98] sm:$0xff]
        %v3018 = vld [vmem:[#allocation12 + $0xa0] sm:$0xff]
        %v3019 = vld [vmem:[#allocation12 + $0xa8] sm:$0xff]
        %v3020 = vld [vmem:[#allocation12 + $0xb0] sm:$0xff]
        %v3021 = vld [vmem:[#allocation12 + $0xb8] sm:$0xff]
        %v3022 = vld [vmem:[#allocation12 + $0xc0] sm:$0xff]
        %v3023 = vld [vmem:[#allocation12 + $0xc8] sm:$0xff]
        %v3024 = vld [vmem:[#allocation12 + $0xd0] sm:$0xff]
        %v3025 = vld [vmem:[#allocation12 + $0xd8] sm:$0xff]
        %v3026 = vld [vmem:[#allocation12 + $0xe0] sm:$0xff]
        %v3027 = vld [vmem:[#allocation12 + $0xe8] sm:$0xff]
        %v3028 = vld [vmem:[#allocation12 + $0xf0] sm:$0xff]
        %v3029 = vld [vmem:[#allocation12 + $0xf8] sm:$0xff]
        %v3030 = vld [vmem:[%s5] sm:$0x3]
        %v3032 = vlaneseq
        %v3033 = vshrl.u32 %v3032, 7
        %v3034 = vsub.s32 0, %v3033
        %v3035 = vrot.slane %v3030, %v3034
        %v3036 = vlaneseq
        %v3037 = vshrl.u32 %v3036, 7
        %v3038 = vsub.s32 1, %v3037
        %v3039 = vrot.slane %v3030, %v3038
        %v3074 = vunpack.c.l.b16 %v2998
        %v3075 = vunpack.c.h.b16 %v2998
        %v3076 = vunpack.c.l.b16 %v2999
        %v3077 = vunpack.c.h.b16 %v2999
        %v3078 = vunpack.c.l.b16 %v3000
        %v3079 = vunpack.c.h.b16 %v3000
        %v3080 = vunpack.c.l.b16 %v3001
        %v3081 = vunpack.c.h.b16 %v3001
        %v3082 = vunpack.c.l.b16 %v3002
        %v3083 = vunpack.c.h.b16 %v3002
        %v3084 = vunpack.c.l.b16 %v3003
        %v3085 = vunpack.c.h.b16 %v3003
        %v3086 = vunpack.c.l.b16 %v3004
        %v3087 = vunpack.c.h.b16 %v3004
        %v3088 = vunpack.c.l.b16 %v3005
        %v3089 = vunpack.c.h.b16 %v3005
        %v3090 = vunpack.c.l.b16 %v3006
        %v3091 = vunpack.c.h.b16 %v3006
        %v3092 = vunpack.c.l.b16 %v3007
        %v3093 = vunpack.c.h.b16 %v3007
        %v3094 = vunpack.c.l.b16 %v3008
        %v3095 = vunpack.c.h.b16 %v3008
        %v3096 = vunpack.c.l.b16 %v3009
        %v3097 = vunpack.c.h.b16 %v3009
        %v3098 = vunpack.c.l.b16 %v3010
        %v3099 = vunpack.c.h.b16 %v3010
        %v3100 = vunpack.c.l.b16 %v3011
        %v3101 = vunpack.c.h.b16 %v3011
        %v3102 = vunpack.c.l.b16 %v3012
        %v3103 = vunpack.c.h.b16 %v3012
        %v3104 = vunpack.c.l.b16 %v3013
        %v3105 = vunpack.c.h.b16 %v3013
        %v3106 = vunpack.c.l.b16 %v3014
        %v3107 = vunpack.c.h.b16 %v3014
        %v3108 = vunpack.c.l.b16 %v3015
        %v3109 = vunpack.c.h.b16 %v3015
        %v3110 = vunpack.c.l.b16 %v3016
        %v3111 = vunpack.c.h.b16 %v3016
        %v3112 = vunpack.c.l.b16 %v3017
        %v3113 = vunpack.c.h.b16 %v3017
        %v3114 = vunpack.c.l.b16 %v3018
        %v3115 = vunpack.c.h.b16 %v3018
        %v3116 = vunpack.c.l.b16 %v3019
        %v3117 = vunpack.c.h.b16 %v3019
        %v3118 = vunpack.c.l.b16 %v3020
        %v3119 = vunpack.c.h.b16 %v3020
        %v3120 = vunpack.c.l.b16 %v3021
        %v3121 = vunpack.c.h.b16 %v3021
        %v3122 = vunpack.c.l.b16 %v3022
        %v3123 = vunpack.c.h.b16 %v3022
        %v3124 = vunpack.c.l.b16 %v3023
        %v3125 = vunpack.c.h.b16 %v3023
        %v3126 = vunpack.c.l.b16 %v3024
        %v3127 = vunpack.c.h.b16 %v3024
        %v3128 = vunpack.c.l.b16 %v3025
        %v3129 = vunpack.c.h.b16 %v3025
        %v3130 = vunpack.c.l.b16 %v3026
        %v3131 = vunpack.c.h.b16 %v3026
        %v3132 = vunpack.c.l.b16 %v3027
        %v3133 = vunpack.c.h.b16 %v3027
        %v3134 = vunpack.c.l.b16 %v3028
        %v3135 = vunpack.c.h.b16 %v3028
        %v3136 = vunpack.c.l.b16 %v3029
        %v3137 = vunpack.c.h.b16 %v3029
        %v3138 = vpack.c.b16 %v3076, %v3074
        %v3139 = vpack.c.b16 %v3077, %v3075
        %v3140 = vpack.c.b16 %v3080, %v3078
        %v3141 = vpack.c.b16 %v3081, %v3079
        %v3142 = vpack.c.b16 %v3084, %v3082
        %v3143 = vpack.c.b16 %v3085, %v3083
        %v3144 = vpack.c.b16 %v3088, %v3086
        %v3145 = vpack.c.b16 %v3089, %v3087
        %v3146 = vpack.c.b16 %v3092, %v3090
        %v3147 = vpack.c.b16 %v3093, %v3091
        %v3148 = vpack.c.b16 %v3096, %v3094
        %v3149 = vpack.c.b16 %v3097, %v3095
        %v3150 = vpack.c.b16 %v3100, %v3098
        %v3151 = vpack.c.b16 %v3101, %v3099
        %v3152 = vpack.c.b16 %v3104, %v3102
        %v3153 = vpack.c.b16 %v3105, %v3103
        %v3154 = vpack.c.b16 %v3108, %v3106
        %v3155 = vpack.c.b16 %v3109, %v3107
        %v3156 = vpack.c.b16 %v3112, %v3110
        %v3157 = vpack.c.b16 %v3113, %v3111
        %v3158 = vpack.c.b16 %v3116, %v3114
        %v3159 = vpack.c.b16 %v3117, %v3115
        %v3160 = vpack.c.b16 %v3120, %v3118
        %v3161 = vpack.c.b16 %v3121, %v3119
        %v3162 = vpack.c.b16 %v3124, %v3122
        %v3163 = vpack.c.b16 %v3125, %v3123
        %v3164 = vpack.c.b16 %v3128, %v3126
        %v3165 = vpack.c.b16 %v3129, %v3127
        %v3166 = vpack.c.b16 %v3132, %v3130
        %v3167 = vpack.c.b16 %v3133, %v3131
        %v3168 = vpack.c.b16 %v3136, %v3134
        %v3169 = vpack.c.b16 %v3137, %v3135
        %3202 = vmatprep.subr.bf16.mxu0 %v3139
        %3203 = vmatpush1.bf16.msra.mxu0 %v3138
        %3204 = vmatprep.subr.bf16.mxu0 %v3141
        %3205 = vmatpush1.bf16.msra.mxu0 %v3140
        %3206 = vmatprep.subr.bf16.mxu0 %v3143
        %3207 = vmatpush1.bf16.msra.mxu0 %v3142
        %3208 = vmatprep.subr.bf16.mxu0 %v3145
        %3209 = vmatpush1.bf16.msra.mxu0 %v3144
        %3210 = vmatprep.subr.bf16.mxu0 %v3147
        %3211 = vmatpush1.bf16.msra.mxu0 %v3146
        %3212 = vmatprep.subr.bf16.mxu0 %v3149
        %3213 = vmatpush1.bf16.msra.mxu0 %v3148
        %3214 = vmatprep.subr.bf16.mxu0 %v3151
        %3215 = vmatpush1.bf16.msra.mxu0 %v3150
        %3216 = vmatprep.subr.bf16.mxu0 %v3153
        %3217 = vmatpush1.bf16.msra.mxu0 %v3152
        %3218 = vmatprep.subr.bf16.mxu0 %v3155
        %3219 = vmatpush1.bf16.msra.mxu0 %v3154
        %3220 = vmatprep.subr.bf16.mxu0 %v3157
        %3221 = vmatpush1.bf16.msra.mxu0 %v3156
        %3222 = vmatprep.subr.bf16.mxu0 %v3159
        %3223 = vmatpush1.bf16.msra.mxu0 %v3158
        %3224 = vmatprep.subr.bf16.mxu0 %v3161
        %3225 = vmatpush1.bf16.msra.mxu0 %v3160
        %3226 = vmatprep.subr.bf16.mxu0 %v3163
        %3227 = vmatpush1.bf16.msra.mxu0 %v3162
        %3228 = vmatprep.subr.bf16.mxu0 %v3165
        %3229 = vmatpush1.bf16.msra.mxu0 %v3164
        %3230 = vmatprep.subr.bf16.mxu0 %v3167
        %3231 = vmatpush1.bf16.msra.mxu0 %v3166
        %3232 = vmatprep.subr.bf16.mxu0 %v3169
        %3233 = vmatpush1.bf16.msra.mxu0 %v3168
        %3234 = vmatprep.mubr.bf16.mxu0 %v2990
        %3235 = vmatmul.mubr.bf16.gmra.mrb[0].mxu0 %v2982
        %v3236 = vpop.f32.mrb[0].mxu0
        %v3237 = vadd.f32 %v3035, %v3236
        %v3238 = vpop.f32.mrb[0].mxu0
        %v3239 = vadd.f32 %v3039, %v3238
        %v3240 = vpop.f32.mrb[0].mxu0
        %v3241 = vadd.f32 %v3035, %v3240
        %v3242 = vpop.f32.mrb[0].mxu0
        %v3243 = vadd.f32 %v3039, %v3242
        %3244 = vmatprep.mubr.bf16.mxu0 %v2991
        %3245 = vmatmul.mubr.bf16.gmra.mrb[0].mxu0 %v2983
        %v3246 = vpop.f32.mrb[0].mxu0
        %v3247 = vadd.f32 %v3035, %v3246
        %v3248 = vpop.f32.mrb[0].mxu0
        %v3249 = vadd.f32 %v3039, %v3248
        %v3250 = vpop.f32.mrb[0].mxu0
        %v3251 = vadd.f32 %v3035, %v3250
        %v3252 = vpop.f32.mrb[0].mxu0
        %v3253 = vadd.f32 %v3039, %v3252
        %3254 = vmatprep.mubr.bf16.mxu0 %v2992
        %3255 = vmatmul.mubr.bf16.gmra.mrb[0].mxu0 %v2984
        %v3256 = vpop.f32.mrb[0].mxu0
        %v3257 = vadd.f32 %v3035, %v3256
        %v3258 = vpop.f32.mrb[0].mxu0
        %v3259 = vadd.f32 %v3039, %v3258
        %v3260 = vpop.f32.mrb[0].mxu0
        %v3261 = vadd.f32 %v3035, %v3260
        %v3262 = vpop.f32.mrb[0].mxu0
        %v3263 = vadd.f32 %v3039, %v3262
        %3264 = vmatprep.mubr.bf16.mxu0 %v2993
        %3265 = vmatmul.mubr.bf16.gmra.mrb[0].mxu0 %v2985
        %v3266 = vpop.f32.mrb[0].mxu0
        %v3267 = vadd.f32 %v3035, %v3266
        %v3268 = vpop.f32.mrb[0].mxu0
        %v3269 = vadd.f32 %v3039, %v3268
        %v3270 = vpop.f32.mrb[0].mxu0
        %v3271 = vadd.f32 %v3035, %v3270
        %v3272 = vpop.f32.mrb[0].mxu0
        %v3273 = vadd.f32 %v3039, %v3272
        %3274 = vmatprep.mubr.bf16.mxu0 %v2994
        %3275 = vmatmul.mubr.bf16.gmra.mrb[0].mxu0 %v2986
        %v3276 = vpop.f32.mrb[0].mxu0
        %v3277 = vadd.f32 %v3035, %v3276
        %v3278 = vpop.f32.mrb[0].mxu0
        %v3279 = vadd.f32 %v3039, %v3278
        %v3280 = vpop.f32.mrb[0].mxu0
        %v3281 = vadd.f32 %v3035, %v3280
        %v3282 = vpop.f32.mrb[0].mxu0
        %v3283 = vadd.f32 %v3039, %v3282
        %3284 = vmatprep.mubr.bf16.mxu0 %v2995
        %3285 = vmatmul.mubr.bf16.gmra.mrb[0].mxu0 %v2987
        %v3286 = vpop.f32.mrb[0].mxu0
        %v3287 = vadd.f32 %v3035, %v3286
        %v3288 = vpop.f32.mrb[0].mxu0
        %v3289 = vadd.f32 %v3039, %v3288
        %v3290 = vpop.f32.mrb[0].mxu0
        %v3291 = vadd.f32 %v3035, %v3290
        %v3292 = vpop.f32.mrb[0].mxu0
        %v3293 = vadd.f32 %v3039, %v3292
        %3294 = vmatprep.mubr.bf16.mxu0 %v2996
        %3295 = vmatmul.mubr.bf16.gmra.mrb[0].mxu0 %v2988
        %v3296 = vpop.f32.mrb[0].mxu0
        %v3297 = vadd.f32 %v3035, %v3296
        %v3298 = vpop.f32.mrb[0].mxu0
        %v3299 = vadd.f32 %v3039, %v3298
        %v3300 = vpop.f32.mrb[0].mxu0
        %v3301 = vadd.f32 %v3035, %v3300
        %v3302 = vpop.f32.mrb[0].mxu0
        %v3303 = vadd.f32 %v3039, %v3302
        %3304 = vmatprep.mubr.bf16.mxu0 %v2997
        %3305 = vmatmul.mubr.bf16.gmra.mrb[0].mxu0 %v2989
        %v3306 = vpop.f32.mrb[0].mxu0
        %v3307 = vadd.f32 %v3035, %v3306
        %v3308 = vpop.f32.mrb[0].mxu0
        %v3309 = vadd.f32 %v3039, %v3308
        %v3310 = vpop.f32.mrb[0].mxu0
        %v3311 = vadd.f32 %v3035, %v3310
        %v3312 = vpop.f32.mrb[0].mxu0
        %v3313 = vadd.f32 %v3039, %v3312
        %3314 = vdwg.mxu0
        %3315 = vst [vmem:[%s341] sm:$0xff] %v3237
        %3316 = vst [vmem:[%s341 + $0x8] sm:$0xff] %v3239
        %3317 = vst [vmem:[%s341 + $0x10] sm:$0xff] %v3241
        %3318 = vst [vmem:[%s341 + $0x18] sm:$0xff] %v3243
        %3319 = vst [vmem:[%s341 + $0x20] sm:$0xff] %v3247
        %3320 = vst [vmem:[%s341 + $0x28] sm:$0xff] %v3249
        %3321 = vst [vmem:[%s341 + $0x30] sm:$0xff] %v3251
        %3322 = vst [vmem:[%s341 + $0x38] sm:$0xff] %v3253
        %3323 = vst [vmem:[%s341 + $0x40] sm:$0xff] %v3257
        %3324 = vst [vmem:[%s341 + $0x48] sm:$0xff] %v3259
        %3325 = vst [vmem:[%s341 + $0x50] sm:$0xff] %v3261
        %3326 = vst [vmem:[%s341 + $0x58] sm:$0xff] %v3263
        %3327 = vst [vmem:[%s341 + $0x60] sm:$0xff] %v3267
        %3328 = vst [vmem:[%s341 + $0x68] sm:$0xff] %v3269
        %3329 = vst [vmem:[%s341 + $0x70] sm:$0xff] %v3271
        %3330 = vst [vmem:[%s341 + $0x78] sm:$0xff] %v3273
        %3331 = vst [vmem:[%s341 + $0x80] sm:$0xff] %v3277
        %3332 = vst [vmem:[%s341 + $0x88] sm:$0xff] %v3279
        %3333 = vst [vmem:[%s341 + $0x90] sm:$0xff] %v3281
        %3334 = vst [vmem:[%s341 + $0x98] sm:$0xff] %v3283
        %3335 = vst [vmem:[%s341 + $0xa0] sm:$0xff] %v3287
        %3336 = vst [vmem:[%s341 + $0xa8] sm:$0xff] %v3289
        %3337 = vst [vmem:[%s341 + $0xb0] sm:$0xff] %v3291
        %3338 = vst [vmem:[%s341 + $0xb8] sm:$0xff] %v3293
        %3339 = vst [vmem:[%s341 + $0xc0] sm:$0xff] %v3297
        %3340 = vst [vmem:[%s341 + $0xc8] sm:$0xff] %v3299
        %3341 = vst [vmem:[%s341 + $0xd0] sm:$0xff] %v3301
        %3342 = vst [vmem:[%s341 + $0xd8] sm:$0xff] %v3303
        %3343 = vst [vmem:[%s341 + $0xe0] sm:$0xff] %v3307
        %3344 = vst [vmem:[%s341 + $0xe8] sm:$0xff] %v3309
        %3345 = vst [vmem:[%s341 + $0xf0] sm:$0xff] %v3311
        %3346 = vst [vmem:[%s341 + $0xf8] sm:$0xff] %v3313
        %s3347 = sand.u32 %s178, 1
        %s3348 = scalar_lea.sflag [#allocation6], %s3347
        %s3349 = sand.u32 %s178, 1
        %s3350 = smul.addr %s3349, 256
        %s3351 = scalar_lea.vmem [#allocation13], %s3350
        // Predicated region
        $region76: #{tpu_custom_call.1} parent=43 // pred_check
          %p3352 = pneg %p188
        $region77: #{tpu_custom_call.1} parent=43 // pred_check_branch
          %3354 = sbr.rel (%p3352) target = $region79
        $region78: #{tpu_custom_call.1} parent=43 // pred_region
          %s3355 = smul.u32 16, %s30
          %s3357 = ssub.s32 4096, 4096
          %3358 = vsyncadd %s3348, %s3357
          %s3359 = smul.addr %s3355, 2
          %s3360 = smul.addr %s29, 64
          %s3361 = sadd.s32 %s3359, %s3360
          %s3362 = smul.addr %s3361, 128
          %s3363 = scalar_lea.hbm %s6, %s3362
          %s3364 = sshll.u32 %s3351, 4
          %s3365 = int_to_ptr.vmem [resolvable:$true] %s3364
          %3370 = dma.vmem_to_hbm [thread:$0]  %s3365, 4096, %s3363, %s3348, 256, 256, 16
        $region79: #{tpu_custom_call.1} parent=43 // pred_fallthru
          _
      $region44: #{tpu_custom_call.1} parent=5 // pred_fallthru
        _
      %p3371 = scmp.le.s32.totalorder 2, %s20
      // Predicated region
      $region80: #{tpu_custom_call.1} parent=5 // pred_check
        %p3372 = pneg %p3371
      $region81: #{tpu_custom_call.1} parent=5 // pred_check_branch
        %3374 = sbr.rel (%p3372) target = $region83
      $region82: #{tpu_custom_call.1} parent=5 // pred_region
        %s3375 = ssub.s32 %s20, 2
        // Predicated region
        $region84: #{tpu_custom_call.1} parent=82 // pred_check
          %p3376 = pneg %p194
        $region85: #{tpu_custom_call.1} parent=82 // pred_check_branch
          %3378 = sbr.rel (%p3376) target = $region87
        $region86: #{tpu_custom_call.1} parent=82 // pred_region
          %s3379 = sand.u32 %s179, 1
          %s3380 = scalar_lea.sflag [#allocation6], %s3379
          %s3381 = sand.u32 %s179, 1
          %s3382 = smul.addr %s3381, 256
          %s3383 = scalar_lea.vmem [#allocation13], %s3382
          %3384 = dma.done %s3380, 4096
        $region87: #{tpu_custom_call.1} parent=82 // pred_fallthru
          _
      $region83: #{tpu_custom_call.1} parent=5 // pred_fallthru
        _
    $region6: #{tpu_custom_call.1} parent=1 // loop_footer
      %s24 = sadd.s32 1, %s20
    $region7: #{tpu_custom_call.1} parent=1 // loop_footer_branch
      %19 = sbr.rel target = $region3
    $region8: #{tpu_custom_call.1} parent=1 // loop_exit
      _
    %3385 = vsyncpa [#allocation5], 1
    %s3386 = scalar_lea.sflag [#allocation5], 1
    %3387 = vsyncpa %s3386, 1
    %3388 = vsyncpa [#allocation8], 1
    %3389 = vsyncpa [#allocation11], 1
    %3390 = vsyncpa [#allocation6], 1
    %s3391 = scalar_lea.sflag [#allocation6], 1
    %3392 = vsyncpa %s3391, 1

</llo_original>
